<compile_context>
chip_gen: v7x
topology: tpu7x:2x2x1
jax: 0.10.0
libtpu: 0.0.40
codegen_flags: <defaults>
</compile_context>

<pallas_src>
import numpy as np
import jax
import jax.numpy as jnp
from jax import lax
from jax.experimental import pallas as pl
from jax.experimental.pallas import tpu as pltpu

CIN_PAD = 8  # input channels (3) zero-padded to 8 sublanes for aligned im2col concat


# ----------------------------------------------------------------------------
# Pallas kernel
# ----------------------------------------------------------------------------
def make_msa_kernel(temperature, H, W):
    inv_t = 1.0 / float(temperature)
    HW = H * W
    HI = jax.lax.Precision.HIGHEST

    def kernel(x_ref, mask_ref,
               w1_ref, b1_ref, w2_ref, b2_ref, w3_ref, b3_ref,
               a1_ref, ba1_ref, a2_ref, ba2_ref, a3_ref, ba3_ref,
               af_ref, baf_ref, ws1_ref, ws2_ref, ws3_ref, bs_ref,
               coord_ref,
               feat_ref, pt_ref):
        x0 = x_ref[...]                                    # (8, HW) f32, channel-major

        def im2col(x):
            # 9 spatially-shifted copies of x stacked along the channel (sublane) axis.
            # Tap k=(ky,kx): value at flat position p is x[:, p + dy*W + dx] when the
            # source pixel is inside the image, else 0 (SAME zero padding).
            pieces = []
            for k in range(9):
                dy, dx = k // 3 - 1, k % 3 - 1
                off = dy * W + dx
                if off == 0:
                    pieces.append(x)
                else:
                    xk = pltpu.roll(x, (-off) % HW, 1)     # y[:, p] = x[:, p + off]
                    pieces.append(xk * mask_ref[k:k + 1, :])
            return jnp.concatenate(pieces, axis=0)         # (9*C, HW) f32

        def conv3x3(x, wm_ref, b_ref):
            # One fused im2col matmul per layer: (Cout, 9C) @ (9C, HW), bf16 in, f32 acc.
            xs = im2col(x).astype(jnp.bfloat16)
            return jnp.dot(wm_ref[...], xs,
                           preferred_element_type=jnp.float32) + b_ref[...]

        def lin(x, w_ref, b_ref):                          # tiny 1x1 convs (channel-major)
            return jnp.dot(w_ref[...], x, precision=HI,
                           preferred_element_type=jnp.float32) + b_ref[...]

        # encoder()  (LeakyReLU(True) -> slope 1.0 -> identity, omitted)
        feat1 = conv3x3(x0, w1_ref, b1_ref)                # (16, HW)
        feat2 = conv3x3(feat1, w2_ref, b2_ref)             # (32, HW)
        feat3 = conv3x3(feat2, w3_ref, b3_ref)             # (64, HW)

        aw1 = jax.nn.sigmoid(lin(feat1, a1_ref, ba1_ref))  # (A, HW)
        aw2 = jax.nn.sigmoid(lin(feat2, a2_ref, ba2_ref))
        aw3 = jax.nn.sigmoid(lin(feat3, a3_ref, ba3_ref))
        af = lin(x0, af_ref, baf_ref)                      # (A, HW)

        # 'concat' path: Ws @ cat([af*aw1, af*aw2, af*aw3]) == sum of three split matmuls
        # (kept split: A=4 pieces are below the 8-sublane tile, so an explicit concat
        #  would force a relayout for a negligible K=12 matmul).
        out = (jnp.dot(ws1_ref[...], af * aw1, precision=HI, preferred_element_type=jnp.float32)
               + jnp.dot(ws2_ref[...], af * aw2, precision=HI, preferred_element_type=jnp.float32)
               + jnp.dot(ws3_ref[...], af * aw3, precision=HI, preferred_element_type=jnp.float32)
               + bs_ref[...])                              # (A, HW)
        feat_ref[...] = out.astype(feat_ref.dtype)         # lane-dense store (A, 256)

        # get_attention_map(): softmax over H*W (lane axis) with temperature
        logits = out * inv_t
        m = jnp.max(logits, axis=1, keepdims=True)         # (A, 1) lane reduce
        e = jnp.exp(logits - m)
        s = jnp.sum(e, axis=1, keepdims=True)
        p = e * pl.reciprocal(s, approx=True)              # EUP reciprocal

        # get_pt(): expected (i, j) coordinates -> (A, 2)
        pt = jnp.dot(p, coord_ref[...], precision=HI, preferred_element_type=jnp.float32)
        pt_ref[...] = pt.astype(pt_ref.dtype)

    return kernel


# ----------------------------------------------------------------------------
# Wrapper
# ----------------------------------------------------------------------------
def msa_forward(img_nchw, params, temperature):
    B, Cin, H, W = img_nchw.shape
    HW = H * W
    A = params["bs"].shape[0]

    # NCHW -> channel-major flattened spatial (pure reshape), channels zero-padded to 8.
    x = img_nchw.reshape(B, Cin, HW).astype(jnp.float32)
    x = jnp.pad(x, ((0, 0), (0, CIN_PAD - Cin), (0, 0)))

    operands = (x, params["mask"],
                params["w1"], params["b1"], params["w2"], params["b2"],
                params["w3"], params["b3"],
                params["a1"], params["ba1"], params["a2"], params["ba2"],
                params["a3"], params["ba3"],
                params["af"], params["baf"],
                params["ws1"], params["ws2"], params["ws3"], params["bs"],
                params["coord"])

    def full_spec(arr):
        nd = arr.ndim
        return pl.BlockSpec(arr.shape, lambda b, _nd=nd: (0,) * _nd)

    in_specs = [pl.BlockSpec((None, CIN_PAD, HW), lambda b: (b, 0, 0))]
    in_specs += [full_spec(a) for a in operands[1:]]

    kernel = make_msa_kernel(temperature, H, W)
    feat_flat, pt = pl.pallas_call(
        kernel,
        out_shape=(jax.ShapeDtypeStruct((B, A, HW), jnp.float32),
                   jax.ShapeDtypeStruct((B, A, 2), jnp.float32)),
        grid=(B,),
        in_specs=in_specs,
        out_specs=(pl.BlockSpec((None, A, HW), lambda b: (b, 0, 0)),
                   pl.BlockSpec((None, A, 2), lambda b: (b, 0, 0))),
        compiler_params=pltpu.CompilerParams(dimension_semantics=("parallel",)),
    )(*operands)

    feat = feat_flat.reshape(B, A, H, W)      # already NCHW, matches PyTorch feat
    pt = pt.reshape(B, A * 2)                 # [i0, j0, i1, j1, ...]
    # TODO(synk): source forward() also threads `state` / returns `gate_weights`, but its
    # own encoder() neither accepts nor produces them (bug in the reference); returning
    # (feat, pt) only.
    return feat, pt


# ----------------------------------------------------------------------------
# Host-side constants (boundary masks, coordinate grid)
# ----------------------------------------------------------------------------
def build_tap_masks(H, W):
    m = np.zeros((9, H * W), np.float32)
    for k in range(9):
        dy, dx = k // 3 - 1, k % 3 - 1
        for h in range(H):
            for w in range(W):
                if 0 <= h + dy < H and 0 <= w + dx < W:
                    m[k, h * W + w] = 1.0
    return jnp.asarray(m)


def build_coord(img_h, img_w):
    i_lin = jnp.linspace(0.0, 1.0, img_h)
    j_lin = jnp.linspace(0.0, 1.0, img_w)
    ig, jg = jnp.meshgrid(i_lin, j_lin, indexing="ij")
    return jnp.stack([ig, jg], axis=-1).reshape(img_h * img_w, 2).astype(jnp.float32)


# ----------------------------------------------------------------------------
# Deterministic parameter construction (synthetic, BN folded in eval mode)
# ----------------------------------------------------------------------------
def init_params(att_num, key, cin_pad=CIN_PAD):
    eps = 1e-5
    keys = iter(jax.random.split(key, 40))

    def bn_fold(cout):
        k1, k2, k3, k4 = jax.random.split(next(keys), 4)
        gamma = 1.0 + 0.1 * jax.random.normal(k1, (cout,), jnp.float32)
        beta = 0.1 * jax.random.normal(k2, (cout,), jnp.float32)
        mean = 0.05 * jax.random.normal(k3, (cout,), jnp.float32)
        var = 1.0 + 0.1 * jax.random.uniform(k4, (cout,), jnp.float32)
        s = gamma / jnp.sqrt(var + eps)
        return s, beta - mean * s

    def conv3x3_p(cin, cout, cp):
        w = 0.1 * jax.random.normal(next(keys), (cout, cin, 3, 3), jnp.float32)   # OIHW
        b = 0.1 * jax.random.normal(next(keys), (cout,), jnp.float32)
        s, shift = bn_fold(cout)
        w_eff = w * s[:, None, None, None]
        b_eff = b * s + shift
        # im2col weight, channel-major: column index = tap*cp + cin_idx, tap = ky*3 + kx
        w9 = jnp.transpose(w_eff, (2, 3, 0, 1)).reshape(9, cout, cin)             # (9,Cout,Cin)
        w9 = jnp.pad(w9, ((0, 0), (0, 0), (0, cp - cin)))
        wm = jnp.transpose(w9, (1, 0, 2)).reshape(cout, 9 * cp).astype(jnp.bfloat16)
        return wm, b_eff.reshape(cout, 1), w_eff, b_eff

    def conv1x1_p(cin, cout, cp=None):
        cp = cin if cp is None else cp
        w = 0.1 * jax.random.normal(next(keys), (cout, cin, 1, 1), jnp.float32)   # bias=False
        s, shift = bn_fold(cout)
        w_eff = w * s[:, None, None, None]
        b_eff = shift
        wk = jnp.pad(w_eff[:, :, 0, 0], ((0, 0), (0, cp - cin)))                  # (Cout, cp)
        return wk, b_eff.reshape(cout, 1), w_eff, b_eff

    params, ref = {}, {}
    for name, (cin, cout, cp) in [("1", (3, 16, cin_pad)), ("2", (16, 32, 16)),
                                  ("3", (32, 64, 32))]:
        wm, bm, wo, bo = conv3x3_p(cin, cout, cp)
        params["w" + name], params["b" + name] = wm, bm
        ref["w" + name], ref["b" + name] = wo, bo
    for name, (cin, cout, cp) in [("a1", (16, att_num, 16)), ("a2", (32, att_num, 32)),
                                  ("a3", (64, att_num, 64)), ("af", (3, att_num, cin_pad))]:
        wk, bk, wo, bo = conv1x1_p(cin, cout, cp)
        params[name], params["b" + name] = wk, bk
        ref[name], ref["b" + name] = wo, bo
    wk, bk, wo, bo = conv1x1_p(att_num * 3, att_num)                              # sum_att
    params["ws1"] = wk[:, 0:att_num]
    params["ws2"] = wk[:, att_num:2 * att_num]
    params["ws3"] = wk[:, 2 * att_num:3 * att_num]
    params["bs"] = bk
    ref["ws"], ref["bs"] = wo, bo
    return params, ref


# ----------------------------------------------------------------------------
# Pure-JAX reference (same folded parameters) for verification
# ----------------------------------------------------------------------------
def reference_forward(img, ref, coord, temperature, att_num):
    def conv(x, w, b):
        y = lax.conv_general_dilated(
            x, w, (1, 1), "SAME",
            dimension_numbers=("NCHW", "OIHW", "NCHW"),
            precision=lax.Precision.HIGHEST)
        return y + b[None, :, None, None]

    # LeakyReLU(True): negative_slope = 1.0 -> identity
    feat1 = conv(img, ref["w1"], ref["b1"])
    feat2 = conv(feat1, ref["w2"], ref["b2"])
    feat3 = conv(feat2, ref["w3"], ref["b3"])
    aw1 = jax.nn.sigmoid(conv(feat1, ref["a1"], ref["ba1"]))
    aw2 = jax.nn.sigmoid(conv(feat2, ref["a2"], ref["ba2"]))
    aw3 = jax.nn.sigmoid(conv(feat3, ref["a3"], ref["ba3"]))
    af = conv(img, ref["af"], ref["baf"])
    cat = jnp.concatenate([af * aw1, af * aw2, af * aw3], axis=1)
    out = conv(cat, ref["ws"], ref["bs"])                              # (B, A, H, W)
    B = out.shape[0]
    att = jax.nn.softmax(out.reshape(B, att_num, -1) / temperature, axis=-1)
    pt = jnp.einsum("bah,hc->bac", att, coord).reshape(B, att_num * 2)
    return out, pt


# ----------------------------------------------------------------------------
if __name__ == "__main__":
    att_num, H, W = 4, 16, 16
    temperature = 0.1
    B = 2

    key = jax.random.PRNGKey(0)
    kp, kx = jax.random.split(key)
    params, ref_params = init_params(att_num, kp)
    params["mask"] = build_tap_masks(H, W)
    params["coord"] = build_coord(H, W)

    img = jax.random.normal(kx, (B, 3, H, W), jnp.float32)

    feat, pt = msa_forward(img, params, temperature)
    jax.block_until_ready((feat, pt))

    feat_r, pt_r = reference_forward(img, ref_params, params["coord"], temperature, att_num)

    assert feat.shape == (B, att_num, H, W)
    assert pt.shape == (B, att_num * 2)
    np.testing.assert_allclose(np.asarray(feat), np.asarray(feat_r), atol=2e-2, rtol=2e-2)
    np.testing.assert_allclose(np.asarray(pt), np.asarray(pt_r), atol=2e-2, rtol=2e-2)

    print("KERNEL_OK")
</pallas_src>

<mosaic_0001>
module attributes {stable_mosaic.version = 11 : i64} {
  func.func @kernel(%arg0: i32, %arg1: memref<1x8x256xf32, #tpu.memory_space<vmem>>, %arg2: memref<9x256xf32, #tpu.memory_space<vmem>>, %arg3: memref<16x72xbf16, #tpu.memory_space<vmem>>, %arg4: memref<16x1xf32, #tpu.memory_space<vmem>>, %arg5: memref<32x144xbf16, #tpu.memory_space<vmem>>, %arg6: memref<32x1xf32, #tpu.memory_space<vmem>>, %arg7: memref<64x288xbf16, #tpu.memory_space<vmem>>, %arg8: memref<64x1xf32, #tpu.memory_space<vmem>>, %arg9: memref<4x16xf32, #tpu.memory_space<vmem>>, %arg10: memref<4x1xf32, #tpu.memory_space<vmem>>, %arg11: memref<4x32xf32, #tpu.memory_space<vmem>>, %arg12: memref<4x1xf32, #tpu.memory_space<vmem>>, %arg13: memref<4x64xf32, #tpu.memory_space<vmem>>, %arg14: memref<4x1xf32, #tpu.memory_space<vmem>>, %arg15: memref<4x8xf32, #tpu.memory_space<vmem>>, %arg16: memref<4x1xf32, #tpu.memory_space<vmem>>, %arg17: memref<4x4xf32, #tpu.memory_space<vmem>>, %arg18: memref<4x4xf32, #tpu.memory_space<vmem>>, %arg19: memref<4x4xf32, #tpu.memory_space<vmem>>, %arg20: memref<4x1xf32, #tpu.memory_space<vmem>>, %arg21: memref<256x2xf32, #tpu.memory_space<vmem>>, %arg22: memref<1x4x256xf32, #tpu.memory_space<vmem>>, %arg23: memref<1x4x2xf32, #tpu.memory_space<vmem>>) attributes {dimension_semantics = [#tpu.dimension_semantics<parallel>], iteration_bounds = array<i64: 2>, scalar_prefetch = 0 : i64, scratch_operands = 0 : i64, tpu.core_type = #tpu.core_type<tc>, window_params = [{transform_indices = @transform_0, window_bounds = array<i64: 1, 8, 256>}, {pipeline_mode = #tpu.pipeline_mode<synchronous>, transform_indices = @transform_1, window_bounds = array<i64: 9, 256>}, {pipeline_mode = #tpu.pipeline_mode<synchronous>, transform_indices = @transform_2, window_bounds = array<i64: 16, 72>}, {pipeline_mode = #tpu.pipeline_mode<synchronous>, transform_indices = @transform_3, window_bounds = array<i64: 16, 1>}, {pipeline_mode = #tpu.pipeline_mode<synchronous>, transform_indices = @transform_4, window_bounds = array<i64: 32, 144>}, {pipeline_mode = #tpu.pipeline_mode<synchronous>, transform_indices = @transform_5, window_bounds = array<i64: 32, 1>}, {pipeline_mode = #tpu.pipeline_mode<synchronous>, transform_indices = @transform_6, window_bounds = array<i64: 64, 288>}, {pipeline_mode = #tpu.pipeline_mode<synchronous>, transform_indices = @transform_7, window_bounds = array<i64: 64, 1>}, {pipeline_mode = #tpu.pipeline_mode<synchronous>, transform_indices = @transform_8, window_bounds = array<i64: 4, 16>}, {pipeline_mode = #tpu.pipeline_mode<synchronous>, transform_indices = @transform_9, window_bounds = array<i64: 4, 1>}, {pipeline_mode = #tpu.pipeline_mode<synchronous>, transform_indices = @transform_10, window_bounds = array<i64: 4, 32>}, {pipeline_mode = #tpu.pipeline_mode<synchronous>, transform_indices = @transform_11, window_bounds = array<i64: 4, 1>}, {pipeline_mode = #tpu.pipeline_mode<synchronous>, transform_indices = @transform_12, window_bounds = array<i64: 4, 64>}, {pipeline_mode = #tpu.pipeline_mode<synchronous>, transform_indices = @transform_13, window_bounds = array<i64: 4, 1>}, {pipeline_mode = #tpu.pipeline_mode<synchronous>, transform_indices = @transform_14, window_bounds = array<i64: 4, 8>}, {pipeline_mode = #tpu.pipeline_mode<synchronous>, transform_indices = @transform_15, window_bounds = array<i64: 4, 1>}, {pipeline_mode = #tpu.pipeline_mode<synchronous>, transform_indices = @transform_16, window_bounds = array<i64: 4, 4>}, {pipeline_mode = #tpu.pipeline_mode<synchronous>, transform_indices = @transform_17, window_bounds = array<i64: 4, 4>}, {pipeline_mode = #tpu.pipeline_mode<synchronous>, transform_indices = @transform_18, window_bounds = array<i64: 4, 4>}, {pipeline_mode = #tpu.pipeline_mode<synchronous>, transform_indices = @transform_19, window_bounds = array<i64: 4, 1>}, {pipeline_mode = #tpu.pipeline_mode<synchronous>, transform_indices = @transform_20, window_bounds = array<i64: 256, 2>}, {transform_indices = @transform_21, window_bounds = array<i64: 1, 4, 256>}, {transform_indices = @transform_22, window_bounds = array<i64: 1, 4, 2>}]} {
    %c0 = arith.constant 0 : index
    %c0_0 = arith.constant 0 : index
    %c0_1 = arith.constant 0 : index
    %0 = vector.load %arg1[%c0, %c0_0, %c0_1] : memref<1x8x256xf32, #tpu.memory_space<vmem>>, vector<1x8x256xf32>
    %1 = vector.shape_cast %0 : vector<1x8x256xf32> to vector<8x256xf32>
    %c17_i32 = arith.constant 17 : i32
    %2 = tpu.dynamic_rotate %1 by %c17_i32 dim 1 : vector<8x256xf32>, i32 -> vector<8x256xf32>
    %c0_2 = arith.constant 0 : index
    %c0_3 = arith.constant 0 : index
    %3 = vector.load %arg2[%c0_2, %c0_3] : memref<9x256xf32, #tpu.memory_space<vmem>>, vector<1x256xf32>
    %4 = vector.broadcast %3 : vector<1x256xf32> to vector<8x256xf32>
    %5 = arith.mulf %2, %4 : vector<8x256xf32>
    %c16_i32 = arith.constant 16 : i32
    %6 = tpu.dynamic_rotate %1 by %c16_i32 dim 1 : vector<8x256xf32>, i32 -> vector<8x256xf32>
    %c1 = arith.constant 1 : index
    %c0_4 = arith.constant 0 : index
    %7 = vector.load %arg2[%c1, %c0_4] : memref<9x256xf32, #tpu.memory_space<vmem>>, vector<1x256xf32>
    %8 = vector.broadcast %7 : vector<1x256xf32> to vector<8x256xf32>
    %9 = arith.mulf %6, %8 : vector<8x256xf32>
    %c15_i32 = arith.constant 15 : i32
    %10 = tpu.dynamic_rotate %1 by %c15_i32 dim 1 : vector<8x256xf32>, i32 -> vector<8x256xf32>
    %c2 = arith.constant 2 : index
    %c0_5 = arith.constant 0 : index
    %11 = vector.load %arg2[%c2, %c0_5] : memref<9x256xf32, #tpu.memory_space<vmem>>, vector<1x256xf32>
    %12 = vector.broadcast %11 : vector<1x256xf32> to vector<8x256xf32>
    %13 = arith.mulf %10, %12 : vector<8x256xf32>
    %c1_i32 = arith.constant 1 : i32
    %14 = tpu.dynamic_rotate %1 by %c1_i32 dim 1 : vector<8x256xf32>, i32 -> vector<8x256xf32>
    %c3 = arith.constant 3 : index
    %c0_6 = arith.constant 0 : index
    %15 = vector.load %arg2[%c3, %c0_6] : memref<9x256xf32, #tpu.memory_space<vmem>>, vector<1x256xf32>
    %16 = vector.broadcast %15 : vector<1x256xf32> to vector<8x256xf32>
    %17 = arith.mulf %14, %16 : vector<8x256xf32>
    %c255_i32 = arith.constant 255 : i32
    %18 = tpu.dynamic_rotate %1 by %c255_i32 dim 1 : vector<8x256xf32>, i32 -> vector<8x256xf32>
    %c5 = arith.constant 5 : index
    %c0_7 = arith.constant 0 : index
    %19 = vector.load %arg2[%c5, %c0_7] : memref<9x256xf32, #tpu.memory_space<vmem>>, vector<1x256xf32>
    %20 = vector.broadcast %19 : vector<1x256xf32> to vector<8x256xf32>
    %21 = arith.mulf %18, %20 : vector<8x256xf32>
    %c241_i32 = arith.constant 241 : i32
    %22 = tpu.dynamic_rotate %1 by %c241_i32 dim 1 : vector<8x256xf32>, i32 -> vector<8x256xf32>
    %c6 = arith.constant 6 : index
    %c0_8 = arith.constant 0 : index
    %23 = vector.load %arg2[%c6, %c0_8] : memref<9x256xf32, #tpu.memory_space<vmem>>, vector<1x256xf32>
    %24 = vector.broadcast %23 : vector<1x256xf32> to vector<8x256xf32>
    %25 = arith.mulf %22, %24 : vector<8x256xf32>
    %c240_i32 = arith.constant 240 : i32
    %26 = tpu.dynamic_rotate %1 by %c240_i32 dim 1 : vector<8x256xf32>, i32 -> vector<8x256xf32>
    %c7 = arith.constant 7 : index
    %c0_9 = arith.constant 0 : index
    %27 = vector.load %arg2[%c7, %c0_9] : memref<9x256xf32, #tpu.memory_space<vmem>>, vector<1x256xf32>
    %28 = vector.broadcast %27 : vector<1x256xf32> to vector<8x256xf32>
    %29 = arith.mulf %26, %28 : vector<8x256xf32>
    %c239_i32 = arith.constant 239 : i32
    %30 = tpu.dynamic_rotate %1 by %c239_i32 dim 1 : vector<8x256xf32>, i32 -> vector<8x256xf32>
    %c8 = arith.constant 8 : index
    %c0_10 = arith.constant 0 : index
    %31 = vector.load %arg2[%c8, %c0_10] : memref<9x256xf32, #tpu.memory_space<vmem>>, vector<1x256xf32>
    %32 = vector.broadcast %31 : vector<1x256xf32> to vector<8x256xf32>
    %33 = arith.mulf %30, %32 : vector<8x256xf32>
    %34 = tpu.concatenate %5, %9, %13, %17, %1, %21, %25, %29, %33 in 0 : vector<8x256xf32>, vector<8x256xf32>, vector<8x256xf32>, vector<8x256xf32>, vector<8x256xf32>, vector<8x256xf32>, vector<8x256xf32>, vector<8x256xf32>, vector<8x256xf32> -> vector<72x256xf32>
    %35 = arith.truncf %34 : vector<72x256xf32> to vector<72x256xbf16>
    %c0_11 = arith.constant 0 : index
    %c0_12 = arith.constant 0 : index
    %36 = vector.load %arg3[%c0_11, %c0_12] : memref<16x72xbf16, #tpu.memory_space<vmem>>, vector<16x72xbf16>
    %cst = arith.constant dense<0.000000e+00> : vector<16x256xf32>
    %37 = tpu.matmul %36, %35, %cst {dimension_numbers = #tpu.dot_dimension_numbers<[1], [0], [0], [1], [0, 0, 1, 1], [], []>} : vector<16x72xbf16>, vector<72x256xbf16>, vector<16x256xf32> -> vector<16x256xf32>
    %c0_13 = arith.constant 0 : index
    %c0_14 = arith.constant 0 : index
    %38 = vector.load %arg4[%c0_13, %c0_14] : memref<16x1xf32, #tpu.memory_space<vmem>>, vector<16x1xf32>
    %39 = vector.broadcast %38 : vector<16x1xf32> to vector<16x256xf32>
    %40 = arith.addf %37, %39 : vector<16x256xf32>
    %c17_i32_15 = arith.constant 17 : i32
    %41 = tpu.dynamic_rotate %40 by %c17_i32_15 dim 1 : vector<16x256xf32>, i32 -> vector<16x256xf32>
    %c0_16 = arith.constant 0 : index
    %c0_17 = arith.constant 0 : index
    %42 = vector.load %arg2[%c0_16, %c0_17] : memref<9x256xf32, #tpu.memory_space<vmem>>, vector<1x256xf32>
    %43 = vector.broadcast %42 : vector<1x256xf32> to vector<16x256xf32>
    %44 = arith.mulf %41, %43 : vector<16x256xf32>
    %c16_i32_18 = arith.constant 16 : i32
    %45 = tpu.dynamic_rotate %40 by %c16_i32_18 dim 1 : vector<16x256xf32>, i32 -> vector<16x256xf32>
    %c1_19 = arith.constant 1 : index
    %c0_20 = arith.constant 0 : index
    %46 = vector.load %arg2[%c1_19, %c0_20] : memref<9x256xf32, #tpu.memory_space<vmem>>, vector<1x256xf32>
    %47 = vector.broadcast %46 : vector<1x256xf32> to vector<16x256xf32>
    %48 = arith.mulf %45, %47 : vector<16x256xf32>
    %c15_i32_21 = arith.constant 15 : i32
    %49 = tpu.dynamic_rotate %40 by %c15_i32_21 dim 1 : vector<16x256xf32>, i32 -> vector<16x256xf32>
    %c2_22 = arith.constant 2 : index
    %c0_23 = arith.constant 0 : index
    %50 = vector.load %arg2[%c2_22, %c0_23] : memref<9x256xf32, #tpu.memory_space<vmem>>, vector<1x256xf32>
    %51 = vector.broadcast %50 : vector<1x256xf32> to vector<16x256xf32>
    %52 = arith.mulf %49, %51 : vector<16x256xf32>
    %c1_i32_24 = arith.constant 1 : i32
    %53 = tpu.dynamic_rotate %40 by %c1_i32_24 dim 1 : vector<16x256xf32>, i32 -> vector<16x256xf32>
    %c3_25 = arith.constant 3 : index
    %c0_26 = arith.constant 0 : index
    %54 = vector.load %arg2[%c3_25, %c0_26] : memref<9x256xf32, #tpu.memory_space<vmem>>, vector<1x256xf32>
    %55 = vector.broadcast %54 : vector<1x256xf32> to vector<16x256xf32>
    %56 = arith.mulf %53, %55 : vector<16x256xf32>
    %c255_i32_27 = arith.constant 255 : i32
    %57 = tpu.dynamic_rotate %40 by %c255_i32_27 dim 1 : vector<16x256xf32>, i32 -> vector<16x256xf32>
    %c5_28 = arith.constant 5 : index
    %c0_29 = arith.constant 0 : index
    %58 = vector.load %arg2[%c5_28, %c0_29] : memref<9x256xf32, #tpu.memory_space<vmem>>, vector<1x256xf32>
    %59 = vector.broadcast %58 : vector<1x256xf32> to vector<16x256xf32>
    %60 = arith.mulf %57, %59 : vector<16x256xf32>
    %c241_i32_30 = arith.constant 241 : i32
    %61 = tpu.dynamic_rotate %40 by %c241_i32_30 dim 1 : vector<16x256xf32>, i32 -> vector<16x256xf32>
    %c6_31 = arith.constant 6 : index
    %c0_32 = arith.constant 0 : index
    %62 = vector.load %arg2[%c6_31, %c0_32] : memref<9x256xf32, #tpu.memory_space<vmem>>, vector<1x256xf32>
    %63 = vector.broadcast %62 : vector<1x256xf32> to vector<16x256xf32>
    %64 = arith.mulf %61, %63 : vector<16x256xf32>
    %c240_i32_33 = arith.constant 240 : i32
    %65 = tpu.dynamic_rotate %40 by %c240_i32_33 dim 1 : vector<16x256xf32>, i32 -> vector<16x256xf32>
    %c7_34 = arith.constant 7 : index
    %c0_35 = arith.constant 0 : index
    %66 = vector.load %arg2[%c7_34, %c0_35] : memref<9x256xf32, #tpu.memory_space<vmem>>, vector<1x256xf32>
    %67 = vector.broadcast %66 : vector<1x256xf32> to vector<16x256xf32>
    %68 = arith.mulf %65, %67 : vector<16x256xf32>
    %c239_i32_36 = arith.constant 239 : i32
    %69 = tpu.dynamic_rotate %40 by %c239_i32_36 dim 1 : vector<16x256xf32>, i32 -> vector<16x256xf32>
    %c8_37 = arith.constant 8 : index
    %c0_38 = arith.constant 0 : index
    %70 = vector.load %arg2[%c8_37, %c0_38] : memref<9x256xf32, #tpu.memory_space<vmem>>, vector<1x256xf32>
    %71 = vector.broadcast %70 : vector<1x256xf32> to vector<16x256xf32>
    %72 = arith.mulf %69, %71 : vector<16x256xf32>
    %73 = tpu.concatenate %44, %48, %52, %56, %40, %60, %64, %68, %72 in 0 : vector<16x256xf32>, vector<16x256xf32>, vector<16x256xf32>, vector<16x256xf32>, vector<16x256xf32>, vector<16x256xf32>, vector<16x256xf32>, vector<16x256xf32>, vector<16x256xf32> -> vector<144x256xf32>
    %74 = arith.truncf %73 : vector<144x256xf32> to vector<144x256xbf16>
    %c0_39 = arith.constant 0 : index
    %c0_40 = arith.constant 0 : index
    %75 = vector.load %arg5[%c0_39, %c0_40] : memref<32x144xbf16, #tpu.memory_space<vmem>>, vector<32x144xbf16>
    %cst_41 = arith.constant dense<0.000000e+00> : vector<32x256xf32>
    %76 = tpu.matmul %75, %74, %cst_41 {dimension_numbers = #tpu.dot_dimension_numbers<[1], [0], [0], [1], [0, 0, 1, 1], [], []>} : vector<32x144xbf16>, vector<144x256xbf16>, vector<32x256xf32> -> vector<32x256xf32>
    %c0_42 = arith.constant 0 : index
    %c0_43 = arith.constant 0 : index
    %77 = vector.load %arg6[%c0_42, %c0_43] : memref<32x1xf32, #tpu.memory_space<vmem>>, vector<32x1xf32>
    %78 = vector.broadcast %77 : vector<32x1xf32> to vector<32x256xf32>
    %79 = arith.addf %76, %78 : vector<32x256xf32>
    %c17_i32_44 = arith.constant 17 : i32
    %80 = tpu.dynamic_rotate %79 by %c17_i32_44 dim 1 : vector<32x256xf32>, i32 -> vector<32x256xf32>
    %c0_45 = arith.constant 0 : index
    %c0_46 = arith.constant 0 : index
    %81 = vector.load %arg2[%c0_45, %c0_46] : memref<9x256xf32, #tpu.memory_space<vmem>>, vector<1x256xf32>
    %82 = vector.broadcast %81 : vector<1x256xf32> to vector<32x256xf32>
    %83 = arith.mulf %80, %82 : vector<32x256xf32>
    %c16_i32_47 = arith.constant 16 : i32
    %84 = tpu.dynamic_rotate %79 by %c16_i32_47 dim 1 : vector<32x256xf32>, i32 -> vector<32x256xf32>
    %c1_48 = arith.constant 1 : index
    %c0_49 = arith.constant 0 : index
    %85 = vector.load %arg2[%c1_48, %c0_49] : memref<9x256xf32, #tpu.memory_space<vmem>>, vector<1x256xf32>
    %86 = vector.broadcast %85 : vector<1x256xf32> to vector<32x256xf32>
    %87 = arith.mulf %84, %86 : vector<32x256xf32>
    %c15_i32_50 = arith.constant 15 : i32
    %88 = tpu.dynamic_rotate %79 by %c15_i32_50 dim 1 : vector<32x256xf32>, i32 -> vector<32x256xf32>
    %c2_51 = arith.constant 2 : index
    %c0_52 = arith.constant 0 : index
    %89 = vector.load %arg2[%c2_51, %c0_52] : memref<9x256xf32, #tpu.memory_space<vmem>>, vector<1x256xf32>
    %90 = vector.broadcast %89 : vector<1x256xf32> to vector<32x256xf32>
    %91 = arith.mulf %88, %90 : vector<32x256xf32>
    %c1_i32_53 = arith.constant 1 : i32
    %92 = tpu.dynamic_rotate %79 by %c1_i32_53 dim 1 : vector<32x256xf32>, i32 -> vector<32x256xf32>
    %c3_54 = arith.constant 3 : index
    %c0_55 = arith.constant 0 : index
    %93 = vector.load %arg2[%c3_54, %c0_55] : memref<9x256xf32, #tpu.memory_space<vmem>>, vector<1x256xf32>
    %94 = vector.broadcast %93 : vector<1x256xf32> to vector<32x256xf32>
    %95 = arith.mulf %92, %94 : vector<32x256xf32>
    %c255_i32_56 = arith.constant 255 : i32
    %96 = tpu.dynamic_rotate %79 by %c255_i32_56 dim 1 : vector<32x256xf32>, i32 -> vector<32x256xf32>
    %c5_57 = arith.constant 5 : index
    %c0_58 = arith.constant 0 : index
    %97 = vector.load %arg2[%c5_57, %c0_58] : memref<9x256xf32, #tpu.memory_space<vmem>>, vector<1x256xf32>
    %98 = vector.broadcast %97 : vector<1x256xf32> to vector<32x256xf32>
    %99 = arith.mulf %96, %98 : vector<32x256xf32>
    %c241_i32_59 = arith.constant 241 : i32
    %100 = tpu.dynamic_rotate %79 by %c241_i32_59 dim 1 : vector<32x256xf32>, i32 -> vector<32x256xf32>
    %c6_60 = arith.constant 6 : index
    %c0_61 = arith.constant 0 : index
    %101 = vector.load %arg2[%c6_60, %c0_61] : memref<9x256xf32, #tpu.memory_space<vmem>>, vector<1x256xf32>
    %102 = vector.broadcast %101 : vector<1x256xf32> to vector<32x256xf32>
    %103 = arith.mulf %100, %102 : vector<32x256xf32>
    %c240_i32_62 = arith.constant 240 : i32
    %104 = tpu.dynamic_rotate %79 by %c240_i32_62 dim 1 : vector<32x256xf32>, i32 -> vector<32x256xf32>
    %c7_63 = arith.constant 7 : index
    %c0_64 = arith.constant 0 : index
    %105 = vector.load %arg2[%c7_63, %c0_64] : memref<9x256xf32, #tpu.memory_space<vmem>>, vector<1x256xf32>
    %106 = vector.broadcast %105 : vector<1x256xf32> to vector<32x256xf32>
    %107 = arith.mulf %104, %106 : vector<32x256xf32>
    %c239_i32_65 = arith.constant 239 : i32
    %108 = tpu.dynamic_rotate %79 by %c239_i32_65 dim 1 : vector<32x256xf32>, i32 -> vector<32x256xf32>
    %c8_66 = arith.constant 8 : index
    %c0_67 = arith.constant 0 : index
    %109 = vector.load %arg2[%c8_66, %c0_67] : memref<9x256xf32, #tpu.memory_space<vmem>>, vector<1x256xf32>
    %110 = vector.broadcast %109 : vector<1x256xf32> to vector<32x256xf32>
    %111 = arith.mulf %108, %110 : vector<32x256xf32>
    %112 = tpu.concatenate %83, %87, %91, %95, %79, %99, %103, %107, %111 in 0 : vector<32x256xf32>, vector<32x256xf32>, vector<32x256xf32>, vector<32x256xf32>, vector<32x256xf32>, vector<32x256xf32>, vector<32x256xf32>, vector<32x256xf32>, vector<32x256xf32> -> vector<288x256xf32>
    %113 = arith.truncf %112 : vector<288x256xf32> to vector<288x256xbf16>
    %c0_68 = arith.constant 0 : index
    %c0_69 = arith.constant 0 : index
    %114 = vector.load %arg7[%c0_68, %c0_69] : memref<64x288xbf16, #tpu.memory_space<vmem>>, vector<64x288xbf16>
    %cst_70 = arith.constant dense<0.000000e+00> : vector<64x256xf32>
    %115 = tpu.matmul %114, %113, %cst_70 {dimension_numbers = #tpu.dot_dimension_numbers<[1], [0], [0], [1], [0, 0, 1, 1], [], []>} : vector<64x288xbf16>, vector<288x256xbf16>, vector<64x256xf32> -> vector<64x256xf32>
    %c0_71 = arith.constant 0 : index
    %c0_72 = arith.constant 0 : index
    %116 = vector.load %arg8[%c0_71, %c0_72] : memref<64x1xf32, #tpu.memory_space<vmem>>, vector<64x1xf32>
    %117 = vector.broadcast %116 : vector<64x1xf32> to vector<64x256xf32>
    %118 = arith.addf %115, %117 : vector<64x256xf32>
    %c0_73 = arith.constant 0 : index
    %c0_74 = arith.constant 0 : index
    %119 = vector.load %arg9[%c0_73, %c0_74] : memref<4x16xf32, #tpu.memory_space<vmem>>, vector<4x16xf32>
    %cst_75 = arith.constant dense<0.000000e+00> : vector<4x256xf32>
    %120 = tpu.matmul %119, %40, %cst_75 {dimension_numbers = #tpu.dot_dimension_numbers<[1], [0], [0], [1], [0, 0, 1, 1], [], []>, precision = #tpu.contract_precision<fp32>} : vector<4x16xf32>, vector<16x256xf32>, vector<4x256xf32> -> vector<4x256xf32>
    %c0_76 = arith.constant 0 : index
    %c0_77 = arith.constant 0 : index
    %121 = vector.load %arg10[%c0_76, %c0_77] : memref<4x1xf32, #tpu.memory_space<vmem>>, vector<4x1xf32>
    %122 = vector.broadcast %121 : vector<4x1xf32> to vector<4x256xf32>
    %123 = arith.addf %120, %122 : vector<4x256xf32>
    %124 = arith.negf %123 : vector<4x256xf32>
    %125 = math.exp %124 : vector<4x256xf32>
    %cst_78 = arith.constant 1.000000e+00 : f32
    %126 = vector.broadcast %cst_78 : f32 to vector<4x256xf32>
    %127 = arith.addf %126, %125 : vector<4x256xf32>
    %128 = arith.divf %126, %127 : vector<4x256xf32>
    %c0_79 = arith.constant 0 : index
    %c0_80 = arith.constant 0 : index
    %129 = vector.load %arg11[%c0_79, %c0_80] : memref<4x32xf32, #tpu.memory_space<vmem>>, vector<4x32xf32>
    %cst_81 = arith.constant dense<0.000000e+00> : vector<4x256xf32>
    %130 = tpu.matmul %129, %79, %cst_81 {dimension_numbers = #tpu.dot_dimension_numbers<[1], [0], [0], [1], [0, 0, 1, 1], [], []>, precision = #tpu.contract_precision<fp32>} : vector<4x32xf32>, vector<32x256xf32>, vector<4x256xf32> -> vector<4x256xf32>
    %c0_82 = arith.constant 0 : index
    %c0_83 = arith.constant 0 : index
    %131 = vector.load %arg12[%c0_82, %c0_83] : memref<4x1xf32, #tpu.memory_space<vmem>>, vector<4x1xf32>
    %132 = vector.broadcast %131 : vector<4x1xf32> to vector<4x256xf32>
    %133 = arith.addf %130, %132 : vector<4x256xf32>
    %134 = arith.negf %133 : vector<4x256xf32>
    %135 = math.exp %134 : vector<4x256xf32>
    %cst_84 = arith.constant 1.000000e+00 : f32
    %136 = vector.broadcast %cst_84 : f32 to vector<4x256xf32>
    %137 = arith.addf %136, %135 : vector<4x256xf32>
    %138 = arith.divf %136, %137 : vector<4x256xf32>
    %c0_85 = arith.constant 0 : index
    %c0_86 = arith.constant 0 : index
    %139 = vector.load %arg13[%c0_85, %c0_86] : memref<4x64xf32, #tpu.memory_space<vmem>>, vector<4x64xf32>
    %cst_87 = arith.constant dense<0.000000e+00> : vector<4x256xf32>
    %140 = tpu.matmul %139, %118, %cst_87 {dimension_numbers = #tpu.dot_dimension_numbers<[1], [0], [0], [1], [0, 0, 1, 1], [], []>, precision = #tpu.contract_precision<fp32>} : vector<4x64xf32>, vector<64x256xf32>, vector<4x256xf32> -> vector<4x256xf32>
    %c0_88 = arith.constant 0 : index
    %c0_89 = arith.constant 0 : index
    %141 = vector.load %arg14[%c0_88, %c0_89] : memref<4x1xf32, #tpu.memory_space<vmem>>, vector<4x1xf32>
    %142 = vector.broadcast %141 : vector<4x1xf32> to vector<4x256xf32>
    %143 = arith.addf %140, %142 : vector<4x256xf32>
    %144 = arith.negf %143 : vector<4x256xf32>
    %145 = math.exp %144 : vector<4x256xf32>
    %cst_90 = arith.constant 1.000000e+00 : f32
    %146 = vector.broadcast %cst_90 : f32 to vector<4x256xf32>
    %147 = arith.addf %146, %145 : vector<4x256xf32>
    %148 = arith.divf %146, %147 : vector<4x256xf32>
    %c0_91 = arith.constant 0 : index
    %c0_92 = arith.constant 0 : index
    %149 = vector.load %arg15[%c0_91, %c0_92] : memref<4x8xf32, #tpu.memory_space<vmem>>, vector<4x8xf32>
    %cst_93 = arith.constant dense<0.000000e+00> : vector<4x256xf32>
    %150 = tpu.matmul %149, %1, %cst_93 {dimension_numbers = #tpu.dot_dimension_numbers<[1], [0], [0], [1], [0, 0, 1, 1], [], []>, precision = #tpu.contract_precision<fp32>} : vector<4x8xf32>, vector<8x256xf32>, vector<4x256xf32> -> vector<4x256xf32>
    %c0_94 = arith.constant 0 : index
    %c0_95 = arith.constant 0 : index
    %151 = vector.load %arg16[%c0_94, %c0_95] : memref<4x1xf32, #tpu.memory_space<vmem>>, vector<4x1xf32>
    %152 = vector.broadcast %151 : vector<4x1xf32> to vector<4x256xf32>
    %153 = arith.addf %150, %152 : vector<4x256xf32>
    %c0_96 = arith.constant 0 : index
    %c0_97 = arith.constant 0 : index
    %154 = vector.load %arg17[%c0_96, %c0_97] : memref<4x4xf32, #tpu.memory_space<vmem>>, vector<4x4xf32>
    %155 = arith.mulf %153, %128 : vector<4x256xf32>
    %cst_98 = arith.constant dense<0.000000e+00> : vector<4x256xf32>
    %156 = tpu.matmul %154, %155, %cst_98 {dimension_numbers = #tpu.dot_dimension_numbers<[1], [0], [0], [1], [0, 0, 1, 1], [], []>, precision = #tpu.contract_precision<fp32>} : vector<4x4xf32>, vector<4x256xf32>, vector<4x256xf32> -> vector<4x256xf32>
    %c0_99 = arith.constant 0 : index
    %c0_100 = arith.constant 0 : index
    %157 = vector.load %arg18[%c0_99, %c0_100] : memref<4x4xf32, #tpu.memory_space<vmem>>, vector<4x4xf32>
    %158 = arith.mulf %153, %138 : vector<4x256xf32>
    %cst_101 = arith.constant dense<0.000000e+00> : vector<4x256xf32>
    %159 = tpu.matmul %157, %158, %cst_101 {dimension_numbers = #tpu.dot_dimension_numbers<[1], [0], [0], [1], [0, 0, 1, 1], [], []>, precision = #tpu.contract_precision<fp32>} : vector<4x4xf32>, vector<4x256xf32>, vector<4x256xf32> -> vector<4x256xf32>
    %160 = arith.addf %156, %159 : vector<4x256xf32>
    %c0_102 = arith.constant 0 : index
    %c0_103 = arith.constant 0 : index
    %161 = vector.load %arg19[%c0_102, %c0_103] : memref<4x4xf32, #tpu.memory_space<vmem>>, vector<4x4xf32>
    %162 = arith.mulf %153, %148 : vector<4x256xf32>
    %cst_104 = arith.constant dense<0.000000e+00> : vector<4x256xf32>
    %163 = tpu.matmul %161, %162, %cst_104 {dimension_numbers = #tpu.dot_dimension_numbers<[1], [0], [0], [1], [0, 0, 1, 1], [], []>, precision = #tpu.contract_precision<fp32>} : vector<4x4xf32>, vector<4x256xf32>, vector<4x256xf32> -> vector<4x256xf32>
    %164 = arith.addf %160, %163 : vector<4x256xf32>
    %c0_105 = arith.constant 0 : index
    %c0_106 = arith.constant 0 : index
    %165 = vector.load %arg20[%c0_105, %c0_106] : memref<4x1xf32, #tpu.memory_space<vmem>>, vector<4x1xf32>
    %166 = vector.broadcast %165 : vector<4x1xf32> to vector<4x256xf32>
    %167 = arith.addf %164, %166 : vector<4x256xf32>
    %c0_107 = arith.constant 0 : index
    %c0_108 = arith.constant 0 : index
    %c0_109 = arith.constant 0 : index
    %168 = vector.load %arg22[%c0_107, %c0_108, %c0_109] : memref<1x4x256xf32, #tpu.memory_space<vmem>>, vector<1x4x256xf32>
    %169 = vector.shape_cast %168 : vector<1x4x256xf32> to vector<4x256xf32>
    %170 = vector.shape_cast %167 : vector<4x256xf32> to vector<1x4x256xf32>
    tpu.vector_store %arg22[%c0_107, %c0_108, %c0_109], %170 {strides = array<i32>} : memref<1x4x256xf32, #tpu.memory_space<vmem>>, vector<1x4x256xf32>,
    %cst_110 = arith.constant 1.000000e+01 : f32
    %171 = vector.broadcast %cst_110 : f32 to vector<4x256xf32>
    %172 = arith.mulf %167, %171 : vector<4x256xf32>
    %cst_111 = arith.constant dense<0xFF800000> : vector<4xf32>
    %173 = vector.multi_reduction <maximumf>, %172, %cst_111 [1] : vector<4x256xf32> to vector<4xf32>
    %174 = vector.shape_cast %173 : vector<4xf32> to vector<4x1xf32>
    %175 = vector.broadcast %174 : vector<4x1xf32> to vector<4x256xf32>
    %176 = arith.subf %172, %175 : vector<4x256xf32>
    %177 = math.exp %176 : vector<4x256xf32>
    %cst_112 = arith.constant dense<0.000000e+00> : vector<4xf32>
    %178 = vector.multi_reduction <add>, %177, %cst_112 [1] : vector<4x256xf32> to vector<4xf32>
    %179 = vector.shape_cast %178 : vector<4xf32> to vector<4x1xf32>
    %180 = tpu.reciprocal %179 {approx = true} : vector<4x1xf32> -> vector<4x1xf32>
    %181 = vector.broadcast %180 : vector<4x1xf32> to vector<4x256xf32>
    %182 = arith.mulf %177, %181 : vector<4x256xf32>
    %c0_113 = arith.constant 0 : index
    %c0_114 = arith.constant 0 : index
    %183 = vector.load %arg21[%c0_113, %c0_114] : memref<256x2xf32, #tpu.memory_space<vmem>>, vector<256x2xf32>
    %cst_115 = arith.constant dense<0.000000e+00> : vector<4x2xf32>
    %184 = tpu.matmul %182, %183, %cst_115 {dimension_numbers = #tpu.dot_dimension_numbers<[1], [0], [0], [1], [0, 0, 1, 1], [], []>, precision = #tpu.contract_precision<fp32>} : vector<4x256xf32>, vector<256x2xf32>, vector<4x2xf32> -> vector<4x2xf32>
    %c0_116 = arith.constant 0 : index
    %c0_117 = arith.constant 0 : index
    %c0_118 = arith.constant 0 : index
    %185 = vector.load %arg23[%c0_116, %c0_117, %c0_118] : memref<1x4x2xf32, #tpu.memory_space<vmem>>, vector<1x4x2xf32>
    %186 = vector.shape_cast %185 : vector<1x4x2xf32> to vector<4x2xf32>
    %187 = vector.shape_cast %184 : vector<4x2xf32> to vector<1x4x2xf32>
    tpu.vector_store %arg23[%c0_116, %c0_117, %c0_118], %187 {strides = array<i32>} : memref<1x4x2xf32, #tpu.memory_space<vmem>>, vector<1x4x2xf32>,
    return
  }
  func.func @transform_0(%arg0: i32) -> (i32, i32, i32) {
    %c0_i32 = arith.constant 0 : i32
    %c0_i32_0 = arith.constant 0 : i32
    %c0_i32_1 = arith.constant 0 : i32
    return %arg0, %c0_i32, %c0_i32_0 : i32, i32, i32
  }
  func.func @transform_1(%arg0: i32) -> (i32, i32) {
    %c0_i32 = arith.constant 0 : i32
    %c0_i32_0 = arith.constant 0 : i32
    %c0_i32_1 = arith.constant 0 : i32
    return %c0_i32, %c0_i32_0 : i32, i32
  }
  func.func @transform_2(%arg0: i32) -> (i32, i32) {
    %c0_i32 = arith.constant 0 : i32
    %c0_i32_0 = arith.constant 0 : i32
    %c0_i32_1 = arith.constant 0 : i32
    return %c0_i32, %c0_i32_0 : i32, i32
  }
  func.func @transform_3(%arg0: i32) -> (i32, i32) {
    %c0_i32 = arith.constant 0 : i32
    %c0_i32_0 = arith.constant 0 : i32
    %c0_i32_1 = arith.constant 0 : i32
    return %c0_i32, %c0_i32_0 : i32, i32
  }
  func.func @transform_4(%arg0: i32) -> (i32, i32) {
    %c0_i32 = arith.constant 0 : i32
    %c0_i32_0 = arith.constant 0 : i32
    %c0_i32_1 = arith.constant 0 : i32
    return %c0_i32, %c0_i32_0 : i32, i32
  }
  func.func @transform_5(%arg0: i32) -> (i32, i32) {
    %c0_i32 = arith.constant 0 : i32
    %c0_i32_0 = arith.constant 0 : i32
    %c0_i32_1 = arith.constant 0 : i32
    return %c0_i32, %c0_i32_0 : i32, i32
  }
  func.func @transform_6(%arg0: i32) -> (i32, i32) {
    %c0_i32 = arith.constant 0 : i32
    %c0_i32_0 = arith.constant 0 : i32
    %c0_i32_1 = arith.constant 0 : i32
    return %c0_i32, %c0_i32_0 : i32, i32
  }
  func.func @transform_7(%arg0: i32) -> (i32, i32) {
    %c0_i32 = arith.constant 0 : i32
    %c0_i32_0 = arith.constant 0 : i32
    %c0_i32_1 = arith.constant 0 : i32
    return %c0_i32, %c0_i32_0 : i32, i32
  }
  func.func @transform_8(%arg0: i32) -> (i32, i32) {
    %c0_i32 = arith.constant 0 : i32
    %c0_i32_0 = arith.constant 0 : i32
    %c0_i32_1 = arith.constant 0 : i32
    return %c0_i32, %c0_i32_0 : i32, i32
  }
  func.func @transform_9(%arg0: i32) -> (i32, i32) {
    %c0_i32 = arith.constant 0 : i32
    %c0_i32_0 = arith.constant 0 : i32
    %c0_i32_1 = arith.constant 0 : i32
    return %c0_i32, %c0_i32_0 : i32, i32
  }
  func.func @transform_10(%arg0: i32) -> (i32, i32) {
    %c0_i32 = arith.constant 0 : i32
    %c0_i32_0 = arith.constant 0 : i32
    %c0_i32_1 = arith.constant 0 : i32
    return %c0_i32, %c0_i32_0 : i32, i32
  }
  func.func @transform_11(%arg0: i32) -> (i32, i32) {
    %c0_i32 = arith.constant 0 : i32
    %c0_i32_0 = arith.constant 0 : i32
    %c0_i32_1 = arith.constant 0 : i32
    return %c0_i32, %c0_i32_0 : i32, i32
  }
  func.func @transform_12(%arg0: i32) -> (i32, i32) {
    %c0_i32 = arith.constant 0 : i32
    %c0_i32_0 = arith.constant 0 : i32
    %c0_i32_1 = arith.constant 0 : i32
    return %c0_i32, %c0_i32_0 : i32, i32
  }
  func.func @transform_13(%arg0: i32) -> (i32, i32) {
    %c0_i32 = arith.constant 0 : i32
    %c0_i32_0 = arith.constant 0 : i32
    %c0_i32_1 = arith.constant 0 : i32
    return %c0_i32, %c0_i32_0 : i32, i32
  }
  func.func @transform_14(%arg0: i32) -> (i32, i32) {
    %c0_i32 = arith.constant 0 : i32
    %c0_i32_0 = arith.constant 0 : i32
    %c0_i32_1 = arith.constant 0 : i32
    return %c0_i32, %c0_i32_0 : i32, i32
  }
  func.func @transform_15(%arg0: i32) -> (i32, i32) {
    %c0_i32 = arith.constant 0 : i32
    %c0_i32_0 = arith.constant 0 : i32
    %c0_i32_1 = arith.constant 0 : i32
    return %c0_i32, %c0_i32_0 : i32, i32
  }
  func.func @transform_16(%arg0: i32) -> (i32, i32) {
    %c0_i32 = arith.constant 0 : i32
    %c0_i32_0 = arith.constant 0 : i32
    %c0_i32_1 = arith.constant 0 : i32
    return %c0_i32, %c0_i32_0 : i32, i32
  }
  func.func @transform_17(%arg0: i32) -> (i32, i32) {
    %c0_i32 = arith.constant 0 : i32
    %c0_i32_0 = arith.constant 0 : i32
    %c0_i32_1 = arith.constant 0 : i32
    return %c0_i32, %c0_i32_0 : i32, i32
  }
  func.func @transform_18(%arg0: i32) -> (i32, i32) {
    %c0_i32 = arith.constant 0 : i32
    %c0_i32_0 = arith.constant 0 : i32
    %c0_i32_1 = arith.constant 0 : i32
    return %c0_i32, %c0_i32_0 : i32, i32
  }
  func.func @transform_19(%arg0: i32) -> (i32, i32) {
    %c0_i32 = arith.constant 0 : i32
    %c0_i32_0 = arith.constant 0 : i32
    %c0_i32_1 = arith.constant 0 : i32
    return %c0_i32, %c0_i32_0 : i32, i32
  }
  func.func @transform_20(%arg0: i32) -> (i32, i32) {
    %c0_i32 = arith.constant 0 : i32
    %c0_i32_0 = arith.constant 0 : i32
    %c0_i32_1 = arith.constant 0 : i32
    return %c0_i32, %c0_i32_0 : i32, i32
  }
  func.func @transform_21(%arg0: i32) -> (i32, i32, i32) {
    %c0_i32 = arith.constant 0 : i32
    %c0_i32_0 = arith.constant 0 : i32
    %c0_i32_1 = arith.constant 0 : i32
    return %arg0, %c0_i32, %c0_i32_0 : i32, i32, i32
  }
  func.func @transform_22(%arg0: i32) -> (i32, i32, i32) {
    %c0_i32 = arith.constant 0 : i32
    %c0_i32_0 = arith.constant 0 : i32
    %c0_i32_1 = arith.constant 0 : i32
    return %arg0, %c0_i32, %c0_i32_0 : i32, i32, i32
  }
}

</mosaic_0001>

<llo_original>
// kernel: tpu_custom_call.1
$region0: #{tpu_custom_call.1}
  #allocation0 [shape = 'u32[]', space=smem, size = 0x4, offset = 0x4, fixed_abs, tag = 'smem constant byte address 0x4 - core index']
  #allocation1 [shape = 'u32[144,128]{1,0:T(1,128)}', space=vmem, size = 0x12000, scoped, tag = 'internal scratch']
  %s0 = inlined_call_operand.vmem [shape: f32[2,8,256], index: 0, kind: input, shape index: {}]
  %s1 = inlined_call_operand.vmem [shape: f32[9,256], index: 1, kind: input, shape index: {}]
  %s2 = inlined_call_operand.vmem [shape: bf16[16,72], index: 2, kind: input, shape index: {}]
  %s3 = inlined_call_operand.vmem [shape: f32[16,1], index: 3, kind: input, shape index: {}]
  %s4 = inlined_call_operand.vmem [shape: bf16[32,144], index: 4, kind: input, shape index: {}]
  %s5 = inlined_call_operand.vmem [shape: f32[32,1], index: 5, kind: input, shape index: {}]
  %s6 = inlined_call_operand.vmem [shape: bf16[64,288], index: 6, kind: input, shape index: {}]
  %s7 = inlined_call_operand.vmem [shape: f32[64,1], index: 7, kind: input, shape index: {}]
  %s8 = inlined_call_operand.vmem [shape: f32[4,16], index: 8, kind: input, shape index: {}]
  %s9 = inlined_call_operand.vmem [shape: f32[4,1], index: 9, kind: input, shape index: {}]
  %s10 = inlined_call_operand.vmem [shape: f32[4,32], index: 10, kind: input, shape index: {}]
  %s11 = inlined_call_operand.vmem [shape: f32[4,1], index: 11, kind: input, shape index: {}]
  %s12 = inlined_call_operand.vmem [shape: f32[4,64], index: 12, kind: input, shape index: {}]
  %s13 = inlined_call_operand.vmem [shape: f32[4,1], index: 13, kind: input, shape index: {}]
  %s14 = inlined_call_operand.vmem [shape: f32[4,8], index: 14, kind: input, shape index: {}]
  %s15 = inlined_call_operand.vmem [shape: f32[4,1], index: 15, kind: input, shape index: {}]
  %s16 = inlined_call_operand.vmem [shape: f32[4,4], index: 16, kind: input, shape index: {}]
  %s17 = inlined_call_operand.vmem [shape: f32[4,4], index: 17, kind: input, shape index: {}]
  %s18 = inlined_call_operand.vmem [shape: f32[4,4], index: 18, kind: input, shape index: {}]
  %s19 = inlined_call_operand.vmem [shape: f32[4,1], index: 19, kind: input, shape index: {}]
  %s20 = inlined_call_operand.vmem [shape: f32[256,2], index: 20, kind: input, shape index: {}]
  %s21 = inlined_call_operand.hbm [shape: f32[2,4,256], index: 21, kind: output, shape index: {0}]
  %s22 = inlined_call_operand.vmem [shape: f32[2,4,2], index: 22, kind: output, shape index: {1}]
  %23 = xla_tuple %s21, %s22
  %s24 = sld [smem:[#allocation0]]
  $region125: #{tpu_custom_call.1} parent=0
    _
  %s26 = ssub.s32 1, %s24
  %s27 = scalar_select 0, %s26, %s24
  $region1: #{tpu_custom_call.1} parent=0
    #allocation2 [shape = 'u8[8192]{0}', space=vmem, size = 0x2000, scoped, tag = 'output window, operand 0']
    #allocation3 [shape = 's32[2]{0}', space=sflag, size = 0x8, scoped, tag = 'scoped memory for tpu_custom_call.1']
    %28 = vsyncpa [#allocation3], 0
    %s29 = scalar_lea.sflag [#allocation3], 1
    %30 = vsyncpa %s29, 0
    loop: start=0, step=1, limit=4
    $region2: #{tpu_custom_call.1} parent=1 // loop_pre_header
      _
    $region3: #{tpu_custom_call.1} parent=1 // loop_header
      %s32 = sphi 0, %s36
      %p33 = scmp.ge.s32.totalorder %s32, 4
      %s42 = sphi 0, %s44
      %s45 = sphi 0, %s42
      %s46 = sphi 0, %s45
      %s62 = sphi 0, %s46
      %s66 = sphi 0, %s66
      %s68 = sphi 0, %s66
      %s69 = sphi 0, %s68
      %s83 = sphi 0, %s69
      %s87 = sphi 0, %s87
      %s89 = sphi 0, %s87
      %s90 = sphi 0, %s89
      %s104 = sphi 0, %s90
      %s108 = sphi 0, %s108
      %s110 = sphi 0, %s108
      %s111 = sphi 0, %s110
      %s125 = sphi 0, %s111
      %s129 = sphi 0, %s129
      %s131 = sphi 0, %s129
      %s132 = sphi 0, %s131
      %s146 = sphi 0, %s132
      %s150 = sphi 0, %s150
      %s152 = sphi 0, %s150
      %s153 = sphi 0, %s152
      %s167 = sphi 0, %s153
      %s171 = sphi 0, %s171
      %s173 = sphi 0, %s171
      %s174 = sphi 0, %s173
      %s188 = sphi 0, %s174
      %s192 = sphi 0, %s192
      %s194 = sphi 0, %s192
      %s195 = sphi 0, %s194
      %s209 = sphi 0, %s195
      %s213 = sphi 0, %s213
      %s215 = sphi 0, %s213
      %s216 = sphi 0, %s215
      %s230 = sphi 0, %s216
      %s234 = sphi 0, %s234
      %s236 = sphi 0, %s234
      %s237 = sphi 0, %s236
      %s251 = sphi 0, %s237
      %s255 = sphi 0, %s255
      %s257 = sphi 0, %s255
      %s258 = sphi 0, %s257
      %s272 = sphi 0, %s258
      %s276 = sphi 0, %s276
      %s278 = sphi 0, %s276
      %s279 = sphi 0, %s278
      %s293 = sphi 0, %s279
      %s297 = sphi 0, %s297
      %s299 = sphi 0, %s297
      %s300 = sphi 0, %s299
      %s314 = sphi 0, %s300
      %s318 = sphi 0, %s318
      %s320 = sphi 0, %s318
      %s321 = sphi 0, %s320
      %s335 = sphi 0, %s321
      %s339 = sphi 0, %s339
      %s341 = sphi 0, %s339
      %s342 = sphi 0, %s341
      %s356 = sphi 0, %s342
      %s360 = sphi 0, %s360
      %s362 = sphi 0, %s360
      %s363 = sphi 0, %s362
      %s377 = sphi 0, %s363
      %s381 = sphi 0, %s381
      %s383 = sphi 0, %s381
      %s384 = sphi 0, %s383
      %s398 = sphi 0, %s384
      %s402 = sphi 0, %s402
      %s404 = sphi 0, %s402
      %s405 = sphi 0, %s404
      %s419 = sphi 0, %s405
      %s423 = sphi 0, %s423
      %s425 = sphi 0, %s423
      %s426 = sphi 0, %s425
      %s440 = sphi 0, %s426
      %s444 = sphi 0, %s444
      %s446 = sphi 0, %s444
      %s447 = sphi 0, %s446
      %s461 = sphi 0, %s447
      %s465 = sphi 0, %s465
      %s467 = sphi 0, %s465
      %s468 = sphi 0, %s467
      %s482 = sphi 0, %s468
      %s488 = sphi 0, %s490
      %s491 = sphi 0, %s488
      %s492 = sphi 0, %s491
      %s508 = sphi 0, %s492
      %s514 = sphi 0, %s516
      %s517 = sphi 0, %s514
      %s518 = sphi 0, %s517
      %s534 = sphi 0, %s518
    $region4: #{tpu_custom_call.1} parent=1 // loop_header_branch
      %35 = sbr.rel (%p33) target = $region8
    $region5: #{tpu_custom_call.1} parent=1 // loop_body
      %s37 = ssub.s32 %s32, 1
      %s38 = ssub.s32 %s32, 2
      %s39 = sadd.s32 %s32, 1
      %s40 = ssub.s32 %s32, %s39
      %p41 = scmp.eq.s32.totalorder %s40, 0
      %s43 = sadd.s32 %s42, 1
      %s44 = scalar_select %p41, %s42, %s43
      %p47 = pneg %p41
      %p48 = scmp.eq.s32.totalorder %s32, 1
      %p49 = por %p47, %p48
      %p50 = scmp.ne.s32.totalorder %s42, %s45
      %p51 = scmp.eq.s32.totalorder %s32, 0
      %p52 = por %p50, %p51
      %p53 = scmp.ne.s32.totalorder %s42, %s45
      %p54 = scmp.eq.s32.totalorder %s37, 1
      %p55 = por %p53, %p54
      %p56 = scmp.ne.s32.totalorder %s45, %s46
      %p57 = scmp.eq.s32.totalorder %s37, 0
      %p58 = por %p56, %p57
      %p59 = scmp.ne.s32.totalorder %s45, %s46
      %p60 = scmp.eq.s32.totalorder %s38, 1
      %p61 = por %p59, %p60
      %p63 = scmp.ne.s32.totalorder %s46, %s62
      %p64 = scmp.eq.s32.totalorder %s38, 0
      %p65 = por %p63, %p64
      %s67 = sadd.s32 %s66, 1
      %p70 = scmp.eq.s32.totalorder %s32, 1
      %p71 = scmp.ne.s32.totalorder %s66, %s68
      %p72 = scmp.eq.s32.totalorder %s32, 0
      %p73 = por %p71, %p72
      %p74 = scmp.ne.s32.totalorder %s66, %s68
      %p75 = scmp.eq.s32.totalorder %s37, 1
      %p76 = por %p74, %p75
      %p77 = scmp.ne.s32.totalorder %s68, %s69
      %p78 = scmp.eq.s32.totalorder %s37, 0
      %p79 = por %p77, %p78
      %p80 = scmp.ne.s32.totalorder %s68, %s69
      %p81 = scmp.eq.s32.totalorder %s38, 1
      %p82 = por %p80, %p81
      %p84 = scmp.ne.s32.totalorder %s69, %s83
      %p85 = scmp.eq.s32.totalorder %s38, 0
      %p86 = por %p84, %p85
      %s88 = sadd.s32 %s87, 1
      %p91 = scmp.eq.s32.totalorder %s32, 1
      %p92 = scmp.ne.s32.totalorder %s87, %s89
      %p93 = scmp.eq.s32.totalorder %s32, 0
      %p94 = por %p92, %p93
      %p95 = scmp.ne.s32.totalorder %s87, %s89
      %p96 = scmp.eq.s32.totalorder %s37, 1
      %p97 = por %p95, %p96
      %p98 = scmp.ne.s32.totalorder %s89, %s90
      %p99 = scmp.eq.s32.totalorder %s37, 0
      %p100 = por %p98, %p99
      %p101 = scmp.ne.s32.totalorder %s89, %s90
      %p102 = scmp.eq.s32.totalorder %s38, 1
      %p103 = por %p101, %p102
      %p105 = scmp.ne.s32.totalorder %s90, %s104
      %p106 = scmp.eq.s32.totalorder %s38, 0
      %p107 = por %p105, %p106
      %s109 = sadd.s32 %s108, 1
      %p112 = scmp.eq.s32.totalorder %s32, 1
      %p113 = scmp.ne.s32.totalorder %s108, %s110
      %p114 = scmp.eq.s32.totalorder %s32, 0
      %p115 = por %p113, %p114
      %p116 = scmp.ne.s32.totalorder %s108, %s110
      %p117 = scmp.eq.s32.totalorder %s37, 1
      %p118 = por %p116, %p117
      %p119 = scmp.ne.s32.totalorder %s110, %s111
      %p120 = scmp.eq.s32.totalorder %s37, 0
      %p121 = por %p119, %p120
      %p122 = scmp.ne.s32.totalorder %s110, %s111
      %p123 = scmp.eq.s32.totalorder %s38, 1
      %p124 = por %p122, %p123
      %p126 = scmp.ne.s32.totalorder %s111, %s125
      %p127 = scmp.eq.s32.totalorder %s38, 0
      %p128 = por %p126, %p127
      %s130 = sadd.s32 %s129, 1
      %p133 = scmp.eq.s32.totalorder %s32, 1
      %p134 = scmp.ne.s32.totalorder %s129, %s131
      %p135 = scmp.eq.s32.totalorder %s32, 0
      %p136 = por %p134, %p135
      %p137 = scmp.ne.s32.totalorder %s129, %s131
      %p138 = scmp.eq.s32.totalorder %s37, 1
      %p139 = por %p137, %p138
      %p140 = scmp.ne.s32.totalorder %s131, %s132
      %p141 = scmp.eq.s32.totalorder %s37, 0
      %p142 = por %p140, %p141
      %p143 = scmp.ne.s32.totalorder %s131, %s132
      %p144 = scmp.eq.s32.totalorder %s38, 1
      %p145 = por %p143, %p144
      %p147 = scmp.ne.s32.totalorder %s132, %s146
      %p148 = scmp.eq.s32.totalorder %s38, 0
      %p149 = por %p147, %p148
      %s151 = sadd.s32 %s150, 1
      %p154 = scmp.eq.s32.totalorder %s32, 1
      %p155 = scmp.ne.s32.totalorder %s150, %s152
      %p156 = scmp.eq.s32.totalorder %s32, 0
      %p157 = por %p155, %p156
      %p158 = scmp.ne.s32.totalorder %s150, %s152
      %p159 = scmp.eq.s32.totalorder %s37, 1
      %p160 = por %p158, %p159
      %p161 = scmp.ne.s32.totalorder %s152, %s153
      %p162 = scmp.eq.s32.totalorder %s37, 0
      %p163 = por %p161, %p162
      %p164 = scmp.ne.s32.totalorder %s152, %s153
      %p165 = scmp.eq.s32.totalorder %s38, 1
      %p166 = por %p164, %p165
      %p168 = scmp.ne.s32.totalorder %s153, %s167
      %p169 = scmp.eq.s32.totalorder %s38, 0
      %p170 = por %p168, %p169
      %s172 = sadd.s32 %s171, 1
      %p175 = scmp.eq.s32.totalorder %s32, 1
      %p176 = scmp.ne.s32.totalorder %s171, %s173
      %p177 = scmp.eq.s32.totalorder %s32, 0
      %p178 = por %p176, %p177
      %p179 = scmp.ne.s32.totalorder %s171, %s173
      %p180 = scmp.eq.s32.totalorder %s37, 1
      %p181 = por %p179, %p180
      %p182 = scmp.ne.s32.totalorder %s173, %s174
      %p183 = scmp.eq.s32.totalorder %s37, 0
      %p184 = por %p182, %p183
      %p185 = scmp.ne.s32.totalorder %s173, %s174
      %p186 = scmp.eq.s32.totalorder %s38, 1
      %p187 = por %p185, %p186
      %p189 = scmp.ne.s32.totalorder %s174, %s188
      %p190 = scmp.eq.s32.totalorder %s38, 0
      %p191 = por %p189, %p190
      %s193 = sadd.s32 %s192, 1
      %p196 = scmp.eq.s32.totalorder %s32, 1
      %p197 = scmp.ne.s32.totalorder %s192, %s194
      %p198 = scmp.eq.s32.totalorder %s32, 0
      %p199 = por %p197, %p198
      %p200 = scmp.ne.s32.totalorder %s192, %s194
      %p201 = scmp.eq.s32.totalorder %s37, 1
      %p202 = por %p200, %p201
      %p203 = scmp.ne.s32.totalorder %s194, %s195
      %p204 = scmp.eq.s32.totalorder %s37, 0
      %p205 = por %p203, %p204
      %p206 = scmp.ne.s32.totalorder %s194, %s195
      %p207 = scmp.eq.s32.totalorder %s38, 1
      %p208 = por %p206, %p207
      %p210 = scmp.ne.s32.totalorder %s195, %s209
      %p211 = scmp.eq.s32.totalorder %s38, 0
      %p212 = por %p210, %p211
      %s214 = sadd.s32 %s213, 1
      %p217 = scmp.eq.s32.totalorder %s32, 1
      %p218 = scmp.ne.s32.totalorder %s213, %s215
      %p219 = scmp.eq.s32.totalorder %s32, 0
      %p220 = por %p218, %p219
      %p221 = scmp.ne.s32.totalorder %s213, %s215
      %p222 = scmp.eq.s32.totalorder %s37, 1
      %p223 = por %p221, %p222
      %p224 = scmp.ne.s32.totalorder %s215, %s216
      %p225 = scmp.eq.s32.totalorder %s37, 0
      %p226 = por %p224, %p225
      %p227 = scmp.ne.s32.totalorder %s215, %s216
      %p228 = scmp.eq.s32.totalorder %s38, 1
      %p229 = por %p227, %p228
      %p231 = scmp.ne.s32.totalorder %s216, %s230
      %p232 = scmp.eq.s32.totalorder %s38, 0
      %p233 = por %p231, %p232
      %s235 = sadd.s32 %s234, 1
      %p238 = scmp.eq.s32.totalorder %s32, 1
      %p239 = scmp.ne.s32.totalorder %s234, %s236
      %p240 = scmp.eq.s32.totalorder %s32, 0
      %p241 = por %p239, %p240
      %p242 = scmp.ne.s32.totalorder %s234, %s236
      %p243 = scmp.eq.s32.totalorder %s37, 1
      %p244 = por %p242, %p243
      %p245 = scmp.ne.s32.totalorder %s236, %s237
      %p246 = scmp.eq.s32.totalorder %s37, 0
      %p247 = por %p245, %p246
      %p248 = scmp.ne.s32.totalorder %s236, %s237
      %p249 = scmp.eq.s32.totalorder %s38, 1
      %p250 = por %p248, %p249
      %p252 = scmp.ne.s32.totalorder %s237, %s251
      %p253 = scmp.eq.s32.totalorder %s38, 0
      %p254 = por %p252, %p253
      %s256 = sadd.s32 %s255, 1
      %p259 = scmp.eq.s32.totalorder %s32, 1
      %p260 = scmp.ne.s32.totalorder %s255, %s257
      %p261 = scmp.eq.s32.totalorder %s32, 0
      %p262 = por %p260, %p261
      %p263 = scmp.ne.s32.totalorder %s255, %s257
      %p264 = scmp.eq.s32.totalorder %s37, 1
      %p265 = por %p263, %p264
      %p266 = scmp.ne.s32.totalorder %s257, %s258
      %p267 = scmp.eq.s32.totalorder %s37, 0
      %p268 = por %p266, %p267
      %p269 = scmp.ne.s32.totalorder %s257, %s258
      %p270 = scmp.eq.s32.totalorder %s38, 1
      %p271 = por %p269, %p270
      %p273 = scmp.ne.s32.totalorder %s258, %s272
      %p274 = scmp.eq.s32.totalorder %s38, 0
      %p275 = por %p273, %p274
      %s277 = sadd.s32 %s276, 1
      %p280 = scmp.eq.s32.totalorder %s32, 1
      %p281 = scmp.ne.s32.totalorder %s276, %s278
      %p282 = scmp.eq.s32.totalorder %s32, 0
      %p283 = por %p281, %p282
      %p284 = scmp.ne.s32.totalorder %s276, %s278
      %p285 = scmp.eq.s32.totalorder %s37, 1
      %p286 = por %p284, %p285
      %p287 = scmp.ne.s32.totalorder %s278, %s279
      %p288 = scmp.eq.s32.totalorder %s37, 0
      %p289 = por %p287, %p288
      %p290 = scmp.ne.s32.totalorder %s278, %s279
      %p291 = scmp.eq.s32.totalorder %s38, 1
      %p292 = por %p290, %p291
      %p294 = scmp.ne.s32.totalorder %s279, %s293
      %p295 = scmp.eq.s32.totalorder %s38, 0
      %p296 = por %p294, %p295
      %s298 = sadd.s32 %s297, 1
      %p301 = scmp.eq.s32.totalorder %s32, 1
      %p302 = scmp.ne.s32.totalorder %s297, %s299
      %p303 = scmp.eq.s32.totalorder %s32, 0
      %p304 = por %p302, %p303
      %p305 = scmp.ne.s32.totalorder %s297, %s299
      %p306 = scmp.eq.s32.totalorder %s37, 1
      %p307 = por %p305, %p306
      %p308 = scmp.ne.s32.totalorder %s299, %s300
      %p309 = scmp.eq.s32.totalorder %s37, 0
      %p310 = por %p308, %p309
      %p311 = scmp.ne.s32.totalorder %s299, %s300
      %p312 = scmp.eq.s32.totalorder %s38, 1
      %p313 = por %p311, %p312
      %p315 = scmp.ne.s32.totalorder %s300, %s314
      %p316 = scmp.eq.s32.totalorder %s38, 0
      %p317 = por %p315, %p316
      %s319 = sadd.s32 %s318, 1
      %p322 = scmp.eq.s32.totalorder %s32, 1
      %p323 = scmp.ne.s32.totalorder %s318, %s320
      %p324 = scmp.eq.s32.totalorder %s32, 0
      %p325 = por %p323, %p324
      %p326 = scmp.ne.s32.totalorder %s318, %s320
      %p327 = scmp.eq.s32.totalorder %s37, 1
      %p328 = por %p326, %p327
      %p329 = scmp.ne.s32.totalorder %s320, %s321
      %p330 = scmp.eq.s32.totalorder %s37, 0
      %p331 = por %p329, %p330
      %p332 = scmp.ne.s32.totalorder %s320, %s321
      %p333 = scmp.eq.s32.totalorder %s38, 1
      %p334 = por %p332, %p333
      %p336 = scmp.ne.s32.totalorder %s321, %s335
      %p337 = scmp.eq.s32.totalorder %s38, 0
      %p338 = por %p336, %p337
      %s340 = sadd.s32 %s339, 1
      %p343 = scmp.eq.s32.totalorder %s32, 1
      %p344 = scmp.ne.s32.totalorder %s339, %s341
      %p345 = scmp.eq.s32.totalorder %s32, 0
      %p346 = por %p344, %p345
      %p347 = scmp.ne.s32.totalorder %s339, %s341
      %p348 = scmp.eq.s32.totalorder %s37, 1
      %p349 = por %p347, %p348
      %p350 = scmp.ne.s32.totalorder %s341, %s342
      %p351 = scmp.eq.s32.totalorder %s37, 0
      %p352 = por %p350, %p351
      %p353 = scmp.ne.s32.totalorder %s341, %s342
      %p354 = scmp.eq.s32.totalorder %s38, 1
      %p355 = por %p353, %p354
      %p357 = scmp.ne.s32.totalorder %s342, %s356
      %p358 = scmp.eq.s32.totalorder %s38, 0
      %p359 = por %p357, %p358
      %s361 = sadd.s32 %s360, 1
      %p364 = scmp.eq.s32.totalorder %s32, 1
      %p365 = scmp.ne.s32.totalorder %s360, %s362
      %p366 = scmp.eq.s32.totalorder %s32, 0
      %p367 = por %p365, %p366
      %p368 = scmp.ne.s32.totalorder %s360, %s362
      %p369 = scmp.eq.s32.totalorder %s37, 1
      %p370 = por %p368, %p369
      %p371 = scmp.ne.s32.totalorder %s362, %s363
      %p372 = scmp.eq.s32.totalorder %s37, 0
      %p373 = por %p371, %p372
      %p374 = scmp.ne.s32.totalorder %s362, %s363
      %p375 = scmp.eq.s32.totalorder %s38, 1
      %p376 = por %p374, %p375
      %p378 = scmp.ne.s32.totalorder %s363, %s377
      %p379 = scmp.eq.s32.totalorder %s38, 0
      %p380 = por %p378, %p379
      %s382 = sadd.s32 %s381, 1
      %p385 = scmp.eq.s32.totalorder %s32, 1
      %p386 = scmp.ne.s32.totalorder %s381, %s383
      %p387 = scmp.eq.s32.totalorder %s32, 0
      %p388 = por %p386, %p387
      %p389 = scmp.ne.s32.totalorder %s381, %s383
      %p390 = scmp.eq.s32.totalorder %s37, 1
      %p391 = por %p389, %p390
      %p392 = scmp.ne.s32.totalorder %s383, %s384
      %p393 = scmp.eq.s32.totalorder %s37, 0
      %p394 = por %p392, %p393
      %p395 = scmp.ne.s32.totalorder %s383, %s384
      %p396 = scmp.eq.s32.totalorder %s38, 1
      %p397 = por %p395, %p396
      %p399 = scmp.ne.s32.totalorder %s384, %s398
      %p400 = scmp.eq.s32.totalorder %s38, 0
      %p401 = por %p399, %p400
      %s403 = sadd.s32 %s402, 1
      %p406 = scmp.eq.s32.totalorder %s32, 1
      %p407 = scmp.ne.s32.totalorder %s402, %s404
      %p408 = scmp.eq.s32.totalorder %s32, 0
      %p409 = por %p407, %p408
      %p410 = scmp.ne.s32.totalorder %s402, %s404
      %p411 = scmp.eq.s32.totalorder %s37, 1
      %p412 = por %p410, %p411
      %p413 = scmp.ne.s32.totalorder %s404, %s405
      %p414 = scmp.eq.s32.totalorder %s37, 0
      %p415 = por %p413, %p414
      %p416 = scmp.ne.s32.totalorder %s404, %s405
      %p417 = scmp.eq.s32.totalorder %s38, 1
      %p418 = por %p416, %p417
      %p420 = scmp.ne.s32.totalorder %s405, %s419
      %p421 = scmp.eq.s32.totalorder %s38, 0
      %p422 = por %p420, %p421
      %s424 = sadd.s32 %s423, 1
      %p427 = scmp.eq.s32.totalorder %s32, 1
      %p428 = scmp.ne.s32.totalorder %s423, %s425
      %p429 = scmp.eq.s32.totalorder %s32, 0
      %p430 = por %p428, %p429
      %p431 = scmp.ne.s32.totalorder %s423, %s425
      %p432 = scmp.eq.s32.totalorder %s37, 1
      %p433 = por %p431, %p432
      %p434 = scmp.ne.s32.totalorder %s425, %s426
      %p435 = scmp.eq.s32.totalorder %s37, 0
      %p436 = por %p434, %p435
      %p437 = scmp.ne.s32.totalorder %s425, %s426
      %p438 = scmp.eq.s32.totalorder %s38, 1
      %p439 = por %p437, %p438
      %p441 = scmp.ne.s32.totalorder %s426, %s440
      %p442 = scmp.eq.s32.totalorder %s38, 0
      %p443 = por %p441, %p442
      %s445 = sadd.s32 %s444, 1
      %p448 = scmp.eq.s32.totalorder %s32, 1
      %p449 = scmp.ne.s32.totalorder %s444, %s446
      %p450 = scmp.eq.s32.totalorder %s32, 0
      %p451 = por %p449, %p450
      %p452 = scmp.ne.s32.totalorder %s444, %s446
      %p453 = scmp.eq.s32.totalorder %s37, 1
      %p454 = por %p452, %p453
      %p455 = scmp.ne.s32.totalorder %s446, %s447
      %p456 = scmp.eq.s32.totalorder %s37, 0
      %p457 = por %p455, %p456
      %p458 = scmp.ne.s32.totalorder %s446, %s447
      %p459 = scmp.eq.s32.totalorder %s38, 1
      %p460 = por %p458, %p459
      %p462 = scmp.ne.s32.totalorder %s447, %s461
      %p463 = scmp.eq.s32.totalorder %s38, 0
      %p464 = por %p462, %p463
      %s466 = sadd.s32 %s465, 1
      %p469 = scmp.eq.s32.totalorder %s32, 1
      %p470 = scmp.ne.s32.totalorder %s465, %s467
      %p471 = scmp.eq.s32.totalorder %s32, 0
      %p472 = por %p470, %p471
      %p473 = scmp.ne.s32.totalorder %s465, %s467
      %p474 = scmp.eq.s32.totalorder %s37, 1
      %p475 = por %p473, %p474
      %p476 = scmp.ne.s32.totalorder %s467, %s468
      %p477 = scmp.eq.s32.totalorder %s37, 0
      %p478 = por %p476, %p477
      %p479 = scmp.ne.s32.totalorder %s467, %s468
      %p480 = scmp.eq.s32.totalorder %s38, 1
      %p481 = por %p479, %p480
      %p483 = scmp.ne.s32.totalorder %s468, %s482
      %p484 = scmp.eq.s32.totalorder %s38, 0
      %p485 = por %p483, %p484
      %s486 = ssub.s32 %s32, %s39
      %p487 = scmp.eq.s32.totalorder %s486, 0
      %s489 = sadd.s32 %s488, 1
      %s490 = scalar_select %p487, %s488, %s489
      %p493 = pneg %p487
      %p494 = scmp.eq.s32.totalorder %s32, 1
      %p495 = por %p493, %p494
      %p496 = scmp.ne.s32.totalorder %s488, %s491
      %p497 = scmp.eq.s32.totalorder %s32, 0
      %p498 = por %p496, %p497
      %p499 = scmp.ne.s32.totalorder %s488, %s491
      %p500 = scmp.eq.s32.totalorder %s37, 1
      %p501 = por %p499, %p500
      %p502 = scmp.ne.s32.totalorder %s491, %s492
      %p503 = scmp.eq.s32.totalorder %s37, 0
      %p504 = por %p502, %p503
      %p505 = scmp.ne.s32.totalorder %s491, %s492
      %p506 = scmp.eq.s32.totalorder %s38, 1
      %p507 = por %p505, %p506
      %p509 = scmp.ne.s32.totalorder %s492, %s508
      %p510 = scmp.eq.s32.totalorder %s38, 0
      %p511 = por %p509, %p510
      %s512 = ssub.s32 %s32, %s39
      %p513 = scmp.eq.s32.totalorder %s512, 0
      %s515 = sadd.s32 %s514, 1
      %s516 = scalar_select %p513, %s514, %s515
      %p519 = pneg %p513
      %p520 = scmp.eq.s32.totalorder %s32, 1
      %p521 = por %p519, %p520
      %p522 = scmp.ne.s32.totalorder %s514, %s517
      %p523 = scmp.eq.s32.totalorder %s32, 0
      %p524 = por %p522, %p523
      %p525 = scmp.ne.s32.totalorder %s514, %s517
      %p526 = scmp.eq.s32.totalorder %s37, 1
      %p527 = por %p525, %p526
      %p528 = scmp.ne.s32.totalorder %s517, %s518
      %p529 = scmp.eq.s32.totalorder %s37, 0
      %p530 = por %p528, %p529
      %p531 = scmp.ne.s32.totalorder %s517, %s518
      %p532 = scmp.eq.s32.totalorder %s38, 1
      %p533 = por %p531, %p532
      %p535 = scmp.ne.s32.totalorder %s518, %s534
      %p536 = scmp.eq.s32.totalorder %s38, 0
      %p537 = por %p535, %p536
      %p538 = scmp.le.s32.totalorder 1, %s32
      %p539 = scmp.lt.s32.totalorder %s32, 3
      %p540 = pnand %p538, %p539
      %p541 = pneg %p540
      // Predicated region
      $region9: #{tpu_custom_call.1} parent=5 // pred_check
        _
      $region10: #{tpu_custom_call.1} parent=5 // pred_check_branch
        %543 = sbr.rel (%p540) target = $region12
      $region11: #{tpu_custom_call.1} parent=5 // pred_region
        %s544 = ssub.s32 %s32, 1
        // Predicated region
        $region13: #{tpu_custom_call.1} parent=11 // pred_check
          %p545 = pneg %p79
        $region14: #{tpu_custom_call.1} parent=11 // pred_check_branch
          %547 = sbr.rel (%p545) target = $region16
        $region15: #{tpu_custom_call.1} parent=11 // pred_region
          _
        $region16: #{tpu_custom_call.1} parent=11 // pred_fallthru
          _
        // Predicated region
        $region17: #{tpu_custom_call.1} parent=11 // pred_check
          %p548 = pneg %p100
        $region18: #{tpu_custom_call.1} parent=11 // pred_check_branch
          %550 = sbr.rel (%p548) target = $region20
        $region19: #{tpu_custom_call.1} parent=11 // pred_region
          _
        $region20: #{tpu_custom_call.1} parent=11 // pred_fallthru
          _
        // Predicated region
        $region21: #{tpu_custom_call.1} parent=11 // pred_check
          %p551 = pneg %p121
        $region22: #{tpu_custom_call.1} parent=11 // pred_check_branch
          %553 = sbr.rel (%p551) target = $region24
        $region23: #{tpu_custom_call.1} parent=11 // pred_region
          _
        $region24: #{tpu_custom_call.1} parent=11 // pred_fallthru
          _
        // Predicated region
        $region25: #{tpu_custom_call.1} parent=11 // pred_check
          %p554 = pneg %p142
        $region26: #{tpu_custom_call.1} parent=11 // pred_check_branch
          %556 = sbr.rel (%p554) target = $region28
        $region27: #{tpu_custom_call.1} parent=11 // pred_region
          _
        $region28: #{tpu_custom_call.1} parent=11 // pred_fallthru
          _
        // Predicated region
        $region29: #{tpu_custom_call.1} parent=11 // pred_check
          %p557 = pneg %p163
        $region30: #{tpu_custom_call.1} parent=11 // pred_check_branch
          %559 = sbr.rel (%p557) target = $region32
        $region31: #{tpu_custom_call.1} parent=11 // pred_region
          _
        $region32: #{tpu_custom_call.1} parent=11 // pred_fallthru
          _
        // Predicated region
        $region33: #{tpu_custom_call.1} parent=11 // pred_check
          %p560 = pneg %p184
        $region34: #{tpu_custom_call.1} parent=11 // pred_check_branch
          %562 = sbr.rel (%p560) target = $region36
        $region35: #{tpu_custom_call.1} parent=11 // pred_region
          _
        $region36: #{tpu_custom_call.1} parent=11 // pred_fallthru
          _
        // Predicated region
        $region37: #{tpu_custom_call.1} parent=11 // pred_check
          %p563 = pneg %p205
        $region38: #{tpu_custom_call.1} parent=11 // pred_check_branch
          %565 = sbr.rel (%p563) target = $region40
        $region39: #{tpu_custom_call.1} parent=11 // pred_region
          _
        $region40: #{tpu_custom_call.1} parent=11 // pred_fallthru
          _
        // Predicated region
        $region41: #{tpu_custom_call.1} parent=11 // pred_check
          %p566 = pneg %p226
        $region42: #{tpu_custom_call.1} parent=11 // pred_check_branch
          %568 = sbr.rel (%p566) target = $region44
        $region43: #{tpu_custom_call.1} parent=11 // pred_region
          _
        $region44: #{tpu_custom_call.1} parent=11 // pred_fallthru
          _
        // Predicated region
        $region45: #{tpu_custom_call.1} parent=11 // pred_check
          %p569 = pneg %p247
        $region46: #{tpu_custom_call.1} parent=11 // pred_check_branch
          %571 = sbr.rel (%p569) target = $region48
        $region47: #{tpu_custom_call.1} parent=11 // pred_region
          _
        $region48: #{tpu_custom_call.1} parent=11 // pred_fallthru
          _
        // Predicated region
        $region49: #{tpu_custom_call.1} parent=11 // pred_check
          %p572 = pneg %p268
        $region50: #{tpu_custom_call.1} parent=11 // pred_check_branch
          %574 = sbr.rel (%p572) target = $region52
        $region51: #{tpu_custom_call.1} parent=11 // pred_region
          _
        $region52: #{tpu_custom_call.1} parent=11 // pred_fallthru
          _
        // Predicated region
        $region53: #{tpu_custom_call.1} parent=11 // pred_check
          %p575 = pneg %p289
        $region54: #{tpu_custom_call.1} parent=11 // pred_check_branch
          %577 = sbr.rel (%p575) target = $region56
        $region55: #{tpu_custom_call.1} parent=11 // pred_region
          _
        $region56: #{tpu_custom_call.1} parent=11 // pred_fallthru
          _
        // Predicated region
        $region57: #{tpu_custom_call.1} parent=11 // pred_check
          %p578 = pneg %p310
        $region58: #{tpu_custom_call.1} parent=11 // pred_check_branch
          %580 = sbr.rel (%p578) target = $region60
        $region59: #{tpu_custom_call.1} parent=11 // pred_region
          _
        $region60: #{tpu_custom_call.1} parent=11 // pred_fallthru
          _
        // Predicated region
        $region61: #{tpu_custom_call.1} parent=11 // pred_check
          %p581 = pneg %p331
        $region62: #{tpu_custom_call.1} parent=11 // pred_check_branch
          %583 = sbr.rel (%p581) target = $region64
        $region63: #{tpu_custom_call.1} parent=11 // pred_region
          _
        $region64: #{tpu_custom_call.1} parent=11 // pred_fallthru
          _
        // Predicated region
        $region65: #{tpu_custom_call.1} parent=11 // pred_check
          %p584 = pneg %p352
        $region66: #{tpu_custom_call.1} parent=11 // pred_check_branch
          %586 = sbr.rel (%p584) target = $region68
        $region67: #{tpu_custom_call.1} parent=11 // pred_region
          _
        $region68: #{tpu_custom_call.1} parent=11 // pred_fallthru
          _
        // Predicated region
        $region69: #{tpu_custom_call.1} parent=11 // pred_check
          %p587 = pneg %p373
        $region70: #{tpu_custom_call.1} parent=11 // pred_check_branch
          %589 = sbr.rel (%p587) target = $region72
        $region71: #{tpu_custom_call.1} parent=11 // pred_region
          _
        $region72: #{tpu_custom_call.1} parent=11 // pred_fallthru
          _
        // Predicated region
        $region73: #{tpu_custom_call.1} parent=11 // pred_check
          %p590 = pneg %p394
        $region74: #{tpu_custom_call.1} parent=11 // pred_check_branch
          %592 = sbr.rel (%p590) target = $region76
        $region75: #{tpu_custom_call.1} parent=11 // pred_region
          _
        $region76: #{tpu_custom_call.1} parent=11 // pred_fallthru
          _
        // Predicated region
        $region77: #{tpu_custom_call.1} parent=11 // pred_check
          %p593 = pneg %p415
        $region78: #{tpu_custom_call.1} parent=11 // pred_check_branch
          %595 = sbr.rel (%p593) target = $region80
        $region79: #{tpu_custom_call.1} parent=11 // pred_region
          _
        $region80: #{tpu_custom_call.1} parent=11 // pred_fallthru
          _
        // Predicated region
        $region81: #{tpu_custom_call.1} parent=11 // pred_check
          %p596 = pneg %p436
        $region82: #{tpu_custom_call.1} parent=11 // pred_check_branch
          %598 = sbr.rel (%p596) target = $region84
        $region83: #{tpu_custom_call.1} parent=11 // pred_region
          _
        $region84: #{tpu_custom_call.1} parent=11 // pred_fallthru
          _
        // Predicated region
        $region85: #{tpu_custom_call.1} parent=11 // pred_check
          %p599 = pneg %p457
        $region86: #{tpu_custom_call.1} parent=11 // pred_check_branch
          %601 = sbr.rel (%p599) target = $region88
        $region87: #{tpu_custom_call.1} parent=11 // pred_region
          _
        $region88: #{tpu_custom_call.1} parent=11 // pred_fallthru
          _
        // Predicated region
        $region89: #{tpu_custom_call.1} parent=11 // pred_check
          %p602 = pneg %p478
        $region90: #{tpu_custom_call.1} parent=11 // pred_check_branch
          %604 = sbr.rel (%p602) target = $region92
        $region91: #{tpu_custom_call.1} parent=11 // pred_region
          _
        $region92: #{tpu_custom_call.1} parent=11 // pred_fallthru
          _
      $region12: #{tpu_custom_call.1} parent=5 // pred_fallthru
        _
      %p605 = scmp.lt.s32.totalorder %s32, 2
      // Predicated region
      $region93: #{tpu_custom_call.1} parent=5 // pred_check
        %p606 = pneg %p605
      $region94: #{tpu_custom_call.1} parent=5 // pred_check_branch
        %608 = sbr.rel (%p606) target = $region96
      $region95: #{tpu_custom_call.1} parent=5 // pred_region
        // Predicated region
        $region97: #{tpu_custom_call.1} parent=95 // pred_check
          %p609 = pneg %p52
        $region98: #{tpu_custom_call.1} parent=95 // pred_check_branch
          %611 = sbr.rel (%p609) target = $region100
        $region99: #{tpu_custom_call.1} parent=95 // pred_region
          %p612 = scmp.lt.s32.totalorder %s32, 1
          %s613 = scalar_select %p612, %s32, 1
          %s614 = smul.addr %s613, 2
          %s615 = smul.addr %s614, 8
          %s616 = scalar_lea.vmem %s0, %s615
        $region100: #{tpu_custom_call.1} parent=95 // pred_fallthru
          _
      $region96: #{tpu_custom_call.1} parent=5 // pred_fallthru
        _
      %p617 = scmp.le.s32.totalorder 1, %s32
      %p618 = scmp.lt.s32.totalorder %s32, 3
      %p619 = pnand %p617, %p618
      %p620 = pneg %p619
      // Predicated region
      $region101: #{tpu_custom_call.1} parent=5 // pred_check
        _
      $region102: #{tpu_custom_call.1} parent=5 // pred_check_branch
        %622 = sbr.rel (%p619) target = $region104
      $region103: #{tpu_custom_call.1} parent=5 // pred_region
        %s623 = ssub.s32 %s32, 1
        %p624 = scmp.lt.s32.totalorder %s37, 1
        %s625 = scalar_select %p624, %s37, 1
        %s626 = smul.addr %s625, 2
        %s627 = smul.addr %s626, 8
        %s628 = scalar_lea.vmem %s0, %s627
        %p629 = pneg %p58
        %p630 = pneg %p55
        %p631 = pneg %p79
        %p632 = pneg %p76
        %p633 = pneg %p100
        %p634 = pneg %p97
        %p635 = pneg %p121
        %p636 = pneg %p118
        %p637 = pneg %p142
        %p638 = pneg %p139
        %p639 = pneg %p163
        %p640 = pneg %p160
        %p641 = pneg %p184
        %p642 = pneg %p181
        %p643 = pneg %p205
        %p644 = pneg %p202
        %p645 = pneg %p226
        %p646 = pneg %p223
        %p647 = pneg %p247
        %p648 = pneg %p244
        %p649 = pneg %p268
        %p650 = pneg %p265
        %p651 = pneg %p289
        %p652 = pneg %p286
        %p653 = pneg %p310
        %p654 = pneg %p307
        %p655 = pneg %p331
        %p656 = pneg %p328
        %p657 = pneg %p352
        %p658 = pneg %p349
        %p659 = pneg %p373
        %p660 = pneg %p370
        %p661 = pneg %p394
        %p662 = pneg %p391
        %p663 = pneg %p415
        %p664 = pneg %p412
        %p665 = pneg %p436
        %p666 = pneg %p433
        %p667 = pneg %p457
        %p668 = pneg %p454
        %p669 = pneg %p478
        %p670 = pneg %p475
        %p671 = pneg %p504
        %p672 = pneg %p501
        %s673 = sand.u32 %s491, 1
        %s674 = scalar_lea.sflag [#allocation3], %s673
        %s675 = sand.u32 %s491, 1
        %s676 = smul.addr %s675, 8
        %s677 = scalar_lea.vmem [#allocation2], %s676
        %p678 = pneg %p530
        %p679 = pneg %p527
        %p680 = scmp.lt.s32.totalorder %s37, 1
        %s681 = scalar_select %p680, %s37, 1
        %s682 = smul.addr %s681, 4
        %s683 = scalar_lea.vmem %s22, %s682
        %p684 = scmp.lt.s32.totalorder %s37, 1
        %s685 = scalar_select %p684, %s37, 1
        %s686 = smul.addr %s685, 2
        %s687 = smul.addr %s686, 8
        %s688 = scalar_lea.vmem %s0, %s687
        %p689 = scmp.lt.s32.totalorder %s37, 1
        %s690 = scalar_select %p689, %s37, 1
        %s691 = smul.addr %s690, 4
        %s692 = scalar_lea.vmem %s22, %s691
        %v694 = vld [vmem:[%s688] sm:$0xff]
        %v695 = vld [vmem:[%s688 + $0x8] sm:$0xff]
        %696 = vrot.lane.b32.xlu0 %v694, 17
        %v697 = vpop.permute.xlu0 %696
        %698 = vrot.lane.b32.xlu0 %v695, 17
        %v699 = vpop.permute.xlu0 %698
        %v700 = vlaneseq
        %v701 = vand.u32 %v700, 127
        %vm702 = vcmp.lt.s32.totalorder %v701, 17
        %v703 = vsel %vm702, %v697, %v699
        %v704 = vsel %vm702, %v699, %v697
        %v705 = vld [vmem:[%s1] ss:$8 sm:$0x3]
        %v707 = vlaneseq
        %v708 = vshrl.u32 %v707, 7
        %v709 = vsub.s32 0, %v708
        %v710 = vrot.slane %v705, %v709
        %v711 = vlaneseq
        %v712 = vshrl.u32 %v711, 7
        %v713 = vsub.s32 1, %v712
        %v714 = vrot.slane %v705, %v713
        %v717 = vmul.f32 %v704, %v710
        %v718 = vmul.f32 %v703, %v714
        %719 = vrot.lane.b32.xlu0 %v694, 16
        %v720 = vpop.permute.xlu0 %719
        %721 = vrot.lane.b32.xlu0 %v695, 16
        %v722 = vpop.permute.xlu0 %721
        %vm723 = vcmp.lt.s32.totalorder %v701, 16
        %v724 = vsel %vm723, %v720, %v722
        %v725 = vsel %vm723, %v722, %v720
        %s726 = scalar_lea.vmem %s1, 1
        %v727 = vld [vmem:[%s726] ss:$8 sm:$0x3]
        %v729 = vlaneseq
        %v730 = vshrl.u32 %v729, 7
        %v731 = vsub.s32 0, %v730
        %v732 = vrot.slane %v727, %v731
        %v733 = vlaneseq
        %v734 = vshrl.u32 %v733, 7
        %v735 = vsub.s32 1, %v734
        %v736 = vrot.slane %v727, %v735
        %v739 = vmul.f32 %v725, %v732
        %v740 = vmul.f32 %v724, %v736
        %741 = vrot.lane.b32.xlu0 %v694, 15
        %v742 = vpop.permute.xlu0 %741
        %743 = vrot.lane.b32.xlu0 %v695, 15
        %v744 = vpop.permute.xlu0 %743
        %vm745 = vcmp.lt.s32.totalorder %v701, 15
        %v746 = vsel %vm745, %v742, %v744
        %v747 = vsel %vm745, %v744, %v742
        %s748 = scalar_lea.vmem %s1, 2
        %v749 = vld [vmem:[%s748] ss:$8 sm:$0x3]
        %v751 = vlaneseq
        %v752 = vshrl.u32 %v751, 7
        %v753 = vsub.s32 0, %v752
        %v754 = vrot.slane %v749, %v753
        %v755 = vlaneseq
        %v756 = vshrl.u32 %v755, 7
        %v757 = vsub.s32 1, %v756
        %v758 = vrot.slane %v749, %v757
        %v761 = vmul.f32 %v747, %v754
        %v762 = vmul.f32 %v746, %v758
        %763 = vrot.lane.b32.xlu0 %v694, 1
        %v764 = vpop.permute.xlu0 %763
        %765 = vrot.lane.b32.xlu0 %v695, 1
        %v766 = vpop.permute.xlu0 %765
        %vm767 = vcmp.lt.s32.totalorder %v701, 1
        %v768 = vsel %vm767, %v764, %v766
        %v769 = vsel %vm767, %v766, %v764
        %s770 = scalar_lea.vmem %s1, 3
        %v771 = vld [vmem:[%s770] ss:$8 sm:$0x3]
        %v773 = vlaneseq
        %v774 = vshrl.u32 %v773, 7
        %v775 = vsub.s32 0, %v774
        %v776 = vrot.slane %v771, %v775
        %v777 = vlaneseq
        %v778 = vshrl.u32 %v777, 7
        %v779 = vsub.s32 1, %v778
        %v780 = vrot.slane %v771, %v779
        %v783 = vmul.f32 %v769, %v776
        %v784 = vmul.f32 %v768, %v780
        %785 = vrot.lane.b32.xlu0 %v694, 127
        %v786 = vpop.permute.xlu0 %785
        %787 = vrot.lane.b32.xlu0 %v695, 127
        %v788 = vpop.permute.xlu0 %787
        %vm789 = vcmp.lt.s32.totalorder %v701, 127
        %v790 = vsel %vm789, %v786, %v788
        %v791 = vsel %vm789, %v788, %v786
        %s792 = scalar_lea.vmem %s1, 5
        %v793 = vld [vmem:[%s792] ss:$8 sm:$0x3]
        %v795 = vlaneseq
        %v796 = vshrl.u32 %v795, 7
        %v797 = vsub.s32 0, %v796
        %v798 = vrot.slane %v793, %v797
        %v799 = vlaneseq
        %v800 = vshrl.u32 %v799, 7
        %v801 = vsub.s32 1, %v800
        %v802 = vrot.slane %v793, %v801
        %v805 = vmul.f32 %v790, %v798
        %v806 = vmul.f32 %v791, %v802
        %807 = vrot.lane.b32.xlu0 %v694, 113
        %v808 = vpop.permute.xlu0 %807
        %809 = vrot.lane.b32.xlu0 %v695, 113
        %v810 = vpop.permute.xlu0 %809
        %vm811 = vcmp.lt.s32.totalorder %v701, 113
        %v812 = vsel %vm811, %v808, %v810
        %v813 = vsel %vm811, %v810, %v808
        %s814 = scalar_lea.vmem %s1, 6
        %v815 = vld [vmem:[%s814] ss:$8 sm:$0x3]
        %v817 = vlaneseq
        %v818 = vshrl.u32 %v817, 7
        %v819 = vsub.s32 0, %v818
        %v820 = vrot.slane %v815, %v819
        %v821 = vlaneseq
        %v822 = vshrl.u32 %v821, 7
        %v823 = vsub.s32 1, %v822
        %v824 = vrot.slane %v815, %v823
        %v827 = vmul.f32 %v812, %v820
        %v828 = vmul.f32 %v813, %v824
        %829 = vrot.lane.b32.xlu0 %v694, 112
        %v830 = vpop.permute.xlu0 %829
        %831 = vrot.lane.b32.xlu0 %v695, 112
        %v832 = vpop.permute.xlu0 %831
        %vm833 = vcmp.lt.s32.totalorder %v701, 112
        %v834 = vsel %vm833, %v830, %v832
        %v835 = vsel %vm833, %v832, %v830
        %s836 = scalar_lea.vmem %s1, 7
        %v837 = vld [vmem:[%s836] ss:$8 sm:$0x3]
        %v839 = vlaneseq
        %v840 = vshrl.u32 %v839, 7
        %v841 = vsub.s32 0, %v840
        %v842 = vrot.slane %v837, %v841
        %v843 = vlaneseq
        %v844 = vshrl.u32 %v843, 7
        %v845 = vsub.s32 1, %v844
        %v846 = vrot.slane %v837, %v845
        %v849 = vmul.f32 %v834, %v842
        %v850 = vmul.f32 %v835, %v846
        %851 = vrot.lane.b32.xlu0 %v694, 111
        %v852 = vpop.permute.xlu0 %851
        %853 = vrot.lane.b32.xlu0 %v695, 111
        %v854 = vpop.permute.xlu0 %853
        %vm855 = vcmp.lt.s32.totalorder %v701, 111
        %v856 = vsel %vm855, %v852, %v854
        %v857 = vsel %vm855, %v854, %v852
        %s858 = scalar_lea.vmem %s1, 16
        %v859 = vld [vmem:[%s858] ss:$8 sm:$0x3]
        %v861 = vlaneseq
        %v862 = vshrl.u32 %v861, 7
        %v863 = vsub.s32 0, %v862
        %v864 = vrot.slane %v859, %v863
        %v865 = vlaneseq
        %v866 = vshrl.u32 %v865, 7
        %v867 = vsub.s32 1, %v866
        %v868 = vrot.slane %v859, %v867
        %v871 = vmul.f32 %v856, %v864
        %v872 = vmul.f32 %v857, %v868
        %v873 = vpack.c.bf16 %v739, %v717
        %v874 = vpack.c.bf16 %v740, %v718
        %v875 = vpack.c.bf16 %v783, %v761
        %v876 = vpack.c.bf16 %v784, %v762
        %v877 = vpack.c.bf16 %v805, %v694
        %v878 = vpack.c.bf16 %v806, %v695
        %v879 = vpack.c.bf16 %v849, %v827
        %v880 = vpack.c.bf16 %v850, %v828
        %v881 = vpack.c.bf16 %v871, %v871
        %v882 = vpack.c.bf16 %v872, %v872
        %v883 = vld [vmem:[%s2] sm:$0xf]
        %v884 = vld [vmem:[%s2 + $0x4] sm:$0xf]
        %v885 = vld [vmem:[%s3] sm:$0xff]
        %v886 = vld [vmem:[%s3 + $0x8] sm:$0xff]
        %888 = vset.pattern.permute.xlu0 0
        %889 = vperm.xlu0 %888, %v885
        %v890 = vpop.permute.xlu0 %889
        %893 = vset.pattern.permute.xlu0 0
        %894 = vperm.xlu0 %893, %v886
        %v895 = vpop.permute.xlu0 %894
        %v899 = vunpack.c.l.b16 %v883
        %v900 = vunpack.c.l.b16 %v884
        %v901 = vpack.c.b16 %v900, %v899
        %vm902 = vcmask 588800
        %v904 = vsel %vm902, %v901, 0
        %vm906 = vcmask 1043456
        %v908 = vsel %vm906, %v881, 0
        %v911 = vsel %vm906, %v882, 0
        %913 = vmatprep.subr.bf16.mxu0 %v874
        %914 = vmatpush1.bf16.msra.mxu0 %v873
        %915 = vmatprep.subr.bf16.mxu0 %v876
        %916 = vmatpush1.bf16.msra.mxu0 %v875
        %917 = vmatprep.subr.bf16.mxu0 %v878
        %918 = vmatpush1.bf16.msra.mxu0 %v877
        %919 = vmatprep.subr.bf16.mxu0 %v880
        %920 = vmatpush1.bf16.msra.mxu0 %v879
        %921 = vmatprep.subr.bf16.mxu0 %v911
        %922 = vmatpush1.bf16.msra.mxu0 %v908
        %923 = vmatprep.subr.bf16.mxu0 0
        %924 = vmatpush1.bf16.msra.mxu0 0
        %925 = vmatprep.subr.bf16.mxu0 0
        %926 = vmatpush1.bf16.msra.mxu0 0
        %927 = vmatprep.subr.bf16.mxu0 0
        %928 = vmatpush1.bf16.msra.mxu0 0
        %929 = vmatprep.subr.bf16.mxu0 0
        %930 = vmatpush1.bf16.msra.mxu0 0
        %931 = vmatprep.subr.bf16.mxu0 0
        %932 = vmatpush1.bf16.msra.mxu0 0
        %933 = vmatprep.subr.bf16.mxu0 0
        %934 = vmatpush1.bf16.msra.mxu0 0
        %935 = vmatprep.subr.bf16.mxu0 0
        %936 = vmatpush1.bf16.msra.mxu0 0
        %937 = vmatprep.subr.bf16.mxu0 0
        %938 = vmatpush1.bf16.msra.mxu0 0
        %939 = vmatprep.subr.bf16.mxu0 0
        %940 = vmatpush1.bf16.msra.mxu0 0
        %941 = vmatprep.subr.bf16.mxu0 0
        %942 = vmatpush1.bf16.msra.mxu0 0
        %943 = vmatprep.subr.bf16.mxu0 0
        %944 = vmatpush1.bf16.msra.mxu0 0
        %945 = vmatprep.mubr.bf16.mxu0 0
        %946 = vmatmul.mubr.bf16.gmra.mrb[0].mxu0 %v904
        %v947 = vpop.f32.mrb[0].mxu0
        %v948 = vadd.f32 %v890, %v947
        %v949 = vpop.f32.mrb[0].mxu0
        %v950 = vadd.f32 %v890, %v949
        %v951 = vpop.f32.mrb[0].mxu0
        %v952 = vadd.f32 %v895, %v951
        %v953 = vpop.f32.mrb[0].mxu0
        %v954 = vadd.f32 %v895, %v953
        %955 = vdwg.mxu0
        %956 = vrot.lane.b32.xlu0 %v948, 17
        %v957 = vpop.permute.xlu0 %956
        %958 = vrot.lane.b32.xlu0 %v952, 17
        %v959 = vpop.permute.xlu0 %958
        %960 = vrot.lane.b32.xlu0 %v950, 17
        %v961 = vpop.permute.xlu0 %960
        %962 = vrot.lane.b32.xlu0 %v954, 17
        %v963 = vpop.permute.xlu0 %962
        %v964 = vsel %vm702, %v957, %v961
        %v965 = vsel %vm702, %v959, %v963
        %v966 = vsel %vm702, %v961, %v957
        %v967 = vsel %vm702, %v963, %v959
        %v968 = vmul.f32 %v966, %v710
        %v969 = vmul.f32 %v964, %v714
        %v970 = vmul.f32 %v967, %v710
        %v971 = vmul.f32 %v965, %v714
        %972 = vrot.lane.b32.xlu0 %v948, 16
        %v973 = vpop.permute.xlu0 %972
        %974 = vrot.lane.b32.xlu0 %v952, 16
        %v975 = vpop.permute.xlu0 %974
        %976 = vrot.lane.b32.xlu0 %v950, 16
        %v977 = vpop.permute.xlu0 %976
        %978 = vrot.lane.b32.xlu0 %v954, 16
        %v979 = vpop.permute.xlu0 %978
        %v980 = vsel %vm723, %v973, %v977
        %v981 = vsel %vm723, %v975, %v979
        %v982 = vsel %vm723, %v977, %v973
        %v983 = vsel %vm723, %v979, %v975
        %v984 = vmul.f32 %v982, %v732
        %v985 = vmul.f32 %v980, %v736
        %v986 = vmul.f32 %v983, %v732
        %v987 = vmul.f32 %v981, %v736
        %988 = vrot.lane.b32.xlu0 %v948, 15
        %v989 = vpop.permute.xlu0 %988
        %990 = vrot.lane.b32.xlu0 %v952, 15
        %v991 = vpop.permute.xlu0 %990
        %992 = vrot.lane.b32.xlu0 %v950, 15
        %v993 = vpop.permute.xlu0 %992
        %994 = vrot.lane.b32.xlu0 %v954, 15
        %v995 = vpop.permute.xlu0 %994
        %v996 = vsel %vm745, %v989, %v993
        %v997 = vsel %vm745, %v991, %v995
        %v998 = vsel %vm745, %v993, %v989
        %v999 = vsel %vm745, %v995, %v991
        %v1000 = vmul.f32 %v998, %v754
        %v1001 = vmul.f32 %v996, %v758
        %v1002 = vmul.f32 %v999, %v754
        %v1003 = vmul.f32 %v997, %v758
        %1004 = vrot.lane.b32.xlu0 %v948, 1
        %v1005 = vpop.permute.xlu0 %1004
        %1006 = vrot.lane.b32.xlu0 %v952, 1
        %v1007 = vpop.permute.xlu0 %1006
        %1008 = vrot.lane.b32.xlu0 %v950, 1
        %v1009 = vpop.permute.xlu0 %1008
        %1010 = vrot.lane.b32.xlu0 %v954, 1
        %v1011 = vpop.permute.xlu0 %1010
        %v1012 = vsel %vm767, %v1005, %v1009
        %v1013 = vsel %vm767, %v1007, %v1011
        %v1014 = vsel %vm767, %v1009, %v1005
        %v1015 = vsel %vm767, %v1011, %v1007
        %v1016 = vmul.f32 %v1014, %v776
        %v1017 = vmul.f32 %v1012, %v780
        %v1018 = vmul.f32 %v1015, %v776
        %v1019 = vmul.f32 %v1013, %v780
        %1020 = vrot.lane.b32.xlu0 %v948, 127
        %v1021 = vpop.permute.xlu0 %1020
        %1022 = vrot.lane.b32.xlu0 %v952, 127
        %v1023 = vpop.permute.xlu0 %1022
        %1024 = vrot.lane.b32.xlu0 %v950, 127
        %v1025 = vpop.permute.xlu0 %1024
        %1026 = vrot.lane.b32.xlu0 %v954, 127
        %v1027 = vpop.permute.xlu0 %1026
        %v1028 = vsel %vm789, %v1021, %v1025
        %v1029 = vsel %vm789, %v1023, %v1027
        %v1030 = vsel %vm789, %v1025, %v1021
        %v1031 = vsel %vm789, %v1027, %v1023
        %v1032 = vmul.f32 %v1028, %v798
        %v1033 = vmul.f32 %v1030, %v802
        %v1034 = vmul.f32 %v1029, %v798
        %v1035 = vmul.f32 %v1031, %v802
        %1036 = vrot.lane.b32.xlu0 %v948, 113
        %v1037 = vpop.permute.xlu0 %1036
        %1038 = vrot.lane.b32.xlu0 %v952, 113
        %v1039 = vpop.permute.xlu0 %1038
        %1040 = vrot.lane.b32.xlu0 %v950, 113
        %v1041 = vpop.permute.xlu0 %1040
        %1042 = vrot.lane.b32.xlu0 %v954, 113
        %v1043 = vpop.permute.xlu0 %1042
        %v1044 = vsel %vm811, %v1037, %v1041
        %v1045 = vsel %vm811, %v1039, %v1043
        %v1046 = vsel %vm811, %v1041, %v1037
        %v1047 = vsel %vm811, %v1043, %v1039
        %v1048 = vmul.f32 %v1044, %v820
        %v1049 = vmul.f32 %v1046, %v824
        %v1050 = vmul.f32 %v1045, %v820
        %v1051 = vmul.f32 %v1047, %v824
        %1052 = vrot.lane.b32.xlu0 %v948, 112
        %v1053 = vpop.permute.xlu0 %1052
        %1054 = vrot.lane.b32.xlu0 %v952, 112
        %v1055 = vpop.permute.xlu0 %1054
        %1056 = vrot.lane.b32.xlu0 %v950, 112
        %v1057 = vpop.permute.xlu0 %1056
        %1058 = vrot.lane.b32.xlu0 %v954, 112
        %v1059 = vpop.permute.xlu0 %1058
        %v1060 = vsel %vm833, %v1053, %v1057
        %v1061 = vsel %vm833, %v1055, %v1059
        %v1062 = vsel %vm833, %v1057, %v1053
        %v1063 = vsel %vm833, %v1059, %v1055
        %v1064 = vmul.f32 %v1060, %v842
        %v1065 = vmul.f32 %v1062, %v846
        %v1066 = vmul.f32 %v1061, %v842
        %v1067 = vmul.f32 %v1063, %v846
        %1068 = vrot.lane.b32.xlu0 %v948, 111
        %v1069 = vpop.permute.xlu0 %1068
        %1070 = vrot.lane.b32.xlu0 %v952, 111
        %v1071 = vpop.permute.xlu0 %1070
        %1072 = vrot.lane.b32.xlu0 %v950, 111
        %v1073 = vpop.permute.xlu0 %1072
        %1074 = vrot.lane.b32.xlu0 %v954, 111
        %v1075 = vpop.permute.xlu0 %1074
        %v1076 = vsel %vm855, %v1069, %v1073
        %v1077 = vsel %vm855, %v1071, %v1075
        %v1078 = vsel %vm855, %v1073, %v1069
        %v1079 = vsel %vm855, %v1075, %v1071
        %v1080 = vmul.f32 %v1076, %v864
        %v1081 = vmul.f32 %v1078, %v868
        %v1082 = vmul.f32 %v1077, %v864
        %v1083 = vmul.f32 %v1079, %v868
        %v1084 = vpack.c.bf16 %v970, %v968
        %v1085 = vpack.c.bf16 %v971, %v969
        %v1086 = vpack.c.bf16 %v986, %v984
        %v1087 = vpack.c.bf16 %v987, %v985
        %v1088 = vpack.c.bf16 %v1002, %v1000
        %v1089 = vpack.c.bf16 %v1003, %v1001
        %v1090 = vpack.c.bf16 %v1018, %v1016
        %v1091 = vpack.c.bf16 %v1019, %v1017
        %v1092 = vpack.c.bf16 %v952, %v948
        %v1093 = vpack.c.bf16 %v954, %v950
        %v1094 = vpack.c.bf16 %v1034, %v1032
        %v1095 = vpack.c.bf16 %v1035, %v1033
        %v1096 = vpack.c.bf16 %v1050, %v1048
        %v1097 = vpack.c.bf16 %v1051, %v1049
        %v1098 = vpack.c.bf16 %v1066, %v1064
        %v1099 = vpack.c.bf16 %v1067, %v1065
        %v1100 = vpack.c.bf16 %v1082, %v1080
        %v1101 = vpack.c.bf16 %v1083, %v1081
        %v1102 = vld [vmem:[%s4] sm:$0xff]
        %v1103 = vld [vmem:[%s4 + $0x8] sm:$0xff]
        %v1104 = vld [vmem:[%s4 + $0x10] sm:$0xff]
        %v1105 = vld [vmem:[%s4 + $0x18] sm:$0xff]
        %v1106 = vld [vmem:[%s5] sm:$0xff]
        %v1107 = vld [vmem:[%s5 + $0x8] sm:$0xff]
        %v1108 = vld [vmem:[%s5 + $0x10] sm:$0xff]
        %v1109 = vld [vmem:[%s5 + $0x18] sm:$0xff]
        %1111 = vset.pattern.permute.xlu0 0
        %1112 = vperm.xlu0 %1111, %v1106
        %v1113 = vpop.permute.xlu0 %1112
        %1116 = vset.pattern.permute.xlu0 0
        %1117 = vperm.xlu0 %1116, %v1107
        %v1118 = vpop.permute.xlu0 %1117
        %1121 = vset.pattern.permute.xlu0 0
        %1122 = vperm.xlu0 %1121, %v1108
        %v1123 = vpop.permute.xlu0 %1122
        %1126 = vset.pattern.permute.xlu0 0
        %1127 = vperm.xlu0 %1126, %v1109
        %v1128 = vpop.permute.xlu0 %1127
        %v1134 = vunpack.c.l.b16 %v1102
        %v1135 = vunpack.c.h.b16 %v1102
        %v1136 = vunpack.c.l.b16 %v1103
        %v1137 = vunpack.c.h.b16 %v1103
        %v1138 = vunpack.c.l.b16 %v1104
        %v1139 = vunpack.c.h.b16 %v1104
        %v1140 = vunpack.c.l.b16 %v1105
        %v1141 = vunpack.c.h.b16 %v1105
        %v1142 = vpack.c.b16 %v1136, %v1134
        %v1143 = vpack.c.b16 %v1137, %v1135
        %v1144 = vpack.c.b16 %v1140, %v1138
        %v1145 = vpack.c.b16 %v1141, %v1139
        %vm1148 = vcmask 130048
        %v1150 = vsel %vm1148, %v1143, 0
        %v1153 = vsel %vm1148, %v1145, 0
        %1155 = vmatprep.subr.bf16.mxu0 %v1085
        %1156 = vmatpush1.bf16.msra.mxu0 %v1084
        %1157 = vmatprep.subr.bf16.mxu0 %v1087
        %1158 = vmatpush1.bf16.msra.mxu0 %v1086
        %1159 = vmatprep.subr.bf16.mxu0 %v1089
        %1160 = vmatpush1.bf16.msra.mxu0 %v1088
        %1161 = vmatprep.subr.bf16.mxu0 %v1091
        %1162 = vmatpush1.bf16.msra.mxu0 %v1090
        %1163 = vmatprep.subr.bf16.mxu0 %v1093
        %1164 = vmatpush1.bf16.msra.mxu0 %v1092
        %1165 = vmatprep.subr.bf16.mxu0 %v1095
        %1166 = vmatpush1.bf16.msra.mxu0 %v1094
        %1167 = vmatprep.subr.bf16.mxu0 %v1097
        %1168 = vmatpush1.bf16.msra.mxu0 %v1096
        %1169 = vmatprep.subr.bf16.mxu0 %v1099
        %1170 = vmatpush1.bf16.msra.mxu0 %v1098
        %1171 = vmatprep.subr.bf16.mxu0 %v1101
        %1172 = vmatpush1.bf16.msra.mxu0 %v1100
        %1173 = vmatprep.subr.bf16.mxu0 0
        %1174 = vmatpush1.bf16.msra.mxu0 0
        %1175 = vmatprep.subr.bf16.mxu0 0
        %1176 = vmatpush1.bf16.msra.mxu0 0
        %1177 = vmatprep.subr.bf16.mxu0 0
        %1178 = vmatpush1.bf16.msra.mxu0 0
        %1179 = vmatprep.subr.bf16.mxu0 0
        %1180 = vmatpush1.bf16.msra.mxu0 0
        %1181 = vmatprep.subr.bf16.mxu0 0
        %1182 = vmatpush1.bf16.msra.mxu0 0
        %1183 = vmatprep.subr.bf16.mxu0 0
        %1184 = vmatpush1.bf16.msra.mxu0 0
        %1185 = vmatprep.subr.bf16.mxu0 0
        %1186 = vmatpush1.bf16.msra.mxu0 0
        %1187 = vmatprep.mubr.bf16.mxu0 %v1150
        %1188 = vmatmul.mubr.bf16.gmra.mrb[0].mxu0 %v1142
        %v1189 = vpop.f32.mrb[0].mxu0
        %v1190 = vadd.f32 %v1113, %v1189
        %v1191 = vpop.f32.mrb[0].mxu0
        %v1192 = vadd.f32 %v1113, %v1191
        %v1193 = vpop.f32.mrb[0].mxu0
        %v1194 = vadd.f32 %v1118, %v1193
        %v1195 = vpop.f32.mrb[0].mxu0
        %v1196 = vadd.f32 %v1118, %v1195
        %1197 = vmatprep.mubr.bf16.mxu0 %v1153
        %1198 = vmatmul.mubr.bf16.gmra.mrb[0].mxu0 %v1144
        %v1199 = vpop.f32.mrb[0].mxu0
        %v1200 = vadd.f32 %v1123, %v1199
        %v1201 = vpop.f32.mrb[0].mxu0
        %v1202 = vadd.f32 %v1123, %v1201
        %v1203 = vpop.f32.mrb[0].mxu0
        %v1204 = vadd.f32 %v1128, %v1203
        %v1205 = vpop.f32.mrb[0].mxu0
        %v1206 = vadd.f32 %v1128, %v1205
        %1207 = vdwg.mxu0
        %1208 = vrot.lane.b32.xlu0 %v1190, 17
        %v1209 = vpop.permute.xlu0 %1208
        %1210 = vrot.lane.b32.xlu0 %v1194, 17
        %v1211 = vpop.permute.xlu0 %1210
        %1212 = vrot.lane.b32.xlu0 %v1200, 17
        %v1213 = vpop.permute.xlu0 %1212
        %1214 = vrot.lane.b32.xlu0 %v1204, 17
        %v1215 = vpop.permute.xlu0 %1214
        %1216 = vrot.lane.b32.xlu0 %v1192, 17
        %v1217 = vpop.permute.xlu0 %1216
        %1218 = vrot.lane.b32.xlu0 %v1196, 17
        %v1219 = vpop.permute.xlu0 %1218
        %1220 = vrot.lane.b32.xlu0 %v1202, 17
        %v1221 = vpop.permute.xlu0 %1220
        %1222 = vrot.lane.b32.xlu0 %v1206, 17
        %v1223 = vpop.permute.xlu0 %1222
        %v1224 = vsel %vm702, %v1209, %v1217
        %v1225 = vsel %vm702, %v1211, %v1219
        %v1226 = vsel %vm702, %v1213, %v1221
        %v1227 = vsel %vm702, %v1215, %v1223
        %v1228 = vsel %vm702, %v1217, %v1209
        %v1229 = vsel %vm702, %v1219, %v1211
        %v1230 = vsel %vm702, %v1221, %v1213
        %v1231 = vsel %vm702, %v1223, %v1215
        %v1232 = vmul.f32 %v1228, %v710
        %v1233 = vmul.f32 %v1224, %v714
        %v1234 = vmul.f32 %v1229, %v710
        %v1235 = vmul.f32 %v1225, %v714
        %v1236 = vmul.f32 %v1230, %v710
        %v1237 = vmul.f32 %v1226, %v714
        %v1238 = vmul.f32 %v1231, %v710
        %v1239 = vmul.f32 %v1227, %v714
        %1240 = vrot.lane.b32.xlu0 %v1190, 16
        %v1241 = vpop.permute.xlu0 %1240
        %1242 = vrot.lane.b32.xlu0 %v1194, 16
        %v1243 = vpop.permute.xlu0 %1242
        %1244 = vrot.lane.b32.xlu0 %v1200, 16
        %v1245 = vpop.permute.xlu0 %1244
        %1246 = vrot.lane.b32.xlu0 %v1204, 16
        %v1247 = vpop.permute.xlu0 %1246
        %1248 = vrot.lane.b32.xlu0 %v1192, 16
        %v1249 = vpop.permute.xlu0 %1248
        %1250 = vrot.lane.b32.xlu0 %v1196, 16
        %v1251 = vpop.permute.xlu0 %1250
        %1252 = vrot.lane.b32.xlu0 %v1202, 16
        %v1253 = vpop.permute.xlu0 %1252
        %1254 = vrot.lane.b32.xlu0 %v1206, 16
        %v1255 = vpop.permute.xlu0 %1254
        %v1256 = vsel %vm723, %v1241, %v1249
        %v1257 = vsel %vm723, %v1243, %v1251
        %v1258 = vsel %vm723, %v1245, %v1253
        %v1259 = vsel %vm723, %v1247, %v1255
        %v1260 = vsel %vm723, %v1249, %v1241
        %v1261 = vsel %vm723, %v1251, %v1243
        %v1262 = vsel %vm723, %v1253, %v1245
        %v1263 = vsel %vm723, %v1255, %v1247
        %v1264 = vmul.f32 %v1260, %v732
        %v1265 = vmul.f32 %v1256, %v736
        %v1266 = vmul.f32 %v1261, %v732
        %v1267 = vmul.f32 %v1257, %v736
        %v1268 = vmul.f32 %v1262, %v732
        %v1269 = vmul.f32 %v1258, %v736
        %v1270 = vmul.f32 %v1263, %v732
        %v1271 = vmul.f32 %v1259, %v736
        %1272 = vrot.lane.b32.xlu0 %v1190, 15
        %v1273 = vpop.permute.xlu0 %1272
        %1274 = vrot.lane.b32.xlu0 %v1194, 15
        %v1275 = vpop.permute.xlu0 %1274
        %1276 = vrot.lane.b32.xlu0 %v1200, 15
        %v1277 = vpop.permute.xlu0 %1276
        %1278 = vrot.lane.b32.xlu0 %v1204, 15
        %v1279 = vpop.permute.xlu0 %1278
        %1280 = vrot.lane.b32.xlu0 %v1192, 15
        %v1281 = vpop.permute.xlu0 %1280
        %1282 = vrot.lane.b32.xlu0 %v1196, 15
        %v1283 = vpop.permute.xlu0 %1282
        %1284 = vrot.lane.b32.xlu0 %v1202, 15
        %v1285 = vpop.permute.xlu0 %1284
        %1286 = vrot.lane.b32.xlu0 %v1206, 15
        %v1287 = vpop.permute.xlu0 %1286
        %v1288 = vsel %vm745, %v1273, %v1281
        %v1289 = vsel %vm745, %v1275, %v1283
        %v1290 = vsel %vm745, %v1277, %v1285
        %v1291 = vsel %vm745, %v1279, %v1287
        %v1292 = vsel %vm745, %v1281, %v1273
        %v1293 = vsel %vm745, %v1283, %v1275
        %v1294 = vsel %vm745, %v1285, %v1277
        %v1295 = vsel %vm745, %v1287, %v1279
        %v1296 = vmul.f32 %v1292, %v754
        %v1297 = vmul.f32 %v1288, %v758
        %v1298 = vmul.f32 %v1293, %v754
        %v1299 = vmul.f32 %v1289, %v758
        %v1300 = vmul.f32 %v1294, %v754
        %v1301 = vmul.f32 %v1290, %v758
        %v1302 = vmul.f32 %v1295, %v754
        %v1303 = vmul.f32 %v1291, %v758
        %1304 = vrot.lane.b32.xlu0 %v1190, 1
        %v1305 = vpop.permute.xlu0 %1304
        %1306 = vrot.lane.b32.xlu0 %v1194, 1
        %v1307 = vpop.permute.xlu0 %1306
        %1308 = vrot.lane.b32.xlu0 %v1200, 1
        %v1309 = vpop.permute.xlu0 %1308
        %1310 = vrot.lane.b32.xlu0 %v1204, 1
        %v1311 = vpop.permute.xlu0 %1310
        %1312 = vrot.lane.b32.xlu0 %v1192, 1
        %v1313 = vpop.permute.xlu0 %1312
        %1314 = vrot.lane.b32.xlu0 %v1196, 1
        %v1315 = vpop.permute.xlu0 %1314
        %1316 = vrot.lane.b32.xlu0 %v1202, 1
        %v1317 = vpop.permute.xlu0 %1316
        %1318 = vrot.lane.b32.xlu0 %v1206, 1
        %v1319 = vpop.permute.xlu0 %1318
        %v1320 = vsel %vm767, %v1305, %v1313
        %v1321 = vsel %vm767, %v1307, %v1315
        %v1322 = vsel %vm767, %v1309, %v1317
        %v1323 = vsel %vm767, %v1311, %v1319
        %v1324 = vsel %vm767, %v1313, %v1305
        %v1325 = vsel %vm767, %v1315, %v1307
        %v1326 = vsel %vm767, %v1317, %v1309
        %v1327 = vsel %vm767, %v1319, %v1311
        %v1328 = vmul.f32 %v1324, %v776
        %v1329 = vmul.f32 %v1320, %v780
        %v1330 = vmul.f32 %v1325, %v776
        %v1331 = vmul.f32 %v1321, %v780
        %v1332 = vmul.f32 %v1326, %v776
        %v1333 = vmul.f32 %v1322, %v780
        %v1334 = vmul.f32 %v1327, %v776
        %v1335 = vmul.f32 %v1323, %v780
        %1336 = vrot.lane.b32.xlu0 %v1190, 127
        %v1337 = vpop.permute.xlu0 %1336
        %1338 = vrot.lane.b32.xlu0 %v1194, 127
        %v1339 = vpop.permute.xlu0 %1338
        %1340 = vrot.lane.b32.xlu0 %v1200, 127
        %v1341 = vpop.permute.xlu0 %1340
        %1342 = vrot.lane.b32.xlu0 %v1204, 127
        %v1343 = vpop.permute.xlu0 %1342
        %1344 = vrot.lane.b32.xlu0 %v1192, 127
        %v1345 = vpop.permute.xlu0 %1344
        %1346 = vrot.lane.b32.xlu0 %v1196, 127
        %v1347 = vpop.permute.xlu0 %1346
        %1348 = vrot.lane.b32.xlu0 %v1202, 127
        %v1349 = vpop.permute.xlu0 %1348
        %1350 = vrot.lane.b32.xlu0 %v1206, 127
        %v1351 = vpop.permute.xlu0 %1350
        %v1352 = vsel %vm789, %v1337, %v1345
        %v1353 = vsel %vm789, %v1339, %v1347
        %v1354 = vsel %vm789, %v1341, %v1349
        %v1355 = vsel %vm789, %v1343, %v1351
        %v1356 = vsel %vm789, %v1345, %v1337
        %v1357 = vsel %vm789, %v1347, %v1339
        %v1358 = vsel %vm789, %v1349, %v1341
        %v1359 = vsel %vm789, %v1351, %v1343
        %v1360 = vmul.f32 %v1352, %v798
        %v1361 = vmul.f32 %v1356, %v802
        %v1362 = vmul.f32 %v1353, %v798
        %v1363 = vmul.f32 %v1357, %v802
        %v1364 = vmul.f32 %v1354, %v798
        %v1365 = vmul.f32 %v1358, %v802
        %v1366 = vmul.f32 %v1355, %v798
        %v1367 = vmul.f32 %v1359, %v802
        %1368 = vrot.lane.b32.xlu0 %v1190, 113
        %v1369 = vpop.permute.xlu0 %1368
        %1370 = vrot.lane.b32.xlu0 %v1194, 113
        %v1371 = vpop.permute.xlu0 %1370
        %1372 = vrot.lane.b32.xlu0 %v1200, 113
        %v1373 = vpop.permute.xlu0 %1372
        %1374 = vrot.lane.b32.xlu0 %v1204, 113
        %v1375 = vpop.permute.xlu0 %1374
        %1376 = vrot.lane.b32.xlu0 %v1192, 113
        %v1377 = vpop.permute.xlu0 %1376
        %1378 = vrot.lane.b32.xlu0 %v1196, 113
        %v1379 = vpop.permute.xlu0 %1378
        %1380 = vrot.lane.b32.xlu0 %v1202, 113
        %v1381 = vpop.permute.xlu0 %1380
        %1382 = vrot.lane.b32.xlu0 %v1206, 113
        %v1383 = vpop.permute.xlu0 %1382
        %v1384 = vsel %vm811, %v1369, %v1377
        %v1385 = vsel %vm811, %v1371, %v1379
        %v1386 = vsel %vm811, %v1373, %v1381
        %v1387 = vsel %vm811, %v1375, %v1383
        %v1388 = vsel %vm811, %v1377, %v1369
        %v1389 = vsel %vm811, %v1379, %v1371
        %v1390 = vsel %vm811, %v1381, %v1373
        %v1391 = vsel %vm811, %v1383, %v1375
        %v1392 = vmul.f32 %v1384, %v820
        %v1393 = vmul.f32 %v1388, %v824
        %v1394 = vmul.f32 %v1385, %v820
        %v1395 = vmul.f32 %v1389, %v824
        %v1396 = vmul.f32 %v1386, %v820
        %v1397 = vmul.f32 %v1390, %v824
        %v1398 = vmul.f32 %v1387, %v820
        %v1399 = vmul.f32 %v1391, %v824
        %1400 = vrot.lane.b32.xlu0 %v1190, 112
        %v1401 = vpop.permute.xlu0 %1400
        %1402 = vrot.lane.b32.xlu0 %v1194, 112
        %v1403 = vpop.permute.xlu0 %1402
        %1404 = vrot.lane.b32.xlu0 %v1200, 112
        %v1405 = vpop.permute.xlu0 %1404
        %1406 = vrot.lane.b32.xlu0 %v1204, 112
        %v1407 = vpop.permute.xlu0 %1406
        %1408 = vrot.lane.b32.xlu0 %v1192, 112
        %v1409 = vpop.permute.xlu0 %1408
        %1410 = vrot.lane.b32.xlu0 %v1196, 112
        %v1411 = vpop.permute.xlu0 %1410
        %1412 = vrot.lane.b32.xlu0 %v1202, 112
        %v1413 = vpop.permute.xlu0 %1412
        %1414 = vrot.lane.b32.xlu0 %v1206, 112
        %v1415 = vpop.permute.xlu0 %1414
        %v1416 = vsel %vm833, %v1401, %v1409
        %v1417 = vsel %vm833, %v1403, %v1411
        %v1418 = vsel %vm833, %v1405, %v1413
        %v1419 = vsel %vm833, %v1407, %v1415
        %v1420 = vsel %vm833, %v1409, %v1401
        %v1421 = vsel %vm833, %v1411, %v1403
        %v1422 = vsel %vm833, %v1413, %v1405
        %v1423 = vsel %vm833, %v1415, %v1407
        %v1424 = vmul.f32 %v1416, %v842
        %v1425 = vmul.f32 %v1420, %v846
        %v1426 = vmul.f32 %v1417, %v842
        %v1427 = vmul.f32 %v1421, %v846
        %v1428 = vmul.f32 %v1418, %v842
        %v1429 = vmul.f32 %v1422, %v846
        %v1430 = vmul.f32 %v1419, %v842
        %v1431 = vmul.f32 %v1423, %v846
        %1432 = vrot.lane.b32.xlu0 %v1190, 111
        %v1433 = vpop.permute.xlu0 %1432
        %1434 = vrot.lane.b32.xlu0 %v1194, 111
        %v1435 = vpop.permute.xlu0 %1434
        %1436 = vrot.lane.b32.xlu0 %v1200, 111
        %v1437 = vpop.permute.xlu0 %1436
        %1438 = vrot.lane.b32.xlu0 %v1204, 111
        %v1439 = vpop.permute.xlu0 %1438
        %1440 = vrot.lane.b32.xlu0 %v1192, 111
        %v1441 = vpop.permute.xlu0 %1440
        %1442 = vrot.lane.b32.xlu0 %v1196, 111
        %v1443 = vpop.permute.xlu0 %1442
        %1444 = vrot.lane.b32.xlu0 %v1202, 111
        %v1445 = vpop.permute.xlu0 %1444
        %1446 = vrot.lane.b32.xlu0 %v1206, 111
        %v1447 = vpop.permute.xlu0 %1446
        %v1448 = vsel %vm855, %v1433, %v1441
        %v1449 = vsel %vm855, %v1435, %v1443
        %v1450 = vsel %vm855, %v1437, %v1445
        %v1451 = vsel %vm855, %v1439, %v1447
        %v1452 = vsel %vm855, %v1441, %v1433
        %v1453 = vsel %vm855, %v1443, %v1435
        %v1454 = vsel %vm855, %v1445, %v1437
        %v1455 = vsel %vm855, %v1447, %v1439
        %v1456 = vmul.f32 %v1448, %v864
        %v1457 = vmul.f32 %v1452, %v868
        %v1458 = vmul.f32 %v1449, %v864
        %v1459 = vmul.f32 %v1453, %v868
        %v1460 = vmul.f32 %v1450, %v864
        %v1461 = vmul.f32 %v1454, %v868
        %v1462 = vmul.f32 %v1451, %v864
        %v1463 = vmul.f32 %v1455, %v868
        %v1464 = vpack.c.bf16 %v1234, %v1232
        %v1465 = vpack.c.bf16 %v1235, %v1233
        %v1466 = vpack.c.bf16 %v1238, %v1236
        %v1467 = vpack.c.bf16 %v1239, %v1237
        %v1468 = vpack.c.bf16 %v1266, %v1264
        %v1469 = vpack.c.bf16 %v1267, %v1265
        %v1470 = vpack.c.bf16 %v1270, %v1268
        %v1471 = vpack.c.bf16 %v1271, %v1269
        %v1472 = vpack.c.bf16 %v1298, %v1296
        %v1473 = vpack.c.bf16 %v1299, %v1297
        %v1474 = vpack.c.bf16 %v1302, %v1300
        %v1475 = vpack.c.bf16 %v1303, %v1301
        %v1476 = vpack.c.bf16 %v1330, %v1328
        %v1477 = vpack.c.bf16 %v1331, %v1329
        %v1478 = vpack.c.bf16 %v1334, %v1332
        %v1479 = vpack.c.bf16 %v1335, %v1333
        %v1480 = vpack.c.bf16 %v1194, %v1190
        %v1481 = vpack.c.bf16 %v1196, %v1192
        %v1482 = vpack.c.bf16 %v1204, %v1200
        %v1483 = vpack.c.bf16 %v1206, %v1202
        %v1484 = vpack.c.bf16 %v1362, %v1360
        %v1485 = vpack.c.bf16 %v1363, %v1361
        %v1486 = vpack.c.bf16 %v1366, %v1364
        %v1487 = vpack.c.bf16 %v1367, %v1365
        %v1488 = vpack.c.bf16 %v1394, %v1392
        %v1489 = vpack.c.bf16 %v1395, %v1393
        %v1490 = vpack.c.bf16 %v1398, %v1396
        %v1491 = vpack.c.bf16 %v1399, %v1397
        %v1492 = vpack.c.bf16 %v1426, %v1424
        %v1493 = vpack.c.bf16 %v1427, %v1425
        %v1494 = vpack.c.bf16 %v1430, %v1428
        %v1495 = vpack.c.bf16 %v1431, %v1429
        %v1496 = vpack.c.bf16 %v1458, %v1456
        %v1497 = vpack.c.bf16 %v1459, %v1457
        %v1498 = vpack.c.bf16 %v1462, %v1460
        %v1499 = vpack.c.bf16 %v1463, %v1461
        %v1500 = vld [vmem:[%s6] sm:$0xff]
        %v1501 = vld [vmem:[%s6 + $0x8] sm:$0xf]
        %v1502 = vld [vmem:[%s6 + $0xc] sm:$0xff]
        %v1503 = vld [vmem:[%s6 + $0x14] sm:$0xf]
        %v1504 = vld [vmem:[%s6 + $0x18] sm:$0xff]
        %v1505 = vld [vmem:[%s6 + $0x20] sm:$0xf]
        %v1506 = vld [vmem:[%s6 + $0x24] sm:$0xff]
        %v1507 = vld [vmem:[%s6 + $0x2c] sm:$0xf]
        %v1508 = vld [vmem:[%s6 + $0x30] sm:$0xff]
        %v1509 = vld [vmem:[%s6 + $0x38] sm:$0xf]
        %v1510 = vld [vmem:[%s6 + $0x3c] sm:$0xff]
        %v1511 = vld [vmem:[%s6 + $0x44] sm:$0xf]
        %v1512 = vld [vmem:[%s6 + $0x48] sm:$0xff]
        %v1513 = vld [vmem:[%s6 + $0x50] sm:$0xf]
        %v1514 = vld [vmem:[%s6 + $0x54] sm:$0xff]
        %v1515 = vld [vmem:[%s6 + $0x5c] sm:$0xf]
        %v1516 = vld [vmem:[%s7] sm:$0xff]
        %v1517 = vld [vmem:[%s7 + $0x8] sm:$0xff]
        %v1518 = vld [vmem:[%s7 + $0x10] sm:$0xff]
        %v1519 = vld [vmem:[%s7 + $0x18] sm:$0xff]
        %v1520 = vld [vmem:[%s7 + $0x20] sm:$0xff]
        %v1521 = vld [vmem:[%s7 + $0x28] sm:$0xff]
        %v1522 = vld [vmem:[%s7 + $0x30] sm:$0xff]
        %v1523 = vld [vmem:[%s7 + $0x38] sm:$0xff]
        %1525 = vset.pattern.permute.xlu0 0
        %1526 = vperm.xlu0 %1525, %v1516
        %v1527 = vpop.permute.xlu0 %1526
        %1530 = vset.pattern.permute.xlu0 0
        %1531 = vperm.xlu0 %1530, %v1517
        %v1532 = vpop.permute.xlu0 %1531
        %1535 = vset.pattern.permute.xlu0 0
        %1536 = vperm.xlu0 %1535, %v1518
        %v1537 = vpop.permute.xlu0 %1536
        %1540 = vset.pattern.permute.xlu0 0
        %1541 = vperm.xlu0 %1540, %v1519
        %v1542 = vpop.permute.xlu0 %1541
        %1545 = vset.pattern.permute.xlu0 0
        %1546 = vperm.xlu0 %1545, %v1520
        %v1547 = vpop.permute.xlu0 %1546
        %1550 = vset.pattern.permute.xlu0 0
        %1551 = vperm.xlu0 %1550, %v1521
        %v1552 = vpop.permute.xlu0 %1551
        %1555 = vset.pattern.permute.xlu0 0
        %1556 = vperm.xlu0 %1555, %v1522
        %v1557 = vpop.permute.xlu0 %1556
        %1560 = vset.pattern.permute.xlu0 0
        %1561 = vperm.xlu0 %1560, %v1523
        %v1562 = vpop.permute.xlu0 %1561
        %v1580 = vunpack.c.l.b16 %v1500
        %v1581 = vunpack.c.h.b16 %v1500
        %v1582 = vunpack.c.l.b16 %v1501
        %v1583 = vunpack.c.l.b16 %v1502
        %v1584 = vunpack.c.h.b16 %v1502
        %v1585 = vunpack.c.l.b16 %v1503
        %v1586 = vunpack.c.l.b16 %v1504
        %v1587 = vunpack.c.h.b16 %v1504
        %v1588 = vunpack.c.l.b16 %v1505
        %v1589 = vunpack.c.l.b16 %v1506
        %v1590 = vunpack.c.h.b16 %v1506
        %v1591 = vunpack.c.l.b16 %v1507
        %v1592 = vunpack.c.l.b16 %v1508
        %v1593 = vunpack.c.h.b16 %v1508
        %v1594 = vunpack.c.l.b16 %v1509
        %v1595 = vunpack.c.l.b16 %v1510
        %v1596 = vunpack.c.h.b16 %v1510
        %v1597 = vunpack.c.l.b16 %v1511
        %v1598 = vunpack.c.l.b16 %v1512
        %v1599 = vunpack.c.h.b16 %v1512
        %v1600 = vunpack.c.l.b16 %v1513
        %v1601 = vunpack.c.l.b16 %v1514
        %v1602 = vunpack.c.h.b16 %v1514
        %v1603 = vunpack.c.l.b16 %v1515
        %v1604 = vpack.c.b16 %v1583, %v1580
        %v1605 = vpack.c.b16 %v1584, %v1581
        %v1606 = vpack.c.b16 %v1585, %v1582
        %v1607 = vpack.c.b16 %v1589, %v1586
        %v1608 = vpack.c.b16 %v1590, %v1587
        %v1609 = vpack.c.b16 %v1591, %v1588
        %v1610 = vpack.c.b16 %v1595, %v1592
        %v1611 = vpack.c.b16 %v1596, %v1593
        %v1612 = vpack.c.b16 %v1597, %v1594
        %v1613 = vpack.c.b16 %v1601, %v1598
        %v1614 = vpack.c.b16 %v1602, %v1599
        %v1615 = vpack.c.b16 %v1603, %v1600
        %vm1624 = vcmask 261120
        %v1626 = vsel %vm1624, %v1606, 0
        %v1629 = vsel %vm1624, %v1609, 0
        %v1632 = vsel %vm1624, %v1612, 0
        %v1635 = vsel %vm1624, %v1615, 0
        %1637 = vmatprep.subr.bf16.mxu0 %v1465
        %1638 = vmatpush1.bf16.msra.mxu0 %v1464
        %1639 = vmatprep.subr.bf16.mxu0 %v1467
        %1640 = vmatpush1.bf16.msra.mxu0 %v1466
        %1641 = vmatprep.subr.bf16.mxu0 %v1469
        %1642 = vmatpush1.bf16.msra.mxu0 %v1468
        %1643 = vmatprep.subr.bf16.mxu0 %v1471
        %1644 = vmatpush1.bf16.msra.mxu0 %v1470
        %1645 = vmatprep.subr.bf16.mxu0 %v1473
        %1646 = vmatpush1.bf16.msra.mxu0 %v1472
        %1647 = vmatprep.subr.bf16.mxu0 %v1475
        %1648 = vmatpush1.bf16.msra.mxu0 %v1474
        %1649 = vmatprep.subr.bf16.mxu0 %v1477
        %1650 = vmatpush1.bf16.msra.mxu0 %v1476
        %1651 = vmatprep.subr.bf16.mxu0 %v1479
        %1652 = vmatpush1.bf16.msra.mxu0 %v1478
        %1653 = vmatprep.subr.bf16.mxu0 %v1481
        %1654 = vmatpush1.bf16.msra.mxu0 %v1480
        %1655 = vmatprep.subr.bf16.mxu0 %v1483
        %1656 = vmatpush1.bf16.msra.mxu0 %v1482
        %1657 = vmatprep.subr.bf16.mxu0 %v1485
        %1658 = vmatpush1.bf16.msra.mxu0 %v1484
        %1659 = vmatprep.subr.bf16.mxu0 %v1487
        %1660 = vmatpush1.bf16.msra.mxu0 %v1486
        %1661 = vmatprep.subr.bf16.mxu0 %v1489
        %1662 = vmatpush1.bf16.msra.mxu0 %v1488
        %1663 = vmatprep.subr.bf16.mxu0 %v1491
        %1664 = vmatpush1.bf16.msra.mxu0 %v1490
        %1665 = vmatprep.subr.bf16.mxu0 %v1493
        %1666 = vmatpush1.bf16.msra.mxu0 %v1492
        %1667 = vmatprep.subr.bf16.mxu0 %v1495
        %1668 = vmatpush1.bf16.msra.mxu0 %v1494
        %1669 = vmatprep.mubr.bf16.mxu0 %v1605
        %1670 = vmatmul.mubr.bf16.gmra.mrb[0].mxu0 %v1604
        %v1671 = vpop.f32.mrb[0].mxu0
        %v1672 = vadd.f32 %v1527, %v1671
        %v1673 = vpop.f32.mrb[0].mxu0
        %v1674 = vadd.f32 %v1527, %v1673
        %v1675 = vpop.f32.mrb[0].mxu0
        %v1676 = vadd.f32 %v1532, %v1675
        %v1677 = vpop.f32.mrb[0].mxu0
        %v1678 = vadd.f32 %v1532, %v1677
        %1679 = vmatprep.mubr.bf16.mxu0 %v1608
        %1680 = vmatmul.mubr.bf16.gmra.mrb[0].mxu0 %v1607
        %v1681 = vpop.f32.mrb[0].mxu0
        %v1682 = vadd.f32 %v1537, %v1681
        %v1683 = vpop.f32.mrb[0].mxu0
        %v1684 = vadd.f32 %v1537, %v1683
        %v1685 = vpop.f32.mrb[0].mxu0
        %v1686 = vadd.f32 %v1542, %v1685
        %v1687 = vpop.f32.mrb[0].mxu0
        %v1688 = vadd.f32 %v1542, %v1687
        %1689 = vmatprep.mubr.bf16.mxu0 %v1611
        %1690 = vmatmul.mubr.bf16.gmra.mrb[0].mxu0 %v1610
        %v1691 = vpop.f32.mrb[0].mxu0
        %v1692 = vadd.f32 %v1547, %v1691
        %v1693 = vpop.f32.mrb[0].mxu0
        %v1694 = vadd.f32 %v1547, %v1693
        %v1695 = vpop.f32.mrb[0].mxu0
        %v1696 = vadd.f32 %v1552, %v1695
        %v1697 = vpop.f32.mrb[0].mxu0
        %v1698 = vadd.f32 %v1552, %v1697
        %1699 = vmatprep.mubr.bf16.mxu0 %v1614
        %1700 = vmatmul.mubr.bf16.gmra.mrb[0].mxu0 %v1613
        %v1701 = vpop.f32.mrb[0].mxu0
        %v1702 = vadd.f32 %v1557, %v1701
        %v1703 = vpop.f32.mrb[0].mxu0
        %v1704 = vadd.f32 %v1557, %v1703
        %v1705 = vpop.f32.mrb[0].mxu0
        %v1706 = vadd.f32 %v1562, %v1705
        %v1707 = vpop.f32.mrb[0].mxu0
        %v1708 = vadd.f32 %v1562, %v1707
        %1709 = vdwg.mxu0
        %1710 = vmatprep.subr.bf16.mxu0 %v1497
        %1711 = vmatpush1.bf16.msra.mxu0 %v1496
        %1712 = vmatprep.subr.bf16.mxu0 %v1499
        %1713 = vmatpush1.bf16.msra.mxu0 %v1498
        %1714 = vmatprep.subr.bf16.mxu0 0
        %1715 = vmatpush1.bf16.msra.mxu0 0
        %1716 = vmatprep.subr.bf16.mxu0 0
        %1717 = vmatpush1.bf16.msra.mxu0 0
        %1718 = vmatprep.subr.bf16.mxu0 0
        %1719 = vmatpush1.bf16.msra.mxu0 0
        %1720 = vmatprep.subr.bf16.mxu0 0
        %1721 = vmatpush1.bf16.msra.mxu0 0
        %1722 = vmatprep.subr.bf16.mxu0 0
        %1723 = vmatpush1.bf16.msra.mxu0 0
        %1724 = vmatprep.subr.bf16.mxu0 0
        %1725 = vmatpush1.bf16.msra.mxu0 0
        %1726 = vmatprep.subr.bf16.mxu0 0
        %1727 = vmatpush1.bf16.msra.mxu0 0
        %1728 = vmatprep.subr.bf16.mxu0 0
        %1729 = vmatpush1.bf16.msra.mxu0 0
        %1730 = vmatprep.subr.bf16.mxu0 0
        %1731 = vmatpush1.bf16.msra.mxu0 0
        %1732 = vmatprep.subr.bf16.mxu0 0
        %1733 = vmatpush1.bf16.msra.mxu0 0
        %1734 = vmatprep.subr.bf16.mxu0 0
        %1735 = vmatpush1.bf16.msra.mxu0 0
        %1736 = vmatprep.subr.bf16.mxu0 0
        %1737 = vmatpush1.bf16.msra.mxu0 0
        %1738 = vmatprep.subr.bf16.mxu0 0
        %1739 = vmatpush1.bf16.msra.mxu0 0
        %1740 = vmatprep.subr.bf16.mxu0 0
        %1741 = vmatpush1.bf16.msra.mxu0 0
        %1742 = vmatprep.mubr.bf16.mxu0 0
        %1743 = vmatmul.mubr.bf16.gmra.mrb[0].mxu0 %v1626
        %v1744 = vpop.f32.mrb[0].mxu0
        %v1745 = vadd.f32 %v1672, %v1744
        %v1746 = vpop.f32.mrb[0].mxu0
        %v1747 = vadd.f32 %v1674, %v1746
        %v1748 = vpop.f32.mrb[0].mxu0
        %v1749 = vadd.f32 %v1676, %v1748
        %v1750 = vpop.f32.mrb[0].mxu0
        %v1751 = vadd.f32 %v1678, %v1750
        %1752 = vmatprep.mubr.bf16.mxu0 0
        %1753 = vmatmul.mubr.bf16.gmra.mrb[0].mxu0 %v1629
        %v1754 = vpop.f32.mrb[0].mxu0
        %v1755 = vadd.f32 %v1682, %v1754
        %v1756 = vpop.f32.mrb[0].mxu0
        %v1757 = vadd.f32 %v1684, %v1756
        %v1758 = vpop.f32.mrb[0].mxu0
        %v1759 = vadd.f32 %v1686, %v1758
        %v1760 = vpop.f32.mrb[0].mxu0
        %v1761 = vadd.f32 %v1688, %v1760
        %1762 = vmatprep.mubr.bf16.mxu0 0
        %1763 = vmatmul.mubr.bf16.gmra.mrb[0].mxu0 %v1632
        %v1764 = vpop.f32.mrb[0].mxu0
        %v1765 = vadd.f32 %v1692, %v1764
        %v1766 = vpop.f32.mrb[0].mxu0
        %v1767 = vadd.f32 %v1694, %v1766
        %v1768 = vpop.f32.mrb[0].mxu0
        %v1769 = vadd.f32 %v1696, %v1768
        %v1770 = vpop.f32.mrb[0].mxu0
        %v1771 = vadd.f32 %v1698, %v1770
        %1772 = vmatprep.mubr.bf16.mxu0 0
        %1773 = vmatmul.mubr.bf16.gmra.mrb[0].mxu0 %v1635
        %v1774 = vpop.f32.mrb[0].mxu0
        %v1775 = vadd.f32 %v1702, %v1774
        %v1776 = vpop.f32.mrb[0].mxu0
        %v1777 = vadd.f32 %v1704, %v1776
        %v1778 = vpop.f32.mrb[0].mxu0
        %v1779 = vadd.f32 %v1706, %v1778
        %v1780 = vpop.f32.mrb[0].mxu0
        %v1781 = vadd.f32 %v1708, %v1780
        %1782 = vdwg.mxu0
        %v1783 = vld [vmem:[%s8] sm:$0xf]
        %v1784 = vld [vmem:[%s9] sm:$0xf]
        %1786 = vset.pattern.permute.xlu0 0
        %1787 = vperm.xlu0 %1786, %v1784
        %v1788 = vpop.permute.xlu0 %1787
        %v1791 = vsel %vm1148, %v1783, 0
        %v1793 = vand.u32 %v950, 4294901760
        %1794 = vmatprep.subr.mxu0 %v1793
        %v1795 = vand.u32 %v948, 4294901760
        %1796 = vmatpush1.msra.mxu0 %v1795
        %v1797 = vand.u32 %v954, 4294901760
        %1798 = vmatprep.subr.mxu0 %v1797
        %v1799 = vand.u32 %v952, 4294901760
        %1800 = vmatpush1.msra.mxu0 %v1799
        %1801 = vmatprep.subr.mxu0 0.0
        %1802 = vmatpush1.msra.mxu0 0.0
        %1803 = vmatprep.subr.mxu0 0.0
        %1804 = vmatpush1.msra.mxu0 0.0
        %1805 = vmatprep.subr.mxu0 0.0
        %1806 = vmatpush1.msra.mxu0 0.0
        %1807 = vmatprep.subr.mxu0 0.0
        %1808 = vmatpush1.msra.mxu0 0.0
        %1809 = vmatprep.subr.mxu0 0.0
        %1810 = vmatpush1.msra.mxu0 0.0
        %1811 = vmatprep.subr.mxu0 0.0
        %1812 = vmatpush1.msra.mxu0 0.0
        %1813 = vmatprep.subr.mxu0 0.0
        %1814 = vmatpush1.msra.mxu0 0.0
        %1815 = vmatprep.subr.mxu0 0.0
        %1816 = vmatpush1.msra.mxu0 0.0
        %1817 = vmatprep.subr.mxu0 0.0
        %1818 = vmatpush1.msra.mxu0 0.0
        %1819 = vmatprep.subr.mxu0 0.0
        %1820 = vmatpush1.msra.mxu0 0.0
        %1821 = vmatprep.subr.mxu0 0.0
        %1822 = vmatpush1.msra.mxu0 0.0
        %1823 = vmatprep.subr.mxu0 0.0
        %1824 = vmatpush1.msra.mxu0 0.0
        %1825 = vmatprep.subr.mxu0 0.0
        %1826 = vmatpush1.msra.mxu0 0.0
        %1827 = vmatprep.subr.mxu0 0.0
        %1828 = vmatpush1.msra.mxu0 0.0
        %1829 = vmatprep.subr.mxu0 0.0
        %1830 = vmatpush1.msra.mxu0 0.0
        %1831 = vmatprep.subr.mxu0 0.0
        %1832 = vmatpush1.msra.mxu0 0.0
        %1833 = vmatprep.subr.mxu0 0.0
        %1834 = vmatpush1.msra.mxu0 0.0
        %1835 = vmatprep.subr.mxu0 0.0
        %1836 = vmatpush1.msra.mxu0 0.0
        %1837 = vmatprep.subr.mxu0 0.0
        %1838 = vmatpush1.msra.mxu0 0.0
        %1839 = vmatprep.subr.mxu0 0.0
        %1840 = vmatpush1.msra.mxu0 0.0
        %1841 = vmatprep.subr.mxu0 0.0
        %1842 = vmatpush1.msra.mxu0 0.0
        %1843 = vmatprep.subr.mxu0 0.0
        %1844 = vmatpush1.msra.mxu0 0.0
        %1845 = vmatprep.subr.mxu0 0.0
        %1846 = vmatpush1.msra.mxu0 0.0
        %1847 = vmatprep.subr.mxu0 0.0
        %1848 = vmatpush1.msra.mxu0 0.0
        %1849 = vmatprep.subr.mxu0 0.0
        %1850 = vmatpush1.msra.mxu0 0.0
        %1851 = vmatprep.subr.mxu0 0.0
        %1852 = vmatpush1.msra.mxu0 0.0
        %1853 = vmatprep.subr.mxu0 0.0
        %1854 = vmatpush1.msra.mxu0 0.0
        %1855 = vmatprep.subr.mxu0 0.0
        %1856 = vmatpush1.msra.mxu0 0.0
        %1857 = vmatprep.subr.mxu0 0.0
        %1858 = vmatpush1.msra.mxu0 0.0
        %1859 = vmatprep.subr.mxu0 0.0
        %1860 = vmatpush1.msra.mxu0 0.0
        %1861 = vmatprep.mubr.f32.mxu0 0.0
        %v1862 = vand.u32 %v1791, 4294901760
        %v1863 = vsub.f32 %v1791, %v1862
        %v1864 = vand.u32 %v1863, 4294901760
        %v1865 = vsub.f32 %v1863, %v1864
        %v1866 = vand.u32 %v1865, 4294901760
        %1867 = vmatmul.mubr.f32.gmra.mrb[0].mxu0 %v1866
        %v1868 = vpop.f32.mrb[0].mxu0
        %v1869 = vadd.f32 %v1788, %v1868
        %v1870 = vpop.f32.mrb[0].mxu0
        %v1871 = vadd.f32 %v1788, %v1870
        %1872 = vdwg.mxu0
        %v1873 = vand.u32 %v950, 4294901760
        %v1874 = vsub.f32 %v950, %v1873
        %v1875 = vand.u32 %v1874, 4294901760
        %v1876 = vsub.f32 %v1874, %v1875
        %v1877 = vand.u32 %v1876, 4294901760
        %1878 = vmatprep.subr.mxu0 %v1877
        %v1879 = vand.u32 %v948, 4294901760
        %v1880 = vsub.f32 %v948, %v1879
        %v1881 = vand.u32 %v1880, 4294901760
        %v1882 = vsub.f32 %v1880, %v1881
        %v1883 = vand.u32 %v1882, 4294901760
        %1884 = vmatpush1.msra.mxu0 %v1883
        %v1885 = vand.u32 %v954, 4294901760
        %v1886 = vsub.f32 %v954, %v1885
        %v1887 = vand.u32 %v1886, 4294901760
        %v1888 = vsub.f32 %v1886, %v1887
        %v1889 = vand.u32 %v1888, 4294901760
        %1890 = vmatprep.subr.mxu0 %v1889
        %v1891 = vand.u32 %v952, 4294901760
        %v1892 = vsub.f32 %v952, %v1891
        %v1893 = vand.u32 %v1892, 4294901760
        %v1894 = vsub.f32 %v1892, %v1893
        %v1895 = vand.u32 %v1894, 4294901760
        %1896 = vmatpush1.msra.mxu0 %v1895
        %1897 = vmatprep.subr.mxu0 0.0
        %1898 = vmatpush1.msra.mxu0 0.0
        %1899 = vmatprep.subr.mxu0 0.0
        %1900 = vmatpush1.msra.mxu0 0.0
        %1901 = vmatprep.subr.mxu0 0.0
        %1902 = vmatpush1.msra.mxu0 0.0
        %1903 = vmatprep.subr.mxu0 0.0
        %1904 = vmatpush1.msra.mxu0 0.0
        %1905 = vmatprep.subr.mxu0 0.0
        %1906 = vmatpush1.msra.mxu0 0.0
        %1907 = vmatprep.subr.mxu0 0.0
        %1908 = vmatpush1.msra.mxu0 0.0
        %1909 = vmatprep.subr.mxu0 0.0
        %1910 = vmatpush1.msra.mxu0 0.0
        %1911 = vmatprep.subr.mxu0 0.0
        %1912 = vmatpush1.msra.mxu0 0.0
        %1913 = vmatprep.subr.mxu0 0.0
        %1914 = vmatpush1.msra.mxu0 0.0
        %1915 = vmatprep.subr.mxu0 0.0
        %1916 = vmatpush1.msra.mxu0 0.0
        %1917 = vmatprep.subr.mxu0 0.0
        %1918 = vmatpush1.msra.mxu0 0.0
        %1919 = vmatprep.subr.mxu0 0.0
        %1920 = vmatpush1.msra.mxu0 0.0
        %1921 = vmatprep.subr.mxu0 0.0
        %1922 = vmatpush1.msra.mxu0 0.0
        %1923 = vmatprep.subr.mxu0 0.0
        %1924 = vmatpush1.msra.mxu0 0.0
        %1925 = vmatprep.subr.mxu0 0.0
        %1926 = vmatpush1.msra.mxu0 0.0
        %1927 = vmatprep.subr.mxu0 0.0
        %1928 = vmatpush1.msra.mxu0 0.0
        %1929 = vmatprep.subr.mxu0 0.0
        %1930 = vmatpush1.msra.mxu0 0.0
        %1931 = vmatprep.subr.mxu0 0.0
        %1932 = vmatpush1.msra.mxu0 0.0
        %1933 = vmatprep.subr.mxu0 0.0
        %1934 = vmatpush1.msra.mxu0 0.0
        %1935 = vmatprep.subr.mxu0 0.0
        %1936 = vmatpush1.msra.mxu0 0.0
        %1937 = vmatprep.subr.mxu0 0.0
        %1938 = vmatpush1.msra.mxu0 0.0
        %1939 = vmatprep.subr.mxu0 0.0
        %1940 = vmatpush1.msra.mxu0 0.0
        %1941 = vmatprep.subr.mxu0 0.0
        %1942 = vmatpush1.msra.mxu0 0.0
        %1943 = vmatprep.subr.mxu0 0.0
        %1944 = vmatpush1.msra.mxu0 0.0
        %1945 = vmatprep.subr.mxu0 0.0
        %1946 = vmatpush1.msra.mxu0 0.0
        %1947 = vmatprep.subr.mxu0 0.0
        %1948 = vmatpush1.msra.mxu0 0.0
        %1949 = vmatprep.subr.mxu0 0.0
        %1950 = vmatpush1.msra.mxu0 0.0
        %1951 = vmatprep.subr.mxu0 0.0
        %1952 = vmatpush1.msra.mxu0 0.0
        %1953 = vmatprep.subr.mxu0 0.0
        %1954 = vmatpush1.msra.mxu0 0.0
        %1955 = vmatprep.subr.mxu0 0.0
        %1956 = vmatpush1.msra.mxu0 0.0
        %1957 = vmatprep.mubr.f32.mxu0 0.0
        %v1958 = vand.u32 %v1791, 4294901760
        %1959 = vmatmul.mubr.f32.gmra.mrb[0].mxu0 %v1958
        %v1960 = vpop.f32.mrb[0].mxu0
        %v1961 = vadd.f32 %v1869, %v1960
        %v1962 = vpop.f32.mrb[0].mxu0
        %v1963 = vadd.f32 %v1871, %v1962
        %1964 = vdwg.mxu0
        %v1965 = vand.u32 %v950, 4294901760
        %v1966 = vsub.f32 %v950, %v1965
        %1967 = vmatprep.subr.mxu0 %v1966
        %v1968 = vand.u32 %v948, 4294901760
        %v1969 = vsub.f32 %v948, %v1968
        %1970 = vmatpush1.msra.mxu0 %v1969
        %v1971 = vand.u32 %v954, 4294901760
        %v1972 = vsub.f32 %v954, %v1971
        %1973 = vmatprep.subr.mxu0 %v1972
        %v1974 = vand.u32 %v952, 4294901760
        %v1975 = vsub.f32 %v952, %v1974
        %1976 = vmatpush1.msra.mxu0 %v1975
        %1977 = vmatprep.subr.mxu0 0.0
        %1978 = vmatpush1.msra.mxu0 0.0
        %1979 = vmatprep.subr.mxu0 0.0
        %1980 = vmatpush1.msra.mxu0 0.0
        %1981 = vmatprep.subr.mxu0 0.0
        %1982 = vmatpush1.msra.mxu0 0.0
        %1983 = vmatprep.subr.mxu0 0.0
        %1984 = vmatpush1.msra.mxu0 0.0
        %1985 = vmatprep.subr.mxu0 0.0
        %1986 = vmatpush1.msra.mxu0 0.0
        %1987 = vmatprep.subr.mxu0 0.0
        %1988 = vmatpush1.msra.mxu0 0.0
        %1989 = vmatprep.subr.mxu0 0.0
        %1990 = vmatpush1.msra.mxu0 0.0
        %1991 = vmatprep.subr.mxu0 0.0
        %1992 = vmatpush1.msra.mxu0 0.0
        %1993 = vmatprep.subr.mxu0 0.0
        %1994 = vmatpush1.msra.mxu0 0.0
        %1995 = vmatprep.subr.mxu0 0.0
        %1996 = vmatpush1.msra.mxu0 0.0
        %1997 = vmatprep.subr.mxu0 0.0
        %1998 = vmatpush1.msra.mxu0 0.0
        %1999 = vmatprep.subr.mxu0 0.0
        %2000 = vmatpush1.msra.mxu0 0.0
        %2001 = vmatprep.subr.mxu0 0.0
        %2002 = vmatpush1.msra.mxu0 0.0
        %2003 = vmatprep.subr.mxu0 0.0
        %2004 = vmatpush1.msra.mxu0 0.0
        %2005 = vmatprep.subr.mxu0 0.0
        %2006 = vmatpush1.msra.mxu0 0.0
        %2007 = vmatprep.subr.mxu0 0.0
        %2008 = vmatpush1.msra.mxu0 0.0
        %2009 = vmatprep.subr.mxu0 0.0
        %2010 = vmatpush1.msra.mxu0 0.0
        %2011 = vmatprep.subr.mxu0 0.0
        %2012 = vmatpush1.msra.mxu0 0.0
        %2013 = vmatprep.subr.mxu0 0.0
        %2014 = vmatpush1.msra.mxu0 0.0
        %2015 = vmatprep.subr.mxu0 0.0
        %2016 = vmatpush1.msra.mxu0 0.0
        %2017 = vmatprep.subr.mxu0 0.0
        %2018 = vmatpush1.msra.mxu0 0.0
        %2019 = vmatprep.subr.mxu0 0.0
        %2020 = vmatpush1.msra.mxu0 0.0
        %2021 = vmatprep.subr.mxu0 0.0
        %2022 = vmatpush1.msra.mxu0 0.0
        %2023 = vmatprep.subr.mxu0 0.0
        %2024 = vmatpush1.msra.mxu0 0.0
        %2025 = vmatprep.subr.mxu0 0.0
        %2026 = vmatpush1.msra.mxu0 0.0
        %2027 = vmatprep.subr.mxu0 0.0
        %2028 = vmatpush1.msra.mxu0 0.0
        %2029 = vmatprep.subr.mxu0 0.0
        %2030 = vmatpush1.msra.mxu0 0.0
        %2031 = vmatprep.subr.mxu0 0.0
        %2032 = vmatpush1.msra.mxu0 0.0
        %2033 = vmatprep.subr.mxu0 0.0
        %2034 = vmatpush1.msra.mxu0 0.0
        %2035 = vmatprep.subr.mxu0 0.0
        %2036 = vmatpush1.msra.mxu0 0.0
        %2037 = vmatprep.mubr.f32.mxu0 0.0
        %v2038 = vand.u32 %v1791, 4294901760
        %v2039 = vsub.f32 %v1791, %v2038
        %2040 = vmatmul.mubr.f32.gmra.mrb[0].mxu0 %v2039
        %v2041 = vpop.f32.mrb[0].mxu0
        %v2042 = vadd.f32 %v1961, %v2041
        %v2043 = vpop.f32.mrb[0].mxu0
        %v2044 = vadd.f32 %v1963, %v2043
        %2045 = vdwg.mxu0
        %v2046 = vand.u32 %v950, 4294901760
        %2047 = vmatprep.subr.mxu0 %v2046
        %v2048 = vand.u32 %v948, 4294901760
        %2049 = vmatpush1.msra.mxu0 %v2048
        %v2050 = vand.u32 %v954, 4294901760
        %2051 = vmatprep.subr.mxu0 %v2050
        %v2052 = vand.u32 %v952, 4294901760
        %2053 = vmatpush1.msra.mxu0 %v2052
        %2054 = vmatprep.subr.mxu0 0.0
        %2055 = vmatpush1.msra.mxu0 0.0
        %2056 = vmatprep.subr.mxu0 0.0
        %2057 = vmatpush1.msra.mxu0 0.0
        %2058 = vmatprep.subr.mxu0 0.0
        %2059 = vmatpush1.msra.mxu0 0.0
        %2060 = vmatprep.subr.mxu0 0.0
        %2061 = vmatpush1.msra.mxu0 0.0
        %2062 = vmatprep.subr.mxu0 0.0
        %2063 = vmatpush1.msra.mxu0 0.0
        %2064 = vmatprep.subr.mxu0 0.0
        %2065 = vmatpush1.msra.mxu0 0.0
        %2066 = vmatprep.subr.mxu0 0.0
        %2067 = vmatpush1.msra.mxu0 0.0
        %2068 = vmatprep.subr.mxu0 0.0
        %2069 = vmatpush1.msra.mxu0 0.0
        %2070 = vmatprep.subr.mxu0 0.0
        %2071 = vmatpush1.msra.mxu0 0.0
        %2072 = vmatprep.subr.mxu0 0.0
        %2073 = vmatpush1.msra.mxu0 0.0
        %2074 = vmatprep.subr.mxu0 0.0
        %2075 = vmatpush1.msra.mxu0 0.0
        %2076 = vmatprep.subr.mxu0 0.0
        %2077 = vmatpush1.msra.mxu0 0.0
        %2078 = vmatprep.subr.mxu0 0.0
        %2079 = vmatpush1.msra.mxu0 0.0
        %2080 = vmatprep.subr.mxu0 0.0
        %2081 = vmatpush1.msra.mxu0 0.0
        %2082 = vmatprep.subr.mxu0 0.0
        %2083 = vmatpush1.msra.mxu0 0.0
        %2084 = vmatprep.subr.mxu0 0.0
        %2085 = vmatpush1.msra.mxu0 0.0
        %2086 = vmatprep.subr.mxu0 0.0
        %2087 = vmatpush1.msra.mxu0 0.0
        %2088 = vmatprep.subr.mxu0 0.0
        %2089 = vmatpush1.msra.mxu0 0.0
        %2090 = vmatprep.subr.mxu0 0.0
        %2091 = vmatpush1.msra.mxu0 0.0
        %2092 = vmatprep.subr.mxu0 0.0
        %2093 = vmatpush1.msra.mxu0 0.0
        %2094 = vmatprep.subr.mxu0 0.0
        %2095 = vmatpush1.msra.mxu0 0.0
        %2096 = vmatprep.subr.mxu0 0.0
        %2097 = vmatpush1.msra.mxu0 0.0
        %2098 = vmatprep.subr.mxu0 0.0
        %2099 = vmatpush1.msra.mxu0 0.0
        %2100 = vmatprep.subr.mxu0 0.0
        %2101 = vmatpush1.msra.mxu0 0.0
        %2102 = vmatprep.subr.mxu0 0.0
        %2103 = vmatpush1.msra.mxu0 0.0
        %2104 = vmatprep.subr.mxu0 0.0
        %2105 = vmatpush1.msra.mxu0 0.0
        %2106 = vmatprep.subr.mxu0 0.0
        %2107 = vmatpush1.msra.mxu0 0.0
        %2108 = vmatprep.subr.mxu0 0.0
        %2109 = vmatpush1.msra.mxu0 0.0
        %2110 = vmatprep.subr.mxu0 0.0
        %2111 = vmatpush1.msra.mxu0 0.0
        %2112 = vmatprep.subr.mxu0 0.0
        %2113 = vmatpush1.msra.mxu0 0.0
        %2114 = vmatprep.mubr.f32.mxu0 0.0
        %v2115 = vand.u32 %v1791, 4294901760
        %v2116 = vsub.f32 %v1791, %v2115
        %v2117 = vand.u32 %v2116, 4294901760
        %2118 = vmatmul.mubr.f32.gmra.mrb[0].mxu0 %v2117
        %v2119 = vpop.f32.mrb[0].mxu0
        %v2120 = vadd.f32 %v2042, %v2119
        %v2121 = vpop.f32.mrb[0].mxu0
        %v2122 = vadd.f32 %v2044, %v2121
        %2123 = vdwg.mxu0
        %v2124 = vand.u32 %v950, 4294901760
        %v2125 = vsub.f32 %v950, %v2124
        %v2126 = vand.u32 %v2125, 4294901760
        %2127 = vmatprep.subr.mxu0 %v2126
        %v2128 = vand.u32 %v948, 4294901760
        %v2129 = vsub.f32 %v948, %v2128
        %v2130 = vand.u32 %v2129, 4294901760
        %2131 = vmatpush1.msra.mxu0 %v2130
        %v2132 = vand.u32 %v954, 4294901760
        %v2133 = vsub.f32 %v954, %v2132
        %v2134 = vand.u32 %v2133, 4294901760
        %2135 = vmatprep.subr.mxu0 %v2134
        %v2136 = vand.u32 %v952, 4294901760
        %v2137 = vsub.f32 %v952, %v2136
        %v2138 = vand.u32 %v2137, 4294901760
        %2139 = vmatpush1.msra.mxu0 %v2138
        %2140 = vmatprep.subr.mxu0 0.0
        %2141 = vmatpush1.msra.mxu0 0.0
        %2142 = vmatprep.subr.mxu0 0.0
        %2143 = vmatpush1.msra.mxu0 0.0
        %2144 = vmatprep.subr.mxu0 0.0
        %2145 = vmatpush1.msra.mxu0 0.0
        %2146 = vmatprep.subr.mxu0 0.0
        %2147 = vmatpush1.msra.mxu0 0.0
        %2148 = vmatprep.subr.mxu0 0.0
        %2149 = vmatpush1.msra.mxu0 0.0
        %2150 = vmatprep.subr.mxu0 0.0
        %2151 = vmatpush1.msra.mxu0 0.0
        %2152 = vmatprep.subr.mxu0 0.0
        %2153 = vmatpush1.msra.mxu0 0.0
        %2154 = vmatprep.subr.mxu0 0.0
        %2155 = vmatpush1.msra.mxu0 0.0
        %2156 = vmatprep.subr.mxu0 0.0
        %2157 = vmatpush1.msra.mxu0 0.0
        %2158 = vmatprep.subr.mxu0 0.0
        %2159 = vmatpush1.msra.mxu0 0.0
        %2160 = vmatprep.subr.mxu0 0.0
        %2161 = vmatpush1.msra.mxu0 0.0
        %2162 = vmatprep.subr.mxu0 0.0
        %2163 = vmatpush1.msra.mxu0 0.0
        %2164 = vmatprep.subr.mxu0 0.0
        %2165 = vmatpush1.msra.mxu0 0.0
        %2166 = vmatprep.subr.mxu0 0.0
        %2167 = vmatpush1.msra.mxu0 0.0
        %2168 = vmatprep.subr.mxu0 0.0
        %2169 = vmatpush1.msra.mxu0 0.0
        %2170 = vmatprep.subr.mxu0 0.0
        %2171 = vmatpush1.msra.mxu0 0.0
        %2172 = vmatprep.subr.mxu0 0.0
        %2173 = vmatpush1.msra.mxu0 0.0
        %2174 = vmatprep.subr.mxu0 0.0
        %2175 = vmatpush1.msra.mxu0 0.0
        %2176 = vmatprep.subr.mxu0 0.0
        %2177 = vmatpush1.msra.mxu0 0.0
        %2178 = vmatprep.subr.mxu0 0.0
        %2179 = vmatpush1.msra.mxu0 0.0
        %2180 = vmatprep.subr.mxu0 0.0
        %2181 = vmatpush1.msra.mxu0 0.0
        %2182 = vmatprep.subr.mxu0 0.0
        %2183 = vmatpush1.msra.mxu0 0.0
        %2184 = vmatprep.subr.mxu0 0.0
        %2185 = vmatpush1.msra.mxu0 0.0
        %2186 = vmatprep.subr.mxu0 0.0
        %2187 = vmatpush1.msra.mxu0 0.0
        %2188 = vmatprep.subr.mxu0 0.0
        %2189 = vmatpush1.msra.mxu0 0.0
        %2190 = vmatprep.subr.mxu0 0.0
        %2191 = vmatpush1.msra.mxu0 0.0
        %2192 = vmatprep.subr.mxu0 0.0
        %2193 = vmatpush1.msra.mxu0 0.0
        %2194 = vmatprep.subr.mxu0 0.0
        %2195 = vmatpush1.msra.mxu0 0.0
        %2196 = vmatprep.subr.mxu0 0.0
        %2197 = vmatpush1.msra.mxu0 0.0
        %2198 = vmatprep.subr.mxu0 0.0
        %2199 = vmatpush1.msra.mxu0 0.0
        %2200 = vmatprep.mubr.f32.mxu0 0.0
        %v2201 = vand.u32 %v1791, 4294901760
        %2202 = vmatmul.mubr.f32.gmra.mrb[0].mxu0 %v2201
        %v2203 = vpop.f32.mrb[0].mxu0
        %v2204 = vadd.f32 %v2120, %v2203
        %v2205 = vpop.f32.mrb[0].mxu0
        %v2206 = vadd.f32 %v2122, %v2205
        %2207 = vdwg.mxu0
        %v2208 = vand.u32 %v950, 4294901760
        %2209 = vmatprep.subr.mxu0 %v2208
        %v2210 = vand.u32 %v948, 4294901760
        %2211 = vmatpush1.msra.mxu0 %v2210
        %v2212 = vand.u32 %v954, 4294901760
        %2213 = vmatprep.subr.mxu0 %v2212
        %v2214 = vand.u32 %v952, 4294901760
        %2215 = vmatpush1.msra.mxu0 %v2214
        %2216 = vmatprep.subr.mxu0 0.0
        %2217 = vmatpush1.msra.mxu0 0.0
        %2218 = vmatprep.subr.mxu0 0.0
        %2219 = vmatpush1.msra.mxu0 0.0
        %2220 = vmatprep.subr.mxu0 0.0
        %2221 = vmatpush1.msra.mxu0 0.0
        %2222 = vmatprep.subr.mxu0 0.0
        %2223 = vmatpush1.msra.mxu0 0.0
        %2224 = vmatprep.subr.mxu0 0.0
        %2225 = vmatpush1.msra.mxu0 0.0
        %2226 = vmatprep.subr.mxu0 0.0
        %2227 = vmatpush1.msra.mxu0 0.0
        %2228 = vmatprep.subr.mxu0 0.0
        %2229 = vmatpush1.msra.mxu0 0.0
        %2230 = vmatprep.subr.mxu0 0.0
        %2231 = vmatpush1.msra.mxu0 0.0
        %2232 = vmatprep.subr.mxu0 0.0
        %2233 = vmatpush1.msra.mxu0 0.0
        %2234 = vmatprep.subr.mxu0 0.0
        %2235 = vmatpush1.msra.mxu0 0.0
        %2236 = vmatprep.subr.mxu0 0.0
        %2237 = vmatpush1.msra.mxu0 0.0
        %2238 = vmatprep.subr.mxu0 0.0
        %2239 = vmatpush1.msra.mxu0 0.0
        %2240 = vmatprep.subr.mxu0 0.0
        %2241 = vmatpush1.msra.mxu0 0.0
        %2242 = vmatprep.subr.mxu0 0.0
        %2243 = vmatpush1.msra.mxu0 0.0
        %2244 = vmatprep.subr.mxu0 0.0
        %2245 = vmatpush1.msra.mxu0 0.0
        %2246 = vmatprep.subr.mxu0 0.0
        %2247 = vmatpush1.msra.mxu0 0.0
        %2248 = vmatprep.subr.mxu0 0.0
        %2249 = vmatpush1.msra.mxu0 0.0
        %2250 = vmatprep.subr.mxu0 0.0
        %2251 = vmatpush1.msra.mxu0 0.0
        %2252 = vmatprep.subr.mxu0 0.0
        %2253 = vmatpush1.msra.mxu0 0.0
        %2254 = vmatprep.subr.mxu0 0.0
        %2255 = vmatpush1.msra.mxu0 0.0
        %2256 = vmatprep.subr.mxu0 0.0
        %2257 = vmatpush1.msra.mxu0 0.0
        %2258 = vmatprep.subr.mxu0 0.0
        %2259 = vmatpush1.msra.mxu0 0.0
        %2260 = vmatprep.subr.mxu0 0.0
        %2261 = vmatpush1.msra.mxu0 0.0
        %2262 = vmatprep.subr.mxu0 0.0
        %2263 = vmatpush1.msra.mxu0 0.0
        %2264 = vmatprep.subr.mxu0 0.0
        %2265 = vmatpush1.msra.mxu0 0.0
        %2266 = vmatprep.subr.mxu0 0.0
        %2267 = vmatpush1.msra.mxu0 0.0
        %2268 = vmatprep.subr.mxu0 0.0
        %2269 = vmatpush1.msra.mxu0 0.0
        %2270 = vmatprep.subr.mxu0 0.0
        %2271 = vmatpush1.msra.mxu0 0.0
        %2272 = vmatprep.subr.mxu0 0.0
        %2273 = vmatpush1.msra.mxu0 0.0
        %2274 = vmatprep.subr.mxu0 0.0
        %2275 = vmatpush1.msra.mxu0 0.0
        %2276 = vmatprep.mubr.f32.mxu0 0.0
        %v2277 = vand.u32 %v1791, 4294901760
        %2278 = vmatmul.mubr.f32.gmra.mrb[0].mxu0 %v2277
        %v2279 = vpop.f32.mrb[0].mxu0
        %v2280 = vadd.f32 %v2204, %v2279
        %v2281 = vpop.f32.mrb[0].mxu0
        %v2282 = vadd.f32 %v2206, %v2281
        %2283 = vdwg.mxu0
        %v2284 = vxor.u32 %v2280, 2147483648
        %v2285 = vxor.u32 %v2282, 2147483648
        %v2286 = vmul.f32 %v2284, 1.442695
        %v2287 = vpow.pop %v2286
        %v2288 = vmul.f32 %v2285, 1.442695
        %v2289 = vpow.pop %v2288
        %v2290 = vadd.f32 %v2287, 1.0
        %v2291 = vadd.f32 %v2289, 1.0
        %v2292 = vrcp.pop %v2290
        %v2293 = vmul.f32 1.0, %v2292
        %v2294 = vrcp.pop %v2291
        %v2295 = vmul.f32 1.0, %v2294
        %v2296 = vld [vmem:[%s10] sm:$0xf]
        %v2297 = vld [vmem:[%s11] sm:$0xf]
        %2299 = vset.pattern.permute.xlu0 0
        %2300 = vperm.xlu0 %2299, %v2297
        %v2301 = vpop.permute.xlu0 %2300
        %v2304 = vsel %vm1624, %v2296, 0
        %v2306 = vand.u32 %v1192, 4294901760
        %2307 = vmatprep.subr.mxu0 %v2306
        %v2308 = vand.u32 %v1190, 4294901760
        %2309 = vmatpush1.msra.mxu0 %v2308
        %v2310 = vand.u32 %v1196, 4294901760
        %2311 = vmatprep.subr.mxu0 %v2310
        %v2312 = vand.u32 %v1194, 4294901760
        %2313 = vmatpush1.msra.mxu0 %v2312
        %v2314 = vand.u32 %v1202, 4294901760
        %2315 = vmatprep.subr.mxu0 %v2314
        %v2316 = vand.u32 %v1200, 4294901760
        %2317 = vmatpush1.msra.mxu0 %v2316
        %v2318 = vand.u32 %v1206, 4294901760
        %2319 = vmatprep.subr.mxu0 %v2318
        %v2320 = vand.u32 %v1204, 4294901760
        %2321 = vmatpush1.msra.mxu0 %v2320
        %2322 = vmatprep.subr.mxu0 0.0
        %2323 = vmatpush1.msra.mxu0 0.0
        %2324 = vmatprep.subr.mxu0 0.0
        %2325 = vmatpush1.msra.mxu0 0.0
        %2326 = vmatprep.subr.mxu0 0.0
        %2327 = vmatpush1.msra.mxu0 0.0
        %2328 = vmatprep.subr.mxu0 0.0
        %2329 = vmatpush1.msra.mxu0 0.0
        %2330 = vmatprep.subr.mxu0 0.0
        %2331 = vmatpush1.msra.mxu0 0.0
        %2332 = vmatprep.subr.mxu0 0.0
        %2333 = vmatpush1.msra.mxu0 0.0
        %2334 = vmatprep.subr.mxu0 0.0
        %2335 = vmatpush1.msra.mxu0 0.0
        %2336 = vmatprep.subr.mxu0 0.0
        %2337 = vmatpush1.msra.mxu0 0.0
        %2338 = vmatprep.subr.mxu0 0.0
        %2339 = vmatpush1.msra.mxu0 0.0
        %2340 = vmatprep.subr.mxu0 0.0
        %2341 = vmatpush1.msra.mxu0 0.0
        %2342 = vmatprep.subr.mxu0 0.0
        %2343 = vmatpush1.msra.mxu0 0.0
        %2344 = vmatprep.subr.mxu0 0.0
        %2345 = vmatpush1.msra.mxu0 0.0
        %2346 = vmatprep.subr.mxu0 0.0
        %2347 = vmatpush1.msra.mxu0 0.0
        %2348 = vmatprep.subr.mxu0 0.0
        %2349 = vmatpush1.msra.mxu0 0.0
        %2350 = vmatprep.subr.mxu0 0.0
        %2351 = vmatpush1.msra.mxu0 0.0
        %2352 = vmatprep.subr.mxu0 0.0
        %2353 = vmatpush1.msra.mxu0 0.0
        %2354 = vmatprep.subr.mxu0 0.0
        %2355 = vmatpush1.msra.mxu0 0.0
        %2356 = vmatprep.subr.mxu0 0.0
        %2357 = vmatpush1.msra.mxu0 0.0
        %2358 = vmatprep.subr.mxu0 0.0
        %2359 = vmatpush1.msra.mxu0 0.0
        %2360 = vmatprep.subr.mxu0 0.0
        %2361 = vmatpush1.msra.mxu0 0.0
        %2362 = vmatprep.subr.mxu0 0.0
        %2363 = vmatpush1.msra.mxu0 0.0
        %2364 = vmatprep.subr.mxu0 0.0
        %2365 = vmatpush1.msra.mxu0 0.0
        %2366 = vmatprep.subr.mxu0 0.0
        %2367 = vmatpush1.msra.mxu0 0.0
        %2368 = vmatprep.subr.mxu0 0.0
        %2369 = vmatpush1.msra.mxu0 0.0
        %2370 = vmatprep.subr.mxu0 0.0
        %2371 = vmatpush1.msra.mxu0 0.0
        %2372 = vmatprep.subr.mxu0 0.0
        %2373 = vmatpush1.msra.mxu0 0.0
        %2374 = vmatprep.subr.mxu0 0.0
        %2375 = vmatpush1.msra.mxu0 0.0
        %2376 = vmatprep.subr.mxu0 0.0
        %2377 = vmatpush1.msra.mxu0 0.0
        %2378 = vmatprep.mubr.f32.mxu0 0.0
        %v2379 = vand.u32 %v2304, 4294901760
        %v2380 = vsub.f32 %v2304, %v2379
        %v2381 = vand.u32 %v2380, 4294901760
        %v2382 = vsub.f32 %v2380, %v2381
        %v2383 = vand.u32 %v2382, 4294901760
        %2384 = vmatmul.mubr.f32.gmra.mrb[0].mxu0 %v2383
        %v2385 = vpop.f32.mrb[0].mxu0
        %v2386 = vadd.f32 %v2301, %v2385
        %v2387 = vpop.f32.mrb[0].mxu0
        %v2388 = vadd.f32 %v2301, %v2387
        %2389 = vdwg.mxu0
        %v2390 = vand.u32 %v1192, 4294901760
        %v2391 = vsub.f32 %v1192, %v2390
        %v2392 = vand.u32 %v2391, 4294901760
        %v2393 = vsub.f32 %v2391, %v2392
        %v2394 = vand.u32 %v2393, 4294901760
        %2395 = vmatprep.subr.mxu0 %v2394
        %v2396 = vand.u32 %v1190, 4294901760
        %v2397 = vsub.f32 %v1190, %v2396
        %v2398 = vand.u32 %v2397, 4294901760
        %v2399 = vsub.f32 %v2397, %v2398
        %v2400 = vand.u32 %v2399, 4294901760
        %2401 = vmatpush1.msra.mxu0 %v2400
        %v2402 = vand.u32 %v1196, 4294901760
        %v2403 = vsub.f32 %v1196, %v2402
        %v2404 = vand.u32 %v2403, 4294901760
        %v2405 = vsub.f32 %v2403, %v2404
        %v2406 = vand.u32 %v2405, 4294901760
        %2407 = vmatprep.subr.mxu0 %v2406
        %v2408 = vand.u32 %v1194, 4294901760
        %v2409 = vsub.f32 %v1194, %v2408
        %v2410 = vand.u32 %v2409, 4294901760
        %v2411 = vsub.f32 %v2409, %v2410
        %v2412 = vand.u32 %v2411, 4294901760
        %2413 = vmatpush1.msra.mxu0 %v2412
        %v2414 = vand.u32 %v1202, 4294901760
        %v2415 = vsub.f32 %v1202, %v2414
        %v2416 = vand.u32 %v2415, 4294901760
        %v2417 = vsub.f32 %v2415, %v2416
        %v2418 = vand.u32 %v2417, 4294901760
        %2419 = vmatprep.subr.mxu0 %v2418
        %v2420 = vand.u32 %v1200, 4294901760
        %v2421 = vsub.f32 %v1200, %v2420
        %v2422 = vand.u32 %v2421, 4294901760
        %v2423 = vsub.f32 %v2421, %v2422
        %v2424 = vand.u32 %v2423, 4294901760
        %2425 = vmatpush1.msra.mxu0 %v2424
        %v2426 = vand.u32 %v1206, 4294901760
        %v2427 = vsub.f32 %v1206, %v2426
        %v2428 = vand.u32 %v2427, 4294901760
        %v2429 = vsub.f32 %v2427, %v2428
        %v2430 = vand.u32 %v2429, 4294901760
        %2431 = vmatprep.subr.mxu0 %v2430
        %v2432 = vand.u32 %v1204, 4294901760
        %v2433 = vsub.f32 %v1204, %v2432
        %v2434 = vand.u32 %v2433, 4294901760
        %v2435 = vsub.f32 %v2433, %v2434
        %v2436 = vand.u32 %v2435, 4294901760
        %2437 = vmatpush1.msra.mxu0 %v2436
        %2438 = vmatprep.subr.mxu0 0.0
        %2439 = vmatpush1.msra.mxu0 0.0
        %2440 = vmatprep.subr.mxu0 0.0
        %2441 = vmatpush1.msra.mxu0 0.0
        %2442 = vmatprep.subr.mxu0 0.0
        %2443 = vmatpush1.msra.mxu0 0.0
        %2444 = vmatprep.subr.mxu0 0.0
        %2445 = vmatpush1.msra.mxu0 0.0
        %2446 = vmatprep.subr.mxu0 0.0
        %2447 = vmatpush1.msra.mxu0 0.0
        %2448 = vmatprep.subr.mxu0 0.0
        %2449 = vmatpush1.msra.mxu0 0.0
        %2450 = vmatprep.subr.mxu0 0.0
        %2451 = vmatpush1.msra.mxu0 0.0
        %2452 = vmatprep.subr.mxu0 0.0
        %2453 = vmatpush1.msra.mxu0 0.0
        %2454 = vmatprep.subr.mxu0 0.0
        %2455 = vmatpush1.msra.mxu0 0.0
        %2456 = vmatprep.subr.mxu0 0.0
        %2457 = vmatpush1.msra.mxu0 0.0
        %2458 = vmatprep.subr.mxu0 0.0
        %2459 = vmatpush1.msra.mxu0 0.0
        %2460 = vmatprep.subr.mxu0 0.0
        %2461 = vmatpush1.msra.mxu0 0.0
        %2462 = vmatprep.subr.mxu0 0.0
        %2463 = vmatpush1.msra.mxu0 0.0
        %2464 = vmatprep.subr.mxu0 0.0
        %2465 = vmatpush1.msra.mxu0 0.0
        %2466 = vmatprep.subr.mxu0 0.0
        %2467 = vmatpush1.msra.mxu0 0.0
        %2468 = vmatprep.subr.mxu0 0.0
        %2469 = vmatpush1.msra.mxu0 0.0
        %2470 = vmatprep.subr.mxu0 0.0
        %2471 = vmatpush1.msra.mxu0 0.0
        %2472 = vmatprep.subr.mxu0 0.0
        %2473 = vmatpush1.msra.mxu0 0.0
        %2474 = vmatprep.subr.mxu0 0.0
        %2475 = vmatpush1.msra.mxu0 0.0
        %2476 = vmatprep.subr.mxu0 0.0
        %2477 = vmatpush1.msra.mxu0 0.0
        %2478 = vmatprep.subr.mxu0 0.0
        %2479 = vmatpush1.msra.mxu0 0.0
        %2480 = vmatprep.subr.mxu0 0.0
        %2481 = vmatpush1.msra.mxu0 0.0
        %2482 = vmatprep.subr.mxu0 0.0
        %2483 = vmatpush1.msra.mxu0 0.0
        %2484 = vmatprep.subr.mxu0 0.0
        %2485 = vmatpush1.msra.mxu0 0.0
        %2486 = vmatprep.subr.mxu0 0.0
        %2487 = vmatpush1.msra.mxu0 0.0
        %2488 = vmatprep.subr.mxu0 0.0
        %2489 = vmatpush1.msra.mxu0 0.0
        %2490 = vmatprep.subr.mxu0 0.0
        %2491 = vmatpush1.msra.mxu0 0.0
        %2492 = vmatprep.subr.mxu0 0.0
        %2493 = vmatpush1.msra.mxu0 0.0
        %2494 = vmatprep.mubr.f32.mxu0 0.0
        %v2495 = vand.u32 %v2304, 4294901760
        %2496 = vmatmul.mubr.f32.gmra.mrb[0].mxu0 %v2495
        %v2497 = vpop.f32.mrb[0].mxu0
        %v2498 = vadd.f32 %v2386, %v2497
        %v2499 = vpop.f32.mrb[0].mxu0
        %v2500 = vadd.f32 %v2388, %v2499
        %2501 = vdwg.mxu0
        %v2502 = vand.u32 %v1192, 4294901760
        %v2503 = vsub.f32 %v1192, %v2502
        %2504 = vmatprep.subr.mxu0 %v2503
        %v2505 = vand.u32 %v1190, 4294901760
        %v2506 = vsub.f32 %v1190, %v2505
        %2507 = vmatpush1.msra.mxu0 %v2506
        %v2508 = vand.u32 %v1196, 4294901760
        %v2509 = vsub.f32 %v1196, %v2508
        %2510 = vmatprep.subr.mxu0 %v2509
        %v2511 = vand.u32 %v1194, 4294901760
        %v2512 = vsub.f32 %v1194, %v2511
        %2513 = vmatpush1.msra.mxu0 %v2512
        %v2514 = vand.u32 %v1202, 4294901760
        %v2515 = vsub.f32 %v1202, %v2514
        %2516 = vmatprep.subr.mxu0 %v2515
        %v2517 = vand.u32 %v1200, 4294901760
        %v2518 = vsub.f32 %v1200, %v2517
        %2519 = vmatpush1.msra.mxu0 %v2518
        %v2520 = vand.u32 %v1206, 4294901760
        %v2521 = vsub.f32 %v1206, %v2520
        %2522 = vmatprep.subr.mxu0 %v2521
        %v2523 = vand.u32 %v1204, 4294901760
        %v2524 = vsub.f32 %v1204, %v2523
        %2525 = vmatpush1.msra.mxu0 %v2524
        %2526 = vmatprep.subr.mxu0 0.0
        %2527 = vmatpush1.msra.mxu0 0.0
        %2528 = vmatprep.subr.mxu0 0.0
        %2529 = vmatpush1.msra.mxu0 0.0
        %2530 = vmatprep.subr.mxu0 0.0
        %2531 = vmatpush1.msra.mxu0 0.0
        %2532 = vmatprep.subr.mxu0 0.0
        %2533 = vmatpush1.msra.mxu0 0.0
        %2534 = vmatprep.subr.mxu0 0.0
        %2535 = vmatpush1.msra.mxu0 0.0
        %2536 = vmatprep.subr.mxu0 0.0
        %2537 = vmatpush1.msra.mxu0 0.0
        %2538 = vmatprep.subr.mxu0 0.0
        %2539 = vmatpush1.msra.mxu0 0.0
        %2540 = vmatprep.subr.mxu0 0.0
        %2541 = vmatpush1.msra.mxu0 0.0
        %2542 = vmatprep.subr.mxu0 0.0
        %2543 = vmatpush1.msra.mxu0 0.0
        %2544 = vmatprep.subr.mxu0 0.0
        %2545 = vmatpush1.msra.mxu0 0.0
        %2546 = vmatprep.subr.mxu0 0.0
        %2547 = vmatpush1.msra.mxu0 0.0
        %2548 = vmatprep.subr.mxu0 0.0
        %2549 = vmatpush1.msra.mxu0 0.0
        %2550 = vmatprep.subr.mxu0 0.0
        %2551 = vmatpush1.msra.mxu0 0.0
        %2552 = vmatprep.subr.mxu0 0.0
        %2553 = vmatpush1.msra.mxu0 0.0
        %2554 = vmatprep.subr.mxu0 0.0
        %2555 = vmatpush1.msra.mxu0 0.0
        %2556 = vmatprep.subr.mxu0 0.0
        %2557 = vmatpush1.msra.mxu0 0.0
        %2558 = vmatprep.subr.mxu0 0.0
        %2559 = vmatpush1.msra.mxu0 0.0
        %2560 = vmatprep.subr.mxu0 0.0
        %2561 = vmatpush1.msra.mxu0 0.0
        %2562 = vmatprep.subr.mxu0 0.0
        %2563 = vmatpush1.msra.mxu0 0.0
        %2564 = vmatprep.subr.mxu0 0.0
        %2565 = vmatpush1.msra.mxu0 0.0
        %2566 = vmatprep.subr.mxu0 0.0
        %2567 = vmatpush1.msra.mxu0 0.0
        %2568 = vmatprep.subr.mxu0 0.0
        %2569 = vmatpush1.msra.mxu0 0.0
        %2570 = vmatprep.subr.mxu0 0.0
        %2571 = vmatpush1.msra.mxu0 0.0
        %2572 = vmatprep.subr.mxu0 0.0
        %2573 = vmatpush1.msra.mxu0 0.0
        %2574 = vmatprep.subr.mxu0 0.0
        %2575 = vmatpush1.msra.mxu0 0.0
        %2576 = vmatprep.subr.mxu0 0.0
        %2577 = vmatpush1.msra.mxu0 0.0
        %2578 = vmatprep.subr.mxu0 0.0
        %2579 = vmatpush1.msra.mxu0 0.0
        %2580 = vmatprep.subr.mxu0 0.0
        %2581 = vmatpush1.msra.mxu0 0.0
        %2582 = vmatprep.mubr.f32.mxu0 0.0
        %v2583 = vand.u32 %v2304, 4294901760
        %v2584 = vsub.f32 %v2304, %v2583
        %2585 = vmatmul.mubr.f32.gmra.mrb[0].mxu0 %v2584
        %v2586 = vpop.f32.mrb[0].mxu0
        %v2587 = vadd.f32 %v2498, %v2586
        %v2588 = vpop.f32.mrb[0].mxu0
        %v2589 = vadd.f32 %v2500, %v2588
        %2590 = vdwg.mxu0
        %v2591 = vand.u32 %v1192, 4294901760
        %2592 = vmatprep.subr.mxu0 %v2591
        %v2593 = vand.u32 %v1190, 4294901760
        %2594 = vmatpush1.msra.mxu0 %v2593
        %v2595 = vand.u32 %v1196, 4294901760
        %2596 = vmatprep.subr.mxu0 %v2595
        %v2597 = vand.u32 %v1194, 4294901760
        %2598 = vmatpush1.msra.mxu0 %v2597
        %v2599 = vand.u32 %v1202, 4294901760
        %2600 = vmatprep.subr.mxu0 %v2599
        %v2601 = vand.u32 %v1200, 4294901760
        %2602 = vmatpush1.msra.mxu0 %v2601
        %v2603 = vand.u32 %v1206, 4294901760
        %2604 = vmatprep.subr.mxu0 %v2603
        %v2605 = vand.u32 %v1204, 4294901760
        %2606 = vmatpush1.msra.mxu0 %v2605
        %2607 = vmatprep.subr.mxu0 0.0
        %2608 = vmatpush1.msra.mxu0 0.0
        %2609 = vmatprep.subr.mxu0 0.0
        %2610 = vmatpush1.msra.mxu0 0.0
        %2611 = vmatprep.subr.mxu0 0.0
        %2612 = vmatpush1.msra.mxu0 0.0
        %2613 = vmatprep.subr.mxu0 0.0
        %2614 = vmatpush1.msra.mxu0 0.0
        %2615 = vmatprep.subr.mxu0 0.0
        %2616 = vmatpush1.msra.mxu0 0.0
        %2617 = vmatprep.subr.mxu0 0.0
        %2618 = vmatpush1.msra.mxu0 0.0
        %2619 = vmatprep.subr.mxu0 0.0
        %2620 = vmatpush1.msra.mxu0 0.0
        %2621 = vmatprep.subr.mxu0 0.0
        %2622 = vmatpush1.msra.mxu0 0.0
        %2623 = vmatprep.subr.mxu0 0.0
        %2624 = vmatpush1.msra.mxu0 0.0
        %2625 = vmatprep.subr.mxu0 0.0
        %2626 = vmatpush1.msra.mxu0 0.0
        %2627 = vmatprep.subr.mxu0 0.0
        %2628 = vmatpush1.msra.mxu0 0.0
        %2629 = vmatprep.subr.mxu0 0.0
        %2630 = vmatpush1.msra.mxu0 0.0
        %2631 = vmatprep.subr.mxu0 0.0
        %2632 = vmatpush1.msra.mxu0 0.0
        %2633 = vmatprep.subr.mxu0 0.0
        %2634 = vmatpush1.msra.mxu0 0.0
        %2635 = vmatprep.subr.mxu0 0.0
        %2636 = vmatpush1.msra.mxu0 0.0
        %2637 = vmatprep.subr.mxu0 0.0
        %2638 = vmatpush1.msra.mxu0 0.0
        %2639 = vmatprep.subr.mxu0 0.0
        %2640 = vmatpush1.msra.mxu0 0.0
        %2641 = vmatprep.subr.mxu0 0.0
        %2642 = vmatpush1.msra.mxu0 0.0
        %2643 = vmatprep.subr.mxu0 0.0
        %2644 = vmatpush1.msra.mxu0 0.0
        %2645 = vmatprep.subr.mxu0 0.0
        %2646 = vmatpush1.msra.mxu0 0.0
        %2647 = vmatprep.subr.mxu0 0.0
        %2648 = vmatpush1.msra.mxu0 0.0
        %2649 = vmatprep.subr.mxu0 0.0
        %2650 = vmatpush1.msra.mxu0 0.0
        %2651 = vmatprep.subr.mxu0 0.0
        %2652 = vmatpush1.msra.mxu0 0.0
        %2653 = vmatprep.subr.mxu0 0.0
        %2654 = vmatpush1.msra.mxu0 0.0
        %2655 = vmatprep.subr.mxu0 0.0
        %2656 = vmatpush1.msra.mxu0 0.0
        %2657 = vmatprep.subr.mxu0 0.0
        %2658 = vmatpush1.msra.mxu0 0.0
        %2659 = vmatprep.subr.mxu0 0.0
        %2660 = vmatpush1.msra.mxu0 0.0
        %2661 = vmatprep.subr.mxu0 0.0
        %2662 = vmatpush1.msra.mxu0 0.0
        %2663 = vmatprep.mubr.f32.mxu0 0.0
        %v2664 = vand.u32 %v2304, 4294901760
        %v2665 = vsub.f32 %v2304, %v2664
        %v2666 = vand.u32 %v2665, 4294901760
        %2667 = vmatmul.mubr.f32.gmra.mrb[0].mxu0 %v2666
        %v2668 = vpop.f32.mrb[0].mxu0
        %v2669 = vadd.f32 %v2587, %v2668
        %v2670 = vpop.f32.mrb[0].mxu0
        %v2671 = vadd.f32 %v2589, %v2670
        %2672 = vdwg.mxu0
        %v2673 = vand.u32 %v1192, 4294901760
        %v2674 = vsub.f32 %v1192, %v2673
        %v2675 = vand.u32 %v2674, 4294901760
        %2676 = vmatprep.subr.mxu0 %v2675
        %v2677 = vand.u32 %v1190, 4294901760
        %v2678 = vsub.f32 %v1190, %v2677
        %v2679 = vand.u32 %v2678, 4294901760
        %2680 = vmatpush1.msra.mxu0 %v2679
        %v2681 = vand.u32 %v1196, 4294901760
        %v2682 = vsub.f32 %v1196, %v2681
        %v2683 = vand.u32 %v2682, 4294901760
        %2684 = vmatprep.subr.mxu0 %v2683
        %v2685 = vand.u32 %v1194, 4294901760
        %v2686 = vsub.f32 %v1194, %v2685
        %v2687 = vand.u32 %v2686, 4294901760
        %2688 = vmatpush1.msra.mxu0 %v2687
        %v2689 = vand.u32 %v1202, 4294901760
        %v2690 = vsub.f32 %v1202, %v2689
        %v2691 = vand.u32 %v2690, 4294901760
        %2692 = vmatprep.subr.mxu0 %v2691
        %v2693 = vand.u32 %v1200, 4294901760
        %v2694 = vsub.f32 %v1200, %v2693
        %v2695 = vand.u32 %v2694, 4294901760
        %2696 = vmatpush1.msra.mxu0 %v2695
        %v2697 = vand.u32 %v1206, 4294901760
        %v2698 = vsub.f32 %v1206, %v2697
        %v2699 = vand.u32 %v2698, 4294901760
        %2700 = vmatprep.subr.mxu0 %v2699
        %v2701 = vand.u32 %v1204, 4294901760
        %v2702 = vsub.f32 %v1204, %v2701
        %v2703 = vand.u32 %v2702, 4294901760
        %2704 = vmatpush1.msra.mxu0 %v2703
        %2705 = vmatprep.subr.mxu0 0.0
        %2706 = vmatpush1.msra.mxu0 0.0
        %2707 = vmatprep.subr.mxu0 0.0
        %2708 = vmatpush1.msra.mxu0 0.0
        %2709 = vmatprep.subr.mxu0 0.0
        %2710 = vmatpush1.msra.mxu0 0.0
        %2711 = vmatprep.subr.mxu0 0.0
        %2712 = vmatpush1.msra.mxu0 0.0
        %2713 = vmatprep.subr.mxu0 0.0
        %2714 = vmatpush1.msra.mxu0 0.0
        %2715 = vmatprep.subr.mxu0 0.0
        %2716 = vmatpush1.msra.mxu0 0.0
        %2717 = vmatprep.subr.mxu0 0.0
        %2718 = vmatpush1.msra.mxu0 0.0
        %2719 = vmatprep.subr.mxu0 0.0
        %2720 = vmatpush1.msra.mxu0 0.0
        %2721 = vmatprep.subr.mxu0 0.0
        %2722 = vmatpush1.msra.mxu0 0.0
        %2723 = vmatprep.subr.mxu0 0.0
        %2724 = vmatpush1.msra.mxu0 0.0
        %2725 = vmatprep.subr.mxu0 0.0
        %2726 = vmatpush1.msra.mxu0 0.0
        %2727 = vmatprep.subr.mxu0 0.0
        %2728 = vmatpush1.msra.mxu0 0.0
        %2729 = vmatprep.subr.mxu0 0.0
        %2730 = vmatpush1.msra.mxu0 0.0
        %2731 = vmatprep.subr.mxu0 0.0
        %2732 = vmatpush1.msra.mxu0 0.0
        %2733 = vmatprep.subr.mxu0 0.0
        %2734 = vmatpush1.msra.mxu0 0.0
        %2735 = vmatprep.subr.mxu0 0.0
        %2736 = vmatpush1.msra.mxu0 0.0
        %2737 = vmatprep.subr.mxu0 0.0
        %2738 = vmatpush1.msra.mxu0 0.0
        %2739 = vmatprep.subr.mxu0 0.0
        %2740 = vmatpush1.msra.mxu0 0.0
        %2741 = vmatprep.subr.mxu0 0.0
        %2742 = vmatpush1.msra.mxu0 0.0
        %2743 = vmatprep.subr.mxu0 0.0
        %2744 = vmatpush1.msra.mxu0 0.0
        %2745 = vmatprep.subr.mxu0 0.0
        %2746 = vmatpush1.msra.mxu0 0.0
        %2747 = vmatprep.subr.mxu0 0.0
        %2748 = vmatpush1.msra.mxu0 0.0
        %2749 = vmatprep.subr.mxu0 0.0
        %2750 = vmatpush1.msra.mxu0 0.0
        %2751 = vmatprep.subr.mxu0 0.0
        %2752 = vmatpush1.msra.mxu0 0.0
        %2753 = vmatprep.subr.mxu0 0.0
        %2754 = vmatpush1.msra.mxu0 0.0
        %2755 = vmatprep.subr.mxu0 0.0
        %2756 = vmatpush1.msra.mxu0 0.0
        %2757 = vmatprep.subr.mxu0 0.0
        %2758 = vmatpush1.msra.mxu0 0.0
        %2759 = vmatprep.subr.mxu0 0.0
        %2760 = vmatpush1.msra.mxu0 0.0
        %2761 = vmatprep.mubr.f32.mxu0 0.0
        %v2762 = vand.u32 %v2304, 4294901760
        %2763 = vmatmul.mubr.f32.gmra.mrb[0].mxu0 %v2762
        %v2764 = vpop.f32.mrb[0].mxu0
        %v2765 = vadd.f32 %v2669, %v2764
        %v2766 = vpop.f32.mrb[0].mxu0
        %v2767 = vadd.f32 %v2671, %v2766
        %2768 = vdwg.mxu0
        %v2769 = vand.u32 %v1192, 4294901760
        %2770 = vmatprep.subr.mxu0 %v2769
        %v2771 = vand.u32 %v1190, 4294901760
        %2772 = vmatpush1.msra.mxu0 %v2771
        %v2773 = vand.u32 %v1196, 4294901760
        %2774 = vmatprep.subr.mxu0 %v2773
        %v2775 = vand.u32 %v1194, 4294901760
        %2776 = vmatpush1.msra.mxu0 %v2775
        %v2777 = vand.u32 %v1202, 4294901760
        %2778 = vmatprep.subr.mxu0 %v2777
        %v2779 = vand.u32 %v1200, 4294901760
        %2780 = vmatpush1.msra.mxu0 %v2779
        %v2781 = vand.u32 %v1206, 4294901760
        %2782 = vmatprep.subr.mxu0 %v2781
        %v2783 = vand.u32 %v1204, 4294901760
        %2784 = vmatpush1.msra.mxu0 %v2783
        %2785 = vmatprep.subr.mxu0 0.0
        %2786 = vmatpush1.msra.mxu0 0.0
        %2787 = vmatprep.subr.mxu0 0.0
        %2788 = vmatpush1.msra.mxu0 0.0
        %2789 = vmatprep.subr.mxu0 0.0
        %2790 = vmatpush1.msra.mxu0 0.0
        %2791 = vmatprep.subr.mxu0 0.0
        %2792 = vmatpush1.msra.mxu0 0.0
        %2793 = vmatprep.subr.mxu0 0.0
        %2794 = vmatpush1.msra.mxu0 0.0
        %2795 = vmatprep.subr.mxu0 0.0
        %2796 = vmatpush1.msra.mxu0 0.0
        %2797 = vmatprep.subr.mxu0 0.0
        %2798 = vmatpush1.msra.mxu0 0.0
        %2799 = vmatprep.subr.mxu0 0.0
        %2800 = vmatpush1.msra.mxu0 0.0
        %2801 = vmatprep.subr.mxu0 0.0
        %2802 = vmatpush1.msra.mxu0 0.0
        %2803 = vmatprep.subr.mxu0 0.0
        %2804 = vmatpush1.msra.mxu0 0.0
        %2805 = vmatprep.subr.mxu0 0.0
        %2806 = vmatpush1.msra.mxu0 0.0
        %2807 = vmatprep.subr.mxu0 0.0
        %2808 = vmatpush1.msra.mxu0 0.0
        %2809 = vmatprep.subr.mxu0 0.0
        %2810 = vmatpush1.msra.mxu0 0.0
        %2811 = vmatprep.subr.mxu0 0.0
        %2812 = vmatpush1.msra.mxu0 0.0
        %2813 = vmatprep.subr.mxu0 0.0
        %2814 = vmatpush1.msra.mxu0 0.0
        %2815 = vmatprep.subr.mxu0 0.0
        %2816 = vmatpush1.msra.mxu0 0.0
        %2817 = vmatprep.subr.mxu0 0.0
        %2818 = vmatpush1.msra.mxu0 0.0
        %2819 = vmatprep.subr.mxu0 0.0
        %2820 = vmatpush1.msra.mxu0 0.0
        %2821 = vmatprep.subr.mxu0 0.0
        %2822 = vmatpush1.msra.mxu0 0.0
        %2823 = vmatprep.subr.mxu0 0.0
        %2824 = vmatpush1.msra.mxu0 0.0
        %2825 = vmatprep.subr.mxu0 0.0
        %2826 = vmatpush1.msra.mxu0 0.0
        %2827 = vmatprep.subr.mxu0 0.0
        %2828 = vmatpush1.msra.mxu0 0.0
        %2829 = vmatprep.subr.mxu0 0.0
        %2830 = vmatpush1.msra.mxu0 0.0
        %2831 = vmatprep.subr.mxu0 0.0
        %2832 = vmatpush1.msra.mxu0 0.0
        %2833 = vmatprep.subr.mxu0 0.0
        %2834 = vmatpush1.msra.mxu0 0.0
        %2835 = vmatprep.subr.mxu0 0.0
        %2836 = vmatpush1.msra.mxu0 0.0
        %2837 = vmatprep.subr.mxu0 0.0
        %2838 = vmatpush1.msra.mxu0 0.0
        %2839 = vmatprep.subr.mxu0 0.0
        %2840 = vmatpush1.msra.mxu0 0.0
        %2841 = vmatprep.mubr.f32.mxu0 0.0
        %v2842 = vand.u32 %v2304, 4294901760
        %2843 = vmatmul.mubr.f32.gmra.mrb[0].mxu0 %v2842
        %v2844 = vpop.f32.mrb[0].mxu0
        %v2845 = vadd.f32 %v2765, %v2844
        %v2846 = vpop.f32.mrb[0].mxu0
        %v2847 = vadd.f32 %v2767, %v2846
        %2848 = vdwg.mxu0
        %v2849 = vxor.u32 %v2845, 2147483648
        %v2850 = vxor.u32 %v2847, 2147483648
        %v2851 = vmul.f32 %v2849, 1.442695
        %v2852 = vpow.pop %v2851
        %v2853 = vmul.f32 %v2850, 1.442695
        %v2854 = vpow.pop %v2853
        %v2855 = vadd.f32 %v2852, 1.0
        %v2856 = vadd.f32 %v2854, 1.0
        %v2857 = vrcp.pop %v2855
        %v2858 = vmul.f32 1.0, %v2857
        %v2859 = vrcp.pop %v2856
        %v2860 = vmul.f32 1.0, %v2859
        %v2861 = vld [vmem:[%s12] sm:$0xf]
        %v2862 = vld [vmem:[%s13] sm:$0xf]
        %2864 = vset.pattern.permute.xlu0 0
        %2865 = vperm.xlu0 %2864, %v2862
        %v2866 = vpop.permute.xlu0 %2865
        %vm2868 = vcmask 523264
        %v2870 = vsel %vm2868, %v2861, 0
        %v2872 = vand.u32 %v1747, 4294901760
        %2873 = vmatprep.subr.mxu0 %v2872
        %v2874 = vand.u32 %v1745, 4294901760
        %2875 = vmatpush1.msra.mxu0 %v2874
        %v2876 = vand.u32 %v1751, 4294901760
        %2877 = vmatprep.subr.mxu0 %v2876
        %v2878 = vand.u32 %v1749, 4294901760
        %2879 = vmatpush1.msra.mxu0 %v2878
        %v2880 = vand.u32 %v1757, 4294901760
        %2881 = vmatprep.subr.mxu0 %v2880
        %v2882 = vand.u32 %v1755, 4294901760
        %2883 = vmatpush1.msra.mxu0 %v2882
        %v2884 = vand.u32 %v1761, 4294901760
        %2885 = vmatprep.subr.mxu0 %v2884
        %v2886 = vand.u32 %v1759, 4294901760
        %2887 = vmatpush1.msra.mxu0 %v2886
        %v2888 = vand.u32 %v1767, 4294901760
        %2889 = vmatprep.subr.mxu0 %v2888
        %v2890 = vand.u32 %v1765, 4294901760
        %2891 = vmatpush1.msra.mxu0 %v2890
        %v2892 = vand.u32 %v1771, 4294901760
        %2893 = vmatprep.subr.mxu0 %v2892
        %v2894 = vand.u32 %v1769, 4294901760
        %2895 = vmatpush1.msra.mxu0 %v2894
        %v2896 = vand.u32 %v1777, 4294901760
        %2897 = vmatprep.subr.mxu0 %v2896
        %v2898 = vand.u32 %v1775, 4294901760
        %2899 = vmatpush1.msra.mxu0 %v2898
        %v2900 = vand.u32 %v1781, 4294901760
        %2901 = vmatprep.subr.mxu0 %v2900
        %v2902 = vand.u32 %v1779, 4294901760
        %2903 = vmatpush1.msra.mxu0 %v2902
        %2904 = vmatprep.subr.mxu0 0.0
        %2905 = vmatpush1.msra.mxu0 0.0
        %2906 = vmatprep.subr.mxu0 0.0
        %2907 = vmatpush1.msra.mxu0 0.0
        %2908 = vmatprep.subr.mxu0 0.0
        %2909 = vmatpush1.msra.mxu0 0.0
        %2910 = vmatprep.subr.mxu0 0.0
        %2911 = vmatpush1.msra.mxu0 0.0
        %2912 = vmatprep.subr.mxu0 0.0
        %2913 = vmatpush1.msra.mxu0 0.0
        %2914 = vmatprep.subr.mxu0 0.0
        %2915 = vmatpush1.msra.mxu0 0.0
        %2916 = vmatprep.subr.mxu0 0.0
        %2917 = vmatpush1.msra.mxu0 0.0
        %2918 = vmatprep.subr.mxu0 0.0
        %2919 = vmatpush1.msra.mxu0 0.0
        %2920 = vmatprep.subr.mxu0 0.0
        %2921 = vmatpush1.msra.mxu0 0.0
        %2922 = vmatprep.subr.mxu0 0.0
        %2923 = vmatpush1.msra.mxu0 0.0
        %2924 = vmatprep.subr.mxu0 0.0
        %2925 = vmatpush1.msra.mxu0 0.0
        %2926 = vmatprep.subr.mxu0 0.0
        %2927 = vmatpush1.msra.mxu0 0.0
        %2928 = vmatprep.subr.mxu0 0.0
        %2929 = vmatpush1.msra.mxu0 0.0
        %2930 = vmatprep.subr.mxu0 0.0
        %2931 = vmatpush1.msra.mxu0 0.0
        %2932 = vmatprep.subr.mxu0 0.0
        %2933 = vmatpush1.msra.mxu0 0.0
        %2934 = vmatprep.subr.mxu0 0.0
        %2935 = vmatpush1.msra.mxu0 0.0
        %2936 = vmatprep.subr.mxu0 0.0
        %2937 = vmatpush1.msra.mxu0 0.0
        %2938 = vmatprep.subr.mxu0 0.0
        %2939 = vmatpush1.msra.mxu0 0.0
        %2940 = vmatprep.subr.mxu0 0.0
        %2941 = vmatpush1.msra.mxu0 0.0
        %2942 = vmatprep.subr.mxu0 0.0
        %2943 = vmatpush1.msra.mxu0 0.0
        %2944 = vmatprep.subr.mxu0 0.0
        %2945 = vmatpush1.msra.mxu0 0.0
        %2946 = vmatprep.subr.mxu0 0.0
        %2947 = vmatpush1.msra.mxu0 0.0
        %2948 = vmatprep.subr.mxu0 0.0
        %2949 = vmatpush1.msra.mxu0 0.0
        %2950 = vmatprep.subr.mxu0 0.0
        %2951 = vmatpush1.msra.mxu0 0.0
        %2952 = vmatprep.mubr.f32.mxu0 0.0
        %v2953 = vand.u32 %v2870, 4294901760
        %v2954 = vsub.f32 %v2870, %v2953
        %v2955 = vand.u32 %v2954, 4294901760
        %v2956 = vsub.f32 %v2954, %v2955
        %v2957 = vand.u32 %v2956, 4294901760
        %2958 = vmatmul.mubr.f32.gmra.mrb[0].mxu0 %v2957
        %v2959 = vpop.f32.mrb[0].mxu0
        %v2960 = vadd.f32 %v2866, %v2959
        %v2961 = vpop.f32.mrb[0].mxu0
        %v2962 = vadd.f32 %v2866, %v2961
        %2963 = vdwg.mxu0
        %v2964 = vand.u32 %v1747, 4294901760
        %v2965 = vsub.f32 %v1747, %v2964
        %v2966 = vand.u32 %v2965, 4294901760
        %v2967 = vsub.f32 %v2965, %v2966
        %v2968 = vand.u32 %v2967, 4294901760
        %2969 = vmatprep.subr.mxu0 %v2968
        %v2970 = vand.u32 %v1745, 4294901760
        %v2971 = vsub.f32 %v1745, %v2970
        %v2972 = vand.u32 %v2971, 4294901760
        %v2973 = vsub.f32 %v2971, %v2972
        %v2974 = vand.u32 %v2973, 4294901760
        %2975 = vmatpush1.msra.mxu0 %v2974
        %v2976 = vand.u32 %v1751, 4294901760
        %v2977 = vsub.f32 %v1751, %v2976
        %v2978 = vand.u32 %v2977, 4294901760
        %v2979 = vsub.f32 %v2977, %v2978
        %v2980 = vand.u32 %v2979, 4294901760
        %2981 = vmatprep.subr.mxu0 %v2980
        %v2982 = vand.u32 %v1749, 4294901760
        %v2983 = vsub.f32 %v1749, %v2982
        %v2984 = vand.u32 %v2983, 4294901760
        %v2985 = vsub.f32 %v2983, %v2984
        %v2986 = vand.u32 %v2985, 4294901760
        %2987 = vmatpush1.msra.mxu0 %v2986
        %v2988 = vand.u32 %v1757, 4294901760
        %v2989 = vsub.f32 %v1757, %v2988
        %v2990 = vand.u32 %v2989, 4294901760
        %v2991 = vsub.f32 %v2989, %v2990
        %v2992 = vand.u32 %v2991, 4294901760
        %2993 = vmatprep.subr.mxu0 %v2992
        %v2994 = vand.u32 %v1755, 4294901760
        %v2995 = vsub.f32 %v1755, %v2994
        %v2996 = vand.u32 %v2995, 4294901760
        %v2997 = vsub.f32 %v2995, %v2996
        %v2998 = vand.u32 %v2997, 4294901760
        %2999 = vmatpush1.msra.mxu0 %v2998
        %v3000 = vand.u32 %v1761, 4294901760
        %v3001 = vsub.f32 %v1761, %v3000
        %v3002 = vand.u32 %v3001, 4294901760
        %v3003 = vsub.f32 %v3001, %v3002
        %v3004 = vand.u32 %v3003, 4294901760
        %3005 = vmatprep.subr.mxu0 %v3004
        %v3006 = vand.u32 %v1759, 4294901760
        %v3007 = vsub.f32 %v1759, %v3006
        %v3008 = vand.u32 %v3007, 4294901760
        %v3009 = vsub.f32 %v3007, %v3008
        %v3010 = vand.u32 %v3009, 4294901760
        %3011 = vmatpush1.msra.mxu0 %v3010
        %v3012 = vand.u32 %v1767, 4294901760
        %v3013 = vsub.f32 %v1767, %v3012
        %v3014 = vand.u32 %v3013, 4294901760
        %v3015 = vsub.f32 %v3013, %v3014
        %v3016 = vand.u32 %v3015, 4294901760
        %3017 = vmatprep.subr.mxu0 %v3016
        %v3018 = vand.u32 %v1765, 4294901760
        %v3019 = vsub.f32 %v1765, %v3018
        %v3020 = vand.u32 %v3019, 4294901760
        %v3021 = vsub.f32 %v3019, %v3020
        %v3022 = vand.u32 %v3021, 4294901760
        %3023 = vmatpush1.msra.mxu0 %v3022
        %v3024 = vand.u32 %v1771, 4294901760
        %v3025 = vsub.f32 %v1771, %v3024
        %v3026 = vand.u32 %v3025, 4294901760
        %v3027 = vsub.f32 %v3025, %v3026
        %v3028 = vand.u32 %v3027, 4294901760
        %3029 = vmatprep.subr.mxu0 %v3028
        %v3030 = vand.u32 %v1769, 4294901760
        %v3031 = vsub.f32 %v1769, %v3030
        %v3032 = vand.u32 %v3031, 4294901760
        %v3033 = vsub.f32 %v3031, %v3032
        %v3034 = vand.u32 %v3033, 4294901760
        %3035 = vmatpush1.msra.mxu0 %v3034
        %v3036 = vand.u32 %v1777, 4294901760
        %v3037 = vsub.f32 %v1777, %v3036
        %v3038 = vand.u32 %v3037, 4294901760
        %v3039 = vsub.f32 %v3037, %v3038
        %v3040 = vand.u32 %v3039, 4294901760
        %3041 = vmatprep.subr.mxu0 %v3040
        %v3042 = vand.u32 %v1775, 4294901760
        %v3043 = vsub.f32 %v1775, %v3042
        %v3044 = vand.u32 %v3043, 4294901760
        %v3045 = vsub.f32 %v3043, %v3044
        %v3046 = vand.u32 %v3045, 4294901760
        %3047 = vmatpush1.msra.mxu0 %v3046
        %v3048 = vand.u32 %v1781, 4294901760
        %v3049 = vsub.f32 %v1781, %v3048
        %v3050 = vand.u32 %v3049, 4294901760
        %v3051 = vsub.f32 %v3049, %v3050
        %v3052 = vand.u32 %v3051, 4294901760
        %3053 = vmatprep.subr.mxu0 %v3052
        %v3054 = vand.u32 %v1779, 4294901760
        %v3055 = vsub.f32 %v1779, %v3054
        %v3056 = vand.u32 %v3055, 4294901760
        %v3057 = vsub.f32 %v3055, %v3056
        %v3058 = vand.u32 %v3057, 4294901760
        %3059 = vmatpush1.msra.mxu0 %v3058
        %3060 = vmatprep.subr.mxu0 0.0
        %3061 = vmatpush1.msra.mxu0 0.0
        %3062 = vmatprep.subr.mxu0 0.0
        %3063 = vmatpush1.msra.mxu0 0.0
        %3064 = vmatprep.subr.mxu0 0.0
        %3065 = vmatpush1.msra.mxu0 0.0
        %3066 = vmatprep.subr.mxu0 0.0
        %3067 = vmatpush1.msra.mxu0 0.0
        %3068 = vmatprep.subr.mxu0 0.0
        %3069 = vmatpush1.msra.mxu0 0.0
        %3070 = vmatprep.subr.mxu0 0.0
        %3071 = vmatpush1.msra.mxu0 0.0
        %3072 = vmatprep.subr.mxu0 0.0
        %3073 = vmatpush1.msra.mxu0 0.0
        %3074 = vmatprep.subr.mxu0 0.0
        %3075 = vmatpush1.msra.mxu0 0.0
        %3076 = vmatprep.subr.mxu0 0.0
        %3077 = vmatpush1.msra.mxu0 0.0
        %3078 = vmatprep.subr.mxu0 0.0
        %3079 = vmatpush1.msra.mxu0 0.0
        %3080 = vmatprep.subr.mxu0 0.0
        %3081 = vmatpush1.msra.mxu0 0.0
        %3082 = vmatprep.subr.mxu0 0.0
        %3083 = vmatpush1.msra.mxu0 0.0
        %3084 = vmatprep.subr.mxu0 0.0
        %3085 = vmatpush1.msra.mxu0 0.0
        %3086 = vmatprep.subr.mxu0 0.0
        %3087 = vmatpush1.msra.mxu0 0.0
        %3088 = vmatprep.subr.mxu0 0.0
        %3089 = vmatpush1.msra.mxu0 0.0
        %3090 = vmatprep.subr.mxu0 0.0
        %3091 = vmatpush1.msra.mxu0 0.0
        %3092 = vmatprep.subr.mxu0 0.0
        %3093 = vmatpush1.msra.mxu0 0.0
        %3094 = vmatprep.subr.mxu0 0.0
        %3095 = vmatpush1.msra.mxu0 0.0
        %3096 = vmatprep.subr.mxu0 0.0
        %3097 = vmatpush1.msra.mxu0 0.0
        %3098 = vmatprep.subr.mxu0 0.0
        %3099 = vmatpush1.msra.mxu0 0.0
        %3100 = vmatprep.subr.mxu0 0.0
        %3101 = vmatpush1.msra.mxu0 0.0
        %3102 = vmatprep.subr.mxu0 0.0
        %3103 = vmatpush1.msra.mxu0 0.0
        %3104 = vmatprep.subr.mxu0 0.0
        %3105 = vmatpush1.msra.mxu0 0.0
        %3106 = vmatprep.subr.mxu0 0.0
        %3107 = vmatpush1.msra.mxu0 0.0
        %3108 = vmatprep.mubr.f32.mxu0 0.0
        %v3109 = vand.u32 %v2870, 4294901760
        %3110 = vmatmul.mubr.f32.gmra.mrb[0].mxu0 %v3109
        %v3111 = vpop.f32.mrb[0].mxu0
        %v3112 = vadd.f32 %v2960, %v3111
        %v3113 = vpop.f32.mrb[0].mxu0
        %v3114 = vadd.f32 %v2962, %v3113
        %3115 = vdwg.mxu0
        %v3116 = vand.u32 %v1747, 4294901760
        %v3117 = vsub.f32 %v1747, %v3116
        %3118 = vmatprep.subr.mxu0 %v3117
        %v3119 = vand.u32 %v1745, 4294901760
        %v3120 = vsub.f32 %v1745, %v3119
        %3121 = vmatpush1.msra.mxu0 %v3120
        %v3122 = vand.u32 %v1751, 4294901760
        %v3123 = vsub.f32 %v1751, %v3122
        %3124 = vmatprep.subr.mxu0 %v3123
        %v3125 = vand.u32 %v1749, 4294901760
        %v3126 = vsub.f32 %v1749, %v3125
        %3127 = vmatpush1.msra.mxu0 %v3126
        %v3128 = vand.u32 %v1757, 4294901760
        %v3129 = vsub.f32 %v1757, %v3128
        %3130 = vmatprep.subr.mxu0 %v3129
        %v3131 = vand.u32 %v1755, 4294901760
        %v3132 = vsub.f32 %v1755, %v3131
        %3133 = vmatpush1.msra.mxu0 %v3132
        %v3134 = vand.u32 %v1761, 4294901760
        %v3135 = vsub.f32 %v1761, %v3134
        %3136 = vmatprep.subr.mxu0 %v3135
        %v3137 = vand.u32 %v1759, 4294901760
        %v3138 = vsub.f32 %v1759, %v3137
        %3139 = vmatpush1.msra.mxu0 %v3138
        %v3140 = vand.u32 %v1767, 4294901760
        %v3141 = vsub.f32 %v1767, %v3140
        %3142 = vmatprep.subr.mxu0 %v3141
        %v3143 = vand.u32 %v1765, 4294901760
        %v3144 = vsub.f32 %v1765, %v3143
        %3145 = vmatpush1.msra.mxu0 %v3144
        %v3146 = vand.u32 %v1771, 4294901760
        %v3147 = vsub.f32 %v1771, %v3146
        %3148 = vmatprep.subr.mxu0 %v3147
        %v3149 = vand.u32 %v1769, 4294901760
        %v3150 = vsub.f32 %v1769, %v3149
        %3151 = vmatpush1.msra.mxu0 %v3150
        %v3152 = vand.u32 %v1777, 4294901760
        %v3153 = vsub.f32 %v1777, %v3152
        %3154 = vmatprep.subr.mxu0 %v3153
        %v3155 = vand.u32 %v1775, 4294901760
        %v3156 = vsub.f32 %v1775, %v3155
        %3157 = vmatpush1.msra.mxu0 %v3156
        %v3158 = vand.u32 %v1781, 4294901760
        %v3159 = vsub.f32 %v1781, %v3158
        %3160 = vmatprep.subr.mxu0 %v3159
        %v3161 = vand.u32 %v1779, 4294901760
        %v3162 = vsub.f32 %v1779, %v3161
        %3163 = vmatpush1.msra.mxu0 %v3162
        %3164 = vmatprep.subr.mxu0 0.0
        %3165 = vmatpush1.msra.mxu0 0.0
        %3166 = vmatprep.subr.mxu0 0.0
        %3167 = vmatpush1.msra.mxu0 0.0
        %3168 = vmatprep.subr.mxu0 0.0
        %3169 = vmatpush1.msra.mxu0 0.0
        %3170 = vmatprep.subr.mxu0 0.0
        %3171 = vmatpush1.msra.mxu0 0.0
        %3172 = vmatprep.subr.mxu0 0.0
        %3173 = vmatpush1.msra.mxu0 0.0
        %3174 = vmatprep.subr.mxu0 0.0
        %3175 = vmatpush1.msra.mxu0 0.0
        %3176 = vmatprep.subr.mxu0 0.0
        %3177 = vmatpush1.msra.mxu0 0.0
        %3178 = vmatprep.subr.mxu0 0.0
        %3179 = vmatpush1.msra.mxu0 0.0
        %3180 = vmatprep.subr.mxu0 0.0
        %3181 = vmatpush1.msra.mxu0 0.0
        %3182 = vmatprep.subr.mxu0 0.0
        %3183 = vmatpush1.msra.mxu0 0.0
        %3184 = vmatprep.subr.mxu0 0.0
        %3185 = vmatpush1.msra.mxu0 0.0
        %3186 = vmatprep.subr.mxu0 0.0
        %3187 = vmatpush1.msra.mxu0 0.0
        %3188 = vmatprep.subr.mxu0 0.0
        %3189 = vmatpush1.msra.mxu0 0.0
        %3190 = vmatprep.subr.mxu0 0.0
        %3191 = vmatpush1.msra.mxu0 0.0
        %3192 = vmatprep.subr.mxu0 0.0
        %3193 = vmatpush1.msra.mxu0 0.0
        %3194 = vmatprep.subr.mxu0 0.0
        %3195 = vmatpush1.msra.mxu0 0.0
        %3196 = vmatprep.subr.mxu0 0.0
        %3197 = vmatpush1.msra.mxu0 0.0
        %3198 = vmatprep.subr.mxu0 0.0
        %3199 = vmatpush1.msra.mxu0 0.0
        %3200 = vmatprep.subr.mxu0 0.0
        %3201 = vmatpush1.msra.mxu0 0.0
        %3202 = vmatprep.subr.mxu0 0.0
        %3203 = vmatpush1.msra.mxu0 0.0
        %3204 = vmatprep.subr.mxu0 0.0
        %3205 = vmatpush1.msra.mxu0 0.0
        %3206 = vmatprep.subr.mxu0 0.0
        %3207 = vmatpush1.msra.mxu0 0.0
        %3208 = vmatprep.subr.mxu0 0.0
        %3209 = vmatpush1.msra.mxu0 0.0
        %3210 = vmatprep.subr.mxu0 0.0
        %3211 = vmatpush1.msra.mxu0 0.0
        %3212 = vmatprep.mubr.f32.mxu0 0.0
        %v3213 = vand.u32 %v2870, 4294901760
        %v3214 = vsub.f32 %v2870, %v3213
        %3215 = vmatmul.mubr.f32.gmra.mrb[0].mxu0 %v3214
        %v3216 = vpop.f32.mrb[0].mxu0
        %v3217 = vadd.f32 %v3112, %v3216
        %v3218 = vpop.f32.mrb[0].mxu0
        %v3219 = vadd.f32 %v3114, %v3218
        %3220 = vdwg.mxu0
        %v3221 = vand.u32 %v1747, 4294901760
        %3222 = vmatprep.subr.mxu0 %v3221
        %v3223 = vand.u32 %v1745, 4294901760
        %3224 = vmatpush1.msra.mxu0 %v3223
        %v3225 = vand.u32 %v1751, 4294901760
        %3226 = vmatprep.subr.mxu0 %v3225
        %v3227 = vand.u32 %v1749, 4294901760
        %3228 = vmatpush1.msra.mxu0 %v3227
        %v3229 = vand.u32 %v1757, 4294901760
        %3230 = vmatprep.subr.mxu0 %v3229
        %v3231 = vand.u32 %v1755, 4294901760
        %3232 = vmatpush1.msra.mxu0 %v3231
        %v3233 = vand.u32 %v1761, 4294901760
        %3234 = vmatprep.subr.mxu0 %v3233
        %v3235 = vand.u32 %v1759, 4294901760
        %3236 = vmatpush1.msra.mxu0 %v3235
        %v3237 = vand.u32 %v1767, 4294901760
        %3238 = vmatprep.subr.mxu0 %v3237
        %v3239 = vand.u32 %v1765, 4294901760
        %3240 = vmatpush1.msra.mxu0 %v3239
        %v3241 = vand.u32 %v1771, 4294901760
        %3242 = vmatprep.subr.mxu0 %v3241
        %v3243 = vand.u32 %v1769, 4294901760
        %3244 = vmatpush1.msra.mxu0 %v3243
        %v3245 = vand.u32 %v1777, 4294901760
        %3246 = vmatprep.subr.mxu0 %v3245
        %v3247 = vand.u32 %v1775, 4294901760
        %3248 = vmatpush1.msra.mxu0 %v3247
        %v3249 = vand.u32 %v1781, 4294901760
        %3250 = vmatprep.subr.mxu0 %v3249
        %v3251 = vand.u32 %v1779, 4294901760
        %3252 = vmatpush1.msra.mxu0 %v3251
        %3253 = vmatprep.subr.mxu0 0.0
        %3254 = vmatpush1.msra.mxu0 0.0
        %3255 = vmatprep.subr.mxu0 0.0
        %3256 = vmatpush1.msra.mxu0 0.0
        %3257 = vmatprep.subr.mxu0 0.0
        %3258 = vmatpush1.msra.mxu0 0.0
        %3259 = vmatprep.subr.mxu0 0.0
        %3260 = vmatpush1.msra.mxu0 0.0
        %3261 = vmatprep.subr.mxu0 0.0
        %3262 = vmatpush1.msra.mxu0 0.0
        %3263 = vmatprep.subr.mxu0 0.0
        %3264 = vmatpush1.msra.mxu0 0.0
        %3265 = vmatprep.subr.mxu0 0.0
        %3266 = vmatpush1.msra.mxu0 0.0
        %3267 = vmatprep.subr.mxu0 0.0
        %3268 = vmatpush1.msra.mxu0 0.0
        %3269 = vmatprep.subr.mxu0 0.0
        %3270 = vmatpush1.msra.mxu0 0.0
        %3271 = vmatprep.subr.mxu0 0.0
        %3272 = vmatpush1.msra.mxu0 0.0
        %3273 = vmatprep.subr.mxu0 0.0
        %3274 = vmatpush1.msra.mxu0 0.0
        %3275 = vmatprep.subr.mxu0 0.0
        %3276 = vmatpush1.msra.mxu0 0.0
        %3277 = vmatprep.subr.mxu0 0.0
        %3278 = vmatpush1.msra.mxu0 0.0
        %3279 = vmatprep.subr.mxu0 0.0
        %3280 = vmatpush1.msra.mxu0 0.0
        %3281 = vmatprep.subr.mxu0 0.0
        %3282 = vmatpush1.msra.mxu0 0.0
        %3283 = vmatprep.subr.mxu0 0.0
        %3284 = vmatpush1.msra.mxu0 0.0
        %3285 = vmatprep.subr.mxu0 0.0
        %3286 = vmatpush1.msra.mxu0 0.0
        %3287 = vmatprep.subr.mxu0 0.0
        %3288 = vmatpush1.msra.mxu0 0.0
        %3289 = vmatprep.subr.mxu0 0.0
        %3290 = vmatpush1.msra.mxu0 0.0
        %3291 = vmatprep.subr.mxu0 0.0
        %3292 = vmatpush1.msra.mxu0 0.0
        %3293 = vmatprep.subr.mxu0 0.0
        %3294 = vmatpush1.msra.mxu0 0.0
        %3295 = vmatprep.subr.mxu0 0.0
        %3296 = vmatpush1.msra.mxu0 0.0
        %3297 = vmatprep.subr.mxu0 0.0
        %3298 = vmatpush1.msra.mxu0 0.0
        %3299 = vmatprep.subr.mxu0 0.0
        %3300 = vmatpush1.msra.mxu0 0.0
        %3301 = vmatprep.mubr.f32.mxu0 0.0
        %v3302 = vand.u32 %v2870, 4294901760
        %v3303 = vsub.f32 %v2870, %v3302
        %v3304 = vand.u32 %v3303, 4294901760
        %3305 = vmatmul.mubr.f32.gmra.mrb[0].mxu0 %v3304
        %v3306 = vpop.f32.mrb[0].mxu0
        %v3307 = vadd.f32 %v3217, %v3306
        %v3308 = vpop.f32.mrb[0].mxu0
        %v3309 = vadd.f32 %v3219, %v3308
        %3310 = vdwg.mxu0
        %v3311 = vand.u32 %v1747, 4294901760
        %v3312 = vsub.f32 %v1747, %v3311
        %v3313 = vand.u32 %v3312, 4294901760
        %3314 = vmatprep.subr.mxu0 %v3313
        %v3315 = vand.u32 %v1745, 4294901760
        %v3316 = vsub.f32 %v1745, %v3315
        %v3317 = vand.u32 %v3316, 4294901760
        %3318 = vmatpush1.msra.mxu0 %v3317
        %v3319 = vand.u32 %v1751, 4294901760
        %v3320 = vsub.f32 %v1751, %v3319
        %v3321 = vand.u32 %v3320, 4294901760
        %3322 = vmatprep.subr.mxu0 %v3321
        %v3323 = vand.u32 %v1749, 4294901760
        %v3324 = vsub.f32 %v1749, %v3323
        %v3325 = vand.u32 %v3324, 4294901760
        %3326 = vmatpush1.msra.mxu0 %v3325
        %v3327 = vand.u32 %v1757, 4294901760
        %v3328 = vsub.f32 %v1757, %v3327
        %v3329 = vand.u32 %v3328, 4294901760
        %3330 = vmatprep.subr.mxu0 %v3329
        %v3331 = vand.u32 %v1755, 4294901760
        %v3332 = vsub.f32 %v1755, %v3331
        %v3333 = vand.u32 %v3332, 4294901760
        %3334 = vmatpush1.msra.mxu0 %v3333
        %v3335 = vand.u32 %v1761, 4294901760
        %v3336 = vsub.f32 %v1761, %v3335
        %v3337 = vand.u32 %v3336, 4294901760
        %3338 = vmatprep.subr.mxu0 %v3337
        %v3339 = vand.u32 %v1759, 4294901760
        %v3340 = vsub.f32 %v1759, %v3339
        %v3341 = vand.u32 %v3340, 4294901760
        %3342 = vmatpush1.msra.mxu0 %v3341
        %v3343 = vand.u32 %v1767, 4294901760
        %v3344 = vsub.f32 %v1767, %v3343
        %v3345 = vand.u32 %v3344, 4294901760
        %3346 = vmatprep.subr.mxu0 %v3345
        %v3347 = vand.u32 %v1765, 4294901760
        %v3348 = vsub.f32 %v1765, %v3347
        %v3349 = vand.u32 %v3348, 4294901760
        %3350 = vmatpush1.msra.mxu0 %v3349
        %v3351 = vand.u32 %v1771, 4294901760
        %v3352 = vsub.f32 %v1771, %v3351
        %v3353 = vand.u32 %v3352, 4294901760
        %3354 = vmatprep.subr.mxu0 %v3353
        %v3355 = vand.u32 %v1769, 4294901760
        %v3356 = vsub.f32 %v1769, %v3355
        %v3357 = vand.u32 %v3356, 4294901760
        %3358 = vmatpush1.msra.mxu0 %v3357
        %v3359 = vand.u32 %v1777, 4294901760
        %v3360 = vsub.f32 %v1777, %v3359
        %v3361 = vand.u32 %v3360, 4294901760
        %3362 = vmatprep.subr.mxu0 %v3361
        %v3363 = vand.u32 %v1775, 4294901760
        %v3364 = vsub.f32 %v1775, %v3363
        %v3365 = vand.u32 %v3364, 4294901760
        %3366 = vmatpush1.msra.mxu0 %v3365
        %v3367 = vand.u32 %v1781, 4294901760
        %v3368 = vsub.f32 %v1781, %v3367
        %v3369 = vand.u32 %v3368, 4294901760
        %3370 = vmatprep.subr.mxu0 %v3369
        %v3371 = vand.u32 %v1779, 4294901760
        %v3372 = vsub.f32 %v1779, %v3371
        %v3373 = vand.u32 %v3372, 4294901760
        %3374 = vmatpush1.msra.mxu0 %v3373
        %3375 = vmatprep.subr.mxu0 0.0
        %3376 = vmatpush1.msra.mxu0 0.0
        %3377 = vmatprep.subr.mxu0 0.0
        %3378 = vmatpush1.msra.mxu0 0.0
        %3379 = vmatprep.subr.mxu0 0.0
        %3380 = vmatpush1.msra.mxu0 0.0
        %3381 = vmatprep.subr.mxu0 0.0
        %3382 = vmatpush1.msra.mxu0 0.0
        %3383 = vmatprep.subr.mxu0 0.0
        %3384 = vmatpush1.msra.mxu0 0.0
        %3385 = vmatprep.subr.mxu0 0.0
        %3386 = vmatpush1.msra.mxu0 0.0
        %3387 = vmatprep.subr.mxu0 0.0
        %3388 = vmatpush1.msra.mxu0 0.0
        %3389 = vmatprep.subr.mxu0 0.0
        %3390 = vmatpush1.msra.mxu0 0.0
        %3391 = vmatprep.subr.mxu0 0.0
        %3392 = vmatpush1.msra.mxu0 0.0
        %3393 = vmatprep.subr.mxu0 0.0
        %3394 = vmatpush1.msra.mxu0 0.0
        %3395 = vmatprep.subr.mxu0 0.0
        %3396 = vmatpush1.msra.mxu0 0.0
        %3397 = vmatprep.subr.mxu0 0.0
        %3398 = vmatpush1.msra.mxu0 0.0
        %3399 = vmatprep.subr.mxu0 0.0
        %3400 = vmatpush1.msra.mxu0 0.0
        %3401 = vmatprep.subr.mxu0 0.0
        %3402 = vmatpush1.msra.mxu0 0.0
        %3403 = vmatprep.subr.mxu0 0.0
        %3404 = vmatpush1.msra.mxu0 0.0
        %3405 = vmatprep.subr.mxu0 0.0
        %3406 = vmatpush1.msra.mxu0 0.0
        %3407 = vmatprep.subr.mxu0 0.0
        %3408 = vmatpush1.msra.mxu0 0.0
        %3409 = vmatprep.subr.mxu0 0.0
        %3410 = vmatpush1.msra.mxu0 0.0
        %3411 = vmatprep.subr.mxu0 0.0
        %3412 = vmatpush1.msra.mxu0 0.0
        %3413 = vmatprep.subr.mxu0 0.0
        %3414 = vmatpush1.msra.mxu0 0.0
        %3415 = vmatprep.subr.mxu0 0.0
        %3416 = vmatpush1.msra.mxu0 0.0
        %3417 = vmatprep.subr.mxu0 0.0
        %3418 = vmatpush1.msra.mxu0 0.0
        %3419 = vmatprep.subr.mxu0 0.0
        %3420 = vmatpush1.msra.mxu0 0.0
        %3421 = vmatprep.subr.mxu0 0.0
        %3422 = vmatpush1.msra.mxu0 0.0
        %3423 = vmatprep.mubr.f32.mxu0 0.0
        %v3424 = vand.u32 %v2870, 4294901760
        %3425 = vmatmul.mubr.f32.gmra.mrb[0].mxu0 %v3424
        %v3426 = vpop.f32.mrb[0].mxu0
        %v3427 = vadd.f32 %v3307, %v3426
        %v3428 = vpop.f32.mrb[0].mxu0
        %v3429 = vadd.f32 %v3309, %v3428
        %3430 = vdwg.mxu0
        %v3431 = vand.u32 %v1747, 4294901760
        %3432 = vmatprep.subr.mxu0 %v3431
        %v3433 = vand.u32 %v1745, 4294901760
        %3434 = vmatpush1.msra.mxu0 %v3433
        %v3435 = vand.u32 %v1751, 4294901760
        %3436 = vmatprep.subr.mxu0 %v3435
        %v3437 = vand.u32 %v1749, 4294901760
        %3438 = vmatpush1.msra.mxu0 %v3437
        %v3439 = vand.u32 %v1757, 4294901760
        %3440 = vmatprep.subr.mxu0 %v3439
        %v3441 = vand.u32 %v1755, 4294901760
        %3442 = vmatpush1.msra.mxu0 %v3441
        %v3443 = vand.u32 %v1761, 4294901760
        %3444 = vmatprep.subr.mxu0 %v3443
        %v3445 = vand.u32 %v1759, 4294901760
        %3446 = vmatpush1.msra.mxu0 %v3445
        %v3447 = vand.u32 %v1767, 4294901760
        %3448 = vmatprep.subr.mxu0 %v3447
        %v3449 = vand.u32 %v1765, 4294901760
        %3450 = vmatpush1.msra.mxu0 %v3449
        %v3451 = vand.u32 %v1771, 4294901760
        %3452 = vmatprep.subr.mxu0 %v3451
        %v3453 = vand.u32 %v1769, 4294901760
        %3454 = vmatpush1.msra.mxu0 %v3453
        %v3455 = vand.u32 %v1777, 4294901760
        %3456 = vmatprep.subr.mxu0 %v3455
        %v3457 = vand.u32 %v1775, 4294901760
        %3458 = vmatpush1.msra.mxu0 %v3457
        %v3459 = vand.u32 %v1781, 4294901760
        %3460 = vmatprep.subr.mxu0 %v3459
        %v3461 = vand.u32 %v1779, 4294901760
        %3462 = vmatpush1.msra.mxu0 %v3461
        %3463 = vmatprep.subr.mxu0 0.0
        %3464 = vmatpush1.msra.mxu0 0.0
        %3465 = vmatprep.subr.mxu0 0.0
        %3466 = vmatpush1.msra.mxu0 0.0
        %3467 = vmatprep.subr.mxu0 0.0
        %3468 = vmatpush1.msra.mxu0 0.0
        %3469 = vmatprep.subr.mxu0 0.0
        %3470 = vmatpush1.msra.mxu0 0.0
        %3471 = vmatprep.subr.mxu0 0.0
        %3472 = vmatpush1.msra.mxu0 0.0
        %3473 = vmatprep.subr.mxu0 0.0
        %3474 = vmatpush1.msra.mxu0 0.0
        %3475 = vmatprep.subr.mxu0 0.0
        %3476 = vmatpush1.msra.mxu0 0.0
        %3477 = vmatprep.subr.mxu0 0.0
        %3478 = vmatpush1.msra.mxu0 0.0
        %3479 = vmatprep.subr.mxu0 0.0
        %3480 = vmatpush1.msra.mxu0 0.0
        %3481 = vmatprep.subr.mxu0 0.0
        %3482 = vmatpush1.msra.mxu0 0.0
        %3483 = vmatprep.subr.mxu0 0.0
        %3484 = vmatpush1.msra.mxu0 0.0
        %3485 = vmatprep.subr.mxu0 0.0
        %3486 = vmatpush1.msra.mxu0 0.0
        %3487 = vmatprep.subr.mxu0 0.0
        %3488 = vmatpush1.msra.mxu0 0.0
        %3489 = vmatprep.subr.mxu0 0.0
        %3490 = vmatpush1.msra.mxu0 0.0
        %3491 = vmatprep.subr.mxu0 0.0
        %3492 = vmatpush1.msra.mxu0 0.0
        %3493 = vmatprep.subr.mxu0 0.0
        %3494 = vmatpush1.msra.mxu0 0.0
        %3495 = vmatprep.subr.mxu0 0.0
        %3496 = vmatpush1.msra.mxu0 0.0
        %3497 = vmatprep.subr.mxu0 0.0
        %3498 = vmatpush1.msra.mxu0 0.0
        %3499 = vmatprep.subr.mxu0 0.0
        %3500 = vmatpush1.msra.mxu0 0.0
        %3501 = vmatprep.subr.mxu0 0.0
        %3502 = vmatpush1.msra.mxu0 0.0
        %3503 = vmatprep.subr.mxu0 0.0
        %3504 = vmatpush1.msra.mxu0 0.0
        %3505 = vmatprep.subr.mxu0 0.0
        %3506 = vmatpush1.msra.mxu0 0.0
        %3507 = vmatprep.subr.mxu0 0.0
        %3508 = vmatpush1.msra.mxu0 0.0
        %3509 = vmatprep.subr.mxu0 0.0
        %3510 = vmatpush1.msra.mxu0 0.0
        %3511 = vmatprep.mubr.f32.mxu0 0.0
        %v3512 = vand.u32 %v2870, 4294901760
        %3513 = vmatmul.mubr.f32.gmra.mrb[0].mxu0 %v3512
        %v3514 = vpop.f32.mrb[0].mxu0
        %v3515 = vadd.f32 %v3427, %v3514
        %v3516 = vpop.f32.mrb[0].mxu0
        %v3517 = vadd.f32 %v3429, %v3516
        %3518 = vdwg.mxu0
        %v3519 = vxor.u32 %v3515, 2147483648
        %v3520 = vxor.u32 %v3517, 2147483648
        %v3521 = vmul.f32 %v3519, 1.442695
        %v3522 = vpow.pop %v3521
        %v3523 = vmul.f32 %v3520, 1.442695
        %v3524 = vpow.pop %v3523
        %v3525 = vadd.f32 %v3522, 1.0
        %v3526 = vadd.f32 %v3524, 1.0
        %v3527 = vrcp.pop %v3525
        %v3528 = vmul.f32 1.0, %v3527
        %v3529 = vrcp.pop %v3526
        %v3530 = vmul.f32 1.0, %v3529
        %v3531 = vld [vmem:[%s14] sm:$0xf]
        %v3532 = vld [vmem:[%s15] sm:$0xf]
        %3534 = vset.pattern.permute.xlu0 0
        %3535 = vperm.xlu0 %3534, %v3532
        %v3536 = vpop.permute.xlu0 %3535
        %vm3538 = vcmask 64512
        %v3540 = vsel %vm3538, %v3531, 0
        %v3542 = vand.u32 %v695, 4294901760
        %3543 = vmatprep.subr.mxu0 %v3542
        %v3544 = vand.u32 %v694, 4294901760
        %3545 = vmatpush1.msra.mxu0 %v3544
        %3546 = vmatprep.subr.mxu0 0.0
        %3547 = vmatpush1.msra.mxu0 0.0
        %3548 = vmatprep.subr.mxu0 0.0
        %3549 = vmatpush1.msra.mxu0 0.0
        %3550 = vmatprep.subr.mxu0 0.0
        %3551 = vmatpush1.msra.mxu0 0.0
        %3552 = vmatprep.subr.mxu0 0.0
        %3553 = vmatpush1.msra.mxu0 0.0
        %3554 = vmatprep.subr.mxu0 0.0
        %3555 = vmatpush1.msra.mxu0 0.0
        %3556 = vmatprep.subr.mxu0 0.0
        %3557 = vmatpush1.msra.mxu0 0.0
        %3558 = vmatprep.subr.mxu0 0.0
        %3559 = vmatpush1.msra.mxu0 0.0
        %3560 = vmatprep.subr.mxu0 0.0
        %3561 = vmatpush1.msra.mxu0 0.0
        %3562 = vmatprep.subr.mxu0 0.0
        %3563 = vmatpush1.msra.mxu0 0.0
        %3564 = vmatprep.subr.mxu0 0.0
        %3565 = vmatpush1.msra.mxu0 0.0
        %3566 = vmatprep.subr.mxu0 0.0
        %3567 = vmatpush1.msra.mxu0 0.0
        %3568 = vmatprep.subr.mxu0 0.0
        %3569 = vmatpush1.msra.mxu0 0.0
        %3570 = vmatprep.subr.mxu0 0.0
        %3571 = vmatpush1.msra.mxu0 0.0
        %3572 = vmatprep.subr.mxu0 0.0
        %3573 = vmatpush1.msra.mxu0 0.0
        %3574 = vmatprep.subr.mxu0 0.0
        %3575 = vmatpush1.msra.mxu0 0.0
        %3576 = vmatprep.subr.mxu0 0.0
        %3577 = vmatpush1.msra.mxu0 0.0
        %3578 = vmatprep.subr.mxu0 0.0
        %3579 = vmatpush1.msra.mxu0 0.0
        %3580 = vmatprep.subr.mxu0 0.0
        %3581 = vmatpush1.msra.mxu0 0.0
        %3582 = vmatprep.subr.mxu0 0.0
        %3583 = vmatpush1.msra.mxu0 0.0
        %3584 = vmatprep.subr.mxu0 0.0
        %3585 = vmatpush1.msra.mxu0 0.0
        %3586 = vmatprep.subr.mxu0 0.0
        %3587 = vmatpush1.msra.mxu0 0.0
        %3588 = vmatprep.subr.mxu0 0.0
        %3589 = vmatpush1.msra.mxu0 0.0
        %3590 = vmatprep.subr.mxu0 0.0
        %3591 = vmatpush1.msra.mxu0 0.0
        %3592 = vmatprep.subr.mxu0 0.0
        %3593 = vmatpush1.msra.mxu0 0.0
        %3594 = vmatprep.subr.mxu0 0.0
        %3595 = vmatpush1.msra.mxu0 0.0
        %3596 = vmatprep.subr.mxu0 0.0
        %3597 = vmatpush1.msra.mxu0 0.0
        %3598 = vmatprep.subr.mxu0 0.0
        %3599 = vmatpush1.msra.mxu0 0.0
        %3600 = vmatprep.subr.mxu0 0.0
        %3601 = vmatpush1.msra.mxu0 0.0
        %3602 = vmatprep.subr.mxu0 0.0
        %3603 = vmatpush1.msra.mxu0 0.0
        %3604 = vmatprep.subr.mxu0 0.0
        %3605 = vmatpush1.msra.mxu0 0.0
        %3606 = vmatprep.subr.mxu0 0.0
        %3607 = vmatpush1.msra.mxu0 0.0
        %3608 = vmatprep.mubr.f32.mxu0 0.0
        %v3609 = vand.u32 %v3540, 4294901760
        %v3610 = vsub.f32 %v3540, %v3609
        %v3611 = vand.u32 %v3610, 4294901760
        %v3612 = vsub.f32 %v3610, %v3611
        %v3613 = vand.u32 %v3612, 4294901760
        %3614 = vmatmul.mubr.f32.gmra.mrb[0].mxu0 %v3613
        %v3615 = vpop.f32.mrb[0].mxu0
        %v3616 = vadd.f32 %v3536, %v3615
        %v3617 = vpop.f32.mrb[0].mxu0
        %v3618 = vadd.f32 %v3536, %v3617
        %3619 = vdwg.mxu0
        %v3620 = vand.u32 %v695, 4294901760
        %v3621 = vsub.f32 %v695, %v3620
        %v3622 = vand.u32 %v3621, 4294901760
        %v3623 = vsub.f32 %v3621, %v3622
        %v3624 = vand.u32 %v3623, 4294901760
        %3625 = vmatprep.subr.mxu0 %v3624
        %v3626 = vand.u32 %v694, 4294901760
        %v3627 = vsub.f32 %v694, %v3626
        %v3628 = vand.u32 %v3627, 4294901760
        %v3629 = vsub.f32 %v3627, %v3628
        %v3630 = vand.u32 %v3629, 4294901760
        %3631 = vmatpush1.msra.mxu0 %v3630
        %3632 = vmatprep.subr.mxu0 0.0
        %3633 = vmatpush1.msra.mxu0 0.0
        %3634 = vmatprep.subr.mxu0 0.0
        %3635 = vmatpush1.msra.mxu0 0.0
        %3636 = vmatprep.subr.mxu0 0.0
        %3637 = vmatpush1.msra.mxu0 0.0
        %3638 = vmatprep.subr.mxu0 0.0
        %3639 = vmatpush1.msra.mxu0 0.0
        %3640 = vmatprep.subr.mxu0 0.0
        %3641 = vmatpush1.msra.mxu0 0.0
        %3642 = vmatprep.subr.mxu0 0.0
        %3643 = vmatpush1.msra.mxu0 0.0
        %3644 = vmatprep.subr.mxu0 0.0
        %3645 = vmatpush1.msra.mxu0 0.0
        %3646 = vmatprep.subr.mxu0 0.0
        %3647 = vmatpush1.msra.mxu0 0.0
        %3648 = vmatprep.subr.mxu0 0.0
        %3649 = vmatpush1.msra.mxu0 0.0
        %3650 = vmatprep.subr.mxu0 0.0
        %3651 = vmatpush1.msra.mxu0 0.0
        %3652 = vmatprep.subr.mxu0 0.0
        %3653 = vmatpush1.msra.mxu0 0.0
        %3654 = vmatprep.subr.mxu0 0.0
        %3655 = vmatpush1.msra.mxu0 0.0
        %3656 = vmatprep.subr.mxu0 0.0
        %3657 = vmatpush1.msra.mxu0 0.0
        %3658 = vmatprep.subr.mxu0 0.0
        %3659 = vmatpush1.msra.mxu0 0.0
        %3660 = vmatprep.subr.mxu0 0.0
        %3661 = vmatpush1.msra.mxu0 0.0
        %3662 = vmatprep.subr.mxu0 0.0
        %3663 = vmatpush1.msra.mxu0 0.0
        %3664 = vmatprep.subr.mxu0 0.0
        %3665 = vmatpush1.msra.mxu0 0.0
        %3666 = vmatprep.subr.mxu0 0.0
        %3667 = vmatpush1.msra.mxu0 0.0
        %3668 = vmatprep.subr.mxu0 0.0
        %3669 = vmatpush1.msra.mxu0 0.0
        %3670 = vmatprep.subr.mxu0 0.0
        %3671 = vmatpush1.msra.mxu0 0.0
        %3672 = vmatprep.subr.mxu0 0.0
        %3673 = vmatpush1.msra.mxu0 0.0
        %3674 = vmatprep.subr.mxu0 0.0
        %3675 = vmatpush1.msra.mxu0 0.0
        %3676 = vmatprep.subr.mxu0 0.0
        %3677 = vmatpush1.msra.mxu0 0.0
        %3678 = vmatprep.subr.mxu0 0.0
        %3679 = vmatpush1.msra.mxu0 0.0
        %3680 = vmatprep.subr.mxu0 0.0
        %3681 = vmatpush1.msra.mxu0 0.0
        %3682 = vmatprep.subr.mxu0 0.0
        %3683 = vmatpush1.msra.mxu0 0.0
        %3684 = vmatprep.subr.mxu0 0.0
        %3685 = vmatpush1.msra.mxu0 0.0
        %3686 = vmatprep.subr.mxu0 0.0
        %3687 = vmatpush1.msra.mxu0 0.0
        %3688 = vmatprep.subr.mxu0 0.0
        %3689 = vmatpush1.msra.mxu0 0.0
        %3690 = vmatprep.subr.mxu0 0.0
        %3691 = vmatpush1.msra.mxu0 0.0
        %3692 = vmatprep.subr.mxu0 0.0
        %3693 = vmatpush1.msra.mxu0 0.0
        %3694 = vmatprep.mubr.f32.mxu0 0.0
        %v3695 = vand.u32 %v3540, 4294901760
        %3696 = vmatmul.mubr.f32.gmra.mrb[0].mxu0 %v3695
        %v3697 = vpop.f32.mrb[0].mxu0
        %v3698 = vadd.f32 %v3616, %v3697
        %v3699 = vpop.f32.mrb[0].mxu0
        %v3700 = vadd.f32 %v3618, %v3699
        %3701 = vdwg.mxu0
        %v3702 = vand.u32 %v695, 4294901760
        %v3703 = vsub.f32 %v695, %v3702
        %3704 = vmatprep.subr.mxu0 %v3703
        %v3705 = vand.u32 %v694, 4294901760
        %v3706 = vsub.f32 %v694, %v3705
        %3707 = vmatpush1.msra.mxu0 %v3706
        %3708 = vmatprep.subr.mxu0 0.0
        %3709 = vmatpush1.msra.mxu0 0.0
        %3710 = vmatprep.subr.mxu0 0.0
        %3711 = vmatpush1.msra.mxu0 0.0
        %3712 = vmatprep.subr.mxu0 0.0
        %3713 = vmatpush1.msra.mxu0 0.0
        %3714 = vmatprep.subr.mxu0 0.0
        %3715 = vmatpush1.msra.mxu0 0.0
        %3716 = vmatprep.subr.mxu0 0.0
        %3717 = vmatpush1.msra.mxu0 0.0
        %3718 = vmatprep.subr.mxu0 0.0
        %3719 = vmatpush1.msra.mxu0 0.0
        %3720 = vmatprep.subr.mxu0 0.0
        %3721 = vmatpush1.msra.mxu0 0.0
        %3722 = vmatprep.subr.mxu0 0.0
        %3723 = vmatpush1.msra.mxu0 0.0
        %3724 = vmatprep.subr.mxu0 0.0
        %3725 = vmatpush1.msra.mxu0 0.0
        %3726 = vmatprep.subr.mxu0 0.0
        %3727 = vmatpush1.msra.mxu0 0.0
        %3728 = vmatprep.subr.mxu0 0.0
        %3729 = vmatpush1.msra.mxu0 0.0
        %3730 = vmatprep.subr.mxu0 0.0
        %3731 = vmatpush1.msra.mxu0 0.0
        %3732 = vmatprep.subr.mxu0 0.0
        %3733 = vmatpush1.msra.mxu0 0.0
        %3734 = vmatprep.subr.mxu0 0.0
        %3735 = vmatpush1.msra.mxu0 0.0
        %3736 = vmatprep.subr.mxu0 0.0
        %3737 = vmatpush1.msra.mxu0 0.0
        %3738 = vmatprep.subr.mxu0 0.0
        %3739 = vmatpush1.msra.mxu0 0.0
        %3740 = vmatprep.subr.mxu0 0.0
        %3741 = vmatpush1.msra.mxu0 0.0
        %3742 = vmatprep.subr.mxu0 0.0
        %3743 = vmatpush1.msra.mxu0 0.0
        %3744 = vmatprep.subr.mxu0 0.0
        %3745 = vmatpush1.msra.mxu0 0.0
        %3746 = vmatprep.subr.mxu0 0.0
        %3747 = vmatpush1.msra.mxu0 0.0
        %3748 = vmatprep.subr.mxu0 0.0
        %3749 = vmatpush1.msra.mxu0 0.0
        %3750 = vmatprep.subr.mxu0 0.0
        %3751 = vmatpush1.msra.mxu0 0.0
        %3752 = vmatprep.subr.mxu0 0.0
        %3753 = vmatpush1.msra.mxu0 0.0
        %3754 = vmatprep.subr.mxu0 0.0
        %3755 = vmatpush1.msra.mxu0 0.0
        %3756 = vmatprep.subr.mxu0 0.0
        %3757 = vmatpush1.msra.mxu0 0.0
        %3758 = vmatprep.subr.mxu0 0.0
        %3759 = vmatpush1.msra.mxu0 0.0
        %3760 = vmatprep.subr.mxu0 0.0
        %3761 = vmatpush1.msra.mxu0 0.0
        %3762 = vmatprep.subr.mxu0 0.0
        %3763 = vmatpush1.msra.mxu0 0.0
        %3764 = vmatprep.subr.mxu0 0.0
        %3765 = vmatpush1.msra.mxu0 0.0
        %3766 = vmatprep.subr.mxu0 0.0
        %3767 = vmatpush1.msra.mxu0 0.0
        %3768 = vmatprep.subr.mxu0 0.0
        %3769 = vmatpush1.msra.mxu0 0.0
        %3770 = vmatprep.mubr.f32.mxu0 0.0
        %v3771 = vand.u32 %v3540, 4294901760
        %v3772 = vsub.f32 %v3540, %v3771
        %3773 = vmatmul.mubr.f32.gmra.mrb[0].mxu0 %v3772
        %v3774 = vpop.f32.mrb[0].mxu0
        %v3775 = vadd.f32 %v3698, %v3774
        %v3776 = vpop.f32.mrb[0].mxu0
        %v3777 = vadd.f32 %v3700, %v3776
        %3778 = vdwg.mxu0
        %v3779 = vand.u32 %v695, 4294901760
        %3780 = vmatprep.subr.mxu0 %v3779
        %v3781 = vand.u32 %v694, 4294901760
        %3782 = vmatpush1.msra.mxu0 %v3781
        %3783 = vmatprep.subr.mxu0 0.0
        %3784 = vmatpush1.msra.mxu0 0.0
        %3785 = vmatprep.subr.mxu0 0.0
        %3786 = vmatpush1.msra.mxu0 0.0
        %3787 = vmatprep.subr.mxu0 0.0
        %3788 = vmatpush1.msra.mxu0 0.0
        %3789 = vmatprep.subr.mxu0 0.0
        %3790 = vmatpush1.msra.mxu0 0.0
        %3791 = vmatprep.subr.mxu0 0.0
        %3792 = vmatpush1.msra.mxu0 0.0
        %3793 = vmatprep.subr.mxu0 0.0
        %3794 = vmatpush1.msra.mxu0 0.0
        %3795 = vmatprep.subr.mxu0 0.0
        %3796 = vmatpush1.msra.mxu0 0.0
        %3797 = vmatprep.subr.mxu0 0.0
        %3798 = vmatpush1.msra.mxu0 0.0
        %3799 = vmatprep.subr.mxu0 0.0
        %3800 = vmatpush1.msra.mxu0 0.0
        %3801 = vmatprep.subr.mxu0 0.0
        %3802 = vmatpush1.msra.mxu0 0.0
        %3803 = vmatprep.subr.mxu0 0.0
        %3804 = vmatpush1.msra.mxu0 0.0
        %3805 = vmatprep.subr.mxu0 0.0
        %3806 = vmatpush1.msra.mxu0 0.0
        %3807 = vmatprep.subr.mxu0 0.0
        %3808 = vmatpush1.msra.mxu0 0.0
        %3809 = vmatprep.subr.mxu0 0.0
        %3810 = vmatpush1.msra.mxu0 0.0
        %3811 = vmatprep.subr.mxu0 0.0
        %3812 = vmatpush1.msra.mxu0 0.0
        %3813 = vmatprep.subr.mxu0 0.0
        %3814 = vmatpush1.msra.mxu0 0.0
        %3815 = vmatprep.subr.mxu0 0.0
        %3816 = vmatpush1.msra.mxu0 0.0
        %3817 = vmatprep.subr.mxu0 0.0
        %3818 = vmatpush1.msra.mxu0 0.0
        %3819 = vmatprep.subr.mxu0 0.0
        %3820 = vmatpush1.msra.mxu0 0.0
        %3821 = vmatprep.subr.mxu0 0.0
        %3822 = vmatpush1.msra.mxu0 0.0
        %3823 = vmatprep.subr.mxu0 0.0
        %3824 = vmatpush1.msra.mxu0 0.0
        %3825 = vmatprep.subr.mxu0 0.0
        %3826 = vmatpush1.msra.mxu0 0.0
        %3827 = vmatprep.subr.mxu0 0.0
        %3828 = vmatpush1.msra.mxu0 0.0
        %3829 = vmatprep.subr.mxu0 0.0
        %3830 = vmatpush1.msra.mxu0 0.0
        %3831 = vmatprep.subr.mxu0 0.0
        %3832 = vmatpush1.msra.mxu0 0.0
        %3833 = vmatprep.subr.mxu0 0.0
        %3834 = vmatpush1.msra.mxu0 0.0
        %3835 = vmatprep.subr.mxu0 0.0
        %3836 = vmatpush1.msra.mxu0 0.0
        %3837 = vmatprep.subr.mxu0 0.0
        %3838 = vmatpush1.msra.mxu0 0.0
        %3839 = vmatprep.subr.mxu0 0.0
        %3840 = vmatpush1.msra.mxu0 0.0
        %3841 = vmatprep.subr.mxu0 0.0
        %3842 = vmatpush1.msra.mxu0 0.0
        %3843 = vmatprep.subr.mxu0 0.0
        %3844 = vmatpush1.msra.mxu0 0.0
        %3845 = vmatprep.mubr.f32.mxu0 0.0
        %v3846 = vand.u32 %v3540, 4294901760
        %v3847 = vsub.f32 %v3540, %v3846
        %v3848 = vand.u32 %v3847, 4294901760
        %3849 = vmatmul.mubr.f32.gmra.mrb[0].mxu0 %v3848
        %v3850 = vpop.f32.mrb[0].mxu0
        %v3851 = vadd.f32 %v3775, %v3850
        %v3852 = vpop.f32.mrb[0].mxu0
        %v3853 = vadd.f32 %v3777, %v3852
        %3854 = vdwg.mxu0
        %v3855 = vand.u32 %v695, 4294901760
        %v3856 = vsub.f32 %v695, %v3855
        %v3857 = vand.u32 %v3856, 4294901760
        %3858 = vmatprep.subr.mxu0 %v3857
        %v3859 = vand.u32 %v694, 4294901760
        %v3860 = vsub.f32 %v694, %v3859
        %v3861 = vand.u32 %v3860, 4294901760
        %3862 = vmatpush1.msra.mxu0 %v3861
        %3863 = vmatprep.subr.mxu0 0.0
        %3864 = vmatpush1.msra.mxu0 0.0
        %3865 = vmatprep.subr.mxu0 0.0
        %3866 = vmatpush1.msra.mxu0 0.0
        %3867 = vmatprep.subr.mxu0 0.0
        %3868 = vmatpush1.msra.mxu0 0.0
        %3869 = vmatprep.subr.mxu0 0.0
        %3870 = vmatpush1.msra.mxu0 0.0
        %3871 = vmatprep.subr.mxu0 0.0
        %3872 = vmatpush1.msra.mxu0 0.0
        %3873 = vmatprep.subr.mxu0 0.0
        %3874 = vmatpush1.msra.mxu0 0.0
        %3875 = vmatprep.subr.mxu0 0.0
        %3876 = vmatpush1.msra.mxu0 0.0
        %3877 = vmatprep.subr.mxu0 0.0
        %3878 = vmatpush1.msra.mxu0 0.0
        %3879 = vmatprep.subr.mxu0 0.0
        %3880 = vmatpush1.msra.mxu0 0.0
        %3881 = vmatprep.subr.mxu0 0.0
        %3882 = vmatpush1.msra.mxu0 0.0
        %3883 = vmatprep.subr.mxu0 0.0
        %3884 = vmatpush1.msra.mxu0 0.0
        %3885 = vmatprep.subr.mxu0 0.0
        %3886 = vmatpush1.msra.mxu0 0.0
        %3887 = vmatprep.subr.mxu0 0.0
        %3888 = vmatpush1.msra.mxu0 0.0
        %3889 = vmatprep.subr.mxu0 0.0
        %3890 = vmatpush1.msra.mxu0 0.0
        %3891 = vmatprep.subr.mxu0 0.0
        %3892 = vmatpush1.msra.mxu0 0.0
        %3893 = vmatprep.subr.mxu0 0.0
        %3894 = vmatpush1.msra.mxu0 0.0
        %3895 = vmatprep.subr.mxu0 0.0
        %3896 = vmatpush1.msra.mxu0 0.0
        %3897 = vmatprep.subr.mxu0 0.0
        %3898 = vmatpush1.msra.mxu0 0.0
        %3899 = vmatprep.subr.mxu0 0.0
        %3900 = vmatpush1.msra.mxu0 0.0
        %3901 = vmatprep.subr.mxu0 0.0
        %3902 = vmatpush1.msra.mxu0 0.0
        %3903 = vmatprep.subr.mxu0 0.0
        %3904 = vmatpush1.msra.mxu0 0.0
        %3905 = vmatprep.subr.mxu0 0.0
        %3906 = vmatpush1.msra.mxu0 0.0
        %3907 = vmatprep.subr.mxu0 0.0
        %3908 = vmatpush1.msra.mxu0 0.0
        %3909 = vmatprep.subr.mxu0 0.0
        %3910 = vmatpush1.msra.mxu0 0.0
        %3911 = vmatprep.subr.mxu0 0.0
        %3912 = vmatpush1.msra.mxu0 0.0
        %3913 = vmatprep.subr.mxu0 0.0
        %3914 = vmatpush1.msra.mxu0 0.0
        %3915 = vmatprep.subr.mxu0 0.0
        %3916 = vmatpush1.msra.mxu0 0.0
        %3917 = vmatprep.subr.mxu0 0.0
        %3918 = vmatpush1.msra.mxu0 0.0
        %3919 = vmatprep.subr.mxu0 0.0
        %3920 = vmatpush1.msra.mxu0 0.0
        %3921 = vmatprep.subr.mxu0 0.0
        %3922 = vmatpush1.msra.mxu0 0.0
        %3923 = vmatprep.subr.mxu0 0.0
        %3924 = vmatpush1.msra.mxu0 0.0
        %3925 = vmatprep.mubr.f32.mxu0 0.0
        %v3926 = vand.u32 %v3540, 4294901760
        %3927 = vmatmul.mubr.f32.gmra.mrb[0].mxu0 %v3926
        %v3928 = vpop.f32.mrb[0].mxu0
        %v3929 = vadd.f32 %v3851, %v3928
        %v3930 = vpop.f32.mrb[0].mxu0
        %v3931 = vadd.f32 %v3853, %v3930
        %3932 = vdwg.mxu0
        %v3933 = vand.u32 %v695, 4294901760
        %3934 = vmatprep.subr.mxu0 %v3933
        %v3935 = vand.u32 %v694, 4294901760
        %3936 = vmatpush1.msra.mxu0 %v3935
        %3937 = vmatprep.subr.mxu0 0.0
        %3938 = vmatpush1.msra.mxu0 0.0
        %3939 = vmatprep.subr.mxu0 0.0
        %3940 = vmatpush1.msra.mxu0 0.0
        %3941 = vmatprep.subr.mxu0 0.0
        %3942 = vmatpush1.msra.mxu0 0.0
        %3943 = vmatprep.subr.mxu0 0.0
        %3944 = vmatpush1.msra.mxu0 0.0
        %3945 = vmatprep.subr.mxu0 0.0
        %3946 = vmatpush1.msra.mxu0 0.0
        %3947 = vmatprep.subr.mxu0 0.0
        %3948 = vmatpush1.msra.mxu0 0.0
        %3949 = vmatprep.subr.mxu0 0.0
        %3950 = vmatpush1.msra.mxu0 0.0
        %3951 = vmatprep.subr.mxu0 0.0
        %3952 = vmatpush1.msra.mxu0 0.0
        %3953 = vmatprep.subr.mxu0 0.0
        %3954 = vmatpush1.msra.mxu0 0.0
        %3955 = vmatprep.subr.mxu0 0.0
        %3956 = vmatpush1.msra.mxu0 0.0
        %3957 = vmatprep.subr.mxu0 0.0
        %3958 = vmatpush1.msra.mxu0 0.0
        %3959 = vmatprep.subr.mxu0 0.0
        %3960 = vmatpush1.msra.mxu0 0.0
        %3961 = vmatprep.subr.mxu0 0.0
        %3962 = vmatpush1.msra.mxu0 0.0
        %3963 = vmatprep.subr.mxu0 0.0
        %3964 = vmatpush1.msra.mxu0 0.0
        %3965 = vmatprep.subr.mxu0 0.0
        %3966 = vmatpush1.msra.mxu0 0.0
        %3967 = vmatprep.subr.mxu0 0.0
        %3968 = vmatpush1.msra.mxu0 0.0
        %3969 = vmatprep.subr.mxu0 0.0
        %3970 = vmatpush1.msra.mxu0 0.0
        %3971 = vmatprep.subr.mxu0 0.0
        %3972 = vmatpush1.msra.mxu0 0.0
        %3973 = vmatprep.subr.mxu0 0.0
        %3974 = vmatpush1.msra.mxu0 0.0
        %3975 = vmatprep.subr.mxu0 0.0
        %3976 = vmatpush1.msra.mxu0 0.0
        %3977 = vmatprep.subr.mxu0 0.0
        %3978 = vmatpush1.msra.mxu0 0.0
        %3979 = vmatprep.subr.mxu0 0.0
        %3980 = vmatpush1.msra.mxu0 0.0
        %3981 = vmatprep.subr.mxu0 0.0
        %3982 = vmatpush1.msra.mxu0 0.0
        %3983 = vmatprep.subr.mxu0 0.0
        %3984 = vmatpush1.msra.mxu0 0.0
        %3985 = vmatprep.subr.mxu0 0.0
        %3986 = vmatpush1.msra.mxu0 0.0
        %3987 = vmatprep.subr.mxu0 0.0
        %3988 = vmatpush1.msra.mxu0 0.0
        %3989 = vmatprep.subr.mxu0 0.0
        %3990 = vmatpush1.msra.mxu0 0.0
        %3991 = vmatprep.subr.mxu0 0.0
        %3992 = vmatpush1.msra.mxu0 0.0
        %3993 = vmatprep.subr.mxu0 0.0
        %3994 = vmatpush1.msra.mxu0 0.0
        %3995 = vmatprep.subr.mxu0 0.0
        %3996 = vmatpush1.msra.mxu0 0.0
        %3997 = vmatprep.subr.mxu0 0.0
        %3998 = vmatpush1.msra.mxu0 0.0
        %3999 = vmatprep.mubr.f32.mxu0 0.0
        %v4000 = vand.u32 %v3540, 4294901760
        %4001 = vmatmul.mubr.f32.gmra.mrb[0].mxu0 %v4000
        %v4002 = vpop.f32.mrb[0].mxu0
        %v4003 = vadd.f32 %v3929, %v4002
        %v4004 = vpop.f32.mrb[0].mxu0
        %v4005 = vadd.f32 %v3931, %v4004
        %4006 = vdwg.mxu0
        %v4007 = vld [vmem:[%s16] sm:$0xf]
        %v4008 = vmul.f32 %v4003, %v2293
        %v4009 = vmul.f32 %v4005, %v2295
        %v4010 = vld [vmem:[%s17] sm:$0xf]
        %v4011 = vmul.f32 %v4003, %v2858
        %v4012 = vmul.f32 %v4005, %v2860
        %vm4013 = vcmask 31744
        %v4015 = vsel %vm4013, %v4010, 0
        %v4018 = vsel %vm906, %v4011, 0
        %v4021 = vsel %vm906, %v4012, 0
        %v4023 = vand.u32 %v4021, 4294901760
        %4024 = vmatprep.subr.mxu0 %v4023
        %v4025 = vand.u32 %v4018, 4294901760
        %4026 = vmatpush1.msra.mxu0 %v4025
        %4027 = vmatprep.subr.mxu0 0.0
        %4028 = vmatpush1.msra.mxu0 0.0
        %4029 = vmatprep.subr.mxu0 0.0
        %4030 = vmatpush1.msra.mxu0 0.0
        %4031 = vmatprep.subr.mxu0 0.0
        %4032 = vmatpush1.msra.mxu0 0.0
        %4033 = vmatprep.subr.mxu0 0.0
        %4034 = vmatpush1.msra.mxu0 0.0
        %4035 = vmatprep.subr.mxu0 0.0
        %4036 = vmatpush1.msra.mxu0 0.0
        %4037 = vmatprep.subr.mxu0 0.0
        %4038 = vmatpush1.msra.mxu0 0.0
        %4039 = vmatprep.subr.mxu0 0.0
        %4040 = vmatpush1.msra.mxu0 0.0
        %4041 = vmatprep.subr.mxu0 0.0
        %4042 = vmatpush1.msra.mxu0 0.0
        %4043 = vmatprep.subr.mxu0 0.0
        %4044 = vmatpush1.msra.mxu0 0.0
        %4045 = vmatprep.subr.mxu0 0.0
        %4046 = vmatpush1.msra.mxu0 0.0
        %4047 = vmatprep.subr.mxu0 0.0
        %4048 = vmatpush1.msra.mxu0 0.0
        %4049 = vmatprep.subr.mxu0 0.0
        %4050 = vmatpush1.msra.mxu0 0.0
        %4051 = vmatprep.subr.mxu0 0.0
        %4052 = vmatpush1.msra.mxu0 0.0
        %4053 = vmatprep.subr.mxu0 0.0
        %4054 = vmatpush1.msra.mxu0 0.0
        %4055 = vmatprep.subr.mxu0 0.0
        %4056 = vmatpush1.msra.mxu0 0.0
        %4057 = vmatprep.subr.mxu0 0.0
        %4058 = vmatpush1.msra.mxu0 0.0
        %4059 = vmatprep.subr.mxu0 0.0
        %4060 = vmatpush1.msra.mxu0 0.0
        %4061 = vmatprep.subr.mxu0 0.0
        %4062 = vmatpush1.msra.mxu0 0.0
        %4063 = vmatprep.subr.mxu0 0.0
        %4064 = vmatpush1.msra.mxu0 0.0
        %4065 = vmatprep.subr.mxu0 0.0
        %4066 = vmatpush1.msra.mxu0 0.0
        %4067 = vmatprep.subr.mxu0 0.0
        %4068 = vmatpush1.msra.mxu0 0.0
        %4069 = vmatprep.subr.mxu0 0.0
        %4070 = vmatpush1.msra.mxu0 0.0
        %4071 = vmatprep.subr.mxu0 0.0
        %4072 = vmatpush1.msra.mxu0 0.0
        %4073 = vmatprep.subr.mxu0 0.0
        %4074 = vmatpush1.msra.mxu0 0.0
        %4075 = vmatprep.subr.mxu0 0.0
        %4076 = vmatpush1.msra.mxu0 0.0
        %4077 = vmatprep.subr.mxu0 0.0
        %4078 = vmatpush1.msra.mxu0 0.0
        %4079 = vmatprep.subr.mxu0 0.0
        %4080 = vmatpush1.msra.mxu0 0.0
        %4081 = vmatprep.subr.mxu0 0.0
        %4082 = vmatpush1.msra.mxu0 0.0
        %4083 = vmatprep.subr.mxu0 0.0
        %4084 = vmatpush1.msra.mxu0 0.0
        %4085 = vmatprep.subr.mxu0 0.0
        %4086 = vmatpush1.msra.mxu0 0.0
        %4087 = vmatprep.subr.mxu0 0.0
        %4088 = vmatpush1.msra.mxu0 0.0
        %4089 = vmatprep.mubr.f32.mxu0 0.0
        %v4090 = vand.u32 %v4015, 4294901760
        %v4091 = vsub.f32 %v4015, %v4090
        %v4092 = vand.u32 %v4091, 4294901760
        %v4093 = vsub.f32 %v4091, %v4092
        %v4094 = vand.u32 %v4093, 4294901760
        %4095 = vmatmul.mubr.f32.gmra.mrb[0].mxu0 %v4094
        %v4096 = vpop.f32.mrb[0].mxu0
        %v4097 = vadd.f32 0.0, %v4096
        %v4098 = vpop.f32.mrb[0].mxu0
        %v4099 = vadd.f32 0.0, %v4098
        %4100 = vdwg.mxu0
        %v4101 = vand.u32 %v4021, 4294901760
        %v4102 = vsub.f32 %v4021, %v4101
        %v4103 = vand.u32 %v4102, 4294901760
        %v4104 = vsub.f32 %v4102, %v4103
        %v4105 = vand.u32 %v4104, 4294901760
        %4106 = vmatprep.subr.mxu0 %v4105
        %v4107 = vand.u32 %v4018, 4294901760
        %v4108 = vsub.f32 %v4018, %v4107
        %v4109 = vand.u32 %v4108, 4294901760
        %v4110 = vsub.f32 %v4108, %v4109
        %v4111 = vand.u32 %v4110, 4294901760
        %4112 = vmatpush1.msra.mxu0 %v4111
        %4113 = vmatprep.subr.mxu0 0.0
        %4114 = vmatpush1.msra.mxu0 0.0
        %4115 = vmatprep.subr.mxu0 0.0
        %4116 = vmatpush1.msra.mxu0 0.0
        %4117 = vmatprep.subr.mxu0 0.0
        %4118 = vmatpush1.msra.mxu0 0.0
        %4119 = vmatprep.subr.mxu0 0.0
        %4120 = vmatpush1.msra.mxu0 0.0
        %4121 = vmatprep.subr.mxu0 0.0
        %4122 = vmatpush1.msra.mxu0 0.0
        %4123 = vmatprep.subr.mxu0 0.0
        %4124 = vmatpush1.msra.mxu0 0.0
        %4125 = vmatprep.subr.mxu0 0.0
        %4126 = vmatpush1.msra.mxu0 0.0
        %4127 = vmatprep.subr.mxu0 0.0
        %4128 = vmatpush1.msra.mxu0 0.0
        %4129 = vmatprep.subr.mxu0 0.0
        %4130 = vmatpush1.msra.mxu0 0.0
        %4131 = vmatprep.subr.mxu0 0.0
        %4132 = vmatpush1.msra.mxu0 0.0
        %4133 = vmatprep.subr.mxu0 0.0
        %4134 = vmatpush1.msra.mxu0 0.0
        %4135 = vmatprep.subr.mxu0 0.0
        %4136 = vmatpush1.msra.mxu0 0.0
        %4137 = vmatprep.subr.mxu0 0.0
        %4138 = vmatpush1.msra.mxu0 0.0
        %4139 = vmatprep.subr.mxu0 0.0
        %4140 = vmatpush1.msra.mxu0 0.0
        %4141 = vmatprep.subr.mxu0 0.0
        %4142 = vmatpush1.msra.mxu0 0.0
        %4143 = vmatprep.subr.mxu0 0.0
        %4144 = vmatpush1.msra.mxu0 0.0
        %4145 = vmatprep.subr.mxu0 0.0
        %4146 = vmatpush1.msra.mxu0 0.0
        %4147 = vmatprep.subr.mxu0 0.0
        %4148 = vmatpush1.msra.mxu0 0.0
        %4149 = vmatprep.subr.mxu0 0.0
        %4150 = vmatpush1.msra.mxu0 0.0
        %4151 = vmatprep.subr.mxu0 0.0
        %4152 = vmatpush1.msra.mxu0 0.0
        %4153 = vmatprep.subr.mxu0 0.0
        %4154 = vmatpush1.msra.mxu0 0.0
        %4155 = vmatprep.subr.mxu0 0.0
        %4156 = vmatpush1.msra.mxu0 0.0
        %4157 = vmatprep.subr.mxu0 0.0
        %4158 = vmatpush1.msra.mxu0 0.0
        %4159 = vmatprep.subr.mxu0 0.0
        %4160 = vmatpush1.msra.mxu0 0.0
        %4161 = vmatprep.subr.mxu0 0.0
        %4162 = vmatpush1.msra.mxu0 0.0
        %4163 = vmatprep.subr.mxu0 0.0
        %4164 = vmatpush1.msra.mxu0 0.0
        %4165 = vmatprep.subr.mxu0 0.0
        %4166 = vmatpush1.msra.mxu0 0.0
        %4167 = vmatprep.subr.mxu0 0.0
        %4168 = vmatpush1.msra.mxu0 0.0
        %4169 = vmatprep.subr.mxu0 0.0
        %4170 = vmatpush1.msra.mxu0 0.0
        %4171 = vmatprep.subr.mxu0 0.0
        %4172 = vmatpush1.msra.mxu0 0.0
        %4173 = vmatprep.subr.mxu0 0.0
        %4174 = vmatpush1.msra.mxu0 0.0
        %4175 = vmatprep.mubr.f32.mxu0 0.0
        %v4176 = vand.u32 %v4015, 4294901760
        %4177 = vmatmul.mubr.f32.gmra.mrb[0].mxu0 %v4176
        %v4178 = vpop.f32.mrb[0].mxu0
        %v4179 = vadd.f32 %v4097, %v4178
        %v4180 = vpop.f32.mrb[0].mxu0
        %v4181 = vadd.f32 %v4099, %v4180
        %4182 = vdwg.mxu0
        %v4183 = vand.u32 %v4021, 4294901760
        %v4184 = vsub.f32 %v4021, %v4183
        %4185 = vmatprep.subr.mxu0 %v4184
        %v4186 = vand.u32 %v4018, 4294901760
        %v4187 = vsub.f32 %v4018, %v4186
        %4188 = vmatpush1.msra.mxu0 %v4187
        %4189 = vmatprep.subr.mxu0 0.0
        %4190 = vmatpush1.msra.mxu0 0.0
        %4191 = vmatprep.subr.mxu0 0.0
        %4192 = vmatpush1.msra.mxu0 0.0
        %4193 = vmatprep.subr.mxu0 0.0
        %4194 = vmatpush1.msra.mxu0 0.0
        %4195 = vmatprep.subr.mxu0 0.0
        %4196 = vmatpush1.msra.mxu0 0.0
        %4197 = vmatprep.subr.mxu0 0.0
        %4198 = vmatpush1.msra.mxu0 0.0
        %4199 = vmatprep.subr.mxu0 0.0
        %4200 = vmatpush1.msra.mxu0 0.0
        %4201 = vmatprep.subr.mxu0 0.0
        %4202 = vmatpush1.msra.mxu0 0.0
        %4203 = vmatprep.subr.mxu0 0.0
        %4204 = vmatpush1.msra.mxu0 0.0
        %4205 = vmatprep.subr.mxu0 0.0
        %4206 = vmatpush1.msra.mxu0 0.0
        %4207 = vmatprep.subr.mxu0 0.0
        %4208 = vmatpush1.msra.mxu0 0.0
        %4209 = vmatprep.subr.mxu0 0.0
        %4210 = vmatpush1.msra.mxu0 0.0
        %4211 = vmatprep.subr.mxu0 0.0
        %4212 = vmatpush1.msra.mxu0 0.0
        %4213 = vmatprep.subr.mxu0 0.0
        %4214 = vmatpush1.msra.mxu0 0.0
        %4215 = vmatprep.subr.mxu0 0.0
        %4216 = vmatpush1.msra.mxu0 0.0
        %4217 = vmatprep.subr.mxu0 0.0
        %4218 = vmatpush1.msra.mxu0 0.0
        %4219 = vmatprep.subr.mxu0 0.0
        %4220 = vmatpush1.msra.mxu0 0.0
        %4221 = vmatprep.subr.mxu0 0.0
        %4222 = vmatpush1.msra.mxu0 0.0
        %4223 = vmatprep.subr.mxu0 0.0
        %4224 = vmatpush1.msra.mxu0 0.0
        %4225 = vmatprep.subr.mxu0 0.0
        %4226 = vmatpush1.msra.mxu0 0.0
        %4227 = vmatprep.subr.mxu0 0.0
        %4228 = vmatpush1.msra.mxu0 0.0
        %4229 = vmatprep.subr.mxu0 0.0
        %4230 = vmatpush1.msra.mxu0 0.0
        %4231 = vmatprep.subr.mxu0 0.0
        %4232 = vmatpush1.msra.mxu0 0.0
        %4233 = vmatprep.subr.mxu0 0.0
        %4234 = vmatpush1.msra.mxu0 0.0
        %4235 = vmatprep.subr.mxu0 0.0
        %4236 = vmatpush1.msra.mxu0 0.0
        %4237 = vmatprep.subr.mxu0 0.0
        %4238 = vmatpush1.msra.mxu0 0.0
        %4239 = vmatprep.subr.mxu0 0.0
        %4240 = vmatpush1.msra.mxu0 0.0
        %4241 = vmatprep.subr.mxu0 0.0
        %4242 = vmatpush1.msra.mxu0 0.0
        %4243 = vmatprep.subr.mxu0 0.0
        %4244 = vmatpush1.msra.mxu0 0.0
        %4245 = vmatprep.subr.mxu0 0.0
        %4246 = vmatpush1.msra.mxu0 0.0
        %4247 = vmatprep.subr.mxu0 0.0
        %4248 = vmatpush1.msra.mxu0 0.0
        %4249 = vmatprep.subr.mxu0 0.0
        %4250 = vmatpush1.msra.mxu0 0.0
        %4251 = vmatprep.mubr.f32.mxu0 0.0
        %v4252 = vand.u32 %v4015, 4294901760
        %v4253 = vsub.f32 %v4015, %v4252
        %4254 = vmatmul.mubr.f32.gmra.mrb[0].mxu0 %v4253
        %v4255 = vpop.f32.mrb[0].mxu0
        %v4256 = vadd.f32 %v4179, %v4255
        %v4257 = vpop.f32.mrb[0].mxu0
        %v4258 = vadd.f32 %v4181, %v4257
        %4259 = vdwg.mxu0
        %v4260 = vand.u32 %v4021, 4294901760
        %4261 = vmatprep.subr.mxu0 %v4260
        %v4262 = vand.u32 %v4018, 4294901760
        %4263 = vmatpush1.msra.mxu0 %v4262
        %4264 = vmatprep.subr.mxu0 0.0
        %4265 = vmatpush1.msra.mxu0 0.0
        %4266 = vmatprep.subr.mxu0 0.0
        %4267 = vmatpush1.msra.mxu0 0.0
        %4268 = vmatprep.subr.mxu0 0.0
        %4269 = vmatpush1.msra.mxu0 0.0
        %4270 = vmatprep.subr.mxu0 0.0
        %4271 = vmatpush1.msra.mxu0 0.0
        %4272 = vmatprep.subr.mxu0 0.0
        %4273 = vmatpush1.msra.mxu0 0.0
        %4274 = vmatprep.subr.mxu0 0.0
        %4275 = vmatpush1.msra.mxu0 0.0
        %4276 = vmatprep.subr.mxu0 0.0
        %4277 = vmatpush1.msra.mxu0 0.0
        %4278 = vmatprep.subr.mxu0 0.0
        %4279 = vmatpush1.msra.mxu0 0.0
        %4280 = vmatprep.subr.mxu0 0.0
        %4281 = vmatpush1.msra.mxu0 0.0
        %4282 = vmatprep.subr.mxu0 0.0
        %4283 = vmatpush1.msra.mxu0 0.0
        %4284 = vmatprep.subr.mxu0 0.0
        %4285 = vmatpush1.msra.mxu0 0.0
        %4286 = vmatprep.subr.mxu0 0.0
        %4287 = vmatpush1.msra.mxu0 0.0
        %4288 = vmatprep.subr.mxu0 0.0
        %4289 = vmatpush1.msra.mxu0 0.0
        %4290 = vmatprep.subr.mxu0 0.0
        %4291 = vmatpush1.msra.mxu0 0.0
        %4292 = vmatprep.subr.mxu0 0.0
        %4293 = vmatpush1.msra.mxu0 0.0
        %4294 = vmatprep.subr.mxu0 0.0
        %4295 = vmatpush1.msra.mxu0 0.0
        %4296 = vmatprep.subr.mxu0 0.0
        %4297 = vmatpush1.msra.mxu0 0.0
        %4298 = vmatprep.subr.mxu0 0.0
        %4299 = vmatpush1.msra.mxu0 0.0
        %4300 = vmatprep.subr.mxu0 0.0
        %4301 = vmatpush1.msra.mxu0 0.0
        %4302 = vmatprep.subr.mxu0 0.0
        %4303 = vmatpush1.msra.mxu0 0.0
        %4304 = vmatprep.subr.mxu0 0.0
        %4305 = vmatpush1.msra.mxu0 0.0
        %4306 = vmatprep.subr.mxu0 0.0
        %4307 = vmatpush1.msra.mxu0 0.0
        %4308 = vmatprep.subr.mxu0 0.0
        %4309 = vmatpush1.msra.mxu0 0.0
        %4310 = vmatprep.subr.mxu0 0.0
        %4311 = vmatpush1.msra.mxu0 0.0
        %4312 = vmatprep.subr.mxu0 0.0
        %4313 = vmatpush1.msra.mxu0 0.0
        %4314 = vmatprep.subr.mxu0 0.0
        %4315 = vmatpush1.msra.mxu0 0.0
        %4316 = vmatprep.subr.mxu0 0.0
        %4317 = vmatpush1.msra.mxu0 0.0
        %4318 = vmatprep.subr.mxu0 0.0
        %4319 = vmatpush1.msra.mxu0 0.0
        %4320 = vmatprep.subr.mxu0 0.0
        %4321 = vmatpush1.msra.mxu0 0.0
        %4322 = vmatprep.subr.mxu0 0.0
        %4323 = vmatpush1.msra.mxu0 0.0
        %4324 = vmatprep.subr.mxu0 0.0
        %4325 = vmatpush1.msra.mxu0 0.0
        %4326 = vmatprep.mubr.f32.mxu0 0.0
        %v4327 = vand.u32 %v4015, 4294901760
        %v4328 = vsub.f32 %v4015, %v4327
        %v4329 = vand.u32 %v4328, 4294901760
        %4330 = vmatmul.mubr.f32.gmra.mrb[0].mxu0 %v4329
        %v4331 = vpop.f32.mrb[0].mxu0
        %v4332 = vadd.f32 %v4256, %v4331
        %v4333 = vpop.f32.mrb[0].mxu0
        %v4334 = vadd.f32 %v4258, %v4333
        %4335 = vdwg.mxu0
        %v4336 = vand.u32 %v4021, 4294901760
        %v4337 = vsub.f32 %v4021, %v4336
        %v4338 = vand.u32 %v4337, 4294901760
        %4339 = vmatprep.subr.mxu0 %v4338
        %v4340 = vand.u32 %v4018, 4294901760
        %v4341 = vsub.f32 %v4018, %v4340
        %v4342 = vand.u32 %v4341, 4294901760
        %4343 = vmatpush1.msra.mxu0 %v4342
        %4344 = vmatprep.subr.mxu0 0.0
        %4345 = vmatpush1.msra.mxu0 0.0
        %4346 = vmatprep.subr.mxu0 0.0
        %4347 = vmatpush1.msra.mxu0 0.0
        %4348 = vmatprep.subr.mxu0 0.0
        %4349 = vmatpush1.msra.mxu0 0.0
        %4350 = vmatprep.subr.mxu0 0.0
        %4351 = vmatpush1.msra.mxu0 0.0
        %4352 = vmatprep.subr.mxu0 0.0
        %4353 = vmatpush1.msra.mxu0 0.0
        %4354 = vmatprep.subr.mxu0 0.0
        %4355 = vmatpush1.msra.mxu0 0.0
        %4356 = vmatprep.subr.mxu0 0.0
        %4357 = vmatpush1.msra.mxu0 0.0
        %4358 = vmatprep.subr.mxu0 0.0
        %4359 = vmatpush1.msra.mxu0 0.0
        %4360 = vmatprep.subr.mxu0 0.0
        %4361 = vmatpush1.msra.mxu0 0.0
        %4362 = vmatprep.subr.mxu0 0.0
        %4363 = vmatpush1.msra.mxu0 0.0
        %4364 = vmatprep.subr.mxu0 0.0
        %4365 = vmatpush1.msra.mxu0 0.0
        %4366 = vmatprep.subr.mxu0 0.0
        %4367 = vmatpush1.msra.mxu0 0.0
        %4368 = vmatprep.subr.mxu0 0.0
        %4369 = vmatpush1.msra.mxu0 0.0
        %4370 = vmatprep.subr.mxu0 0.0
        %4371 = vmatpush1.msra.mxu0 0.0
        %4372 = vmatprep.subr.mxu0 0.0
        %4373 = vmatpush1.msra.mxu0 0.0
        %4374 = vmatprep.subr.mxu0 0.0
        %4375 = vmatpush1.msra.mxu0 0.0
        %4376 = vmatprep.subr.mxu0 0.0
        %4377 = vmatpush1.msra.mxu0 0.0
        %4378 = vmatprep.subr.mxu0 0.0
        %4379 = vmatpush1.msra.mxu0 0.0
        %4380 = vmatprep.subr.mxu0 0.0
        %4381 = vmatpush1.msra.mxu0 0.0
        %4382 = vmatprep.subr.mxu0 0.0
        %4383 = vmatpush1.msra.mxu0 0.0
        %4384 = vmatprep.subr.mxu0 0.0
        %4385 = vmatpush1.msra.mxu0 0.0
        %4386 = vmatprep.subr.mxu0 0.0
        %4387 = vmatpush1.msra.mxu0 0.0
        %4388 = vmatprep.subr.mxu0 0.0
        %4389 = vmatpush1.msra.mxu0 0.0
        %4390 = vmatprep.subr.mxu0 0.0
        %4391 = vmatpush1.msra.mxu0 0.0
        %4392 = vmatprep.subr.mxu0 0.0
        %4393 = vmatpush1.msra.mxu0 0.0
        %4394 = vmatprep.subr.mxu0 0.0
        %4395 = vmatpush1.msra.mxu0 0.0
        %4396 = vmatprep.subr.mxu0 0.0
        %4397 = vmatpush1.msra.mxu0 0.0
        %4398 = vmatprep.subr.mxu0 0.0
        %4399 = vmatpush1.msra.mxu0 0.0
        %4400 = vmatprep.subr.mxu0 0.0
        %4401 = vmatpush1.msra.mxu0 0.0
        %4402 = vmatprep.subr.mxu0 0.0
        %4403 = vmatpush1.msra.mxu0 0.0
        %4404 = vmatprep.subr.mxu0 0.0
        %4405 = vmatpush1.msra.mxu0 0.0
        %4406 = vmatprep.mubr.f32.mxu0 0.0
        %v4407 = vand.u32 %v4015, 4294901760
        %4408 = vmatmul.mubr.f32.gmra.mrb[0].mxu0 %v4407
        %v4409 = vpop.f32.mrb[0].mxu0
        %v4410 = vadd.f32 %v4332, %v4409
        %v4411 = vpop.f32.mrb[0].mxu0
        %v4412 = vadd.f32 %v4334, %v4411
        %4413 = vdwg.mxu0
        %v4414 = vand.u32 %v4021, 4294901760
        %4415 = vmatprep.subr.mxu0 %v4414
        %v4416 = vand.u32 %v4018, 4294901760
        %4417 = vmatpush1.msra.mxu0 %v4416
        %4418 = vmatprep.subr.mxu0 0.0
        %4419 = vmatpush1.msra.mxu0 0.0
        %4420 = vmatprep.subr.mxu0 0.0
        %4421 = vmatpush1.msra.mxu0 0.0
        %4422 = vmatprep.subr.mxu0 0.0
        %4423 = vmatpush1.msra.mxu0 0.0
        %4424 = vmatprep.subr.mxu0 0.0
        %4425 = vmatpush1.msra.mxu0 0.0
        %4426 = vmatprep.subr.mxu0 0.0
        %4427 = vmatpush1.msra.mxu0 0.0
        %4428 = vmatprep.subr.mxu0 0.0
        %4429 = vmatpush1.msra.mxu0 0.0
        %4430 = vmatprep.subr.mxu0 0.0
        %4431 = vmatpush1.msra.mxu0 0.0
        %4432 = vmatprep.subr.mxu0 0.0
        %4433 = vmatpush1.msra.mxu0 0.0
        %4434 = vmatprep.subr.mxu0 0.0
        %4435 = vmatpush1.msra.mxu0 0.0
        %4436 = vmatprep.subr.mxu0 0.0
        %4437 = vmatpush1.msra.mxu0 0.0
        %4438 = vmatprep.subr.mxu0 0.0
        %4439 = vmatpush1.msra.mxu0 0.0
        %4440 = vmatprep.subr.mxu0 0.0
        %4441 = vmatpush1.msra.mxu0 0.0
        %4442 = vmatprep.subr.mxu0 0.0
        %4443 = vmatpush1.msra.mxu0 0.0
        %4444 = vmatprep.subr.mxu0 0.0
        %4445 = vmatpush1.msra.mxu0 0.0
        %4446 = vmatprep.subr.mxu0 0.0
        %4447 = vmatpush1.msra.mxu0 0.0
        %4448 = vmatprep.subr.mxu0 0.0
        %4449 = vmatpush1.msra.mxu0 0.0
        %4450 = vmatprep.subr.mxu0 0.0
        %4451 = vmatpush1.msra.mxu0 0.0
        %4452 = vmatprep.subr.mxu0 0.0
        %4453 = vmatpush1.msra.mxu0 0.0
        %4454 = vmatprep.subr.mxu0 0.0
        %4455 = vmatpush1.msra.mxu0 0.0
        %4456 = vmatprep.subr.mxu0 0.0
        %4457 = vmatpush1.msra.mxu0 0.0
        %4458 = vmatprep.subr.mxu0 0.0
        %4459 = vmatpush1.msra.mxu0 0.0
        %4460 = vmatprep.subr.mxu0 0.0
        %4461 = vmatpush1.msra.mxu0 0.0
        %4462 = vmatprep.subr.mxu0 0.0
        %4463 = vmatpush1.msra.mxu0 0.0
        %4464 = vmatprep.subr.mxu0 0.0
        %4465 = vmatpush1.msra.mxu0 0.0
        %4466 = vmatprep.subr.mxu0 0.0
        %4467 = vmatpush1.msra.mxu0 0.0
        %4468 = vmatprep.subr.mxu0 0.0
        %4469 = vmatpush1.msra.mxu0 0.0
        %4470 = vmatprep.subr.mxu0 0.0
        %4471 = vmatpush1.msra.mxu0 0.0
        %4472 = vmatprep.subr.mxu0 0.0
        %4473 = vmatpush1.msra.mxu0 0.0
        %4474 = vmatprep.subr.mxu0 0.0
        %4475 = vmatpush1.msra.mxu0 0.0
        %4476 = vmatprep.subr.mxu0 0.0
        %4477 = vmatpush1.msra.mxu0 0.0
        %4478 = vmatprep.subr.mxu0 0.0
        %4479 = vmatpush1.msra.mxu0 0.0
        %4480 = vmatprep.mubr.f32.mxu0 0.0
        %v4481 = vand.u32 %v4015, 4294901760
        %4482 = vmatmul.mubr.f32.gmra.mrb[0].mxu0 %v4481
        %v4483 = vpop.f32.mrb[0].mxu0
        %v4484 = vadd.f32 %v4410, %v4483
        %v4485 = vpop.f32.mrb[0].mxu0
        %v4486 = vadd.f32 %v4412, %v4485
        %4487 = vdwg.mxu0
        %v4489 = vsel %vm4013, %v4007, 0
        %v4492 = vsel %vm906, %v4008, 0
        %v4495 = vsel %vm906, %v4009, 0
        %v4497 = vand.u32 %v4495, 4294901760
        %4498 = vmatprep.subr.mxu0 %v4497
        %v4499 = vand.u32 %v4492, 4294901760
        %4500 = vmatpush1.msra.mxu0 %v4499
        %4501 = vmatprep.subr.mxu0 0.0
        %4502 = vmatpush1.msra.mxu0 0.0
        %4503 = vmatprep.subr.mxu0 0.0
        %4504 = vmatpush1.msra.mxu0 0.0
        %4505 = vmatprep.subr.mxu0 0.0
        %4506 = vmatpush1.msra.mxu0 0.0
        %4507 = vmatprep.subr.mxu0 0.0
        %4508 = vmatpush1.msra.mxu0 0.0
        %4509 = vmatprep.subr.mxu0 0.0
        %4510 = vmatpush1.msra.mxu0 0.0
        %4511 = vmatprep.subr.mxu0 0.0
        %4512 = vmatpush1.msra.mxu0 0.0
        %4513 = vmatprep.subr.mxu0 0.0
        %4514 = vmatpush1.msra.mxu0 0.0
        %4515 = vmatprep.subr.mxu0 0.0
        %4516 = vmatpush1.msra.mxu0 0.0
        %4517 = vmatprep.subr.mxu0 0.0
        %4518 = vmatpush1.msra.mxu0 0.0
        %4519 = vmatprep.subr.mxu0 0.0
        %4520 = vmatpush1.msra.mxu0 0.0
        %4521 = vmatprep.subr.mxu0 0.0
        %4522 = vmatpush1.msra.mxu0 0.0
        %4523 = vmatprep.subr.mxu0 0.0
        %4524 = vmatpush1.msra.mxu0 0.0
        %4525 = vmatprep.subr.mxu0 0.0
        %4526 = vmatpush1.msra.mxu0 0.0
        %4527 = vmatprep.subr.mxu0 0.0
        %4528 = vmatpush1.msra.mxu0 0.0
        %4529 = vmatprep.subr.mxu0 0.0
        %4530 = vmatpush1.msra.mxu0 0.0
        %4531 = vmatprep.subr.mxu0 0.0
        %4532 = vmatpush1.msra.mxu0 0.0
        %4533 = vmatprep.subr.mxu0 0.0
        %4534 = vmatpush1.msra.mxu0 0.0
        %4535 = vmatprep.subr.mxu0 0.0
        %4536 = vmatpush1.msra.mxu0 0.0
        %4537 = vmatprep.subr.mxu0 0.0
        %4538 = vmatpush1.msra.mxu0 0.0
        %4539 = vmatprep.subr.mxu0 0.0
        %4540 = vmatpush1.msra.mxu0 0.0
        %4541 = vmatprep.subr.mxu0 0.0
        %4542 = vmatpush1.msra.mxu0 0.0
        %4543 = vmatprep.subr.mxu0 0.0
        %4544 = vmatpush1.msra.mxu0 0.0
        %4545 = vmatprep.subr.mxu0 0.0
        %4546 = vmatpush1.msra.mxu0 0.0
        %4547 = vmatprep.subr.mxu0 0.0
        %4548 = vmatpush1.msra.mxu0 0.0
        %4549 = vmatprep.subr.mxu0 0.0
        %4550 = vmatpush1.msra.mxu0 0.0
        %4551 = vmatprep.subr.mxu0 0.0
        %4552 = vmatpush1.msra.mxu0 0.0
        %4553 = vmatprep.subr.mxu0 0.0
        %4554 = vmatpush1.msra.mxu0 0.0
        %4555 = vmatprep.subr.mxu0 0.0
        %4556 = vmatpush1.msra.mxu0 0.0
        %4557 = vmatprep.subr.mxu0 0.0
        %4558 = vmatpush1.msra.mxu0 0.0
        %4559 = vmatprep.subr.mxu0 0.0
        %4560 = vmatpush1.msra.mxu0 0.0
        %4561 = vmatprep.subr.mxu0 0.0
        %4562 = vmatpush1.msra.mxu0 0.0
        %4563 = vmatprep.mubr.f32.mxu0 0.0
        %v4564 = vand.u32 %v4489, 4294901760
        %v4565 = vsub.f32 %v4489, %v4564
        %v4566 = vand.u32 %v4565, 4294901760
        %v4567 = vsub.f32 %v4565, %v4566
        %v4568 = vand.u32 %v4567, 4294901760
        %4569 = vmatmul.mubr.f32.gmra.mrb[0].mxu0 %v4568
        %v4570 = vpop.f32.mrb[0].mxu0
        %v4571 = vadd.f32 %v4484, %v4570
        %v4572 = vpop.f32.mrb[0].mxu0
        %v4573 = vadd.f32 %v4486, %v4572
        %4574 = vdwg.mxu0
        %v4575 = vand.u32 %v4495, 4294901760
        %v4576 = vsub.f32 %v4495, %v4575
        %v4577 = vand.u32 %v4576, 4294901760
        %v4578 = vsub.f32 %v4576, %v4577
        %v4579 = vand.u32 %v4578, 4294901760
        %4580 = vmatprep.subr.mxu0 %v4579
        %v4581 = vand.u32 %v4492, 4294901760
        %v4582 = vsub.f32 %v4492, %v4581
        %v4583 = vand.u32 %v4582, 4294901760
        %v4584 = vsub.f32 %v4582, %v4583
        %v4585 = vand.u32 %v4584, 4294901760
        %4586 = vmatpush1.msra.mxu0 %v4585
        %4587 = vmatprep.subr.mxu0 0.0
        %4588 = vmatpush1.msra.mxu0 0.0
        %4589 = vmatprep.subr.mxu0 0.0
        %4590 = vmatpush1.msra.mxu0 0.0
        %4591 = vmatprep.subr.mxu0 0.0
        %4592 = vmatpush1.msra.mxu0 0.0
        %4593 = vmatprep.subr.mxu0 0.0
        %4594 = vmatpush1.msra.mxu0 0.0
        %4595 = vmatprep.subr.mxu0 0.0
        %4596 = vmatpush1.msra.mxu0 0.0
        %4597 = vmatprep.subr.mxu0 0.0
        %4598 = vmatpush1.msra.mxu0 0.0
        %4599 = vmatprep.subr.mxu0 0.0
        %4600 = vmatpush1.msra.mxu0 0.0
        %4601 = vmatprep.subr.mxu0 0.0
        %4602 = vmatpush1.msra.mxu0 0.0
        %4603 = vmatprep.subr.mxu0 0.0
        %4604 = vmatpush1.msra.mxu0 0.0
        %4605 = vmatprep.subr.mxu0 0.0
        %4606 = vmatpush1.msra.mxu0 0.0
        %4607 = vmatprep.subr.mxu0 0.0
        %4608 = vmatpush1.msra.mxu0 0.0
        %4609 = vmatprep.subr.mxu0 0.0
        %4610 = vmatpush1.msra.mxu0 0.0
        %4611 = vmatprep.subr.mxu0 0.0
        %4612 = vmatpush1.msra.mxu0 0.0
        %4613 = vmatprep.subr.mxu0 0.0
        %4614 = vmatpush1.msra.mxu0 0.0
        %4615 = vmatprep.subr.mxu0 0.0
        %4616 = vmatpush1.msra.mxu0 0.0
        %4617 = vmatprep.subr.mxu0 0.0
        %4618 = vmatpush1.msra.mxu0 0.0
        %4619 = vmatprep.subr.mxu0 0.0
        %4620 = vmatpush1.msra.mxu0 0.0
        %4621 = vmatprep.subr.mxu0 0.0
        %4622 = vmatpush1.msra.mxu0 0.0
        %4623 = vmatprep.subr.mxu0 0.0
        %4624 = vmatpush1.msra.mxu0 0.0
        %4625 = vmatprep.subr.mxu0 0.0
        %4626 = vmatpush1.msra.mxu0 0.0
        %4627 = vmatprep.subr.mxu0 0.0
        %4628 = vmatpush1.msra.mxu0 0.0
        %4629 = vmatprep.subr.mxu0 0.0
        %4630 = vmatpush1.msra.mxu0 0.0
        %4631 = vmatprep.subr.mxu0 0.0
        %4632 = vmatpush1.msra.mxu0 0.0
        %4633 = vmatprep.subr.mxu0 0.0
        %4634 = vmatpush1.msra.mxu0 0.0
        %4635 = vmatprep.subr.mxu0 0.0
        %4636 = vmatpush1.msra.mxu0 0.0
        %4637 = vmatprep.subr.mxu0 0.0
        %4638 = vmatpush1.msra.mxu0 0.0
        %4639 = vmatprep.subr.mxu0 0.0
        %4640 = vmatpush1.msra.mxu0 0.0
        %4641 = vmatprep.subr.mxu0 0.0
        %4642 = vmatpush1.msra.mxu0 0.0
        %4643 = vmatprep.subr.mxu0 0.0
        %4644 = vmatpush1.msra.mxu0 0.0
        %4645 = vmatprep.subr.mxu0 0.0
        %4646 = vmatpush1.msra.mxu0 0.0
        %4647 = vmatprep.subr.mxu0 0.0
        %4648 = vmatpush1.msra.mxu0 0.0
        %4649 = vmatprep.mubr.f32.mxu0 0.0
        %v4650 = vand.u32 %v4489, 4294901760
        %4651 = vmatmul.mubr.f32.gmra.mrb[0].mxu0 %v4650
        %v4652 = vpop.f32.mrb[0].mxu0
        %v4653 = vadd.f32 %v4571, %v4652
        %v4654 = vpop.f32.mrb[0].mxu0
        %v4655 = vadd.f32 %v4573, %v4654
        %4656 = vdwg.mxu0
        %v4657 = vand.u32 %v4495, 4294901760
        %v4658 = vsub.f32 %v4495, %v4657
        %4659 = vmatprep.subr.mxu0 %v4658
        %v4660 = vand.u32 %v4492, 4294901760
        %v4661 = vsub.f32 %v4492, %v4660
        %4662 = vmatpush1.msra.mxu0 %v4661
        %4663 = vmatprep.subr.mxu0 0.0
        %4664 = vmatpush1.msra.mxu0 0.0
        %4665 = vmatprep.subr.mxu0 0.0
        %4666 = vmatpush1.msra.mxu0 0.0
        %4667 = vmatprep.subr.mxu0 0.0
        %4668 = vmatpush1.msra.mxu0 0.0
        %4669 = vmatprep.subr.mxu0 0.0
        %4670 = vmatpush1.msra.mxu0 0.0
        %4671 = vmatprep.subr.mxu0 0.0
        %4672 = vmatpush1.msra.mxu0 0.0
        %4673 = vmatprep.subr.mxu0 0.0
        %4674 = vmatpush1.msra.mxu0 0.0
        %4675 = vmatprep.subr.mxu0 0.0
        %4676 = vmatpush1.msra.mxu0 0.0
        %4677 = vmatprep.subr.mxu0 0.0
        %4678 = vmatpush1.msra.mxu0 0.0
        %4679 = vmatprep.subr.mxu0 0.0
        %4680 = vmatpush1.msra.mxu0 0.0
        %4681 = vmatprep.subr.mxu0 0.0
        %4682 = vmatpush1.msra.mxu0 0.0
        %4683 = vmatprep.subr.mxu0 0.0
        %4684 = vmatpush1.msra.mxu0 0.0
        %4685 = vmatprep.subr.mxu0 0.0
        %4686 = vmatpush1.msra.mxu0 0.0
        %4687 = vmatprep.subr.mxu0 0.0
        %4688 = vmatpush1.msra.mxu0 0.0
        %4689 = vmatprep.subr.mxu0 0.0
        %4690 = vmatpush1.msra.mxu0 0.0
        %4691 = vmatprep.subr.mxu0 0.0
        %4692 = vmatpush1.msra.mxu0 0.0
        %4693 = vmatprep.subr.mxu0 0.0
        %4694 = vmatpush1.msra.mxu0 0.0
        %4695 = vmatprep.subr.mxu0 0.0
        %4696 = vmatpush1.msra.mxu0 0.0
        %4697 = vmatprep.subr.mxu0 0.0
        %4698 = vmatpush1.msra.mxu0 0.0
        %4699 = vmatprep.subr.mxu0 0.0
        %4700 = vmatpush1.msra.mxu0 0.0
        %4701 = vmatprep.subr.mxu0 0.0
        %4702 = vmatpush1.msra.mxu0 0.0
        %4703 = vmatprep.subr.mxu0 0.0
        %4704 = vmatpush1.msra.mxu0 0.0
        %4705 = vmatprep.subr.mxu0 0.0
        %4706 = vmatpush1.msra.mxu0 0.0
        %4707 = vmatprep.subr.mxu0 0.0
        %4708 = vmatpush1.msra.mxu0 0.0
        %4709 = vmatprep.subr.mxu0 0.0
        %4710 = vmatpush1.msra.mxu0 0.0
        %4711 = vmatprep.subr.mxu0 0.0
        %4712 = vmatpush1.msra.mxu0 0.0
        %4713 = vmatprep.subr.mxu0 0.0
        %4714 = vmatpush1.msra.mxu0 0.0
        %4715 = vmatprep.subr.mxu0 0.0
        %4716 = vmatpush1.msra.mxu0 0.0
        %4717 = vmatprep.subr.mxu0 0.0
        %4718 = vmatpush1.msra.mxu0 0.0
        %4719 = vmatprep.subr.mxu0 0.0
        %4720 = vmatpush1.msra.mxu0 0.0
        %4721 = vmatprep.subr.mxu0 0.0
        %4722 = vmatpush1.msra.mxu0 0.0
        %4723 = vmatprep.subr.mxu0 0.0
        %4724 = vmatpush1.msra.mxu0 0.0
        %4725 = vmatprep.mubr.f32.mxu0 0.0
        %v4726 = vand.u32 %v4489, 4294901760
        %v4727 = vsub.f32 %v4489, %v4726
        %4728 = vmatmul.mubr.f32.gmra.mrb[0].mxu0 %v4727
        %v4729 = vpop.f32.mrb[0].mxu0
        %v4730 = vadd.f32 %v4653, %v4729
        %v4731 = vpop.f32.mrb[0].mxu0
        %v4732 = vadd.f32 %v4655, %v4731
        %4733 = vdwg.mxu0
        %v4734 = vand.u32 %v4495, 4294901760
        %4735 = vmatprep.subr.mxu0 %v4734
        %v4736 = vand.u32 %v4492, 4294901760
        %4737 = vmatpush1.msra.mxu0 %v4736
        %4738 = vmatprep.subr.mxu0 0.0
        %4739 = vmatpush1.msra.mxu0 0.0
        %4740 = vmatprep.subr.mxu0 0.0
        %4741 = vmatpush1.msra.mxu0 0.0
        %4742 = vmatprep.subr.mxu0 0.0
        %4743 = vmatpush1.msra.mxu0 0.0
        %4744 = vmatprep.subr.mxu0 0.0
        %4745 = vmatpush1.msra.mxu0 0.0
        %4746 = vmatprep.subr.mxu0 0.0
        %4747 = vmatpush1.msra.mxu0 0.0
        %4748 = vmatprep.subr.mxu0 0.0
        %4749 = vmatpush1.msra.mxu0 0.0
        %4750 = vmatprep.subr.mxu0 0.0
        %4751 = vmatpush1.msra.mxu0 0.0
        %4752 = vmatprep.subr.mxu0 0.0
        %4753 = vmatpush1.msra.mxu0 0.0
        %4754 = vmatprep.subr.mxu0 0.0
        %4755 = vmatpush1.msra.mxu0 0.0
        %4756 = vmatprep.subr.mxu0 0.0
        %4757 = vmatpush1.msra.mxu0 0.0
        %4758 = vmatprep.subr.mxu0 0.0
        %4759 = vmatpush1.msra.mxu0 0.0
        %4760 = vmatprep.subr.mxu0 0.0
        %4761 = vmatpush1.msra.mxu0 0.0
        %4762 = vmatprep.subr.mxu0 0.0
        %4763 = vmatpush1.msra.mxu0 0.0
        %4764 = vmatprep.subr.mxu0 0.0
        %4765 = vmatpush1.msra.mxu0 0.0
        %4766 = vmatprep.subr.mxu0 0.0
        %4767 = vmatpush1.msra.mxu0 0.0
        %4768 = vmatprep.subr.mxu0 0.0
        %4769 = vmatpush1.msra.mxu0 0.0
        %4770 = vmatprep.subr.mxu0 0.0
        %4771 = vmatpush1.msra.mxu0 0.0
        %4772 = vmatprep.subr.mxu0 0.0
        %4773 = vmatpush1.msra.mxu0 0.0
        %4774 = vmatprep.subr.mxu0 0.0
        %4775 = vmatpush1.msra.mxu0 0.0
        %4776 = vmatprep.subr.mxu0 0.0
        %4777 = vmatpush1.msra.mxu0 0.0
        %4778 = vmatprep.subr.mxu0 0.0
        %4779 = vmatpush1.msra.mxu0 0.0
        %4780 = vmatprep.subr.mxu0 0.0
        %4781 = vmatpush1.msra.mxu0 0.0
        %4782 = vmatprep.subr.mxu0 0.0
        %4783 = vmatpush1.msra.mxu0 0.0
        %4784 = vmatprep.subr.mxu0 0.0
        %4785 = vmatpush1.msra.mxu0 0.0
        %4786 = vmatprep.subr.mxu0 0.0
        %4787 = vmatpush1.msra.mxu0 0.0
        %4788 = vmatprep.subr.mxu0 0.0
        %4789 = vmatpush1.msra.mxu0 0.0
        %4790 = vmatprep.subr.mxu0 0.0
        %4791 = vmatpush1.msra.mxu0 0.0
        %4792 = vmatprep.subr.mxu0 0.0
        %4793 = vmatpush1.msra.mxu0 0.0
        %4794 = vmatprep.subr.mxu0 0.0
        %4795 = vmatpush1.msra.mxu0 0.0
        %4796 = vmatprep.subr.mxu0 0.0
        %4797 = vmatpush1.msra.mxu0 0.0
        %4798 = vmatprep.subr.mxu0 0.0
        %4799 = vmatpush1.msra.mxu0 0.0
        %4800 = vmatprep.mubr.f32.mxu0 0.0
        %v4801 = vand.u32 %v4489, 4294901760
        %v4802 = vsub.f32 %v4489, %v4801
        %v4803 = vand.u32 %v4802, 4294901760
        %4804 = vmatmul.mubr.f32.gmra.mrb[0].mxu0 %v4803
        %v4805 = vpop.f32.mrb[0].mxu0
        %v4806 = vadd.f32 %v4730, %v4805
        %v4807 = vpop.f32.mrb[0].mxu0
        %v4808 = vadd.f32 %v4732, %v4807
        %4809 = vdwg.mxu0
        %v4810 = vand.u32 %v4495, 4294901760
        %v4811 = vsub.f32 %v4495, %v4810
        %v4812 = vand.u32 %v4811, 4294901760
        %4813 = vmatprep.subr.mxu0 %v4812
        %v4814 = vand.u32 %v4492, 4294901760
        %v4815 = vsub.f32 %v4492, %v4814
        %v4816 = vand.u32 %v4815, 4294901760
        %4817 = vmatpush1.msra.mxu0 %v4816
        %4818 = vmatprep.subr.mxu0 0.0
        %4819 = vmatpush1.msra.mxu0 0.0
        %4820 = vmatprep.subr.mxu0 0.0
        %4821 = vmatpush1.msra.mxu0 0.0
        %4822 = vmatprep.subr.mxu0 0.0
        %4823 = vmatpush1.msra.mxu0 0.0
        %4824 = vmatprep.subr.mxu0 0.0
        %4825 = vmatpush1.msra.mxu0 0.0
        %4826 = vmatprep.subr.mxu0 0.0
        %4827 = vmatpush1.msra.mxu0 0.0
        %4828 = vmatprep.subr.mxu0 0.0
        %4829 = vmatpush1.msra.mxu0 0.0
        %4830 = vmatprep.subr.mxu0 0.0
        %4831 = vmatpush1.msra.mxu0 0.0
        %4832 = vmatprep.subr.mxu0 0.0
        %4833 = vmatpush1.msra.mxu0 0.0
        %4834 = vmatprep.subr.mxu0 0.0
        %4835 = vmatpush1.msra.mxu0 0.0
        %4836 = vmatprep.subr.mxu0 0.0
        %4837 = vmatpush1.msra.mxu0 0.0
        %4838 = vmatprep.subr.mxu0 0.0
        %4839 = vmatpush1.msra.mxu0 0.0
        %4840 = vmatprep.subr.mxu0 0.0
        %4841 = vmatpush1.msra.mxu0 0.0
        %4842 = vmatprep.subr.mxu0 0.0
        %4843 = vmatpush1.msra.mxu0 0.0
        %4844 = vmatprep.subr.mxu0 0.0
        %4845 = vmatpush1.msra.mxu0 0.0
        %4846 = vmatprep.subr.mxu0 0.0
        %4847 = vmatpush1.msra.mxu0 0.0
        %4848 = vmatprep.subr.mxu0 0.0
        %4849 = vmatpush1.msra.mxu0 0.0
        %4850 = vmatprep.subr.mxu0 0.0
        %4851 = vmatpush1.msra.mxu0 0.0
        %4852 = vmatprep.subr.mxu0 0.0
        %4853 = vmatpush1.msra.mxu0 0.0
        %4854 = vmatprep.subr.mxu0 0.0
        %4855 = vmatpush1.msra.mxu0 0.0
        %4856 = vmatprep.subr.mxu0 0.0
        %4857 = vmatpush1.msra.mxu0 0.0
        %4858 = vmatprep.subr.mxu0 0.0
        %4859 = vmatpush1.msra.mxu0 0.0
        %4860 = vmatprep.subr.mxu0 0.0
        %4861 = vmatpush1.msra.mxu0 0.0
        %4862 = vmatprep.subr.mxu0 0.0
        %4863 = vmatpush1.msra.mxu0 0.0
        %4864 = vmatprep.subr.mxu0 0.0
        %4865 = vmatpush1.msra.mxu0 0.0
        %4866 = vmatprep.subr.mxu0 0.0
        %4867 = vmatpush1.msra.mxu0 0.0
        %4868 = vmatprep.subr.mxu0 0.0
        %4869 = vmatpush1.msra.mxu0 0.0
        %4870 = vmatprep.subr.mxu0 0.0
        %4871 = vmatpush1.msra.mxu0 0.0
        %4872 = vmatprep.subr.mxu0 0.0
        %4873 = vmatpush1.msra.mxu0 0.0
        %4874 = vmatprep.subr.mxu0 0.0
        %4875 = vmatpush1.msra.mxu0 0.0
        %4876 = vmatprep.subr.mxu0 0.0
        %4877 = vmatpush1.msra.mxu0 0.0
        %4878 = vmatprep.subr.mxu0 0.0
        %4879 = vmatpush1.msra.mxu0 0.0
        %4880 = vmatprep.mubr.f32.mxu0 0.0
        %v4881 = vand.u32 %v4489, 4294901760
        %4882 = vmatmul.mubr.f32.gmra.mrb[0].mxu0 %v4881
        %v4883 = vpop.f32.mrb[0].mxu0
        %v4884 = vadd.f32 %v4806, %v4883
        %v4885 = vpop.f32.mrb[0].mxu0
        %v4886 = vadd.f32 %v4808, %v4885
        %4887 = vdwg.mxu0
        %v4888 = vand.u32 %v4495, 4294901760
        %4889 = vmatprep.subr.mxu0 %v4888
        %v4890 = vand.u32 %v4492, 4294901760
        %4891 = vmatpush1.msra.mxu0 %v4890
        %4892 = vmatprep.subr.mxu0 0.0
        %4893 = vmatpush1.msra.mxu0 0.0
        %4894 = vmatprep.subr.mxu0 0.0
        %4895 = vmatpush1.msra.mxu0 0.0
        %4896 = vmatprep.subr.mxu0 0.0
        %4897 = vmatpush1.msra.mxu0 0.0
        %4898 = vmatprep.subr.mxu0 0.0
        %4899 = vmatpush1.msra.mxu0 0.0
        %4900 = vmatprep.subr.mxu0 0.0
        %4901 = vmatpush1.msra.mxu0 0.0
        %4902 = vmatprep.subr.mxu0 0.0
        %4903 = vmatpush1.msra.mxu0 0.0
        %4904 = vmatprep.subr.mxu0 0.0
        %4905 = vmatpush1.msra.mxu0 0.0
        %4906 = vmatprep.subr.mxu0 0.0
        %4907 = vmatpush1.msra.mxu0 0.0
        %4908 = vmatprep.subr.mxu0 0.0
        %4909 = vmatpush1.msra.mxu0 0.0
        %4910 = vmatprep.subr.mxu0 0.0
        %4911 = vmatpush1.msra.mxu0 0.0
        %4912 = vmatprep.subr.mxu0 0.0
        %4913 = vmatpush1.msra.mxu0 0.0
        %4914 = vmatprep.subr.mxu0 0.0
        %4915 = vmatpush1.msra.mxu0 0.0
        %4916 = vmatprep.subr.mxu0 0.0
        %4917 = vmatpush1.msra.mxu0 0.0
        %4918 = vmatprep.subr.mxu0 0.0
        %4919 = vmatpush1.msra.mxu0 0.0
        %4920 = vmatprep.subr.mxu0 0.0
        %4921 = vmatpush1.msra.mxu0 0.0
        %4922 = vmatprep.subr.mxu0 0.0
        %4923 = vmatpush1.msra.mxu0 0.0
        %4924 = vmatprep.subr.mxu0 0.0
        %4925 = vmatpush1.msra.mxu0 0.0
        %4926 = vmatprep.subr.mxu0 0.0
        %4927 = vmatpush1.msra.mxu0 0.0
        %4928 = vmatprep.subr.mxu0 0.0
        %4929 = vmatpush1.msra.mxu0 0.0
        %4930 = vmatprep.subr.mxu0 0.0
        %4931 = vmatpush1.msra.mxu0 0.0
        %4932 = vmatprep.subr.mxu0 0.0
        %4933 = vmatpush1.msra.mxu0 0.0
        %4934 = vmatprep.subr.mxu0 0.0
        %4935 = vmatpush1.msra.mxu0 0.0
        %4936 = vmatprep.subr.mxu0 0.0
        %4937 = vmatpush1.msra.mxu0 0.0
        %4938 = vmatprep.subr.mxu0 0.0
        %4939 = vmatpush1.msra.mxu0 0.0
        %4940 = vmatprep.subr.mxu0 0.0
        %4941 = vmatpush1.msra.mxu0 0.0
        %4942 = vmatprep.subr.mxu0 0.0
        %4943 = vmatpush1.msra.mxu0 0.0
        %4944 = vmatprep.subr.mxu0 0.0
        %4945 = vmatpush1.msra.mxu0 0.0
        %4946 = vmatprep.subr.mxu0 0.0
        %4947 = vmatpush1.msra.mxu0 0.0
        %4948 = vmatprep.subr.mxu0 0.0
        %4949 = vmatpush1.msra.mxu0 0.0
        %4950 = vmatprep.subr.mxu0 0.0
        %4951 = vmatpush1.msra.mxu0 0.0
        %4952 = vmatprep.subr.mxu0 0.0
        %4953 = vmatpush1.msra.mxu0 0.0
        %4954 = vmatprep.mubr.f32.mxu0 0.0
        %v4955 = vand.u32 %v4489, 4294901760
        %4956 = vmatmul.mubr.f32.gmra.mrb[0].mxu0 %v4955
        %v4957 = vpop.f32.mrb[0].mxu0
        %v4958 = vadd.f32 %v4884, %v4957
        %v4959 = vpop.f32.mrb[0].mxu0
        %v4960 = vadd.f32 %v4886, %v4959
        %4961 = vdwg.mxu0
        %v4962 = vld [vmem:[%s18] sm:$0xf]
        %v4963 = vmul.f32 %v4003, %v3528
        %v4964 = vmul.f32 %v4005, %v3530
        %v4966 = vsel %vm4013, %v4962, 0
        %v4969 = vsel %vm906, %v4963, 0
        %v4972 = vsel %vm906, %v4964, 0
        %v4974 = vand.u32 %v4972, 4294901760
        %4975 = vmatprep.subr.mxu0 %v4974
        %v4976 = vand.u32 %v4969, 4294901760
        %4977 = vmatpush1.msra.mxu0 %v4976
        %4978 = vmatprep.subr.mxu0 0.0
        %4979 = vmatpush1.msra.mxu0 0.0
        %4980 = vmatprep.subr.mxu0 0.0
        %4981 = vmatpush1.msra.mxu0 0.0
        %4982 = vmatprep.subr.mxu0 0.0
        %4983 = vmatpush1.msra.mxu0 0.0
        %4984 = vmatprep.subr.mxu0 0.0
        %4985 = vmatpush1.msra.mxu0 0.0
        %4986 = vmatprep.subr.mxu0 0.0
        %4987 = vmatpush1.msra.mxu0 0.0
        %4988 = vmatprep.subr.mxu0 0.0
        %4989 = vmatpush1.msra.mxu0 0.0
        %4990 = vmatprep.subr.mxu0 0.0
        %4991 = vmatpush1.msra.mxu0 0.0
        %4992 = vmatprep.subr.mxu0 0.0
        %4993 = vmatpush1.msra.mxu0 0.0
        %4994 = vmatprep.subr.mxu0 0.0
        %4995 = vmatpush1.msra.mxu0 0.0
        %4996 = vmatprep.subr.mxu0 0.0
        %4997 = vmatpush1.msra.mxu0 0.0
        %4998 = vmatprep.subr.mxu0 0.0
        %4999 = vmatpush1.msra.mxu0 0.0
        %5000 = vmatprep.subr.mxu0 0.0
        %5001 = vmatpush1.msra.mxu0 0.0
        %5002 = vmatprep.subr.mxu0 0.0
        %5003 = vmatpush1.msra.mxu0 0.0
        %5004 = vmatprep.subr.mxu0 0.0
        %5005 = vmatpush1.msra.mxu0 0.0
        %5006 = vmatprep.subr.mxu0 0.0
        %5007 = vmatpush1.msra.mxu0 0.0
        %5008 = vmatprep.subr.mxu0 0.0
        %5009 = vmatpush1.msra.mxu0 0.0
        %5010 = vmatprep.subr.mxu0 0.0
        %5011 = vmatpush1.msra.mxu0 0.0
        %5012 = vmatprep.subr.mxu0 0.0
        %5013 = vmatpush1.msra.mxu0 0.0
        %5014 = vmatprep.subr.mxu0 0.0
        %5015 = vmatpush1.msra.mxu0 0.0
        %5016 = vmatprep.subr.mxu0 0.0
        %5017 = vmatpush1.msra.mxu0 0.0
        %5018 = vmatprep.subr.mxu0 0.0
        %5019 = vmatpush1.msra.mxu0 0.0
        %5020 = vmatprep.subr.mxu0 0.0
        %5021 = vmatpush1.msra.mxu0 0.0
        %5022 = vmatprep.subr.mxu0 0.0
        %5023 = vmatpush1.msra.mxu0 0.0
        %5024 = vmatprep.subr.mxu0 0.0
        %5025 = vmatpush1.msra.mxu0 0.0
        %5026 = vmatprep.subr.mxu0 0.0
        %5027 = vmatpush1.msra.mxu0 0.0
        %5028 = vmatprep.subr.mxu0 0.0
        %5029 = vmatpush1.msra.mxu0 0.0
        %5030 = vmatprep.subr.mxu0 0.0
        %5031 = vmatpush1.msra.mxu0 0.0
        %5032 = vmatprep.subr.mxu0 0.0
        %5033 = vmatpush1.msra.mxu0 0.0
        %5034 = vmatprep.subr.mxu0 0.0
        %5035 = vmatpush1.msra.mxu0 0.0
        %5036 = vmatprep.subr.mxu0 0.0
        %5037 = vmatpush1.msra.mxu0 0.0
        %5038 = vmatprep.subr.mxu0 0.0
        %5039 = vmatpush1.msra.mxu0 0.0
        %5040 = vmatprep.mubr.f32.mxu0 0.0
        %v5041 = vand.u32 %v4966, 4294901760
        %v5042 = vsub.f32 %v4966, %v5041
        %v5043 = vand.u32 %v5042, 4294901760
        %v5044 = vsub.f32 %v5042, %v5043
        %v5045 = vand.u32 %v5044, 4294901760
        %5046 = vmatmul.mubr.f32.gmra.mrb[0].mxu0 %v5045
        %v5047 = vpop.f32.mrb[0].mxu0
        %v5048 = vadd.f32 0.0, %v5047
        %v5049 = vpop.f32.mrb[0].mxu0
        %v5050 = vadd.f32 0.0, %v5049
        %5051 = vdwg.mxu0
        %v5052 = vand.u32 %v4972, 4294901760
        %v5053 = vsub.f32 %v4972, %v5052
        %v5054 = vand.u32 %v5053, 4294901760
        %v5055 = vsub.f32 %v5053, %v5054
        %v5056 = vand.u32 %v5055, 4294901760
        %5057 = vmatprep.subr.mxu0 %v5056
        %v5058 = vand.u32 %v4969, 4294901760
        %v5059 = vsub.f32 %v4969, %v5058
        %v5060 = vand.u32 %v5059, 4294901760
        %v5061 = vsub.f32 %v5059, %v5060
        %v5062 = vand.u32 %v5061, 4294901760
        %5063 = vmatpush1.msra.mxu0 %v5062
        %5064 = vmatprep.subr.mxu0 0.0
        %5065 = vmatpush1.msra.mxu0 0.0
        %5066 = vmatprep.subr.mxu0 0.0
        %5067 = vmatpush1.msra.mxu0 0.0
        %5068 = vmatprep.subr.mxu0 0.0
        %5069 = vmatpush1.msra.mxu0 0.0
        %5070 = vmatprep.subr.mxu0 0.0
        %5071 = vmatpush1.msra.mxu0 0.0
        %5072 = vmatprep.subr.mxu0 0.0
        %5073 = vmatpush1.msra.mxu0 0.0
        %5074 = vmatprep.subr.mxu0 0.0
        %5075 = vmatpush1.msra.mxu0 0.0
        %5076 = vmatprep.subr.mxu0 0.0
        %5077 = vmatpush1.msra.mxu0 0.0
        %5078 = vmatprep.subr.mxu0 0.0
        %5079 = vmatpush1.msra.mxu0 0.0
        %5080 = vmatprep.subr.mxu0 0.0
        %5081 = vmatpush1.msra.mxu0 0.0
        %5082 = vmatprep.subr.mxu0 0.0
        %5083 = vmatpush1.msra.mxu0 0.0
        %5084 = vmatprep.subr.mxu0 0.0
        %5085 = vmatpush1.msra.mxu0 0.0
        %5086 = vmatprep.subr.mxu0 0.0
        %5087 = vmatpush1.msra.mxu0 0.0
        %5088 = vmatprep.subr.mxu0 0.0
        %5089 = vmatpush1.msra.mxu0 0.0
        %5090 = vmatprep.subr.mxu0 0.0
        %5091 = vmatpush1.msra.mxu0 0.0
        %5092 = vmatprep.subr.mxu0 0.0
        %5093 = vmatpush1.msra.mxu0 0.0
        %5094 = vmatprep.subr.mxu0 0.0
        %5095 = vmatpush1.msra.mxu0 0.0
        %5096 = vmatprep.subr.mxu0 0.0
        %5097 = vmatpush1.msra.mxu0 0.0
        %5098 = vmatprep.subr.mxu0 0.0
        %5099 = vmatpush1.msra.mxu0 0.0
        %5100 = vmatprep.subr.mxu0 0.0
        %5101 = vmatpush1.msra.mxu0 0.0
        %5102 = vmatprep.subr.mxu0 0.0
        %5103 = vmatpush1.msra.mxu0 0.0
        %5104 = vmatprep.subr.mxu0 0.0
        %5105 = vmatpush1.msra.mxu0 0.0
        %5106 = vmatprep.subr.mxu0 0.0
        %5107 = vmatpush1.msra.mxu0 0.0
        %5108 = vmatprep.subr.mxu0 0.0
        %5109 = vmatpush1.msra.mxu0 0.0
        %5110 = vmatprep.subr.mxu0 0.0
        %5111 = vmatpush1.msra.mxu0 0.0
        %5112 = vmatprep.subr.mxu0 0.0
        %5113 = vmatpush1.msra.mxu0 0.0
        %5114 = vmatprep.subr.mxu0 0.0
        %5115 = vmatpush1.msra.mxu0 0.0
        %5116 = vmatprep.subr.mxu0 0.0
        %5117 = vmatpush1.msra.mxu0 0.0
        %5118 = vmatprep.subr.mxu0 0.0
        %5119 = vmatpush1.msra.mxu0 0.0
        %5120 = vmatprep.subr.mxu0 0.0
        %5121 = vmatpush1.msra.mxu0 0.0
        %5122 = vmatprep.subr.mxu0 0.0
        %5123 = vmatpush1.msra.mxu0 0.0
        %5124 = vmatprep.subr.mxu0 0.0
        %5125 = vmatpush1.msra.mxu0 0.0
        %5126 = vmatprep.mubr.f32.mxu0 0.0
        %v5127 = vand.u32 %v4966, 4294901760
        %5128 = vmatmul.mubr.f32.gmra.mrb[0].mxu0 %v5127
        %v5129 = vpop.f32.mrb[0].mxu0
        %v5130 = vadd.f32 %v5048, %v5129
        %v5131 = vpop.f32.mrb[0].mxu0
        %v5132 = vadd.f32 %v5050, %v5131
        %5133 = vdwg.mxu0
        %v5134 = vand.u32 %v4972, 4294901760
        %v5135 = vsub.f32 %v4972, %v5134
        %5136 = vmatprep.subr.mxu0 %v5135
        %v5137 = vand.u32 %v4969, 4294901760
        %v5138 = vsub.f32 %v4969, %v5137
        %5139 = vmatpush1.msra.mxu0 %v5138
        %5140 = vmatprep.subr.mxu0 0.0
        %5141 = vmatpush1.msra.mxu0 0.0
        %5142 = vmatprep.subr.mxu0 0.0
        %5143 = vmatpush1.msra.mxu0 0.0
        %5144 = vmatprep.subr.mxu0 0.0
        %5145 = vmatpush1.msra.mxu0 0.0
        %5146 = vmatprep.subr.mxu0 0.0
        %5147 = vmatpush1.msra.mxu0 0.0
        %5148 = vmatprep.subr.mxu0 0.0
        %5149 = vmatpush1.msra.mxu0 0.0
        %5150 = vmatprep.subr.mxu0 0.0
        %5151 = vmatpush1.msra.mxu0 0.0
        %5152 = vmatprep.subr.mxu0 0.0
        %5153 = vmatpush1.msra.mxu0 0.0
        %5154 = vmatprep.subr.mxu0 0.0
        %5155 = vmatpush1.msra.mxu0 0.0
        %5156 = vmatprep.subr.mxu0 0.0
        %5157 = vmatpush1.msra.mxu0 0.0
        %5158 = vmatprep.subr.mxu0 0.0
        %5159 = vmatpush1.msra.mxu0 0.0
        %5160 = vmatprep.subr.mxu0 0.0
        %5161 = vmatpush1.msra.mxu0 0.0
        %5162 = vmatprep.subr.mxu0 0.0
        %5163 = vmatpush1.msra.mxu0 0.0
        %5164 = vmatprep.subr.mxu0 0.0
        %5165 = vmatpush1.msra.mxu0 0.0
        %5166 = vmatprep.subr.mxu0 0.0
        %5167 = vmatpush1.msra.mxu0 0.0
        %5168 = vmatprep.subr.mxu0 0.0
        %5169 = vmatpush1.msra.mxu0 0.0
        %5170 = vmatprep.subr.mxu0 0.0
        %5171 = vmatpush1.msra.mxu0 0.0
        %5172 = vmatprep.subr.mxu0 0.0
        %5173 = vmatpush1.msra.mxu0 0.0
        %5174 = vmatprep.subr.mxu0 0.0
        %5175 = vmatpush1.msra.mxu0 0.0
        %5176 = vmatprep.subr.mxu0 0.0
        %5177 = vmatpush1.msra.mxu0 0.0
        %5178 = vmatprep.subr.mxu0 0.0
        %5179 = vmatpush1.msra.mxu0 0.0
        %5180 = vmatprep.subr.mxu0 0.0
        %5181 = vmatpush1.msra.mxu0 0.0
        %5182 = vmatprep.subr.mxu0 0.0
        %5183 = vmatpush1.msra.mxu0 0.0
        %5184 = vmatprep.subr.mxu0 0.0
        %5185 = vmatpush1.msra.mxu0 0.0
        %5186 = vmatprep.subr.mxu0 0.0
        %5187 = vmatpush1.msra.mxu0 0.0
        %5188 = vmatprep.subr.mxu0 0.0
        %5189 = vmatpush1.msra.mxu0 0.0
        %5190 = vmatprep.subr.mxu0 0.0
        %5191 = vmatpush1.msra.mxu0 0.0
        %5192 = vmatprep.subr.mxu0 0.0
        %5193 = vmatpush1.msra.mxu0 0.0
        %5194 = vmatprep.subr.mxu0 0.0
        %5195 = vmatpush1.msra.mxu0 0.0
        %5196 = vmatprep.subr.mxu0 0.0
        %5197 = vmatpush1.msra.mxu0 0.0
        %5198 = vmatprep.subr.mxu0 0.0
        %5199 = vmatpush1.msra.mxu0 0.0
        %5200 = vmatprep.subr.mxu0 0.0
        %5201 = vmatpush1.msra.mxu0 0.0
        %5202 = vmatprep.mubr.f32.mxu0 0.0
        %v5203 = vand.u32 %v4966, 4294901760
        %v5204 = vsub.f32 %v4966, %v5203
        %5205 = vmatmul.mubr.f32.gmra.mrb[0].mxu0 %v5204
        %v5206 = vpop.f32.mrb[0].mxu0
        %v5207 = vadd.f32 %v5130, %v5206
        %v5208 = vpop.f32.mrb[0].mxu0
        %v5209 = vadd.f32 %v5132, %v5208
        %5210 = vdwg.mxu0
        %v5211 = vand.u32 %v4972, 4294901760
        %5212 = vmatprep.subr.mxu0 %v5211
        %v5213 = vand.u32 %v4969, 4294901760
        %5214 = vmatpush1.msra.mxu0 %v5213
        %5215 = vmatprep.subr.mxu0 0.0
        %5216 = vmatpush1.msra.mxu0 0.0
        %5217 = vmatprep.subr.mxu0 0.0
        %5218 = vmatpush1.msra.mxu0 0.0
        %5219 = vmatprep.subr.mxu0 0.0
        %5220 = vmatpush1.msra.mxu0 0.0
        %5221 = vmatprep.subr.mxu0 0.0
        %5222 = vmatpush1.msra.mxu0 0.0
        %5223 = vmatprep.subr.mxu0 0.0
        %5224 = vmatpush1.msra.mxu0 0.0
        %5225 = vmatprep.subr.mxu0 0.0
        %5226 = vmatpush1.msra.mxu0 0.0
        %5227 = vmatprep.subr.mxu0 0.0
        %5228 = vmatpush1.msra.mxu0 0.0
        %5229 = vmatprep.subr.mxu0 0.0
        %5230 = vmatpush1.msra.mxu0 0.0
        %5231 = vmatprep.subr.mxu0 0.0
        %5232 = vmatpush1.msra.mxu0 0.0
        %5233 = vmatprep.subr.mxu0 0.0
        %5234 = vmatpush1.msra.mxu0 0.0
        %5235 = vmatprep.subr.mxu0 0.0
        %5236 = vmatpush1.msra.mxu0 0.0
        %5237 = vmatprep.subr.mxu0 0.0
        %5238 = vmatpush1.msra.mxu0 0.0
        %5239 = vmatprep.subr.mxu0 0.0
        %5240 = vmatpush1.msra.mxu0 0.0
        %5241 = vmatprep.subr.mxu0 0.0
        %5242 = vmatpush1.msra.mxu0 0.0
        %5243 = vmatprep.subr.mxu0 0.0
        %5244 = vmatpush1.msra.mxu0 0.0
        %5245 = vmatprep.subr.mxu0 0.0
        %5246 = vmatpush1.msra.mxu0 0.0
        %5247 = vmatprep.subr.mxu0 0.0
        %5248 = vmatpush1.msra.mxu0 0.0
        %5249 = vmatprep.subr.mxu0 0.0
        %5250 = vmatpush1.msra.mxu0 0.0
        %5251 = vmatprep.subr.mxu0 0.0
        %5252 = vmatpush1.msra.mxu0 0.0
        %5253 = vmatprep.subr.mxu0 0.0
        %5254 = vmatpush1.msra.mxu0 0.0
        %5255 = vmatprep.subr.mxu0 0.0
        %5256 = vmatpush1.msra.mxu0 0.0
        %5257 = vmatprep.subr.mxu0 0.0
        %5258 = vmatpush1.msra.mxu0 0.0
        %5259 = vmatprep.subr.mxu0 0.0
        %5260 = vmatpush1.msra.mxu0 0.0
        %5261 = vmatprep.subr.mxu0 0.0
        %5262 = vmatpush1.msra.mxu0 0.0
        %5263 = vmatprep.subr.mxu0 0.0
        %5264 = vmatpush1.msra.mxu0 0.0
        %5265 = vmatprep.subr.mxu0 0.0
        %5266 = vmatpush1.msra.mxu0 0.0
        %5267 = vmatprep.subr.mxu0 0.0
        %5268 = vmatpush1.msra.mxu0 0.0
        %5269 = vmatprep.subr.mxu0 0.0
        %5270 = vmatpush1.msra.mxu0 0.0
        %5271 = vmatprep.subr.mxu0 0.0
        %5272 = vmatpush1.msra.mxu0 0.0
        %5273 = vmatprep.subr.mxu0 0.0
        %5274 = vmatpush1.msra.mxu0 0.0
        %5275 = vmatprep.subr.mxu0 0.0
        %5276 = vmatpush1.msra.mxu0 0.0
        %5277 = vmatprep.mubr.f32.mxu0 0.0
        %v5278 = vand.u32 %v4966, 4294901760
        %v5279 = vsub.f32 %v4966, %v5278
        %v5280 = vand.u32 %v5279, 4294901760
        %5281 = vmatmul.mubr.f32.gmra.mrb[0].mxu0 %v5280
        %v5282 = vpop.f32.mrb[0].mxu0
        %v5283 = vadd.f32 %v5207, %v5282
        %v5284 = vpop.f32.mrb[0].mxu0
        %v5285 = vadd.f32 %v5209, %v5284
        %5286 = vdwg.mxu0
        %v5287 = vand.u32 %v4972, 4294901760
        %v5288 = vsub.f32 %v4972, %v5287
        %v5289 = vand.u32 %v5288, 4294901760
        %5290 = vmatprep.subr.mxu0 %v5289
        %v5291 = vand.u32 %v4969, 4294901760
        %v5292 = vsub.f32 %v4969, %v5291
        %v5293 = vand.u32 %v5292, 4294901760
        %5294 = vmatpush1.msra.mxu0 %v5293
        %5295 = vmatprep.subr.mxu0 0.0
        %5296 = vmatpush1.msra.mxu0 0.0
        %5297 = vmatprep.subr.mxu0 0.0
        %5298 = vmatpush1.msra.mxu0 0.0
        %5299 = vmatprep.subr.mxu0 0.0
        %5300 = vmatpush1.msra.mxu0 0.0
        %5301 = vmatprep.subr.mxu0 0.0
        %5302 = vmatpush1.msra.mxu0 0.0
        %5303 = vmatprep.subr.mxu0 0.0
        %5304 = vmatpush1.msra.mxu0 0.0
        %5305 = vmatprep.subr.mxu0 0.0
        %5306 = vmatpush1.msra.mxu0 0.0
        %5307 = vmatprep.subr.mxu0 0.0
        %5308 = vmatpush1.msra.mxu0 0.0
        %5309 = vmatprep.subr.mxu0 0.0
        %5310 = vmatpush1.msra.mxu0 0.0
        %5311 = vmatprep.subr.mxu0 0.0
        %5312 = vmatpush1.msra.mxu0 0.0
        %5313 = vmatprep.subr.mxu0 0.0
        %5314 = vmatpush1.msra.mxu0 0.0
        %5315 = vmatprep.subr.mxu0 0.0
        %5316 = vmatpush1.msra.mxu0 0.0
        %5317 = vmatprep.subr.mxu0 0.0
        %5318 = vmatpush1.msra.mxu0 0.0
        %5319 = vmatprep.subr.mxu0 0.0
        %5320 = vmatpush1.msra.mxu0 0.0
        %5321 = vmatprep.subr.mxu0 0.0
        %5322 = vmatpush1.msra.mxu0 0.0
        %5323 = vmatprep.subr.mxu0 0.0
        %5324 = vmatpush1.msra.mxu0 0.0
        %5325 = vmatprep.subr.mxu0 0.0
        %5326 = vmatpush1.msra.mxu0 0.0
        %5327 = vmatprep.subr.mxu0 0.0
        %5328 = vmatpush1.msra.mxu0 0.0
        %5329 = vmatprep.subr.mxu0 0.0
        %5330 = vmatpush1.msra.mxu0 0.0
        %5331 = vmatprep.subr.mxu0 0.0
        %5332 = vmatpush1.msra.mxu0 0.0
        %5333 = vmatprep.subr.mxu0 0.0
        %5334 = vmatpush1.msra.mxu0 0.0
        %5335 = vmatprep.subr.mxu0 0.0
        %5336 = vmatpush1.msra.mxu0 0.0
        %5337 = vmatprep.subr.mxu0 0.0
        %5338 = vmatpush1.msra.mxu0 0.0
        %5339 = vmatprep.subr.mxu0 0.0
        %5340 = vmatpush1.msra.mxu0 0.0
        %5341 = vmatprep.subr.mxu0 0.0
        %5342 = vmatpush1.msra.mxu0 0.0
        %5343 = vmatprep.subr.mxu0 0.0
        %5344 = vmatpush1.msra.mxu0 0.0
        %5345 = vmatprep.subr.mxu0 0.0
        %5346 = vmatpush1.msra.mxu0 0.0
        %5347 = vmatprep.subr.mxu0 0.0
        %5348 = vmatpush1.msra.mxu0 0.0
        %5349 = vmatprep.subr.mxu0 0.0
        %5350 = vmatpush1.msra.mxu0 0.0
        %5351 = vmatprep.subr.mxu0 0.0
        %5352 = vmatpush1.msra.mxu0 0.0
        %5353 = vmatprep.subr.mxu0 0.0
        %5354 = vmatpush1.msra.mxu0 0.0
        %5355 = vmatprep.subr.mxu0 0.0
        %5356 = vmatpush1.msra.mxu0 0.0
        %5357 = vmatprep.mubr.f32.mxu0 0.0
        %v5358 = vand.u32 %v4966, 4294901760
        %5359 = vmatmul.mubr.f32.gmra.mrb[0].mxu0 %v5358
        %v5360 = vpop.f32.mrb[0].mxu0
        %v5361 = vadd.f32 %v5283, %v5360
        %v5362 = vpop.f32.mrb[0].mxu0
        %v5363 = vadd.f32 %v5285, %v5362
        %5364 = vdwg.mxu0
        %v5365 = vand.u32 %v4972, 4294901760
        %5366 = vmatprep.subr.mxu0 %v5365
        %v5367 = vand.u32 %v4969, 4294901760
        %5368 = vmatpush1.msra.mxu0 %v5367
        %5369 = vmatprep.subr.mxu0 0.0
        %5370 = vmatpush1.msra.mxu0 0.0
        %5371 = vmatprep.subr.mxu0 0.0
        %5372 = vmatpush1.msra.mxu0 0.0
        %5373 = vmatprep.subr.mxu0 0.0
        %5374 = vmatpush1.msra.mxu0 0.0
        %5375 = vmatprep.subr.mxu0 0.0
        %5376 = vmatpush1.msra.mxu0 0.0
        %5377 = vmatprep.subr.mxu0 0.0
        %5378 = vmatpush1.msra.mxu0 0.0
        %5379 = vmatprep.subr.mxu0 0.0
        %5380 = vmatpush1.msra.mxu0 0.0
        %5381 = vmatprep.subr.mxu0 0.0
        %5382 = vmatpush1.msra.mxu0 0.0
        %5383 = vmatprep.subr.mxu0 0.0
        %5384 = vmatpush1.msra.mxu0 0.0
        %5385 = vmatprep.subr.mxu0 0.0
        %5386 = vmatpush1.msra.mxu0 0.0
        %5387 = vmatprep.subr.mxu0 0.0
        %5388 = vmatpush1.msra.mxu0 0.0
        %5389 = vmatprep.subr.mxu0 0.0
        %5390 = vmatpush1.msra.mxu0 0.0
        %5391 = vmatprep.subr.mxu0 0.0
        %5392 = vmatpush1.msra.mxu0 0.0
        %5393 = vmatprep.subr.mxu0 0.0
        %5394 = vmatpush1.msra.mxu0 0.0
        %5395 = vmatprep.subr.mxu0 0.0
        %5396 = vmatpush1.msra.mxu0 0.0
        %5397 = vmatprep.subr.mxu0 0.0
        %5398 = vmatpush1.msra.mxu0 0.0
        %5399 = vmatprep.subr.mxu0 0.0
        %5400 = vmatpush1.msra.mxu0 0.0
        %5401 = vmatprep.subr.mxu0 0.0
        %5402 = vmatpush1.msra.mxu0 0.0
        %5403 = vmatprep.subr.mxu0 0.0
        %5404 = vmatpush1.msra.mxu0 0.0
        %5405 = vmatprep.subr.mxu0 0.0
        %5406 = vmatpush1.msra.mxu0 0.0
        %5407 = vmatprep.subr.mxu0 0.0
        %5408 = vmatpush1.msra.mxu0 0.0
        %5409 = vmatprep.subr.mxu0 0.0
        %5410 = vmatpush1.msra.mxu0 0.0
        %5411 = vmatprep.subr.mxu0 0.0
        %5412 = vmatpush1.msra.mxu0 0.0
        %5413 = vmatprep.subr.mxu0 0.0
        %5414 = vmatpush1.msra.mxu0 0.0
        %5415 = vmatprep.subr.mxu0 0.0
        %5416 = vmatpush1.msra.mxu0 0.0
        %5417 = vmatprep.subr.mxu0 0.0
        %5418 = vmatpush1.msra.mxu0 0.0
        %5419 = vmatprep.subr.mxu0 0.0
        %5420 = vmatpush1.msra.mxu0 0.0
        %5421 = vmatprep.subr.mxu0 0.0
        %5422 = vmatpush1.msra.mxu0 0.0
        %5423 = vmatprep.subr.mxu0 0.0
        %5424 = vmatpush1.msra.mxu0 0.0
        %5425 = vmatprep.subr.mxu0 0.0
        %5426 = vmatpush1.msra.mxu0 0.0
        %5427 = vmatprep.subr.mxu0 0.0
        %5428 = vmatpush1.msra.mxu0 0.0
        %5429 = vmatprep.subr.mxu0 0.0
        %5430 = vmatpush1.msra.mxu0 0.0
        %5431 = vmatprep.mubr.f32.mxu0 0.0
        %v5432 = vand.u32 %v4966, 4294901760
        %5433 = vmatmul.mubr.f32.gmra.mrb[0].mxu0 %v5432
        %v5434 = vpop.f32.mrb[0].mxu0
        %v5435 = vadd.f32 %v5361, %v5434
        %v5436 = vpop.f32.mrb[0].mxu0
        %v5437 = vadd.f32 %v5363, %v5436
        %5438 = vdwg.mxu0
        %v5439 = vadd.f32 %v4958, %v5435
        %v5440 = vadd.f32 %v4960, %v5437
        %v5441 = vld [vmem:[%s19] sm:$0xf]
        %5443 = vset.pattern.permute.xlu0 0
        %5444 = vperm.xlu0 %5443, %v5441
        %v5445 = vpop.permute.xlu0 %5444
        %v5447 = vadd.f32 %v5439, %v5445
        %v5448 = vadd.f32 %v5440, %v5445
        %v5451 = vcombine.low %v5447, %v5448
        %5453 = vst [vmem:[%s677] sm:$0xff] %v5451
        %v5454 = vmul.f32 %v5447, 10.0
        %v5455 = vmul.f32 %v5448, 10.0
        %v5456 = vsel %vm906, %v5454, -inf
        %v5457 = vsel %vm906, %v5455, -inf
        %v5458 = vmax.f32 %v5456, %v5457
        %5459 = vmax.xlane.f32.xlu0 %v5458
        %v5460 = vpop.xlane.xlu0 %5459
        %v5461 = vsub.f32 %v5454, %v5460
        %v5462 = vsub.f32 %v5455, %v5460
        %v5463 = vmul.f32 %v5461, 1.442695
        %v5464 = vpow.pop %v5463
        %v5465 = vmul.f32 %v5462, 1.442695
        %v5466 = vpow.pop %v5465
        %v5467 = vsel %vm906, %v5464, 0.0
        %v5468 = vsel %vm906, %v5466, 0.0
        %v5469 = vadd.f32 %v5467, %v5468
        %5470 = vadd.xlane.f32.xlu0 %v5469
        %v5471 = vpop.xlane.xlu0 %5470
        %v5472 = vrcp.pop %v5471
        %v5473 = vmul.f32 %v5464, %v5472
        %v5474 = vmul.f32 %v5466, %v5472
        %v5475 = vld [vmem:[%s20] sm:$0xff]
        %v5476 = vld [vmem:[%s20 + $0x8] sm:$0xff]
        %v5477 = vld [vmem:[%s20 + $0x10] sm:$0xff]
        %v5478 = vld [vmem:[%s20 + $0x18] sm:$0xff]
        %v5479 = vld [vmem:[%s20 + $0x20] sm:$0xff]
        %v5480 = vld [vmem:[%s20 + $0x28] sm:$0xff]
        %v5481 = vld [vmem:[%s20 + $0x30] sm:$0xff]
        %v5482 = vld [vmem:[%s20 + $0x38] sm:$0xff]
        %v5483 = vld [vmem:[%s20 + $0x40] sm:$0xff]
        %v5484 = vld [vmem:[%s20 + $0x48] sm:$0xff]
        %v5485 = vld [vmem:[%s20 + $0x50] sm:$0xff]
        %v5486 = vld [vmem:[%s20 + $0x58] sm:$0xff]
        %v5487 = vld [vmem:[%s20 + $0x60] sm:$0xff]
        %v5488 = vld [vmem:[%s20 + $0x68] sm:$0xff]
        %v5489 = vld [vmem:[%s20 + $0x70] sm:$0xff]
        %v5490 = vld [vmem:[%s20 + $0x78] sm:$0xff]
        %v5491 = vld [vmem:[%s20 + $0x80] sm:$0xff]
        %v5492 = vld [vmem:[%s20 + $0x88] sm:$0xff]
        %v5493 = vld [vmem:[%s20 + $0x90] sm:$0xff]
        %v5494 = vld [vmem:[%s20 + $0x98] sm:$0xff]
        %v5495 = vld [vmem:[%s20 + $0xa0] sm:$0xff]
        %v5496 = vld [vmem:[%s20 + $0xa8] sm:$0xff]
        %v5497 = vld [vmem:[%s20 + $0xb0] sm:$0xff]
        %v5498 = vld [vmem:[%s20 + $0xb8] sm:$0xff]
        %v5499 = vld [vmem:[%s20 + $0xc0] sm:$0xff]
        %v5500 = vld [vmem:[%s20 + $0xc8] sm:$0xff]
        %v5501 = vld [vmem:[%s20 + $0xd0] sm:$0xff]
        %v5502 = vld [vmem:[%s20 + $0xd8] sm:$0xff]
        %v5503 = vld [vmem:[%s20 + $0xe0] sm:$0xff]
        %v5504 = vld [vmem:[%s20 + $0xe8] sm:$0xff]
        %v5505 = vld [vmem:[%s20 + $0xf0] sm:$0xff]
        %v5506 = vld [vmem:[%s20 + $0xf8] sm:$0xff]
        %5507 = vmatprep.subr.mxu0 0.0
        %v5508 = vand.u32 %v5475, 4294901760
        %5509 = vmatpush1.msra.mxu0 %v5508
        %5510 = vmatprep.subr.mxu0 0.0
        %v5511 = vand.u32 %v5476, 4294901760
        %5512 = vmatpush1.msra.mxu0 %v5511
        %5513 = vmatprep.subr.mxu0 0.0
        %v5514 = vand.u32 %v5477, 4294901760
        %5515 = vmatpush1.msra.mxu0 %v5514
        %5516 = vmatprep.subr.mxu0 0.0
        %v5517 = vand.u32 %v5478, 4294901760
        %5518 = vmatpush1.msra.mxu0 %v5517
        %5519 = vmatprep.subr.mxu0 0.0
        %v5520 = vand.u32 %v5479, 4294901760
        %5521 = vmatpush1.msra.mxu0 %v5520
        %5522 = vmatprep.subr.mxu0 0.0
        %v5523 = vand.u32 %v5480, 4294901760
        %5524 = vmatpush1.msra.mxu0 %v5523
        %5525 = vmatprep.subr.mxu0 0.0
        %v5526 = vand.u32 %v5481, 4294901760
        %5527 = vmatpush1.msra.mxu0 %v5526
        %5528 = vmatprep.subr.mxu0 0.0
        %v5529 = vand.u32 %v5482, 4294901760
        %5530 = vmatpush1.msra.mxu0 %v5529
        %5531 = vmatprep.subr.mxu0 0.0
        %v5532 = vand.u32 %v5483, 4294901760
        %5533 = vmatpush1.msra.mxu0 %v5532
        %5534 = vmatprep.subr.mxu0 0.0
        %v5535 = vand.u32 %v5484, 4294901760
        %5536 = vmatpush1.msra.mxu0 %v5535
        %5537 = vmatprep.subr.mxu0 0.0
        %v5538 = vand.u32 %v5485, 4294901760
        %5539 = vmatpush1.msra.mxu0 %v5538
        %5540 = vmatprep.subr.mxu0 0.0
        %v5541 = vand.u32 %v5486, 4294901760
        %5542 = vmatpush1.msra.mxu0 %v5541
        %5543 = vmatprep.subr.mxu0 0.0
        %v5544 = vand.u32 %v5487, 4294901760
        %5545 = vmatpush1.msra.mxu0 %v5544
        %5546 = vmatprep.subr.mxu0 0.0
        %v5547 = vand.u32 %v5488, 4294901760
        %5548 = vmatpush1.msra.mxu0 %v5547
        %5549 = vmatprep.subr.mxu0 0.0
        %v5550 = vand.u32 %v5489, 4294901760
        %5551 = vmatpush1.msra.mxu0 %v5550
        %5552 = vmatprep.subr.mxu0 0.0
        %v5553 = vand.u32 %v5490, 4294901760
        %5554 = vmatpush1.msra.mxu0 %v5553
        %5555 = vmatprep.subr.mxu0 0.0
        %v5556 = vand.u32 %v5491, 4294901760
        %5557 = vmatpush1.msra.mxu0 %v5556
        %5558 = vmatprep.subr.mxu0 0.0
        %v5559 = vand.u32 %v5492, 4294901760
        %5560 = vmatpush1.msra.mxu0 %v5559
        %5561 = vmatprep.subr.mxu0 0.0
        %v5562 = vand.u32 %v5493, 4294901760
        %5563 = vmatpush1.msra.mxu0 %v5562
        %5564 = vmatprep.subr.mxu0 0.0
        %v5565 = vand.u32 %v5494, 4294901760
        %5566 = vmatpush1.msra.mxu0 %v5565
        %5567 = vmatprep.subr.mxu0 0.0
        %v5568 = vand.u32 %v5495, 4294901760
        %5569 = vmatpush1.msra.mxu0 %v5568
        %5570 = vmatprep.subr.mxu0 0.0
        %v5571 = vand.u32 %v5496, 4294901760
        %5572 = vmatpush1.msra.mxu0 %v5571
        %5573 = vmatprep.subr.mxu0 0.0
        %v5574 = vand.u32 %v5497, 4294901760
        %5575 = vmatpush1.msra.mxu0 %v5574
        %5576 = vmatprep.subr.mxu0 0.0
        %v5577 = vand.u32 %v5498, 4294901760
        %5578 = vmatpush1.msra.mxu0 %v5577
        %5579 = vmatprep.subr.mxu0 0.0
        %v5580 = vand.u32 %v5499, 4294901760
        %5581 = vmatpush1.msra.mxu0 %v5580
        %5582 = vmatprep.subr.mxu0 0.0
        %v5583 = vand.u32 %v5500, 4294901760
        %5584 = vmatpush1.msra.mxu0 %v5583
        %5585 = vmatprep.subr.mxu0 0.0
        %v5586 = vand.u32 %v5501, 4294901760
        %5587 = vmatpush1.msra.mxu0 %v5586
        %5588 = vmatprep.subr.mxu0 0.0
        %v5589 = vand.u32 %v5502, 4294901760
        %5590 = vmatpush1.msra.mxu0 %v5589
        %5591 = vmatprep.subr.mxu0 0.0
        %v5592 = vand.u32 %v5503, 4294901760
        %5593 = vmatpush1.msra.mxu0 %v5592
        %5594 = vmatprep.subr.mxu0 0.0
        %v5595 = vand.u32 %v5504, 4294901760
        %5596 = vmatpush1.msra.mxu0 %v5595
        %5597 = vmatprep.subr.mxu0 0.0
        %v5598 = vand.u32 %v5505, 4294901760
        %5599 = vmatpush1.msra.mxu0 %v5598
        %5600 = vmatprep.subr.mxu0 0.0
        %v5601 = vand.u32 %v5506, 4294901760
        %5602 = vmatpush1.msra.mxu0 %v5601
        %v5603 = vand.u32 %v5474, 4294901760
        %v5604 = vsub.f32 %v5474, %v5603
        %v5605 = vand.u32 %v5604, 4294901760
        %v5606 = vsub.f32 %v5604, %v5605
        %v5607 = vand.u32 %v5606, 4294901760
        %5608 = vmatprep.mubr.f32.mxu0 %v5607
        %v5609 = vand.u32 %v5473, 4294901760
        %v5610 = vsub.f32 %v5473, %v5609
        %v5611 = vand.u32 %v5610, 4294901760
        %v5612 = vsub.f32 %v5610, %v5611
        %v5613 = vand.u32 %v5612, 4294901760
        %5614 = vmatmul.mubr.f32.gmra.mrb[0].mxu0 %v5613
        %v5615 = vpop.f32.mrb[0].mxu0
        %v5616 = vadd.f32 0.0, %v5615
        %v5617 = vpop.f32.mrb[0].mxu0
        %5618 = vdwg.mxu0
        %5619 = vmatprep.subr.mxu0 0.0
        %v5620 = vand.u32 %v5475, 4294901760
        %v5621 = vsub.f32 %v5475, %v5620
        %v5622 = vand.u32 %v5621, 4294901760
        %v5623 = vsub.f32 %v5621, %v5622
        %v5624 = vand.u32 %v5623, 4294901760
        %5625 = vmatpush1.msra.mxu0 %v5624
        %5626 = vmatprep.subr.mxu0 0.0
        %v5627 = vand.u32 %v5476, 4294901760
        %v5628 = vsub.f32 %v5476, %v5627
        %v5629 = vand.u32 %v5628, 4294901760
        %v5630 = vsub.f32 %v5628, %v5629
        %v5631 = vand.u32 %v5630, 4294901760
        %5632 = vmatpush1.msra.mxu0 %v5631
        %5633 = vmatprep.subr.mxu0 0.0
        %v5634 = vand.u32 %v5477, 4294901760
        %v5635 = vsub.f32 %v5477, %v5634
        %v5636 = vand.u32 %v5635, 4294901760
        %v5637 = vsub.f32 %v5635, %v5636
        %v5638 = vand.u32 %v5637, 4294901760
        %5639 = vmatpush1.msra.mxu0 %v5638
        %5640 = vmatprep.subr.mxu0 0.0
        %v5641 = vand.u32 %v5478, 4294901760
        %v5642 = vsub.f32 %v5478, %v5641
        %v5643 = vand.u32 %v5642, 4294901760
        %v5644 = vsub.f32 %v5642, %v5643
        %v5645 = vand.u32 %v5644, 4294901760
        %5646 = vmatpush1.msra.mxu0 %v5645
        %5647 = vmatprep.subr.mxu0 0.0
        %v5648 = vand.u32 %v5479, 4294901760
        %v5649 = vsub.f32 %v5479, %v5648
        %v5650 = vand.u32 %v5649, 4294901760
        %v5651 = vsub.f32 %v5649, %v5650
        %v5652 = vand.u32 %v5651, 4294901760
        %5653 = vmatpush1.msra.mxu0 %v5652
        %5654 = vmatprep.subr.mxu0 0.0
        %v5655 = vand.u32 %v5480, 4294901760
        %v5656 = vsub.f32 %v5480, %v5655
        %v5657 = vand.u32 %v5656, 4294901760
        %v5658 = vsub.f32 %v5656, %v5657
        %v5659 = vand.u32 %v5658, 4294901760
        %5660 = vmatpush1.msra.mxu0 %v5659
        %5661 = vmatprep.subr.mxu0 0.0
        %v5662 = vand.u32 %v5481, 4294901760
        %v5663 = vsub.f32 %v5481, %v5662
        %v5664 = vand.u32 %v5663, 4294901760
        %v5665 = vsub.f32 %v5663, %v5664
        %v5666 = vand.u32 %v5665, 4294901760
        %5667 = vmatpush1.msra.mxu0 %v5666
        %5668 = vmatprep.subr.mxu0 0.0
        %v5669 = vand.u32 %v5482, 4294901760
        %v5670 = vsub.f32 %v5482, %v5669
        %v5671 = vand.u32 %v5670, 4294901760
        %v5672 = vsub.f32 %v5670, %v5671
        %v5673 = vand.u32 %v5672, 4294901760
        %5674 = vmatpush1.msra.mxu0 %v5673
        %5675 = vmatprep.subr.mxu0 0.0
        %v5676 = vand.u32 %v5483, 4294901760
        %v5677 = vsub.f32 %v5483, %v5676
        %v5678 = vand.u32 %v5677, 4294901760
        %v5679 = vsub.f32 %v5677, %v5678
        %v5680 = vand.u32 %v5679, 4294901760
        %5681 = vmatpush1.msra.mxu0 %v5680
        %5682 = vmatprep.subr.mxu0 0.0
        %v5683 = vand.u32 %v5484, 4294901760
        %v5684 = vsub.f32 %v5484, %v5683
        %v5685 = vand.u32 %v5684, 4294901760
        %v5686 = vsub.f32 %v5684, %v5685
        %v5687 = vand.u32 %v5686, 4294901760
        %5688 = vmatpush1.msra.mxu0 %v5687
        %5689 = vmatprep.subr.mxu0 0.0
        %v5690 = vand.u32 %v5485, 4294901760
        %v5691 = vsub.f32 %v5485, %v5690
        %v5692 = vand.u32 %v5691, 4294901760
        %v5693 = vsub.f32 %v5691, %v5692
        %v5694 = vand.u32 %v5693, 4294901760
        %5695 = vmatpush1.msra.mxu0 %v5694
        %5696 = vmatprep.subr.mxu0 0.0
        %v5697 = vand.u32 %v5486, 4294901760
        %v5698 = vsub.f32 %v5486, %v5697
        %v5699 = vand.u32 %v5698, 4294901760
        %v5700 = vsub.f32 %v5698, %v5699
        %v5701 = vand.u32 %v5700, 4294901760
        %5702 = vmatpush1.msra.mxu0 %v5701
        %5703 = vmatprep.subr.mxu0 0.0
        %v5704 = vand.u32 %v5487, 4294901760
        %v5705 = vsub.f32 %v5487, %v5704
        %v5706 = vand.u32 %v5705, 4294901760
        %v5707 = vsub.f32 %v5705, %v5706
        %v5708 = vand.u32 %v5707, 4294901760
        %5709 = vmatpush1.msra.mxu0 %v5708
        %5710 = vmatprep.subr.mxu0 0.0
        %v5711 = vand.u32 %v5488, 4294901760
        %v5712 = vsub.f32 %v5488, %v5711
        %v5713 = vand.u32 %v5712, 4294901760
        %v5714 = vsub.f32 %v5712, %v5713
        %v5715 = vand.u32 %v5714, 4294901760
        %5716 = vmatpush1.msra.mxu0 %v5715
        %5717 = vmatprep.subr.mxu0 0.0
        %v5718 = vand.u32 %v5489, 4294901760
        %v5719 = vsub.f32 %v5489, %v5718
        %v5720 = vand.u32 %v5719, 4294901760
        %v5721 = vsub.f32 %v5719, %v5720
        %v5722 = vand.u32 %v5721, 4294901760
        %5723 = vmatpush1.msra.mxu0 %v5722
        %5724 = vmatprep.subr.mxu0 0.0
        %v5725 = vand.u32 %v5490, 4294901760
        %v5726 = vsub.f32 %v5490, %v5725
        %v5727 = vand.u32 %v5726, 4294901760
        %v5728 = vsub.f32 %v5726, %v5727
        %v5729 = vand.u32 %v5728, 4294901760
        %5730 = vmatpush1.msra.mxu0 %v5729
        %5731 = vmatprep.subr.mxu0 0.0
        %v5732 = vand.u32 %v5491, 4294901760
        %v5733 = vsub.f32 %v5491, %v5732
        %v5734 = vand.u32 %v5733, 4294901760
        %v5735 = vsub.f32 %v5733, %v5734
        %v5736 = vand.u32 %v5735, 4294901760
        %5737 = vmatpush1.msra.mxu0 %v5736
        %5738 = vmatprep.subr.mxu0 0.0
        %v5739 = vand.u32 %v5492, 4294901760
        %v5740 = vsub.f32 %v5492, %v5739
        %v5741 = vand.u32 %v5740, 4294901760
        %v5742 = vsub.f32 %v5740, %v5741
        %v5743 = vand.u32 %v5742, 4294901760
        %5744 = vmatpush1.msra.mxu0 %v5743
        %5745 = vmatprep.subr.mxu0 0.0
        %v5746 = vand.u32 %v5493, 4294901760
        %v5747 = vsub.f32 %v5493, %v5746
        %v5748 = vand.u32 %v5747, 4294901760
        %v5749 = vsub.f32 %v5747, %v5748
        %v5750 = vand.u32 %v5749, 4294901760
        %5751 = vmatpush1.msra.mxu0 %v5750
        %5752 = vmatprep.subr.mxu0 0.0
        %v5753 = vand.u32 %v5494, 4294901760
        %v5754 = vsub.f32 %v5494, %v5753
        %v5755 = vand.u32 %v5754, 4294901760
        %v5756 = vsub.f32 %v5754, %v5755
        %v5757 = vand.u32 %v5756, 4294901760
        %5758 = vmatpush1.msra.mxu0 %v5757
        %5759 = vmatprep.subr.mxu0 0.0
        %v5760 = vand.u32 %v5495, 4294901760
        %v5761 = vsub.f32 %v5495, %v5760
        %v5762 = vand.u32 %v5761, 4294901760
        %v5763 = vsub.f32 %v5761, %v5762
        %v5764 = vand.u32 %v5763, 4294901760
        %5765 = vmatpush1.msra.mxu0 %v5764
        %5766 = vmatprep.subr.mxu0 0.0
        %v5767 = vand.u32 %v5496, 4294901760
        %v5768 = vsub.f32 %v5496, %v5767
        %v5769 = vand.u32 %v5768, 4294901760
        %v5770 = vsub.f32 %v5768, %v5769
        %v5771 = vand.u32 %v5770, 4294901760
        %5772 = vmatpush1.msra.mxu0 %v5771
        %5773 = vmatprep.subr.mxu0 0.0
        %v5774 = vand.u32 %v5497, 4294901760
        %v5775 = vsub.f32 %v5497, %v5774
        %v5776 = vand.u32 %v5775, 4294901760
        %v5777 = vsub.f32 %v5775, %v5776
        %v5778 = vand.u32 %v5777, 4294901760
        %5779 = vmatpush1.msra.mxu0 %v5778
        %5780 = vmatprep.subr.mxu0 0.0
        %v5781 = vand.u32 %v5498, 4294901760
        %v5782 = vsub.f32 %v5498, %v5781
        %v5783 = vand.u32 %v5782, 4294901760
        %v5784 = vsub.f32 %v5782, %v5783
        %v5785 = vand.u32 %v5784, 4294901760
        %5786 = vmatpush1.msra.mxu0 %v5785
        %5787 = vmatprep.subr.mxu0 0.0
        %v5788 = vand.u32 %v5499, 4294901760
        %v5789 = vsub.f32 %v5499, %v5788
        %v5790 = vand.u32 %v5789, 4294901760
        %v5791 = vsub.f32 %v5789, %v5790
        %v5792 = vand.u32 %v5791, 4294901760
        %5793 = vmatpush1.msra.mxu0 %v5792
        %5794 = vmatprep.subr.mxu0 0.0
        %v5795 = vand.u32 %v5500, 4294901760
        %v5796 = vsub.f32 %v5500, %v5795
        %v5797 = vand.u32 %v5796, 4294901760
        %v5798 = vsub.f32 %v5796, %v5797
        %v5799 = vand.u32 %v5798, 4294901760
        %5800 = vmatpush1.msra.mxu0 %v5799
        %5801 = vmatprep.subr.mxu0 0.0
        %v5802 = vand.u32 %v5501, 4294901760
        %v5803 = vsub.f32 %v5501, %v5802
        %v5804 = vand.u32 %v5803, 4294901760
        %v5805 = vsub.f32 %v5803, %v5804
        %v5806 = vand.u32 %v5805, 4294901760
        %5807 = vmatpush1.msra.mxu0 %v5806
        %5808 = vmatprep.subr.mxu0 0.0
        %v5809 = vand.u32 %v5502, 4294901760
        %v5810 = vsub.f32 %v5502, %v5809
        %v5811 = vand.u32 %v5810, 4294901760
        %v5812 = vsub.f32 %v5810, %v5811
        %v5813 = vand.u32 %v5812, 4294901760
        %5814 = vmatpush1.msra.mxu0 %v5813
        %5815 = vmatprep.subr.mxu0 0.0
        %v5816 = vand.u32 %v5503, 4294901760
        %v5817 = vsub.f32 %v5503, %v5816
        %v5818 = vand.u32 %v5817, 4294901760
        %v5819 = vsub.f32 %v5817, %v5818
        %v5820 = vand.u32 %v5819, 4294901760
        %5821 = vmatpush1.msra.mxu0 %v5820
        %5822 = vmatprep.subr.mxu0 0.0
        %v5823 = vand.u32 %v5504, 4294901760
        %v5824 = vsub.f32 %v5504, %v5823
        %v5825 = vand.u32 %v5824, 4294901760
        %v5826 = vsub.f32 %v5824, %v5825
        %v5827 = vand.u32 %v5826, 4294901760
        %5828 = vmatpush1.msra.mxu0 %v5827
        %5829 = vmatprep.subr.mxu0 0.0
        %v5830 = vand.u32 %v5505, 4294901760
        %v5831 = vsub.f32 %v5505, %v5830
        %v5832 = vand.u32 %v5831, 4294901760
        %v5833 = vsub.f32 %v5831, %v5832
        %v5834 = vand.u32 %v5833, 4294901760
        %5835 = vmatpush1.msra.mxu0 %v5834
        %5836 = vmatprep.subr.mxu0 0.0
        %v5837 = vand.u32 %v5506, 4294901760
        %v5838 = vsub.f32 %v5506, %v5837
        %v5839 = vand.u32 %v5838, 4294901760
        %v5840 = vsub.f32 %v5838, %v5839
        %v5841 = vand.u32 %v5840, 4294901760
        %5842 = vmatpush1.msra.mxu0 %v5841
        %v5843 = vand.u32 %v5474, 4294901760
        %5844 = vmatprep.mubr.f32.mxu0 %v5843
        %v5845 = vand.u32 %v5473, 4294901760
        %5846 = vmatmul.mubr.f32.gmra.mrb[0].mxu0 %v5845
        %v5847 = vpop.f32.mrb[0].mxu0
        %v5848 = vadd.f32 %v5616, %v5847
        %v5849 = vpop.f32.mrb[0].mxu0
        %5850 = vdwg.mxu0
        %5851 = vmatprep.subr.mxu0 0.0
        %v5852 = vand.u32 %v5475, 4294901760
        %v5853 = vsub.f32 %v5475, %v5852
        %5854 = vmatpush1.msra.mxu0 %v5853
        %5855 = vmatprep.subr.mxu0 0.0
        %v5856 = vand.u32 %v5476, 4294901760
        %v5857 = vsub.f32 %v5476, %v5856
        %5858 = vmatpush1.msra.mxu0 %v5857
        %5859 = vmatprep.subr.mxu0 0.0
        %v5860 = vand.u32 %v5477, 4294901760
        %v5861 = vsub.f32 %v5477, %v5860
        %5862 = vmatpush1.msra.mxu0 %v5861
        %5863 = vmatprep.subr.mxu0 0.0
        %v5864 = vand.u32 %v5478, 4294901760
        %v5865 = vsub.f32 %v5478, %v5864
        %5866 = vmatpush1.msra.mxu0 %v5865
        %5867 = vmatprep.subr.mxu0 0.0
        %v5868 = vand.u32 %v5479, 4294901760
        %v5869 = vsub.f32 %v5479, %v5868
        %5870 = vmatpush1.msra.mxu0 %v5869
        %5871 = vmatprep.subr.mxu0 0.0
        %v5872 = vand.u32 %v5480, 4294901760
        %v5873 = vsub.f32 %v5480, %v5872
        %5874 = vmatpush1.msra.mxu0 %v5873
        %5875 = vmatprep.subr.mxu0 0.0
        %v5876 = vand.u32 %v5481, 4294901760
        %v5877 = vsub.f32 %v5481, %v5876
        %5878 = vmatpush1.msra.mxu0 %v5877
        %5879 = vmatprep.subr.mxu0 0.0
        %v5880 = vand.u32 %v5482, 4294901760
        %v5881 = vsub.f32 %v5482, %v5880
        %5882 = vmatpush1.msra.mxu0 %v5881
        %5883 = vmatprep.subr.mxu0 0.0
        %v5884 = vand.u32 %v5483, 4294901760
        %v5885 = vsub.f32 %v5483, %v5884
        %5886 = vmatpush1.msra.mxu0 %v5885
        %5887 = vmatprep.subr.mxu0 0.0
        %v5888 = vand.u32 %v5484, 4294901760
        %v5889 = vsub.f32 %v5484, %v5888
        %5890 = vmatpush1.msra.mxu0 %v5889
        %5891 = vmatprep.subr.mxu0 0.0
        %v5892 = vand.u32 %v5485, 4294901760
        %v5893 = vsub.f32 %v5485, %v5892
        %5894 = vmatpush1.msra.mxu0 %v5893
        %5895 = vmatprep.subr.mxu0 0.0
        %v5896 = vand.u32 %v5486, 4294901760
        %v5897 = vsub.f32 %v5486, %v5896
        %5898 = vmatpush1.msra.mxu0 %v5897
        %5899 = vmatprep.subr.mxu0 0.0
        %v5900 = vand.u32 %v5487, 4294901760
        %v5901 = vsub.f32 %v5487, %v5900
        %5902 = vmatpush1.msra.mxu0 %v5901
        %5903 = vmatprep.subr.mxu0 0.0
        %v5904 = vand.u32 %v5488, 4294901760
        %v5905 = vsub.f32 %v5488, %v5904
        %5906 = vmatpush1.msra.mxu0 %v5905
        %5907 = vmatprep.subr.mxu0 0.0
        %v5908 = vand.u32 %v5489, 4294901760
        %v5909 = vsub.f32 %v5489, %v5908
        %5910 = vmatpush1.msra.mxu0 %v5909
        %5911 = vmatprep.subr.mxu0 0.0
        %v5912 = vand.u32 %v5490, 4294901760
        %v5913 = vsub.f32 %v5490, %v5912
        %5914 = vmatpush1.msra.mxu0 %v5913
        %5915 = vmatprep.subr.mxu0 0.0
        %v5916 = vand.u32 %v5491, 4294901760
        %v5917 = vsub.f32 %v5491, %v5916
        %5918 = vmatpush1.msra.mxu0 %v5917
        %5919 = vmatprep.subr.mxu0 0.0
        %v5920 = vand.u32 %v5492, 4294901760
        %v5921 = vsub.f32 %v5492, %v5920
        %5922 = vmatpush1.msra.mxu0 %v5921
        %5923 = vmatprep.subr.mxu0 0.0
        %v5924 = vand.u32 %v5493, 4294901760
        %v5925 = vsub.f32 %v5493, %v5924
        %5926 = vmatpush1.msra.mxu0 %v5925
        %5927 = vmatprep.subr.mxu0 0.0
        %v5928 = vand.u32 %v5494, 4294901760
        %v5929 = vsub.f32 %v5494, %v5928
        %5930 = vmatpush1.msra.mxu0 %v5929
        %5931 = vmatprep.subr.mxu0 0.0
        %v5932 = vand.u32 %v5495, 4294901760
        %v5933 = vsub.f32 %v5495, %v5932
        %5934 = vmatpush1.msra.mxu0 %v5933
        %5935 = vmatprep.subr.mxu0 0.0
        %v5936 = vand.u32 %v5496, 4294901760
        %v5937 = vsub.f32 %v5496, %v5936
        %5938 = vmatpush1.msra.mxu0 %v5937
        %5939 = vmatprep.subr.mxu0 0.0
        %v5940 = vand.u32 %v5497, 4294901760
        %v5941 = vsub.f32 %v5497, %v5940
        %5942 = vmatpush1.msra.mxu0 %v5941
        %5943 = vmatprep.subr.mxu0 0.0
        %v5944 = vand.u32 %v5498, 4294901760
        %v5945 = vsub.f32 %v5498, %v5944
        %5946 = vmatpush1.msra.mxu0 %v5945
        %5947 = vmatprep.subr.mxu0 0.0
        %v5948 = vand.u32 %v5499, 4294901760
        %v5949 = vsub.f32 %v5499, %v5948
        %5950 = vmatpush1.msra.mxu0 %v5949
        %5951 = vmatprep.subr.mxu0 0.0
        %v5952 = vand.u32 %v5500, 4294901760
        %v5953 = vsub.f32 %v5500, %v5952
        %5954 = vmatpush1.msra.mxu0 %v5953
        %5955 = vmatprep.subr.mxu0 0.0
        %v5956 = vand.u32 %v5501, 4294901760
        %v5957 = vsub.f32 %v5501, %v5956
        %5958 = vmatpush1.msra.mxu0 %v5957
        %5959 = vmatprep.subr.mxu0 0.0
        %v5960 = vand.u32 %v5502, 4294901760
        %v5961 = vsub.f32 %v5502, %v5960
        %5962 = vmatpush1.msra.mxu0 %v5961
        %5963 = vmatprep.subr.mxu0 0.0
        %v5964 = vand.u32 %v5503, 4294901760
        %v5965 = vsub.f32 %v5503, %v5964
        %5966 = vmatpush1.msra.mxu0 %v5965
        %5967 = vmatprep.subr.mxu0 0.0
        %v5968 = vand.u32 %v5504, 4294901760
        %v5969 = vsub.f32 %v5504, %v5968
        %5970 = vmatpush1.msra.mxu0 %v5969
        %5971 = vmatprep.subr.mxu0 0.0
        %v5972 = vand.u32 %v5505, 4294901760
        %v5973 = vsub.f32 %v5505, %v5972
        %5974 = vmatpush1.msra.mxu0 %v5973
        %5975 = vmatprep.subr.mxu0 0.0
        %v5976 = vand.u32 %v5506, 4294901760
        %v5977 = vsub.f32 %v5506, %v5976
        %5978 = vmatpush1.msra.mxu0 %v5977
        %v5979 = vand.u32 %v5474, 4294901760
        %v5980 = vsub.f32 %v5474, %v5979
        %5981 = vmatprep.mubr.f32.mxu0 %v5980
        %v5982 = vand.u32 %v5473, 4294901760
        %v5983 = vsub.f32 %v5473, %v5982
        %5984 = vmatmul.mubr.f32.gmra.mrb[0].mxu0 %v5983
        %v5985 = vpop.f32.mrb[0].mxu0
        %v5986 = vadd.f32 %v5848, %v5985
        %v5987 = vpop.f32.mrb[0].mxu0
        %5988 = vdwg.mxu0
        %5989 = vmatprep.subr.mxu0 0.0
        %v5990 = vand.u32 %v5475, 4294901760
        %5991 = vmatpush1.msra.mxu0 %v5990
        %5992 = vmatprep.subr.mxu0 0.0
        %v5993 = vand.u32 %v5476, 4294901760
        %5994 = vmatpush1.msra.mxu0 %v5993
        %5995 = vmatprep.subr.mxu0 0.0
        %v5996 = vand.u32 %v5477, 4294901760
        %5997 = vmatpush1.msra.mxu0 %v5996
        %5998 = vmatprep.subr.mxu0 0.0
        %v5999 = vand.u32 %v5478, 4294901760
        %6000 = vmatpush1.msra.mxu0 %v5999
        %6001 = vmatprep.subr.mxu0 0.0
        %v6002 = vand.u32 %v5479, 4294901760
        %6003 = vmatpush1.msra.mxu0 %v6002
        %6004 = vmatprep.subr.mxu0 0.0
        %v6005 = vand.u32 %v5480, 4294901760
        %6006 = vmatpush1.msra.mxu0 %v6005
        %6007 = vmatprep.subr.mxu0 0.0
        %v6008 = vand.u32 %v5481, 4294901760
        %6009 = vmatpush1.msra.mxu0 %v6008
        %6010 = vmatprep.subr.mxu0 0.0
        %v6011 = vand.u32 %v5482, 4294901760
        %6012 = vmatpush1.msra.mxu0 %v6011
        %6013 = vmatprep.subr.mxu0 0.0
        %v6014 = vand.u32 %v5483, 4294901760
        %6015 = vmatpush1.msra.mxu0 %v6014
        %6016 = vmatprep.subr.mxu0 0.0
        %v6017 = vand.u32 %v5484, 4294901760
        %6018 = vmatpush1.msra.mxu0 %v6017
        %6019 = vmatprep.subr.mxu0 0.0
        %v6020 = vand.u32 %v5485, 4294901760
        %6021 = vmatpush1.msra.mxu0 %v6020
        %6022 = vmatprep.subr.mxu0 0.0
        %v6023 = vand.u32 %v5486, 4294901760
        %6024 = vmatpush1.msra.mxu0 %v6023
        %6025 = vmatprep.subr.mxu0 0.0
        %v6026 = vand.u32 %v5487, 4294901760
        %6027 = vmatpush1.msra.mxu0 %v6026
        %6028 = vmatprep.subr.mxu0 0.0
        %v6029 = vand.u32 %v5488, 4294901760
        %6030 = vmatpush1.msra.mxu0 %v6029
        %6031 = vmatprep.subr.mxu0 0.0
        %v6032 = vand.u32 %v5489, 4294901760
        %6033 = vmatpush1.msra.mxu0 %v6032
        %6034 = vmatprep.subr.mxu0 0.0
        %v6035 = vand.u32 %v5490, 4294901760
        %6036 = vmatpush1.msra.mxu0 %v6035
        %6037 = vmatprep.subr.mxu0 0.0
        %v6038 = vand.u32 %v5491, 4294901760
        %6039 = vmatpush1.msra.mxu0 %v6038
        %6040 = vmatprep.subr.mxu0 0.0
        %v6041 = vand.u32 %v5492, 4294901760
        %6042 = vmatpush1.msra.mxu0 %v6041
        %6043 = vmatprep.subr.mxu0 0.0
        %v6044 = vand.u32 %v5493, 4294901760
        %6045 = vmatpush1.msra.mxu0 %v6044
        %6046 = vmatprep.subr.mxu0 0.0
        %v6047 = vand.u32 %v5494, 4294901760
        %6048 = vmatpush1.msra.mxu0 %v6047
        %6049 = vmatprep.subr.mxu0 0.0
        %v6050 = vand.u32 %v5495, 4294901760
        %6051 = vmatpush1.msra.mxu0 %v6050
        %6052 = vmatprep.subr.mxu0 0.0
        %v6053 = vand.u32 %v5496, 4294901760
        %6054 = vmatpush1.msra.mxu0 %v6053
        %6055 = vmatprep.subr.mxu0 0.0
        %v6056 = vand.u32 %v5497, 4294901760
        %6057 = vmatpush1.msra.mxu0 %v6056
        %6058 = vmatprep.subr.mxu0 0.0
        %v6059 = vand.u32 %v5498, 4294901760
        %6060 = vmatpush1.msra.mxu0 %v6059
        %6061 = vmatprep.subr.mxu0 0.0
        %v6062 = vand.u32 %v5499, 4294901760
        %6063 = vmatpush1.msra.mxu0 %v6062
        %6064 = vmatprep.subr.mxu0 0.0
        %v6065 = vand.u32 %v5500, 4294901760
        %6066 = vmatpush1.msra.mxu0 %v6065
        %6067 = vmatprep.subr.mxu0 0.0
        %v6068 = vand.u32 %v5501, 4294901760
        %6069 = vmatpush1.msra.mxu0 %v6068
        %6070 = vmatprep.subr.mxu0 0.0
        %v6071 = vand.u32 %v5502, 4294901760
        %6072 = vmatpush1.msra.mxu0 %v6071
        %6073 = vmatprep.subr.mxu0 0.0
        %v6074 = vand.u32 %v5503, 4294901760
        %6075 = vmatpush1.msra.mxu0 %v6074
        %6076 = vmatprep.subr.mxu0 0.0
        %v6077 = vand.u32 %v5504, 4294901760
        %6078 = vmatpush1.msra.mxu0 %v6077
        %6079 = vmatprep.subr.mxu0 0.0
        %v6080 = vand.u32 %v5505, 4294901760
        %6081 = vmatpush1.msra.mxu0 %v6080
        %6082 = vmatprep.subr.mxu0 0.0
        %v6083 = vand.u32 %v5506, 4294901760
        %6084 = vmatpush1.msra.mxu0 %v6083
        %v6085 = vand.u32 %v5474, 4294901760
        %v6086 = vsub.f32 %v5474, %v6085
        %v6087 = vand.u32 %v6086, 4294901760
        %6088 = vmatprep.mubr.f32.mxu0 %v6087
        %v6089 = vand.u32 %v5473, 4294901760
        %v6090 = vsub.f32 %v5473, %v6089
        %v6091 = vand.u32 %v6090, 4294901760
        %6092 = vmatmul.mubr.f32.gmra.mrb[0].mxu0 %v6091
        %v6093 = vpop.f32.mrb[0].mxu0
        %v6094 = vadd.f32 %v5986, %v6093
        %v6095 = vpop.f32.mrb[0].mxu0
        %6096 = vdwg.mxu0
        %6097 = vmatprep.subr.mxu0 0.0
        %v6098 = vand.u32 %v5475, 4294901760
        %v6099 = vsub.f32 %v5475, %v6098
        %v6100 = vand.u32 %v6099, 4294901760
        %6101 = vmatpush1.msra.mxu0 %v6100
        %6102 = vmatprep.subr.mxu0 0.0
        %v6103 = vand.u32 %v5476, 4294901760
        %v6104 = vsub.f32 %v5476, %v6103
        %v6105 = vand.u32 %v6104, 4294901760
        %6106 = vmatpush1.msra.mxu0 %v6105
        %6107 = vmatprep.subr.mxu0 0.0
        %v6108 = vand.u32 %v5477, 4294901760
        %v6109 = vsub.f32 %v5477, %v6108
        %v6110 = vand.u32 %v6109, 4294901760
        %6111 = vmatpush1.msra.mxu0 %v6110
        %6112 = vmatprep.subr.mxu0 0.0
        %v6113 = vand.u32 %v5478, 4294901760
        %v6114 = vsub.f32 %v5478, %v6113
        %v6115 = vand.u32 %v6114, 4294901760
        %6116 = vmatpush1.msra.mxu0 %v6115
        %6117 = vmatprep.subr.mxu0 0.0
        %v6118 = vand.u32 %v5479, 4294901760
        %v6119 = vsub.f32 %v5479, %v6118
        %v6120 = vand.u32 %v6119, 4294901760
        %6121 = vmatpush1.msra.mxu0 %v6120
        %6122 = vmatprep.subr.mxu0 0.0
        %v6123 = vand.u32 %v5480, 4294901760
        %v6124 = vsub.f32 %v5480, %v6123
        %v6125 = vand.u32 %v6124, 4294901760
        %6126 = vmatpush1.msra.mxu0 %v6125
        %6127 = vmatprep.subr.mxu0 0.0
        %v6128 = vand.u32 %v5481, 4294901760
        %v6129 = vsub.f32 %v5481, %v6128
        %v6130 = vand.u32 %v6129, 4294901760
        %6131 = vmatpush1.msra.mxu0 %v6130
        %6132 = vmatprep.subr.mxu0 0.0
        %v6133 = vand.u32 %v5482, 4294901760
        %v6134 = vsub.f32 %v5482, %v6133
        %v6135 = vand.u32 %v6134, 4294901760
        %6136 = vmatpush1.msra.mxu0 %v6135
        %6137 = vmatprep.subr.mxu0 0.0
        %v6138 = vand.u32 %v5483, 4294901760
        %v6139 = vsub.f32 %v5483, %v6138
        %v6140 = vand.u32 %v6139, 4294901760
        %6141 = vmatpush1.msra.mxu0 %v6140
        %6142 = vmatprep.subr.mxu0 0.0
        %v6143 = vand.u32 %v5484, 4294901760
        %v6144 = vsub.f32 %v5484, %v6143
        %v6145 = vand.u32 %v6144, 4294901760
        %6146 = vmatpush1.msra.mxu0 %v6145
        %6147 = vmatprep.subr.mxu0 0.0
        %v6148 = vand.u32 %v5485, 4294901760
        %v6149 = vsub.f32 %v5485, %v6148
        %v6150 = vand.u32 %v6149, 4294901760
        %6151 = vmatpush1.msra.mxu0 %v6150
        %6152 = vmatprep.subr.mxu0 0.0
        %v6153 = vand.u32 %v5486, 4294901760
        %v6154 = vsub.f32 %v5486, %v6153
        %v6155 = vand.u32 %v6154, 4294901760
        %6156 = vmatpush1.msra.mxu0 %v6155
        %6157 = vmatprep.subr.mxu0 0.0
        %v6158 = vand.u32 %v5487, 4294901760
        %v6159 = vsub.f32 %v5487, %v6158
        %v6160 = vand.u32 %v6159, 4294901760
        %6161 = vmatpush1.msra.mxu0 %v6160
        %6162 = vmatprep.subr.mxu0 0.0
        %v6163 = vand.u32 %v5488, 4294901760
        %v6164 = vsub.f32 %v5488, %v6163
        %v6165 = vand.u32 %v6164, 4294901760
        %6166 = vmatpush1.msra.mxu0 %v6165
        %6167 = vmatprep.subr.mxu0 0.0
        %v6168 = vand.u32 %v5489, 4294901760
        %v6169 = vsub.f32 %v5489, %v6168
        %v6170 = vand.u32 %v6169, 4294901760
        %6171 = vmatpush1.msra.mxu0 %v6170
        %6172 = vmatprep.subr.mxu0 0.0
        %v6173 = vand.u32 %v5490, 4294901760
        %v6174 = vsub.f32 %v5490, %v6173
        %v6175 = vand.u32 %v6174, 4294901760
        %6176 = vmatpush1.msra.mxu0 %v6175
        %6177 = vmatprep.subr.mxu0 0.0
        %v6178 = vand.u32 %v5491, 4294901760
        %v6179 = vsub.f32 %v5491, %v6178
        %v6180 = vand.u32 %v6179, 4294901760
        %6181 = vmatpush1.msra.mxu0 %v6180
        %6182 = vmatprep.subr.mxu0 0.0
        %v6183 = vand.u32 %v5492, 4294901760
        %v6184 = vsub.f32 %v5492, %v6183
        %v6185 = vand.u32 %v6184, 4294901760
        %6186 = vmatpush1.msra.mxu0 %v6185
        %6187 = vmatprep.subr.mxu0 0.0
        %v6188 = vand.u32 %v5493, 4294901760
        %v6189 = vsub.f32 %v5493, %v6188
        %v6190 = vand.u32 %v6189, 4294901760
        %6191 = vmatpush1.msra.mxu0 %v6190
        %6192 = vmatprep.subr.mxu0 0.0
        %v6193 = vand.u32 %v5494, 4294901760
        %v6194 = vsub.f32 %v5494, %v6193
        %v6195 = vand.u32 %v6194, 4294901760
        %6196 = vmatpush1.msra.mxu0 %v6195
        %6197 = vmatprep.subr.mxu0 0.0
        %v6198 = vand.u32 %v5495, 4294901760
        %v6199 = vsub.f32 %v5495, %v6198
        %v6200 = vand.u32 %v6199, 4294901760
        %6201 = vmatpush1.msra.mxu0 %v6200
        %6202 = vmatprep.subr.mxu0 0.0
        %v6203 = vand.u32 %v5496, 4294901760
        %v6204 = vsub.f32 %v5496, %v6203
        %v6205 = vand.u32 %v6204, 4294901760
        %6206 = vmatpush1.msra.mxu0 %v6205
        %6207 = vmatprep.subr.mxu0 0.0
        %v6208 = vand.u32 %v5497, 4294901760
        %v6209 = vsub.f32 %v5497, %v6208
        %v6210 = vand.u32 %v6209, 4294901760
        %6211 = vmatpush1.msra.mxu0 %v6210
        %6212 = vmatprep.subr.mxu0 0.0
        %v6213 = vand.u32 %v5498, 4294901760
        %v6214 = vsub.f32 %v5498, %v6213
        %v6215 = vand.u32 %v6214, 4294901760
        %6216 = vmatpush1.msra.mxu0 %v6215
        %6217 = vmatprep.subr.mxu0 0.0
        %v6218 = vand.u32 %v5499, 4294901760
        %v6219 = vsub.f32 %v5499, %v6218
        %v6220 = vand.u32 %v6219, 4294901760
        %6221 = vmatpush1.msra.mxu0 %v6220
        %6222 = vmatprep.subr.mxu0 0.0
        %v6223 = vand.u32 %v5500, 4294901760
        %v6224 = vsub.f32 %v5500, %v6223
        %v6225 = vand.u32 %v6224, 4294901760
        %6226 = vmatpush1.msra.mxu0 %v6225
        %6227 = vmatprep.subr.mxu0 0.0
        %v6228 = vand.u32 %v5501, 4294901760
        %v6229 = vsub.f32 %v5501, %v6228
        %v6230 = vand.u32 %v6229, 4294901760
        %6231 = vmatpush1.msra.mxu0 %v6230
        %6232 = vmatprep.subr.mxu0 0.0
        %v6233 = vand.u32 %v5502, 4294901760
        %v6234 = vsub.f32 %v5502, %v6233
        %v6235 = vand.u32 %v6234, 4294901760
        %6236 = vmatpush1.msra.mxu0 %v6235
        %6237 = vmatprep.subr.mxu0 0.0
        %v6238 = vand.u32 %v5503, 4294901760
        %v6239 = vsub.f32 %v5503, %v6238
        %v6240 = vand.u32 %v6239, 4294901760
        %6241 = vmatpush1.msra.mxu0 %v6240
        %6242 = vmatprep.subr.mxu0 0.0
        %v6243 = vand.u32 %v5504, 4294901760
        %v6244 = vsub.f32 %v5504, %v6243
        %v6245 = vand.u32 %v6244, 4294901760
        %6246 = vmatpush1.msra.mxu0 %v6245
        %6247 = vmatprep.subr.mxu0 0.0
        %v6248 = vand.u32 %v5505, 4294901760
        %v6249 = vsub.f32 %v5505, %v6248
        %v6250 = vand.u32 %v6249, 4294901760
        %6251 = vmatpush1.msra.mxu0 %v6250
        %6252 = vmatprep.subr.mxu0 0.0
        %v6253 = vand.u32 %v5506, 4294901760
        %v6254 = vsub.f32 %v5506, %v6253
        %v6255 = vand.u32 %v6254, 4294901760
        %6256 = vmatpush1.msra.mxu0 %v6255
        %v6257 = vand.u32 %v5474, 4294901760
        %6258 = vmatprep.mubr.f32.mxu0 %v6257
        %v6259 = vand.u32 %v5473, 4294901760
        %6260 = vmatmul.mubr.f32.gmra.mrb[0].mxu0 %v6259
        %v6261 = vpop.f32.mrb[0].mxu0
        %v6262 = vadd.f32 %v6094, %v6261
        %v6263 = vpop.f32.mrb[0].mxu0
        %6264 = vdwg.mxu0
        %6265 = vmatprep.subr.mxu0 0.0
        %v6266 = vand.u32 %v5475, 4294901760
        %6267 = vmatpush1.msra.mxu0 %v6266
        %6268 = vmatprep.subr.mxu0 0.0
        %v6269 = vand.u32 %v5476, 4294901760
        %6270 = vmatpush1.msra.mxu0 %v6269
        %6271 = vmatprep.subr.mxu0 0.0
        %v6272 = vand.u32 %v5477, 4294901760
        %6273 = vmatpush1.msra.mxu0 %v6272
        %6274 = vmatprep.subr.mxu0 0.0
        %v6275 = vand.u32 %v5478, 4294901760
        %6276 = vmatpush1.msra.mxu0 %v6275
        %6277 = vmatprep.subr.mxu0 0.0
        %v6278 = vand.u32 %v5479, 4294901760
        %6279 = vmatpush1.msra.mxu0 %v6278
        %6280 = vmatprep.subr.mxu0 0.0
        %v6281 = vand.u32 %v5480, 4294901760
        %6282 = vmatpush1.msra.mxu0 %v6281
        %6283 = vmatprep.subr.mxu0 0.0
        %v6284 = vand.u32 %v5481, 4294901760
        %6285 = vmatpush1.msra.mxu0 %v6284
        %6286 = vmatprep.subr.mxu0 0.0
        %v6287 = vand.u32 %v5482, 4294901760
        %6288 = vmatpush1.msra.mxu0 %v6287
        %6289 = vmatprep.subr.mxu0 0.0
        %v6290 = vand.u32 %v5483, 4294901760
        %6291 = vmatpush1.msra.mxu0 %v6290
        %6292 = vmatprep.subr.mxu0 0.0
        %v6293 = vand.u32 %v5484, 4294901760
        %6294 = vmatpush1.msra.mxu0 %v6293
        %6295 = vmatprep.subr.mxu0 0.0
        %v6296 = vand.u32 %v5485, 4294901760
        %6297 = vmatpush1.msra.mxu0 %v6296
        %6298 = vmatprep.subr.mxu0 0.0
        %v6299 = vand.u32 %v5486, 4294901760
        %6300 = vmatpush1.msra.mxu0 %v6299
        %6301 = vmatprep.subr.mxu0 0.0
        %v6302 = vand.u32 %v5487, 4294901760
        %6303 = vmatpush1.msra.mxu0 %v6302
        %6304 = vmatprep.subr.mxu0 0.0
        %v6305 = vand.u32 %v5488, 4294901760
        %6306 = vmatpush1.msra.mxu0 %v6305
        %6307 = vmatprep.subr.mxu0 0.0
        %v6308 = vand.u32 %v5489, 4294901760
        %6309 = vmatpush1.msra.mxu0 %v6308
        %6310 = vmatprep.subr.mxu0 0.0
        %v6311 = vand.u32 %v5490, 4294901760
        %6312 = vmatpush1.msra.mxu0 %v6311
        %6313 = vmatprep.subr.mxu0 0.0
        %v6314 = vand.u32 %v5491, 4294901760
        %6315 = vmatpush1.msra.mxu0 %v6314
        %6316 = vmatprep.subr.mxu0 0.0
        %v6317 = vand.u32 %v5492, 4294901760
        %6318 = vmatpush1.msra.mxu0 %v6317
        %6319 = vmatprep.subr.mxu0 0.0
        %v6320 = vand.u32 %v5493, 4294901760
        %6321 = vmatpush1.msra.mxu0 %v6320
        %6322 = vmatprep.subr.mxu0 0.0
        %v6323 = vand.u32 %v5494, 4294901760
        %6324 = vmatpush1.msra.mxu0 %v6323
        %6325 = vmatprep.subr.mxu0 0.0
        %v6326 = vand.u32 %v5495, 4294901760
        %6327 = vmatpush1.msra.mxu0 %v6326
        %6328 = vmatprep.subr.mxu0 0.0
        %v6329 = vand.u32 %v5496, 4294901760
        %6330 = vmatpush1.msra.mxu0 %v6329
        %6331 = vmatprep.subr.mxu0 0.0
        %v6332 = vand.u32 %v5497, 4294901760
        %6333 = vmatpush1.msra.mxu0 %v6332
        %6334 = vmatprep.subr.mxu0 0.0
        %v6335 = vand.u32 %v5498, 4294901760
        %6336 = vmatpush1.msra.mxu0 %v6335
        %6337 = vmatprep.subr.mxu0 0.0
        %v6338 = vand.u32 %v5499, 4294901760
        %6339 = vmatpush1.msra.mxu0 %v6338
        %6340 = vmatprep.subr.mxu0 0.0
        %v6341 = vand.u32 %v5500, 4294901760
        %6342 = vmatpush1.msra.mxu0 %v6341
        %6343 = vmatprep.subr.mxu0 0.0
        %v6344 = vand.u32 %v5501, 4294901760
        %6345 = vmatpush1.msra.mxu0 %v6344
        %6346 = vmatprep.subr.mxu0 0.0
        %v6347 = vand.u32 %v5502, 4294901760
        %6348 = vmatpush1.msra.mxu0 %v6347
        %6349 = vmatprep.subr.mxu0 0.0
        %v6350 = vand.u32 %v5503, 4294901760
        %6351 = vmatpush1.msra.mxu0 %v6350
        %6352 = vmatprep.subr.mxu0 0.0
        %v6353 = vand.u32 %v5504, 4294901760
        %6354 = vmatpush1.msra.mxu0 %v6353
        %6355 = vmatprep.subr.mxu0 0.0
        %v6356 = vand.u32 %v5505, 4294901760
        %6357 = vmatpush1.msra.mxu0 %v6356
        %6358 = vmatprep.subr.mxu0 0.0
        %v6359 = vand.u32 %v5506, 4294901760
        %6360 = vmatpush1.msra.mxu0 %v6359
        %v6361 = vand.u32 %v5474, 4294901760
        %6362 = vmatprep.mubr.f32.mxu0 %v6361
        %v6363 = vand.u32 %v5473, 4294901760
        %6364 = vmatmul.mubr.f32.gmra.mrb[0].mxu0 %v6363
        %v6365 = vpop.f32.mrb[0].mxu0
        %v6366 = vadd.f32 %v6262, %v6365
        %v6367 = vpop.f32.mrb[0].mxu0
        %6368 = vdwg.mxu0
        %vm6369 = vcmask 11264
        %6370 = vst.msk [vmem:[%s692] sm:$0xf] %vm6369, %v6366
        %s6371 = sand.u32 %s491, 1
        %s6372 = scalar_lea.sflag [#allocation3], %s6371
        %s6373 = sand.u32 %s491, 1
        %s6374 = smul.addr %s6373, 8
        %s6375 = scalar_lea.vmem [#allocation2], %s6374
        %p6376 = scmp.lt.s32.totalorder %s37, 1
        %s6377 = scalar_select %p6376, %s37, 1
        %s6378 = smul.addr %s6377, 4
        %s6379 = scalar_lea.vmem %s22, %s6378
        // Predicated region
        $region105: #{tpu_custom_call.1} parent=103 // pred_check
          %p6380 = pneg %p501
        $region106: #{tpu_custom_call.1} parent=103 // pred_check_branch
          %6382 = sbr.rel (%p6380) target = $region108
        $region107: #{tpu_custom_call.1} parent=103 // pred_region
          %s6384 = ssub.s32 128, 128
          %6385 = vsyncadd %s6372, %s6384
          %s6386 = smul.addr %s37, 2
          %s6387 = smul.addr %s6386, 64
          %s6388 = scalar_lea.hbm %s21, %s6387
          %s6390 = sshll.u32 %s6375, 4
          %s6391 = int_to_ptr.vmem [resolvable:$true] %s6390
          %6393 = dma.vmem_to_hbm [thread:$0]  %s6391, 128, %s6388, %s6372
        $region108: #{tpu_custom_call.1} parent=103 // pred_fallthru
          _
        // Predicated region
        $region109: #{tpu_custom_call.1} parent=103 // pred_check
          %p6394 = pneg %p527
        $region110: #{tpu_custom_call.1} parent=103 // pred_check_branch
          %6396 = sbr.rel (%p6394) target = $region112
        $region111: #{tpu_custom_call.1} parent=103 // pred_region
          _
        $region112: #{tpu_custom_call.1} parent=103 // pred_fallthru
          _
      $region104: #{tpu_custom_call.1} parent=5 // pred_fallthru
        _
      %p6397 = scmp.le.s32.totalorder 2, %s32
      // Predicated region
      $region113: #{tpu_custom_call.1} parent=5 // pred_check
        %p6398 = pneg %p6397
      $region114: #{tpu_custom_call.1} parent=5 // pred_check_branch
        %6400 = sbr.rel (%p6398) target = $region116
      $region115: #{tpu_custom_call.1} parent=5 // pred_region
        %s6401 = ssub.s32 %s32, 2
        // Predicated region
        $region117: #{tpu_custom_call.1} parent=115 // pred_check
          %p6402 = pneg %p507
        $region118: #{tpu_custom_call.1} parent=115 // pred_check_branch
          %6404 = sbr.rel (%p6402) target = $region120
        $region119: #{tpu_custom_call.1} parent=115 // pred_region
          %s6405 = sand.u32 %s492, 1
          %s6406 = scalar_lea.sflag [#allocation3], %s6405
          %s6407 = sand.u32 %s492, 1
          %s6408 = smul.addr %s6407, 8
          %s6409 = scalar_lea.vmem [#allocation2], %s6408
          %6410 = dma.done %s6406, 128
        $region120: #{tpu_custom_call.1} parent=115 // pred_fallthru
          _
        // Predicated region
        $region121: #{tpu_custom_call.1} parent=115 // pred_check
          %p6411 = pneg %p533
        $region122: #{tpu_custom_call.1} parent=115 // pred_check_branch
          %6413 = sbr.rel (%p6411) target = $region124
        $region123: #{tpu_custom_call.1} parent=115 // pred_region
          %p6414 = scmp.lt.s32.totalorder %s38, 1
          %s6415 = scalar_select %p6414, %s38, 1
          %s6416 = smul.addr %s6415, 4
          %s6417 = scalar_lea.vmem %s22, %s6416
        $region124: #{tpu_custom_call.1} parent=115 // pred_fallthru
          _
      $region116: #{tpu_custom_call.1} parent=5 // pred_fallthru
        _
    $region6: #{tpu_custom_call.1} parent=1 // loop_footer
      %s36 = sadd.s32 1, %s32
    $region7: #{tpu_custom_call.1} parent=1 // loop_footer_branch
      %31 = sbr.rel target = $region3
    $region8: #{tpu_custom_call.1} parent=1 // loop_exit
      _
    %6418 = vsyncpa [#allocation3], 1
    %s6419 = scalar_lea.sflag [#allocation3], 1
    %6420 = vsyncpa %s6419, 1

</llo_original>
